<compile_context>
chip_gen: v6e
topology: v6e:2x2x1
jax: 0.10.0
libtpu: 0.0.40
codegen_flags: <defaults>
</compile_context>

<pallas_src>
import jax
import jax.numpy as jnp
from jax.experimental import pallas as pl
from jax.experimental.pallas import tpu as pltpu

H = 512          # per-head GAT output channels
NEG_SLOPE = 0.2  # GATConv default LeakyReLU slope


def encoder_kernel(
    x_ref,       # (M, 512)    bf16 node features for this tile of graphs
    mask_ref,    # (1, M, M)   f32  additive attention mask (0 on edges, -1e30 off)
    agcn_ref,    # (1, M, M)   bf16 block-diag D^-1/2 (A+I) D^-1/2
    wgat_ref,    # (512, 1024) bf16 shared GAT linear (both heads), pre-transposed
    bgat_ref,    # (1, 1024)   f32  GAT bias (concat heads)
    att_ref,     # (1024, 128) bf16 [src_h0 | src_h1 | dst_h0 | dst_h1 | 0...] columns
    wgcn_ref,    # (1024, 512) bf16 GCN weight, pre-transposed
    bgcn_ref,    # (1, 512)    f32
    wa_ref,      # (512, 128)  bf16 densea weight^T
    ba_ref,      # (1, 128)    f32
    wl_ref,      # (128, 128)  bf16 dense_latent weight^T, zero-padded 64->128
    bl_ref,      # (1, 128)    f32  zero-padded
    out_ref,     # (M, 128)    f32  latent (only [:, :64] is meaningful)
):
    x = x_ref[...]                 # bf16
    mask_bias = mask_ref[0]        # (M, M) f32 additive mask

    # ---- GATConv(512, 512, heads=2, concat=True) ----------------------------
    # Shared linear transform for both heads in one MXU matmul.
    xh = jnp.dot(x, wgat_ref[...], preferred_element_type=jnp.float32)   # (M,1024) f32
    xh_b = xh.astype(jnp.bfloat16)                                       # cast once, reuse

    # Per-node attention scores via one small MXU matmul:
    #   col0 = <xh_h0, att_src_h0>, col1 = <xh_h1, att_src_h1>,
    #   col2 = <xh_h0, att_dst_h0>, col3 = <xh_h1, att_dst_h1>
    scores = jnp.dot(xh_b, att_ref[...], preferred_element_type=jnp.float32)  # (M,128)
    a_src0 = scores[:, 0:1]
    a_src1 = scores[:, 1:2]
    a_dst0 = scores[:, 2:3]
    a_dst1 = scores[:, 3:4]

    def head_aggregate(a_src, a_dst, xh_head_b):
        # e[i, j] = LeakyReLU(a_dst[i] + a_src[j]); softmax over neighbors j of i.
        e = a_dst + a_src.T                           # (M, M) f32
        e = jnp.where(e > 0.0, e, NEG_SLOPE * e)      # LeakyReLU(0.2)
        e = e + mask_bias                             # additive mask (no cmp+select)
        e = e - jnp.max(e, axis=-1, keepdims=True)
        p = jnp.exp(e)
        p = p / jnp.sum(p, axis=-1, keepdims=True)    # exact divide for parity
        return jnp.dot(p.astype(jnp.bfloat16), xh_head_b,
                       preferred_element_type=jnp.float32)   # (M, 512) f32

    h0 = head_aggregate(a_src0, a_dst0, xh_b[:, :H])
    h1 = head_aggregate(a_src1, a_dst1, xh_b[:, H:])

    # relu(concat(h0,h1)+b) @ Wgcn == relu(h0+b0)@Wgcn[:512] + relu(h1+b1)@Wgcn[512:]
    # (removes the (M,1024) f32 concat copy).
    h0 = jnp.maximum(h0 + bgat_ref[:, :H], 0.0)
    h1 = jnp.maximum(h1 + bgat_ref[:, H:], 0.0)
    # TODO(synk): Dropout(p=0.3) skipped — identity at inference (eval mode).

    # ---- GCNConv(1024, 512): lin first, then normalized aggregation ---------
    hw = (jnp.dot(h0.astype(jnp.bfloat16), wgcn_ref[:H, :],
                  preferred_element_type=jnp.float32)
          + jnp.dot(h1.astype(jnp.bfloat16), wgcn_ref[H:, :],
                    preferred_element_type=jnp.float32))              # (M, 512)
    g = jnp.dot(agcn_ref[0], hw.astype(jnp.bfloat16),
                preferred_element_type=jnp.float32) + bgcn_ref[...]
    g = jnp.maximum(g, 0.0)

    # ---- densea: 512 -> 128, relu -------------------------------------------
    d = jnp.dot(g.astype(jnp.bfloat16), wa_ref[...],
                preferred_element_type=jnp.float32) + ba_ref[...]
    d = jnp.maximum(d, 0.0)

    # ---- dense_latent: 128 -> 64 (padded to 128 lanes for a dense store) ----
    out_ref[...] = jnp.dot(d.astype(jnp.bfloat16), wl_ref[...],
                           preferred_element_type=jnp.float32) + bl_ref[...]


@jax.jit
def encoder_forward(x, mask_bias, a_gcn, params):
    """x: (B*N, 512) f32; mask_bias/a_gcn: (T, M, M) from build_graph_tensors."""
    total_rows = x.shape[0]
    T, M, _ = mask_bias.shape
    x_b = x.astype(jnp.bfloat16)

    row_spec = lambda t: (t, 0)
    tile_spec = lambda t: (t, 0, 0)
    const2 = lambda t: (0, 0)     # weights: same block every step -> DMA'd once

    out_padded = pl.pallas_call(
        encoder_kernel,
        out_shape=jax.ShapeDtypeStruct((total_rows, 128), jnp.float32),
        grid=(T,),
        in_specs=[
            pl.BlockSpec((M, 512), row_spec),        # x
            pl.BlockSpec((1, M, M), tile_spec),      # mask_bias
            pl.BlockSpec((1, M, M), tile_spec),      # a_gcn
            pl.BlockSpec((512, 1024), const2),       # w_gat
            pl.BlockSpec((1, 1024), const2),         # b_gat
            pl.BlockSpec((1024, 128), const2),       # att matrix
            pl.BlockSpec((1024, 512), const2),       # w_gcn
            pl.BlockSpec((1, 512), const2),          # b_gcn
            pl.BlockSpec((512, 128), const2),        # w_a
            pl.BlockSpec((1, 128), const2),          # b_a
            pl.BlockSpec((128, 128), const2),        # w_lat
            pl.BlockSpec((1, 128), const2),          # b_lat
        ],
        out_specs=pl.BlockSpec((M, 128), row_spec),
        compiler_params=pltpu.CompilerParams(
            dimension_semantics=("parallel",)),      # v7x: shard tiles over 2 TCs
    )(x_b, mask_bias, a_gcn,
      params["w_gat"], params["b_gat"], params["att"],
      params["w_gcn"], params["b_gcn"],
      params["w_a"], params["b_a"],
      params["w_lat"], params["b_lat"])
    return out_padded[:, :64]


def build_graph_tensors(edge_index, num_nodes, graphs_per_tile, num_tiles):
    """Hoisted preprocessing: dense mask bias + normalized adjacency, tiled
    block-diagonally so each grid step processes `graphs_per_tile` graphs.

    Note: adjacency is binarized (duplicate edges collapse) and the sym-norm
    uses row degrees, matching PyG for symmetric adjacency.
    """
    src, dst = edge_index[0], edge_index[1]
    adj = jnp.zeros((num_nodes, num_nodes), jnp.float32).at[dst, src].add(1.0)
    a_bin = jnp.where(adj + jnp.eye(num_nodes, dtype=jnp.float32) > 0.0, 1.0, 0.0)

    deg = jnp.sum(a_bin, axis=1)
    dinv = 1.0 / jnp.sqrt(jnp.maximum(deg, 1.0))
    a_gcn = a_bin * dinv[:, None] * dinv[None, :]

    eye_g = jnp.eye(graphs_per_tile, dtype=jnp.float32)
    abin_tile = jnp.kron(eye_g, a_bin)            # (M, M) block diagonal
    agcn_tile = jnp.kron(eye_g, a_gcn)

    mask_bias = (abin_tile - 1.0) * 1e30          # 0 on edges, -1e30 elsewhere
    mask_bias = jnp.tile(mask_bias[None], (num_tiles, 1, 1))
    agcn = jnp.tile(agcn_tile[None], (num_tiles, 1, 1)).astype(jnp.bfloat16)
    return mask_bias, agcn


def init_params(key):
    """Deterministic init matching the PyTorch module's parameter shapes.

    Linear(in, out) weights are stored pre-transposed as (in, out) bf16;
    biases as (1, out) f32.  dense_latent is zero-padded 64->128 output
    columns; the GAT attention vectors are packed into one (1024, 128)
    bf16 matrix so the per-node scores come from a single MXU matmul.
    """
    def lin(k, fan_in, fan_out, out_pad=None):
        kw, kb = jax.random.split(k)
        bound = 1.0 / jnp.sqrt(fan_in)
        w = jax.random.uniform(kw, (fan_in, fan_out), jnp.float32, -bound, bound)
        b = jax.random.uniform(kb, (1, fan_out), jnp.float32, -bound, bound)
        if out_pad is not None and out_pad > fan_out:
            w = jnp.pad(w, ((0, 0), (0, out_pad - fan_out)))
            b = jnp.pad(b, ((0, 0), (0, out_pad - fan_out)))
        return w, b

    ks = jax.random.split(key, 8)
    w_gat, b_gat = lin(ks[0], 512, 1024)          # shared GAT lin + concat-head bias
    att_src = jax.random.uniform(ks[1], (1, 1024), jnp.float32, -0.1, 0.1)
    att_dst = jax.random.uniform(ks[2], (1, 1024), jnp.float32, -0.1, 0.1)
    w_gcn, b_gcn = lin(ks[3], 1024, 512)
    w_a, b_a = lin(ks[4], 512, 128)
    w_lat, b_lat = lin(ks[5], 128, 64, out_pad=128)

    # Pack attention vectors: col0/1 = att_src head0/1, col2/3 = att_dst head0/1.
    att = jnp.zeros((1024, 128), jnp.float32)
    att = att.at[:H, 0].set(att_src[0, :H])
    att = att.at[H:, 1].set(att_src[0, H:])
    att = att.at[:H, 2].set(att_dst[0, :H])
    att = att.at[H:, 3].set(att_dst[0, H:])

    # TODO(synk): on v7x the two big weights could be stored fp8 (e4m3) with
    # per-channel scales to halve weight DMA; kept bf16 here for portability.
    return dict(
        w_gat=w_gat.astype(jnp.bfloat16), b_gat=b_gat,
        att=att.astype(jnp.bfloat16),
        w_gcn=w_gcn.astype(jnp.bfloat16), b_gcn=b_gcn,
        w_a=w_a.astype(jnp.bfloat16), b_a=b_a,
        w_lat=w_lat.astype(jnp.bfloat16), b_lat=b_lat,
    )


if __name__ == "__main__":
    key = jax.random.PRNGKey(0)
    k_x, k_p = jax.random.split(key)

    N = 32            # nodes per graph
    B = 8             # independent graphs (same structure, different features)
    GB = 4            # graphs per grid tile  -> M = 128 matmul rows per step
    T = B // GB       # grid size
    M = GB * N

    x = jax.random.normal(k_x, (B * N, 512), jnp.float32)

    # Deterministic small graph: bidirectional ring, edge_index shape (2, 2N).
    idx = jnp.arange(N)
    src = jnp.concatenate([idx, (idx + 1) % N])
    dst = jnp.concatenate([(idx + 1) % N, idx])
    edge_index = jnp.stack([src, dst], axis=0).astype(jnp.int32)

    params = init_params(k_p)
    # Preprocessing hoisted out of the per-call forward path.
    mask_bias, a_gcn = build_graph_tensors(edge_index, N, GB, T)

    latent = encoder_forward(x, mask_bias, a_gcn, params)
    jax.block_until_ready(latent)
    assert latent.shape == (B * N, 64)
    assert bool(jnp.all(jnp.isfinite(latent)))
    print("KERNEL_OK")
</pallas_src>

<mosaic_0001>
module attributes {stable_mosaic.version = 11 : i64} {
  func.func @encoder_kernel(%arg0: i32, %arg1: memref<128x512xbf16, #tpu.memory_space<vmem>>, %arg2: memref<1x128x128xf32, #tpu.memory_space<vmem>>, %arg3: memref<1x128x128xbf16, #tpu.memory_space<vmem>>, %arg4: memref<512x1024xbf16, #tpu.memory_space<vmem>>, %arg5: memref<1x1024xf32, #tpu.memory_space<vmem>>, %arg6: memref<1024x128xbf16, #tpu.memory_space<vmem>>, %arg7: memref<1024x512xbf16, #tpu.memory_space<vmem>>, %arg8: memref<1x512xf32, #tpu.memory_space<vmem>>, %arg9: memref<512x128xbf16, #tpu.memory_space<vmem>>, %arg10: memref<1x128xf32, #tpu.memory_space<vmem>>, %arg11: memref<128x128xbf16, #tpu.memory_space<vmem>>, %arg12: memref<1x128xf32, #tpu.memory_space<vmem>>, %arg13: memref<128x128xf32, #tpu.memory_space<vmem>>) attributes {dimension_semantics = [#tpu.dimension_semantics<parallel>], iteration_bounds = array<i64: 2>, scalar_prefetch = 0 : i64, scratch_operands = 0 : i64, tpu.core_type = #tpu.core_type<tc>, window_params = [{transform_indices = @transform_0, window_bounds = array<i64: 128, 512>}, {transform_indices = @transform_1, window_bounds = array<i64: 1, 128, 128>}, {transform_indices = @transform_2, window_bounds = array<i64: 1, 128, 128>}, {pipeline_mode = #tpu.pipeline_mode<synchronous>, transform_indices = @transform_3, window_bounds = array<i64: 512, 1024>}, {pipeline_mode = #tpu.pipeline_mode<synchronous>, transform_indices = @transform_4, window_bounds = array<i64: 1, 1024>}, {pipeline_mode = #tpu.pipeline_mode<synchronous>, transform_indices = @transform_5, window_bounds = array<i64: 1024, 128>}, {pipeline_mode = #tpu.pipeline_mode<synchronous>, transform_indices = @transform_6, window_bounds = array<i64: 1024, 512>}, {pipeline_mode = #tpu.pipeline_mode<synchronous>, transform_indices = @transform_7, window_bounds = array<i64: 1, 512>}, {pipeline_mode = #tpu.pipeline_mode<synchronous>, transform_indices = @transform_8, window_bounds = array<i64: 512, 128>}, {pipeline_mode = #tpu.pipeline_mode<synchronous>, transform_indices = @transform_9, window_bounds = array<i64: 1, 128>}, {pipeline_mode = #tpu.pipeline_mode<synchronous>, transform_indices = @transform_10, window_bounds = array<i64: 128, 128>}, {pipeline_mode = #tpu.pipeline_mode<synchronous>, transform_indices = @transform_11, window_bounds = array<i64: 1, 128>}, {transform_indices = @transform_12, window_bounds = array<i64: 128, 128>}]} {
    %c0 = arith.constant 0 : index
    %c0_0 = arith.constant 0 : index
    %0 = vector.load %arg1[%c0, %c0_0] : memref<128x512xbf16, #tpu.memory_space<vmem>>, vector<128x512xbf16>
    %c0_1 = arith.constant 0 : index
    %c0_2 = arith.constant 0 : index
    %c0_3 = arith.constant 0 : index
    %1 = vector.load %arg2[%c0_1, %c0_2, %c0_3] : memref<1x128x128xf32, #tpu.memory_space<vmem>>, vector<1x128x128xf32>
    %2 = vector.shape_cast %1 : vector<1x128x128xf32> to vector<128x128xf32>
    %c0_4 = arith.constant 0 : index
    %c0_5 = arith.constant 0 : index
    %3 = vector.load %arg4[%c0_4, %c0_5] : memref<512x1024xbf16, #tpu.memory_space<vmem>>, vector<512x1024xbf16>
    %cst = arith.constant dense<0.000000e+00> : vector<128x1024xf32>
    %4 = tpu.matmul %0, %3, %cst {dimension_numbers = #tpu.dot_dimension_numbers<[1], [0], [0], [1], [0, 0, 1, 1], [], []>} : vector<128x512xbf16>, vector<512x1024xbf16>, vector<128x1024xf32> -> vector<128x1024xf32>
    %5 = arith.truncf %4 : vector<128x1024xf32> to vector<128x1024xbf16>
    %c0_6 = arith.constant 0 : index
    %c0_7 = arith.constant 0 : index
    %6 = vector.load %arg6[%c0_6, %c0_7] : memref<1024x128xbf16, #tpu.memory_space<vmem>>, vector<1024x128xbf16>
    %cst_8 = arith.constant dense<0.000000e+00> : vector<128x128xf32>
    %7 = tpu.matmul %5, %6, %cst_8 {dimension_numbers = #tpu.dot_dimension_numbers<[1], [0], [0], [1], [0, 0, 1, 1], [], []>} : vector<128x1024xbf16>, vector<1024x128xbf16>, vector<128x128xf32> -> vector<128x128xf32>
    %8 = vector.extract_strided_slice %7 {offsets = [0, 0], sizes = [128, 1], strides = [1, 1]} : vector<128x128xf32> to vector<128x1xf32>
    %9 = vector.extract_strided_slice %7 {offsets = [0, 1], sizes = [128, 1], strides = [1, 1]} : vector<128x128xf32> to vector<128x1xf32>
    %10 = vector.extract_strided_slice %7 {offsets = [0, 2], sizes = [128, 1], strides = [1, 1]} : vector<128x128xf32> to vector<128x1xf32>
    %11 = vector.extract_strided_slice %7 {offsets = [0, 3], sizes = [128, 1], strides = [1, 1]} : vector<128x128xf32> to vector<128x1xf32>
    %12 = vector.extract_strided_slice %5 {offsets = [0, 0], sizes = [128, 512], strides = [1, 1]} : vector<128x1024xbf16> to vector<128x512xbf16>
    %13 = tpu.transpose %8, [1, 0] : vector<128x1xf32> -> vector<1x128xf32>
    %14 = vector.broadcast %10 : vector<128x1xf32> to vector<128x128xf32>
    %15 = vector.broadcast %13 : vector<1x128xf32> to vector<128x128xf32>
    %16 = arith.addf %14, %15 : vector<128x128xf32>
    %cst_9 = arith.constant 0.000000e+00 : f32
    %17 = vector.broadcast %cst_9 : f32 to vector<128x128xf32>
    %18 = arith.cmpf ogt, %16, %17 : vector<128x128xf32>
    %cst_10 = arith.constant 2.000000e-01 : f32
    %19 = vector.broadcast %cst_10 : f32 to vector<128x128xf32>
    %20 = arith.mulf %19, %16 : vector<128x128xf32>
    %21 = arith.select %18, %16, %20 : vector<128x128xi1>, vector<128x128xf32>
    %22 = arith.addf %21, %2 : vector<128x128xf32>
    %cst_11 = arith.constant dense<0xFF800000> : vector<128xf32>
    %23 = vector.multi_reduction <maximumf>, %22, %cst_11 [1] : vector<128x128xf32> to vector<128xf32>
    %24 = vector.shape_cast %23 : vector<128xf32> to vector<128x1xf32>
    %25 = vector.broadcast %24 : vector<128x1xf32> to vector<128x128xf32>
    %26 = arith.subf %22, %25 : vector<128x128xf32>
    %27 = math.exp %26 : vector<128x128xf32>
    %cst_12 = arith.constant dense<0.000000e+00> : vector<128xf32>
    %28 = vector.multi_reduction <add>, %27, %cst_12 [1] : vector<128x128xf32> to vector<128xf32>
    %29 = vector.shape_cast %28 : vector<128xf32> to vector<128x1xf32>
    %30 = vector.broadcast %29 : vector<128x1xf32> to vector<128x128xf32>
    %31 = arith.divf %27, %30 : vector<128x128xf32>
    %32 = arith.truncf %31 : vector<128x128xf32> to vector<128x128xbf16>
    %cst_13 = arith.constant dense<0.000000e+00> : vector<128x512xf32>
    %33 = tpu.matmul %32, %12, %cst_13 {dimension_numbers = #tpu.dot_dimension_numbers<[1], [0], [0], [1], [0, 0, 1, 1], [], []>} : vector<128x128xbf16>, vector<128x512xbf16>, vector<128x512xf32> -> vector<128x512xf32>
    %34 = vector.extract_strided_slice %5 {offsets = [0, 512], sizes = [128, 512], strides = [1, 1]} : vector<128x1024xbf16> to vector<128x512xbf16>
    %35 = tpu.transpose %9, [1, 0] : vector<128x1xf32> -> vector<1x128xf32>
    %36 = vector.broadcast %11 : vector<128x1xf32> to vector<128x128xf32>
    %37 = vector.broadcast %35 : vector<1x128xf32> to vector<128x128xf32>
    %38 = arith.addf %36, %37 : vector<128x128xf32>
    %cst_14 = arith.constant 0.000000e+00 : f32
    %39 = vector.broadcast %cst_14 : f32 to vector<128x128xf32>
    %40 = arith.cmpf ogt, %38, %39 : vector<128x128xf32>
    %cst_15 = arith.constant 2.000000e-01 : f32
    %41 = vector.broadcast %cst_15 : f32 to vector<128x128xf32>
    %42 = arith.mulf %41, %38 : vector<128x128xf32>
    %43 = arith.select %40, %38, %42 : vector<128x128xi1>, vector<128x128xf32>
    %44 = arith.addf %43, %2 : vector<128x128xf32>
    %cst_16 = arith.constant dense<0xFF800000> : vector<128xf32>
    %45 = vector.multi_reduction <maximumf>, %44, %cst_16 [1] : vector<128x128xf32> to vector<128xf32>
    %46 = vector.shape_cast %45 : vector<128xf32> to vector<128x1xf32>
    %47 = vector.broadcast %46 : vector<128x1xf32> to vector<128x128xf32>
    %48 = arith.subf %44, %47 : vector<128x128xf32>
    %49 = math.exp %48 : vector<128x128xf32>
    %cst_17 = arith.constant dense<0.000000e+00> : vector<128xf32>
    %50 = vector.multi_reduction <add>, %49, %cst_17 [1] : vector<128x128xf32> to vector<128xf32>
    %51 = vector.shape_cast %50 : vector<128xf32> to vector<128x1xf32>
    %52 = vector.broadcast %51 : vector<128x1xf32> to vector<128x128xf32>
    %53 = arith.divf %49, %52 : vector<128x128xf32>
    %54 = arith.truncf %53 : vector<128x128xf32> to vector<128x128xbf16>
    %cst_18 = arith.constant dense<0.000000e+00> : vector<128x512xf32>
    %55 = tpu.matmul %54, %34, %cst_18 {dimension_numbers = #tpu.dot_dimension_numbers<[1], [0], [0], [1], [0, 0, 1, 1], [], []>} : vector<128x128xbf16>, vector<128x512xbf16>, vector<128x512xf32> -> vector<128x512xf32>
    %c0_19 = arith.constant 0 : index
    %c0_20 = arith.constant 0 : index
    %56 = vector.load %arg5[%c0_19, %c0_20] : memref<1x1024xf32, #tpu.memory_space<vmem>>, vector<1x512xf32>
    %57 = vector.broadcast %56 : vector<1x512xf32> to vector<128x512xf32>
    %58 = arith.addf %33, %57 : vector<128x512xf32>
    %cst_21 = arith.constant 0.000000e+00 : f32
    %59 = vector.broadcast %cst_21 : f32 to vector<128x512xf32>
    %60 = arith.maximumf %58, %59 : vector<128x512xf32>
    %c0_22 = arith.constant 0 : index
    %c512 = arith.constant 512 : index
    %61 = vector.load %arg5[%c0_22, %c512] : memref<1x1024xf32, #tpu.memory_space<vmem>>, vector<1x512xf32>
    %62 = vector.broadcast %61 : vector<1x512xf32> to vector<128x512xf32>
    %63 = arith.addf %55, %62 : vector<128x512xf32>
    %cst_23 = arith.constant 0.000000e+00 : f32
    %64 = vector.broadcast %cst_23 : f32 to vector<128x512xf32>
    %65 = arith.maximumf %63, %64 : vector<128x512xf32>
    %66 = arith.truncf %60 : vector<128x512xf32> to vector<128x512xbf16>
    %c0_24 = arith.constant 0 : index
    %c0_25 = arith.constant 0 : index
    %67 = vector.load %arg7[%c0_24, %c0_25] : memref<1024x512xbf16, #tpu.memory_space<vmem>>, vector<512x512xbf16>
    %cst_26 = arith.constant dense<0.000000e+00> : vector<128x512xf32>
    %68 = tpu.matmul %66, %67, %cst_26 {dimension_numbers = #tpu.dot_dimension_numbers<[1], [0], [0], [1], [0, 0, 1, 1], [], []>} : vector<128x512xbf16>, vector<512x512xbf16>, vector<128x512xf32> -> vector<128x512xf32>
    %69 = arith.truncf %65 : vector<128x512xf32> to vector<128x512xbf16>
    %c512_27 = arith.constant 512 : index
    %c0_28 = arith.constant 0 : index
    %70 = vector.load %arg7[%c512_27, %c0_28] : memref<1024x512xbf16, #tpu.memory_space<vmem>>, vector<512x512xbf16>
    %cst_29 = arith.constant dense<0.000000e+00> : vector<128x512xf32>
    %71 = tpu.matmul %69, %70, %cst_29 {dimension_numbers = #tpu.dot_dimension_numbers<[1], [0], [0], [1], [0, 0, 1, 1], [], []>} : vector<128x512xbf16>, vector<512x512xbf16>, vector<128x512xf32> -> vector<128x512xf32>
    %72 = arith.addf %68, %71 : vector<128x512xf32>
    %c0_30 = arith.constant 0 : index
    %c0_31 = arith.constant 0 : index
    %c0_32 = arith.constant 0 : index
    %73 = vector.load %arg3[%c0_30, %c0_31, %c0_32] : memref<1x128x128xbf16, #tpu.memory_space<vmem>>, vector<1x128x128xbf16>
    %74 = vector.shape_cast %73 : vector<1x128x128xbf16> to vector<128x128xbf16>
    %75 = arith.truncf %72 : vector<128x512xf32> to vector<128x512xbf16>
    %cst_33 = arith.constant dense<0.000000e+00> : vector<128x512xf32>
    %76 = tpu.matmul %74, %75, %cst_33 {dimension_numbers = #tpu.dot_dimension_numbers<[1], [0], [0], [1], [0, 0, 1, 1], [], []>} : vector<128x128xbf16>, vector<128x512xbf16>, vector<128x512xf32> -> vector<128x512xf32>
    %c0_34 = arith.constant 0 : index
    %c0_35 = arith.constant 0 : index
    %77 = vector.load %arg8[%c0_34, %c0_35] : memref<1x512xf32, #tpu.memory_space<vmem>>, vector<1x512xf32>
    %78 = vector.broadcast %77 : vector<1x512xf32> to vector<128x512xf32>
    %79 = arith.addf %76, %78 : vector<128x512xf32>
    %cst_36 = arith.constant 0.000000e+00 : f32
    %80 = vector.broadcast %cst_36 : f32 to vector<128x512xf32>
    %81 = arith.maximumf %79, %80 : vector<128x512xf32>
    %82 = arith.truncf %81 : vector<128x512xf32> to vector<128x512xbf16>
    %c0_37 = arith.constant 0 : index
    %c0_38 = arith.constant 0 : index
    %83 = vector.load %arg9[%c0_37, %c0_38] : memref<512x128xbf16, #tpu.memory_space<vmem>>, vector<512x128xbf16>
    %cst_39 = arith.constant dense<0.000000e+00> : vector<128x128xf32>
    %84 = tpu.matmul %82, %83, %cst_39 {dimension_numbers = #tpu.dot_dimension_numbers<[1], [0], [0], [1], [0, 0, 1, 1], [], []>} : vector<128x512xbf16>, vector<512x128xbf16>, vector<128x128xf32> -> vector<128x128xf32>
    %c0_40 = arith.constant 0 : index
    %c0_41 = arith.constant 0 : index
    %85 = vector.load %arg10[%c0_40, %c0_41] : memref<1x128xf32, #tpu.memory_space<vmem>>, vector<1x128xf32>
    %86 = vector.broadcast %85 : vector<1x128xf32> to vector<128x128xf32>
    %87 = arith.addf %84, %86 : vector<128x128xf32>
    %cst_42 = arith.constant 0.000000e+00 : f32
    %88 = vector.broadcast %cst_42 : f32 to vector<128x128xf32>
    %89 = arith.maximumf %87, %88 : vector<128x128xf32>
    %90 = arith.truncf %89 : vector<128x128xf32> to vector<128x128xbf16>
    %c0_43 = arith.constant 0 : index
    %c0_44 = arith.constant 0 : index
    %91 = vector.load %arg11[%c0_43, %c0_44] : memref<128x128xbf16, #tpu.memory_space<vmem>>, vector<128x128xbf16>
    %cst_45 = arith.constant dense<0.000000e+00> : vector<128x128xf32>
    %92 = tpu.matmul %90, %91, %cst_45 {dimension_numbers = #tpu.dot_dimension_numbers<[1], [0], [0], [1], [0, 0, 1, 1], [], []>} : vector<128x128xbf16>, vector<128x128xbf16>, vector<128x128xf32> -> vector<128x128xf32>
    %c0_46 = arith.constant 0 : index
    %c0_47 = arith.constant 0 : index
    %93 = vector.load %arg12[%c0_46, %c0_47] : memref<1x128xf32, #tpu.memory_space<vmem>>, vector<1x128xf32>
    %94 = vector.broadcast %93 : vector<1x128xf32> to vector<128x128xf32>
    %95 = arith.addf %92, %94 : vector<128x128xf32>
    %c0_48 = arith.constant 0 : index
    %c0_49 = arith.constant 0 : index
    %96 = vector.load %arg13[%c0_48, %c0_49] : memref<128x128xf32, #tpu.memory_space<vmem>>, vector<128x128xf32>
    tpu.vector_store %arg13[%c0_48, %c0_49], %95 {strides = array<i32>} : memref<128x128xf32, #tpu.memory_space<vmem>>, vector<128x128xf32>,
    return
  }
  func.func @transform_0(%arg0: i32) -> (i32, i32) {
    %c0_i32 = arith.constant 0 : i32
    %c0_i32_0 = arith.constant 0 : i32
    return %arg0, %c0_i32 : i32, i32
  }
  func.func @transform_1(%arg0: i32) -> (i32, i32, i32) {
    %c0_i32 = arith.constant 0 : i32
    %c0_i32_0 = arith.constant 0 : i32
    %c0_i32_1 = arith.constant 0 : i32
    return %arg0, %c0_i32, %c0_i32_0 : i32, i32, i32
  }
  func.func @transform_2(%arg0: i32) -> (i32, i32, i32) {
    %c0_i32 = arith.constant 0 : i32
    %c0_i32_0 = arith.constant 0 : i32
    %c0_i32_1 = arith.constant 0 : i32
    return %arg0, %c0_i32, %c0_i32_0 : i32, i32, i32
  }
  func.func @transform_3(%arg0: i32) -> (i32, i32) {
    %c0_i32 = arith.constant 0 : i32
    %c0_i32_0 = arith.constant 0 : i32
    %c0_i32_1 = arith.constant 0 : i32
    return %c0_i32, %c0_i32_0 : i32, i32
  }
  func.func @transform_4(%arg0: i32) -> (i32, i32) {
    %c0_i32 = arith.constant 0 : i32
    %c0_i32_0 = arith.constant 0 : i32
    %c0_i32_1 = arith.constant 0 : i32
    return %c0_i32, %c0_i32_0 : i32, i32
  }
  func.func @transform_5(%arg0: i32) -> (i32, i32) {
    %c0_i32 = arith.constant 0 : i32
    %c0_i32_0 = arith.constant 0 : i32
    %c0_i32_1 = arith.constant 0 : i32
    return %c0_i32, %c0_i32_0 : i32, i32
  }
  func.func @transform_6(%arg0: i32) -> (i32, i32) {
    %c0_i32 = arith.constant 0 : i32
    %c0_i32_0 = arith.constant 0 : i32
    %c0_i32_1 = arith.constant 0 : i32
    return %c0_i32, %c0_i32_0 : i32, i32
  }
  func.func @transform_7(%arg0: i32) -> (i32, i32) {
    %c0_i32 = arith.constant 0 : i32
    %c0_i32_0 = arith.constant 0 : i32
    %c0_i32_1 = arith.constant 0 : i32
    return %c0_i32, %c0_i32_0 : i32, i32
  }
  func.func @transform_8(%arg0: i32) -> (i32, i32) {
    %c0_i32 = arith.constant 0 : i32
    %c0_i32_0 = arith.constant 0 : i32
    %c0_i32_1 = arith.constant 0 : i32
    return %c0_i32, %c0_i32_0 : i32, i32
  }
  func.func @transform_9(%arg0: i32) -> (i32, i32) {
    %c0_i32 = arith.constant 0 : i32
    %c0_i32_0 = arith.constant 0 : i32
    %c0_i32_1 = arith.constant 0 : i32
    return %c0_i32, %c0_i32_0 : i32, i32
  }
  func.func @transform_10(%arg0: i32) -> (i32, i32) {
    %c0_i32 = arith.constant 0 : i32
    %c0_i32_0 = arith.constant 0 : i32
    %c0_i32_1 = arith.constant 0 : i32
    return %c0_i32, %c0_i32_0 : i32, i32
  }
  func.func @transform_11(%arg0: i32) -> (i32, i32) {
    %c0_i32 = arith.constant 0 : i32
    %c0_i32_0 = arith.constant 0 : i32
    %c0_i32_1 = arith.constant 0 : i32
    return %c0_i32, %c0_i32_0 : i32, i32
  }
  func.func @transform_12(%arg0: i32) -> (i32, i32) {
    %c0_i32 = arith.constant 0 : i32
    %c0_i32_0 = arith.constant 0 : i32
    return %arg0, %c0_i32 : i32, i32
  }
}

</mosaic_0001>

<llo_original>
// kernel: encoder_forward.1
$region0: #{encoder_forward.1}
  #allocation0 [shape = 'u32[]', space=smem, size = 0x4, offset = 0x4, fixed_abs, tag = 'smem constant byte address 0x4 - core index']
  #allocation1 [shape = 'u32[144,128]{1,0:T(1,128)}', space=vmem, size = 0x12000, scoped, tag = 'internal scratch']
  %s0 = inlined_call_operand.vmem [shape: bf16[256,512], index: 0, kind: input, shape index: {}]
  %s1 = inlined_call_operand.vmem [shape: f32[2,128,128], index: 1, kind: input, shape index: {}]
  %s2 = inlined_call_operand.vmem [shape: bf16[2,128,128], index: 2, kind: input, shape index: {}]
  %s3 = inlined_call_operand.hbm [shape: bf16[512,1024], index: 3, kind: input, shape index: {}]
  %s4 = inlined_call_operand.vmem [shape: f32[1,1024], index: 4, kind: input, shape index: {}]
  %s5 = inlined_call_operand.vmem [shape: bf16[1024,128], index: 5, kind: input, shape index: {}]
  %s6 = inlined_call_operand.hbm [shape: bf16[1024,512], index: 6, kind: input, shape index: {}]
  %s7 = inlined_call_operand.vmem [shape: f32[1,512], index: 7, kind: input, shape index: {}]
  %s8 = inlined_call_operand.vmem [shape: bf16[512,128], index: 8, kind: input, shape index: {}]
  %s9 = inlined_call_operand.vmem [shape: f32[1,128], index: 9, kind: input, shape index: {}]
  %s10 = inlined_call_operand.vmem [shape: bf16[128,128], index: 10, kind: input, shape index: {}]
  %s11 = inlined_call_operand.vmem [shape: f32[1,128], index: 11, kind: input, shape index: {}]
  %s12 = inlined_call_operand.vmem [shape: f32[256,128], index: 12, kind: output, shape index: {}]
  %s13 = sld [smem:[#allocation0]]
  $region89: #{encoder_forward.1} parent=0
    _
  %s15 = ssub.s32 1, %s13
  %s16 = scalar_select 0, %s15, %s13
  $region1: #{encoder_forward.1} parent=0
    #allocation2 [shape = 'u8[1048576]{0}', space=vmem, size = 0x100000, scoped, tag = 'input window, operand 3, single buffered']
    #allocation3 [shape = 's32[2]{0}', space=sflag, size = 0x8, scoped, tag = 'scoped memory for encoder_forward.1']
    #allocation4 [shape = 'u8[1048576]{0}', space=vmem, size = 0x100000, scoped, tag = 'input window, operand 6, single buffered']
    #allocation5 [shape = 's32[1]{0}', space=sflag, size = 0x4, scoped, tag = 'scoped memory for encoder_forward.1']
    %17 = vsyncpa [#allocation3], 0
    %18 = vsyncpa [#allocation5], 0
    loop: start=0, step=1, limit=4
    $region2: #{encoder_forward.1} parent=1 // loop_pre_header
      _
    $region3: #{encoder_forward.1} parent=1 // loop_header
      %s20 = sphi 0, %s24
      %p21 = scmp.ge.s32.totalorder %s20, 4
      %s30 = sphi 0, %s32
      %s33 = sphi 0, %s30
      %s34 = sphi 0, %s33
      %s50 = sphi 0, %s34
      %s56 = sphi 0, %s58
      %s59 = sphi 0, %s56
      %s60 = sphi 0, %s59
      %s76 = sphi 0, %s60
      %s82 = sphi 0, %s84
      %s85 = sphi 0, %s82
      %s86 = sphi 0, %s85
      %s102 = sphi 0, %s86
      %s106 = sphi 0, %s106
      %s108 = sphi 0, %s106
      %s109 = sphi 0, %s108
      %s123 = sphi 0, %s109
      %s127 = sphi 0, %s127
      %s129 = sphi 0, %s127
      %s130 = sphi 0, %s129
      %s144 = sphi 0, %s130
      %s148 = sphi 0, %s148
      %s150 = sphi 0, %s148
      %s151 = sphi 0, %s150
      %s165 = sphi 0, %s151
      %s169 = sphi 0, %s169
      %s171 = sphi 0, %s169
      %s172 = sphi 0, %s171
      %s186 = sphi 0, %s172
      %s190 = sphi 0, %s190
      %s192 = sphi 0, %s190
      %s193 = sphi 0, %s192
      %s207 = sphi 0, %s193
      %s211 = sphi 0, %s211
      %s213 = sphi 0, %s211
      %s214 = sphi 0, %s213
      %s228 = sphi 0, %s214
      %s232 = sphi 0, %s232
      %s234 = sphi 0, %s232
      %s235 = sphi 0, %s234
      %s249 = sphi 0, %s235
      %s253 = sphi 0, %s253
      %s255 = sphi 0, %s253
      %s256 = sphi 0, %s255
      %s270 = sphi 0, %s256
      %s274 = sphi 0, %s274
      %s276 = sphi 0, %s274
      %s277 = sphi 0, %s276
      %s291 = sphi 0, %s277
      %s297 = sphi 0, %s299
      %s300 = sphi 0, %s297
      %s301 = sphi 0, %s300
      %s317 = sphi 0, %s301
    $region4: #{encoder_forward.1} parent=1 // loop_header_branch
      %23 = sbr.rel (%p21) target = $region8
    $region5: #{encoder_forward.1} parent=1 // loop_body
      %s25 = ssub.s32 %s20, 1
      %s26 = ssub.s32 %s20, 2
      %s27 = sadd.s32 %s20, 1
      %s28 = ssub.s32 %s20, %s27
      %p29 = scmp.eq.s32.totalorder %s28, 0
      %s31 = sadd.s32 %s30, 1
      %s32 = scalar_select %p29, %s30, %s31
      %p35 = pneg %p29
      %p36 = scmp.eq.s32.totalorder %s20, 1
      %p37 = por %p35, %p36
      %p38 = scmp.ne.s32.totalorder %s30, %s33
      %p39 = scmp.eq.s32.totalorder %s20, 0
      %p40 = por %p38, %p39
      %p41 = scmp.ne.s32.totalorder %s30, %s33
      %p42 = scmp.eq.s32.totalorder %s25, 1
      %p43 = por %p41, %p42
      %p44 = scmp.ne.s32.totalorder %s33, %s34
      %p45 = scmp.eq.s32.totalorder %s25, 0
      %p46 = por %p44, %p45
      %p47 = scmp.ne.s32.totalorder %s33, %s34
      %p48 = scmp.eq.s32.totalorder %s26, 1
      %p49 = por %p47, %p48
      %p51 = scmp.ne.s32.totalorder %s34, %s50
      %p52 = scmp.eq.s32.totalorder %s26, 0
      %p53 = por %p51, %p52
      %s54 = ssub.s32 %s20, %s27
      %p55 = scmp.eq.s32.totalorder %s54, 0
      %s57 = sadd.s32 %s56, 1
      %s58 = scalar_select %p55, %s56, %s57
      %p61 = pneg %p55
      %p62 = scmp.eq.s32.totalorder %s20, 1
      %p63 = por %p61, %p62
      %p64 = scmp.ne.s32.totalorder %s56, %s59
      %p65 = scmp.eq.s32.totalorder %s20, 0
      %p66 = por %p64, %p65
      %p67 = scmp.ne.s32.totalorder %s56, %s59
      %p68 = scmp.eq.s32.totalorder %s25, 1
      %p69 = por %p67, %p68
      %p70 = scmp.ne.s32.totalorder %s59, %s60
      %p71 = scmp.eq.s32.totalorder %s25, 0
      %p72 = por %p70, %p71
      %p73 = scmp.ne.s32.totalorder %s59, %s60
      %p74 = scmp.eq.s32.totalorder %s26, 1
      %p75 = por %p73, %p74
      %p77 = scmp.ne.s32.totalorder %s60, %s76
      %p78 = scmp.eq.s32.totalorder %s26, 0
      %p79 = por %p77, %p78
      %s80 = ssub.s32 %s20, %s27
      %p81 = scmp.eq.s32.totalorder %s80, 0
      %s83 = sadd.s32 %s82, 1
      %s84 = scalar_select %p81, %s82, %s83
      %p87 = pneg %p81
      %p88 = scmp.eq.s32.totalorder %s20, 1
      %p89 = por %p87, %p88
      %p90 = scmp.ne.s32.totalorder %s82, %s85
      %p91 = scmp.eq.s32.totalorder %s20, 0
      %p92 = por %p90, %p91
      %p93 = scmp.ne.s32.totalorder %s82, %s85
      %p94 = scmp.eq.s32.totalorder %s25, 1
      %p95 = por %p93, %p94
      %p96 = scmp.ne.s32.totalorder %s85, %s86
      %p97 = scmp.eq.s32.totalorder %s25, 0
      %p98 = por %p96, %p97
      %p99 = scmp.ne.s32.totalorder %s85, %s86
      %p100 = scmp.eq.s32.totalorder %s26, 1
      %p101 = por %p99, %p100
      %p103 = scmp.ne.s32.totalorder %s86, %s102
      %p104 = scmp.eq.s32.totalorder %s26, 0
      %p105 = por %p103, %p104
      %s107 = sadd.s32 %s106, 1
      %p110 = scmp.eq.s32.totalorder %s20, 1
      %p111 = scmp.ne.s32.totalorder %s106, %s108
      %p112 = scmp.eq.s32.totalorder %s20, 0
      %p113 = por %p111, %p112
      %p114 = scmp.ne.s32.totalorder %s106, %s108
      %p115 = scmp.eq.s32.totalorder %s25, 1
      %p116 = por %p114, %p115
      %p117 = scmp.ne.s32.totalorder %s108, %s109
      %p118 = scmp.eq.s32.totalorder %s25, 0
      %p119 = por %p117, %p118
      %p120 = scmp.ne.s32.totalorder %s108, %s109
      %p121 = scmp.eq.s32.totalorder %s26, 1
      %p122 = por %p120, %p121
      %p124 = scmp.ne.s32.totalorder %s109, %s123
      %p125 = scmp.eq.s32.totalorder %s26, 0
      %p126 = por %p124, %p125
      %s128 = sadd.s32 %s127, 1
      %p131 = scmp.eq.s32.totalorder %s20, 1
      %p132 = scmp.ne.s32.totalorder %s127, %s129
      %p133 = scmp.eq.s32.totalorder %s20, 0
      %p134 = por %p132, %p133
      %p135 = scmp.ne.s32.totalorder %s127, %s129
      %p136 = scmp.eq.s32.totalorder %s25, 1
      %p137 = por %p135, %p136
      %p138 = scmp.ne.s32.totalorder %s129, %s130
      %p139 = scmp.eq.s32.totalorder %s25, 0
      %p140 = por %p138, %p139
      %p141 = scmp.ne.s32.totalorder %s129, %s130
      %p142 = scmp.eq.s32.totalorder %s26, 1
      %p143 = por %p141, %p142
      %p145 = scmp.ne.s32.totalorder %s130, %s144
      %p146 = scmp.eq.s32.totalorder %s26, 0
      %p147 = por %p145, %p146
      %s149 = sadd.s32 %s148, 1
      %p152 = scmp.eq.s32.totalorder %s20, 1
      %p153 = scmp.ne.s32.totalorder %s148, %s150
      %p154 = scmp.eq.s32.totalorder %s20, 0
      %p155 = por %p153, %p154
      %p156 = scmp.ne.s32.totalorder %s148, %s150
      %p157 = scmp.eq.s32.totalorder %s25, 1
      %p158 = por %p156, %p157
      %p159 = scmp.ne.s32.totalorder %s150, %s151
      %p160 = scmp.eq.s32.totalorder %s25, 0
      %p161 = por %p159, %p160
      %p162 = scmp.ne.s32.totalorder %s150, %s151
      %p163 = scmp.eq.s32.totalorder %s26, 1
      %p164 = por %p162, %p163
      %p166 = scmp.ne.s32.totalorder %s151, %s165
      %p167 = scmp.eq.s32.totalorder %s26, 0
      %p168 = por %p166, %p167
      %s170 = sadd.s32 %s169, 1
      %p173 = scmp.eq.s32.totalorder %s20, 1
      %p174 = scmp.ne.s32.totalorder %s169, %s171
      %p175 = scmp.eq.s32.totalorder %s20, 0
      %p176 = por %p174, %p175
      %p177 = scmp.ne.s32.totalorder %s169, %s171
      %p178 = scmp.eq.s32.totalorder %s25, 1
      %p179 = por %p177, %p178
      %p180 = scmp.ne.s32.totalorder %s171, %s172
      %p181 = scmp.eq.s32.totalorder %s25, 0
      %p182 = por %p180, %p181
      %p183 = scmp.ne.s32.totalorder %s171, %s172
      %p184 = scmp.eq.s32.totalorder %s26, 1
      %p185 = por %p183, %p184
      %p187 = scmp.ne.s32.totalorder %s172, %s186
      %p188 = scmp.eq.s32.totalorder %s26, 0
      %p189 = por %p187, %p188
      %s191 = sadd.s32 %s190, 1
      %p194 = scmp.eq.s32.totalorder %s20, 1
      %p195 = scmp.ne.s32.totalorder %s190, %s192
      %p196 = scmp.eq.s32.totalorder %s20, 0
      %p197 = por %p195, %p196
      %p198 = scmp.ne.s32.totalorder %s190, %s192
      %p199 = scmp.eq.s32.totalorder %s25, 1
      %p200 = por %p198, %p199
      %p201 = scmp.ne.s32.totalorder %s192, %s193
      %p202 = scmp.eq.s32.totalorder %s25, 0
      %p203 = por %p201, %p202
      %p204 = scmp.ne.s32.totalorder %s192, %s193
      %p205 = scmp.eq.s32.totalorder %s26, 1
      %p206 = por %p204, %p205
      %p208 = scmp.ne.s32.totalorder %s193, %s207
      %p209 = scmp.eq.s32.totalorder %s26, 0
      %p210 = por %p208, %p209
      %s212 = sadd.s32 %s211, 1
      %p215 = scmp.eq.s32.totalorder %s20, 1
      %p216 = scmp.ne.s32.totalorder %s211, %s213
      %p217 = scmp.eq.s32.totalorder %s20, 0
      %p218 = por %p216, %p217
      %p219 = scmp.ne.s32.totalorder %s211, %s213
      %p220 = scmp.eq.s32.totalorder %s25, 1
      %p221 = por %p219, %p220
      %p222 = scmp.ne.s32.totalorder %s213, %s214
      %p223 = scmp.eq.s32.totalorder %s25, 0
      %p224 = por %p222, %p223
      %p225 = scmp.ne.s32.totalorder %s213, %s214
      %p226 = scmp.eq.s32.totalorder %s26, 1
      %p227 = por %p225, %p226
      %p229 = scmp.ne.s32.totalorder %s214, %s228
      %p230 = scmp.eq.s32.totalorder %s26, 0
      %p231 = por %p229, %p230
      %s233 = sadd.s32 %s232, 1
      %p236 = scmp.eq.s32.totalorder %s20, 1
      %p237 = scmp.ne.s32.totalorder %s232, %s234
      %p238 = scmp.eq.s32.totalorder %s20, 0
      %p239 = por %p237, %p238
      %p240 = scmp.ne.s32.totalorder %s232, %s234
      %p241 = scmp.eq.s32.totalorder %s25, 1
      %p242 = por %p240, %p241
      %p243 = scmp.ne.s32.totalorder %s234, %s235
      %p244 = scmp.eq.s32.totalorder %s25, 0
      %p245 = por %p243, %p244
      %p246 = scmp.ne.s32.totalorder %s234, %s235
      %p247 = scmp.eq.s32.totalorder %s26, 1
      %p248 = por %p246, %p247
      %p250 = scmp.ne.s32.totalorder %s235, %s249
      %p251 = scmp.eq.s32.totalorder %s26, 0
      %p252 = por %p250, %p251
      %s254 = sadd.s32 %s253, 1
      %p257 = scmp.eq.s32.totalorder %s20, 1
      %p258 = scmp.ne.s32.totalorder %s253, %s255
      %p259 = scmp.eq.s32.totalorder %s20, 0
      %p260 = por %p258, %p259
      %p261 = scmp.ne.s32.totalorder %s253, %s255
      %p262 = scmp.eq.s32.totalorder %s25, 1
      %p263 = por %p261, %p262
      %p264 = scmp.ne.s32.totalorder %s255, %s256
      %p265 = scmp.eq.s32.totalorder %s25, 0
      %p266 = por %p264, %p265
      %p267 = scmp.ne.s32.totalorder %s255, %s256
      %p268 = scmp.eq.s32.totalorder %s26, 1
      %p269 = por %p267, %p268
      %p271 = scmp.ne.s32.totalorder %s256, %s270
      %p272 = scmp.eq.s32.totalorder %s26, 0
      %p273 = por %p271, %p272
      %s275 = sadd.s32 %s274, 1
      %p278 = scmp.eq.s32.totalorder %s20, 1
      %p279 = scmp.ne.s32.totalorder %s274, %s276
      %p280 = scmp.eq.s32.totalorder %s20, 0
      %p281 = por %p279, %p280
      %p282 = scmp.ne.s32.totalorder %s274, %s276
      %p283 = scmp.eq.s32.totalorder %s25, 1
      %p284 = por %p282, %p283
      %p285 = scmp.ne.s32.totalorder %s276, %s277
      %p286 = scmp.eq.s32.totalorder %s25, 0
      %p287 = por %p285, %p286
      %p288 = scmp.ne.s32.totalorder %s276, %s277
      %p289 = scmp.eq.s32.totalorder %s26, 1
      %p290 = por %p288, %p289
      %p292 = scmp.ne.s32.totalorder %s277, %s291
      %p293 = scmp.eq.s32.totalorder %s26, 0
      %p294 = por %p292, %p293
      %s295 = ssub.s32 %s20, %s27
      %p296 = scmp.eq.s32.totalorder %s295, 0
      %s298 = sadd.s32 %s297, 1
      %s299 = scalar_select %p296, %s297, %s298
      %p302 = pneg %p296
      %p303 = scmp.eq.s32.totalorder %s20, 1
      %p304 = por %p302, %p303
      %p305 = scmp.ne.s32.totalorder %s297, %s300
      %p306 = scmp.eq.s32.totalorder %s20, 0
      %p307 = por %p305, %p306
      %p308 = scmp.ne.s32.totalorder %s297, %s300
      %p309 = scmp.eq.s32.totalorder %s25, 1
      %p310 = por %p308, %p309
      %p311 = scmp.ne.s32.totalorder %s300, %s301
      %p312 = scmp.eq.s32.totalorder %s25, 0
      %p313 = por %p311, %p312
      %p314 = scmp.ne.s32.totalorder %s300, %s301
      %p315 = scmp.eq.s32.totalorder %s26, 1
      %p316 = por %p314, %p315
      %p318 = scmp.ne.s32.totalorder %s301, %s317
      %p319 = scmp.eq.s32.totalorder %s26, 0
      %p320 = por %p318, %p319
      %p321 = scmp.le.s32.totalorder 1, %s20
      %p322 = scmp.lt.s32.totalorder %s20, 3
      %p323 = pnand %p321, %p322
      %p324 = pneg %p323
      // Predicated region
      $region9: #{encoder_forward.1} parent=5 // pred_check
        _
      $region10: #{encoder_forward.1} parent=5 // pred_check_branch
        %326 = sbr.rel (%p323) target = $region12
      $region11: #{encoder_forward.1} parent=5 // pred_region
        %s327 = ssub.s32 %s20, 1
        // Predicated region
        $region13: #{encoder_forward.1} parent=11 // pred_check
          %p328 = pneg %p119
        $region14: #{encoder_forward.1} parent=11 // pred_check_branch
          %330 = sbr.rel (%p328) target = $region16
        $region15: #{encoder_forward.1} parent=11 // pred_region
          %s332 = ssub.s32 32768, 32768
          %333 = vsyncadd [#allocation3], %s332
          %s334 = sshll.u32 [#allocation2], 4
          %s335 = int_to_ptr.vmem [resolvable:$true] %s334
          %340 = dma.hbm_to_vmem [thread:$0]  %s3, 32768, %s335, [#allocation3], 512, 512, 32
        $region16: #{encoder_forward.1} parent=11 // pred_fallthru
          _
        // Predicated region
        $region17: #{encoder_forward.1} parent=11 // pred_check
          %p341 = pneg %p140
        $region18: #{encoder_forward.1} parent=11 // pred_check_branch
          %343 = sbr.rel (%p341) target = $region20
        $region19: #{encoder_forward.1} parent=11 // pred_region
          _
        $region20: #{encoder_forward.1} parent=11 // pred_fallthru
          _
        // Predicated region
        $region21: #{encoder_forward.1} parent=11 // pred_check
          %p344 = pneg %p161
        $region22: #{encoder_forward.1} parent=11 // pred_check_branch
          %346 = sbr.rel (%p344) target = $region24
        $region23: #{encoder_forward.1} parent=11 // pred_region
          _
        $region24: #{encoder_forward.1} parent=11 // pred_fallthru
          _
        // Predicated region
        $region25: #{encoder_forward.1} parent=11 // pred_check
          %p347 = pneg %p182
        $region26: #{encoder_forward.1} parent=11 // pred_check_branch
          %349 = sbr.rel (%p347) target = $region28
        $region27: #{encoder_forward.1} parent=11 // pred_region
          %s351 = ssub.s32 32768, 32768
          %352 = vsyncadd [#allocation5], %s351
          %s353 = sshll.u32 [#allocation4], 4
          %s354 = int_to_ptr.vmem [resolvable:$true] %s353
          %359 = dma.hbm_to_vmem [thread:$0]  %s6, 32768, %s354, [#allocation5], 256, 256, 16
        $region28: #{encoder_forward.1} parent=11 // pred_fallthru
          _
        // Predicated region
        $region29: #{encoder_forward.1} parent=11 // pred_check
          %p360 = pneg %p203
        $region30: #{encoder_forward.1} parent=11 // pred_check_branch
          %362 = sbr.rel (%p360) target = $region32
        $region31: #{encoder_forward.1} parent=11 // pred_region
          _
        $region32: #{encoder_forward.1} parent=11 // pred_fallthru
          _
        // Predicated region
        $region33: #{encoder_forward.1} parent=11 // pred_check
          %p363 = pneg %p224
        $region34: #{encoder_forward.1} parent=11 // pred_check_branch
          %365 = sbr.rel (%p363) target = $region36
        $region35: #{encoder_forward.1} parent=11 // pred_region
          _
        $region36: #{encoder_forward.1} parent=11 // pred_fallthru
          _
        // Predicated region
        $region37: #{encoder_forward.1} parent=11 // pred_check
          %p366 = pneg %p245
        $region38: #{encoder_forward.1} parent=11 // pred_check_branch
          %368 = sbr.rel (%p366) target = $region40
        $region39: #{encoder_forward.1} parent=11 // pred_region
          _
        $region40: #{encoder_forward.1} parent=11 // pred_fallthru
          _
        // Predicated region
        $region41: #{encoder_forward.1} parent=11 // pred_check
          %p369 = pneg %p266
        $region42: #{encoder_forward.1} parent=11 // pred_check_branch
          %371 = sbr.rel (%p369) target = $region44
        $region43: #{encoder_forward.1} parent=11 // pred_region
          _
        $region44: #{encoder_forward.1} parent=11 // pred_fallthru
          _
        // Predicated region
        $region45: #{encoder_forward.1} parent=11 // pred_check
          %p372 = pneg %p287
        $region46: #{encoder_forward.1} parent=11 // pred_check_branch
          %374 = sbr.rel (%p372) target = $region48
        $region47: #{encoder_forward.1} parent=11 // pred_region
          _
        $region48: #{encoder_forward.1} parent=11 // pred_fallthru
          _
      $region12: #{encoder_forward.1} parent=5 // pred_fallthru
        _
      %p375 = scmp.lt.s32.totalorder %s20, 2
      // Predicated region
      $region49: #{encoder_forward.1} parent=5 // pred_check
        %p376 = pneg %p375
      $region50: #{encoder_forward.1} parent=5 // pred_check_branch
        %378 = sbr.rel (%p376) target = $region52
      $region51: #{encoder_forward.1} parent=5 // pred_region
        // Predicated region
        $region53: #{encoder_forward.1} parent=51 // pred_check
          %p379 = pneg %p40
        $region54: #{encoder_forward.1} parent=51 // pred_check_branch
          %381 = sbr.rel (%p379) target = $region56
        $region55: #{encoder_forward.1} parent=51 // pred_region
          %s382 = smul.u32 16, %s20
          %p383 = scmp.lt.s32.totalorder %s382, 31
          %s384 = scalar_select %p383, %s382, 31
          %s385 = smul.addr %s384, 4
          %s386 = smul.addr %s385, 4
          %s387 = scalar_lea.vmem %s0, %s386
          %s388 = smul.u32 16, %s20
        $region56: #{encoder_forward.1} parent=51 // pred_fallthru
          _
        // Predicated region
        $region57: #{encoder_forward.1} parent=51 // pred_check
          %p389 = pneg %p66
        $region58: #{encoder_forward.1} parent=51 // pred_check_branch
          %391 = sbr.rel (%p389) target = $region60
        $region59: #{encoder_forward.1} parent=51 // pred_region
          %p392 = scmp.lt.s32.totalorder %s20, 1
          %s393 = scalar_select %p392, %s20, 1
          %s394 = smul.addr %s393, 16
          %s395 = smul.addr %s394, 8
          %s396 = scalar_lea.vmem %s1, %s395
        $region60: #{encoder_forward.1} parent=51 // pred_fallthru
          _
        // Predicated region
        $region61: #{encoder_forward.1} parent=51 // pred_check
          %p397 = pneg %p92
        $region62: #{encoder_forward.1} parent=51 // pred_check_branch
          %399 = sbr.rel (%p397) target = $region64
        $region63: #{encoder_forward.1} parent=51 // pred_region
          %p400 = scmp.lt.s32.totalorder %s20, 1
          %s401 = scalar_select %p400, %s20, 1
          %s402 = smul.addr %s401, 16
          %s403 = smul.addr %s402, 4
          %s404 = scalar_lea.vmem %s2, %s403
        $region64: #{encoder_forward.1} parent=51 // pred_fallthru
          _
      $region52: #{encoder_forward.1} parent=5 // pred_fallthru
        _
      %p405 = scmp.le.s32.totalorder 1, %s20
      %p406 = scmp.lt.s32.totalorder %s20, 3
      %p407 = pnand %p405, %p406
      %p408 = pneg %p407
      // Predicated region
      $region65: #{encoder_forward.1} parent=5 // pred_check
        _
      $region66: #{encoder_forward.1} parent=5 // pred_check_branch
        %410 = sbr.rel (%p407) target = $region68
      $region67: #{encoder_forward.1} parent=5 // pred_region
        %s411 = ssub.s32 %s20, 1
        // Predicated region
        $region69: #{encoder_forward.1} parent=67 // pred_check
          %p412 = pneg %p119
        $region70: #{encoder_forward.1} parent=67 // pred_check_branch
          %414 = sbr.rel (%p412) target = $region72
        $region71: #{encoder_forward.1} parent=67 // pred_region
          %415 = dma.done [#allocation3], 32768
        $region72: #{encoder_forward.1} parent=67 // pred_fallthru
          _
        // Predicated region
        $region73: #{encoder_forward.1} parent=67 // pred_check
          %p416 = pneg %p182
        $region74: #{encoder_forward.1} parent=67 // pred_check_branch
          %418 = sbr.rel (%p416) target = $region76
        $region75: #{encoder_forward.1} parent=67 // pred_region
          %419 = dma.done [#allocation5], 32768
        $region76: #{encoder_forward.1} parent=67 // pred_fallthru
          _
        %s420 = smul.u32 16, %s25
        %p421 = scmp.lt.s32.totalorder %s420, 31
        %s422 = scalar_select %p421, %s420, 31
        %s423 = smul.addr %s422, 4
        %s424 = smul.addr %s423, 4
        %s425 = scalar_lea.vmem %s0, %s424
        %p426 = pneg %p46
        %p427 = pneg %p43
        %p428 = scmp.lt.s32.totalorder %s25, 1
        %s429 = scalar_select %p428, %s25, 1
        %s430 = smul.addr %s429, 16
        %s431 = smul.addr %s430, 8
        %s432 = scalar_lea.vmem %s1, %s431
        %p433 = pneg %p72
        %p434 = pneg %p69
        %p435 = scmp.lt.s32.totalorder %s25, 1
        %s436 = scalar_select %p435, %s25, 1
        %s437 = smul.addr %s436, 16
        %s438 = smul.addr %s437, 4
        %s439 = scalar_lea.vmem %s2, %s438
        %p440 = pneg %p98
        %p441 = pneg %p95
        %p442 = pneg %p119
        %p443 = pneg %p116
        %p444 = pneg %p140
        %p445 = pneg %p137
        %p446 = pneg %p161
        %p447 = pneg %p158
        %p448 = pneg %p182
        %p449 = pneg %p179
        %p450 = pneg %p203
        %p451 = pneg %p200
        %p452 = pneg %p224
        %p453 = pneg %p221
        %p454 = pneg %p245
        %p455 = pneg %p242
        %p456 = pneg %p266
        %p457 = pneg %p263
        %p458 = pneg %p287
        %p459 = pneg %p284
        %p460 = pneg %p313
        %p461 = pneg %p310
        %s462 = smul.u32 16, %s25
        %p463 = scmp.lt.s32.totalorder %s462, 31
        %s464 = scalar_select %p463, %s462, 31
        %s465 = smul.addr %s464, 8
        %s466 = scalar_lea.vmem %s12, %s465
        %s467 = smul.u32 16, %s25
        %p468 = scmp.lt.s32.totalorder %s467, 31
        %s469 = scalar_select %p468, %s467, 31
        %s470 = smul.addr %s469, 4
        %s471 = smul.addr %s470, 4
        %s472 = scalar_lea.vmem %s0, %s471
        %s473 = smul.u32 16, %s25
        %p474 = scmp.lt.s32.totalorder %s25, 1
        %s475 = scalar_select %p474, %s25, 1
        %s476 = smul.addr %s475, 16
        %s477 = smul.addr %s476, 8
        %s478 = scalar_lea.vmem %s1, %s477
        %p479 = scmp.lt.s32.totalorder %s25, 1
        %s480 = scalar_select %p479, %s25, 1
        %s481 = smul.addr %s480, 16
        %s482 = smul.addr %s481, 4
        %s483 = scalar_lea.vmem %s2, %s482
        %s484 = smul.u32 16, %s25
        %p485 = scmp.lt.s32.totalorder %s484, 31
        %s486 = scalar_select %p485, %s484, 31
        %s487 = smul.addr %s486, 8
        %s488 = scalar_lea.vmem %s12, %s487
        %s489 = smul.u32 16, %s25
        %v491 = vld [vmem:[%s472] sm:$0xff]
        %v492 = vld [vmem:[%s472 + $0x8] sm:$0xff]
        %v493 = vld [vmem:[%s472 + $0x10] sm:$0xff]
        %v494 = vld [vmem:[%s472 + $0x18] sm:$0xff]
        %v495 = vld [vmem:[%s472 + $0x20] sm:$0xff]
        %v496 = vld [vmem:[%s472 + $0x28] sm:$0xff]
        %v497 = vld [vmem:[%s472 + $0x30] sm:$0xff]
        %v498 = vld [vmem:[%s472 + $0x38] sm:$0xff]
        %v499 = vld [vmem:[%s472 + $0x40] sm:$0xff]
        %v500 = vld [vmem:[%s472 + $0x48] sm:$0xff]
        %v501 = vld [vmem:[%s472 + $0x50] sm:$0xff]
        %v502 = vld [vmem:[%s472 + $0x58] sm:$0xff]
        %v503 = vld [vmem:[%s472 + $0x60] sm:$0xff]
        %v504 = vld [vmem:[%s472 + $0x68] sm:$0xff]
        %v505 = vld [vmem:[%s472 + $0x70] sm:$0xff]
        %v506 = vld [vmem:[%s472 + $0x78] sm:$0xff]
        %v507 = vld [vmem:[%s472 + $0x80] sm:$0xff]
        %v508 = vld [vmem:[%s472 + $0x88] sm:$0xff]
        %v509 = vld [vmem:[%s472 + $0x90] sm:$0xff]
        %v510 = vld [vmem:[%s472 + $0x98] sm:$0xff]
        %v511 = vld [vmem:[%s472 + $0xa0] sm:$0xff]
        %v512 = vld [vmem:[%s472 + $0xa8] sm:$0xff]
        %v513 = vld [vmem:[%s472 + $0xb0] sm:$0xff]
        %v514 = vld [vmem:[%s472 + $0xb8] sm:$0xff]
        %v515 = vld [vmem:[%s472 + $0xc0] sm:$0xff]
        %v516 = vld [vmem:[%s472 + $0xc8] sm:$0xff]
        %v517 = vld [vmem:[%s472 + $0xd0] sm:$0xff]
        %v518 = vld [vmem:[%s472 + $0xd8] sm:$0xff]
        %v519 = vld [vmem:[%s472 + $0xe0] sm:$0xff]
        %v520 = vld [vmem:[%s472 + $0xe8] sm:$0xff]
        %v521 = vld [vmem:[%s472 + $0xf0] sm:$0xff]
        %v522 = vld [vmem:[%s472 + $0xf8] sm:$0xff]
        %v523 = vld [vmem:[%s478] sm:$0xff]
        %v524 = vld [vmem:[%s478 + $0x8] sm:$0xff]
        %v525 = vld [vmem:[%s478 + $0x10] sm:$0xff]
        %v526 = vld [vmem:[%s478 + $0x18] sm:$0xff]
        %v527 = vld [vmem:[%s478 + $0x20] sm:$0xff]
        %v528 = vld [vmem:[%s478 + $0x28] sm:$0xff]
        %v529 = vld [vmem:[%s478 + $0x30] sm:$0xff]
        %v530 = vld [vmem:[%s478 + $0x38] sm:$0xff]
        %v531 = vld [vmem:[%s478 + $0x40] sm:$0xff]
        %v532 = vld [vmem:[%s478 + $0x48] sm:$0xff]
        %v533 = vld [vmem:[%s478 + $0x50] sm:$0xff]
        %v534 = vld [vmem:[%s478 + $0x58] sm:$0xff]
        %v535 = vld [vmem:[%s478 + $0x60] sm:$0xff]
        %v536 = vld [vmem:[%s478 + $0x68] sm:$0xff]
        %v537 = vld [vmem:[%s478 + $0x70] sm:$0xff]
        %v538 = vld [vmem:[%s478 + $0x78] sm:$0xff]
        %v539 = vld [vmem:[#allocation2] sm:$0xff]
        %v540 = vld [vmem:[#allocation2 + $0x8] sm:$0xff]
        %v541 = vld [vmem:[#allocation2 + $0x10] sm:$0xff]
        %v542 = vld [vmem:[#allocation2 + $0x18] sm:$0xff]
        %v543 = vld [vmem:[#allocation2 + $0x20] sm:$0xff]
        %v544 = vld [vmem:[#allocation2 + $0x28] sm:$0xff]
        %v545 = vld [vmem:[#allocation2 + $0x30] sm:$0xff]
        %v546 = vld [vmem:[#allocation2 + $0x38] sm:$0xff]
        %v547 = vld [vmem:[#allocation2 + $0x40] sm:$0xff]
        %v548 = vld [vmem:[#allocation2 + $0x48] sm:$0xff]
        %v549 = vld [vmem:[#allocation2 + $0x50] sm:$0xff]
        %v550 = vld [vmem:[#allocation2 + $0x58] sm:$0xff]
        %v551 = vld [vmem:[#allocation2 + $0x60] sm:$0xff]
        %v552 = vld [vmem:[#allocation2 + $0x68] sm:$0xff]
        %v553 = vld [vmem:[#allocation2 + $0x70] sm:$0xff]
        %v554 = vld [vmem:[#allocation2 + $0x78] sm:$0xff]
        %v555 = vld [vmem:[#allocation2 + $0x80] sm:$0xff]
        %v556 = vld [vmem:[#allocation2 + $0x88] sm:$0xff]
        %v557 = vld [vmem:[#allocation2 + $0x90] sm:$0xff]
        %v558 = vld [vmem:[#allocation2 + $0x98] sm:$0xff]
        %v559 = vld [vmem:[#allocation2 + $0xa0] sm:$0xff]
        %v560 = vld [vmem:[#allocation2 + $0xa8] sm:$0xff]
        %v561 = vld [vmem:[#allocation2 + $0xb0] sm:$0xff]
        %v562 = vld [vmem:[#allocation2 + $0xb8] sm:$0xff]
        %v563 = vld [vmem:[#allocation2 + $0xc0] sm:$0xff]
        %v564 = vld [vmem:[#allocation2 + $0xc8] sm:$0xff]
        %v565 = vld [vmem:[#allocation2 + $0xd0] sm:$0xff]
        %v566 = vld [vmem:[#allocation2 + $0xd8] sm:$0xff]
        %v567 = vld [vmem:[#allocation2 + $0xe0] sm:$0xff]
        %v568 = vld [vmem:[#allocation2 + $0xe8] sm:$0xff]
        %v569 = vld [vmem:[#allocation2 + $0xf0] sm:$0xff]
        %v570 = vld [vmem:[#allocation2 + $0xf8] sm:$0xff]
        %v571 = vld [vmem:[#allocation2 + $0x100] sm:$0xff]
        %v572 = vld [vmem:[#allocation2 + $0x108] sm:$0xff]
        %v573 = vld [vmem:[#allocation2 + $0x110] sm:$0xff]
        %v574 = vld [vmem:[#allocation2 + $0x118] sm:$0xff]
        %v575 = vld [vmem:[#allocation2 + $0x120] sm:$0xff]
        %v576 = vld [vmem:[#allocation2 + $0x128] sm:$0xff]
        %v577 = vld [vmem:[#allocation2 + $0x130] sm:$0xff]
        %v578 = vld [vmem:[#allocation2 + $0x138] sm:$0xff]
        %v579 = vld [vmem:[#allocation2 + $0x140] sm:$0xff]
        %v580 = vld [vmem:[#allocation2 + $0x148] sm:$0xff]
        %v581 = vld [vmem:[#allocation2 + $0x150] sm:$0xff]
        %v582 = vld [vmem:[#allocation2 + $0x158] sm:$0xff]
        %v583 = vld [vmem:[#allocation2 + $0x160] sm:$0xff]
        %v584 = vld [vmem:[#allocation2 + $0x168] sm:$0xff]
        %v585 = vld [vmem:[#allocation2 + $0x170] sm:$0xff]
        %v586 = vld [vmem:[#allocation2 + $0x178] sm:$0xff]
        %v587 = vld [vmem:[#allocation2 + $0x180] sm:$0xff]
        %v588 = vld [vmem:[#allocation2 + $0x188] sm:$0xff]
        %v589 = vld [vmem:[#allocation2 + $0x190] sm:$0xff]
        %v590 = vld [vmem:[#allocation2 + $0x198] sm:$0xff]
        %v591 = vld [vmem:[#allocation2 + $0x1a0] sm:$0xff]
        %v592 = vld [vmem:[#allocation2 + $0x1a8] sm:$0xff]
        %v593 = vld [vmem:[#allocation2 + $0x1b0] sm:$0xff]
        %v594 = vld [vmem:[#allocation2 + $0x1b8] sm:$0xff]
        %v595 = vld [vmem:[#allocation2 + $0x1c0] sm:$0xff]
        %v596 = vld [vmem:[#allocation2 + $0x1c8] sm:$0xff]
        %v597 = vld [vmem:[#allocation2 + $0x1d0] sm:$0xff]
        %v598 = vld [vmem:[#allocation2 + $0x1d8] sm:$0xff]
        %v599 = vld [vmem:[#allocation2 + $0x1e0] sm:$0xff]
        %v600 = vld [vmem:[#allocation2 + $0x1e8] sm:$0xff]
        %v601 = vld [vmem:[#allocation2 + $0x1f0] sm:$0xff]
        %v602 = vld [vmem:[#allocation2 + $0x1f8] sm:$0xff]
        %v603 = vld [vmem:[#allocation2 + $0x200] sm:$0xff]
        %v604 = vld [vmem:[#allocation2 + $0x208] sm:$0xff]
        %v605 = vld [vmem:[#allocation2 + $0x210] sm:$0xff]
        %v606 = vld [vmem:[#allocation2 + $0x218] sm:$0xff]
        %v607 = vld [vmem:[#allocation2 + $0x220] sm:$0xff]
        %v608 = vld [vmem:[#allocation2 + $0x228] sm:$0xff]
        %v609 = vld [vmem:[#allocation2 + $0x230] sm:$0xff]
        %v610 = vld [vmem:[#allocation2 + $0x238] sm:$0xff]
        %v611 = vld [vmem:[#allocation2 + $0x240] sm:$0xff]
        %v612 = vld [vmem:[#allocation2 + $0x248] sm:$0xff]
        %v613 = vld [vmem:[#allocation2 + $0x250] sm:$0xff]
        %v614 = vld [vmem:[#allocation2 + $0x258] sm:$0xff]
        %v615 = vld [vmem:[#allocation2 + $0x260] sm:$0xff]
        %v616 = vld [vmem:[#allocation2 + $0x268] sm:$0xff]
        %v617 = vld [vmem:[#allocation2 + $0x270] sm:$0xff]
        %v618 = vld [vmem:[#allocation2 + $0x278] sm:$0xff]
        %v619 = vld [vmem:[#allocation2 + $0x280] sm:$0xff]
        %v620 = vld [vmem:[#allocation2 + $0x288] sm:$0xff]
        %v621 = vld [vmem:[#allocation2 + $0x290] sm:$0xff]
        %v622 = vld [vmem:[#allocation2 + $0x298] sm:$0xff]
        %v623 = vld [vmem:[#allocation2 + $0x2a0] sm:$0xff]
        %v624 = vld [vmem:[#allocation2 + $0x2a8] sm:$0xff]
        %v625 = vld [vmem:[#allocation2 + $0x2b0] sm:$0xff]
        %v626 = vld [vmem:[#allocation2 + $0x2b8] sm:$0xff]
        %v627 = vld [vmem:[#allocation2 + $0x2c0] sm:$0xff]
        %v628 = vld [vmem:[#allocation2 + $0x2c8] sm:$0xff]
        %v629 = vld [vmem:[#allocation2 + $0x2d0] sm:$0xff]
        %v630 = vld [vmem:[#allocation2 + $0x2d8] sm:$0xff]
        %v631 = vld [vmem:[#allocation2 + $0x2e0] sm:$0xff]
        %v632 = vld [vmem:[#allocation2 + $0x2e8] sm:$0xff]
        %v633 = vld [vmem:[#allocation2 + $0x2f0] sm:$0xff]
        %v634 = vld [vmem:[#allocation2 + $0x2f8] sm:$0xff]
        %v635 = vld [vmem:[#allocation2 + $0x300] sm:$0xff]
        %v636 = vld [vmem:[#allocation2 + $0x308] sm:$0xff]
        %v637 = vld [vmem:[#allocation2 + $0x310] sm:$0xff]
        %v638 = vld [vmem:[#allocation2 + $0x318] sm:$0xff]
        %v639 = vld [vmem:[#allocation2 + $0x320] sm:$0xff]
        %v640 = vld [vmem:[#allocation2 + $0x328] sm:$0xff]
        %v641 = vld [vmem:[#allocation2 + $0x330] sm:$0xff]
        %v642 = vld [vmem:[#allocation2 + $0x338] sm:$0xff]
        %v643 = vld [vmem:[#allocation2 + $0x340] sm:$0xff]
        %v644 = vld [vmem:[#allocation2 + $0x348] sm:$0xff]
        %v645 = vld [vmem:[#allocation2 + $0x350] sm:$0xff]
        %v646 = vld [vmem:[#allocation2 + $0x358] sm:$0xff]
        %v647 = vld [vmem:[#allocation2 + $0x360] sm:$0xff]
        %v648 = vld [vmem:[#allocation2 + $0x368] sm:$0xff]
        %v649 = vld [vmem:[#allocation2 + $0x370] sm:$0xff]
        %v650 = vld [vmem:[#allocation2 + $0x378] sm:$0xff]
        %v651 = vld [vmem:[#allocation2 + $0x380] sm:$0xff]
        %v652 = vld [vmem:[#allocation2 + $0x388] sm:$0xff]
        %v653 = vld [vmem:[#allocation2 + $0x390] sm:$0xff]
        %v654 = vld [vmem:[#allocation2 + $0x398] sm:$0xff]
        %v655 = vld [vmem:[#allocation2 + $0x3a0] sm:$0xff]
        %v656 = vld [vmem:[#allocation2 + $0x3a8] sm:$0xff]
        %v657 = vld [vmem:[#allocation2 + $0x3b0] sm:$0xff]
        %v658 = vld [vmem:[#allocation2 + $0x3b8] sm:$0xff]
        %v659 = vld [vmem:[#allocation2 + $0x3c0] sm:$0xff]
        %v660 = vld [vmem:[#allocation2 + $0x3c8] sm:$0xff]
        %v661 = vld [vmem:[#allocation2 + $0x3d0] sm:$0xff]
        %v662 = vld [vmem:[#allocation2 + $0x3d8] sm:$0xff]
        %v663 = vld [vmem:[#allocation2 + $0x3e0] sm:$0xff]
        %v664 = vld [vmem:[#allocation2 + $0x3e8] sm:$0xff]
        %v665 = vld [vmem:[#allocation2 + $0x3f0] sm:$0xff]
        %v666 = vld [vmem:[#allocation2 + $0x3f8] sm:$0xff]
        %v667 = vld [vmem:[#allocation2 + $0x400] sm:$0xff]
        %v668 = vld [vmem:[#allocation2 + $0x408] sm:$0xff]
        %v669 = vld [vmem:[#allocation2 + $0x410] sm:$0xff]
        %v670 = vld [vmem:[#allocation2 + $0x418] sm:$0xff]
        %v671 = vld [vmem:[#allocation2 + $0x420] sm:$0xff]
        %v672 = vld [vmem:[#allocation2 + $0x428] sm:$0xff]
        %v673 = vld [vmem:[#allocation2 + $0x430] sm:$0xff]
        %v674 = vld [vmem:[#allocation2 + $0x438] sm:$0xff]
        %v675 = vld [vmem:[#allocation2 + $0x440] sm:$0xff]
        %v676 = vld [vmem:[#allocation2 + $0x448] sm:$0xff]
        %v677 = vld [vmem:[#allocation2 + $0x450] sm:$0xff]
        %v678 = vld [vmem:[#allocation2 + $0x458] sm:$0xff]
        %v679 = vld [vmem:[#allocation2 + $0x460] sm:$0xff]
        %v680 = vld [vmem:[#allocation2 + $0x468] sm:$0xff]
        %v681 = vld [vmem:[#allocation2 + $0x470] sm:$0xff]
        %v682 = vld [vmem:[#allocation2 + $0x478] sm:$0xff]
        %v683 = vld [vmem:[#allocation2 + $0x480] sm:$0xff]
        %v684 = vld [vmem:[#allocation2 + $0x488] sm:$0xff]
        %v685 = vld [vmem:[#allocation2 + $0x490] sm:$0xff]
        %v686 = vld [vmem:[#allocation2 + $0x498] sm:$0xff]
        %v687 = vld [vmem:[#allocation2 + $0x4a0] sm:$0xff]
        %v688 = vld [vmem:[#allocation2 + $0x4a8] sm:$0xff]
        %v689 = vld [vmem:[#allocation2 + $0x4b0] sm:$0xff]
        %v690 = vld [vmem:[#allocation2 + $0x4b8] sm:$0xff]
        %v691 = vld [vmem:[#allocation2 + $0x4c0] sm:$0xff]
        %v692 = vld [vmem:[#allocation2 + $0x4c8] sm:$0xff]
        %v693 = vld [vmem:[#allocation2 + $0x4d0] sm:$0xff]
        %v694 = vld [vmem:[#allocation2 + $0x4d8] sm:$0xff]
        %v695 = vld [vmem:[#allocation2 + $0x4e0] sm:$0xff]
        %v696 = vld [vmem:[#allocation2 + $0x4e8] sm:$0xff]
        %v697 = vld [vmem:[#allocation2 + $0x4f0] sm:$0xff]
        %v698 = vld [vmem:[#allocation2 + $0x4f8] sm:$0xff]
        %v699 = vld [vmem:[#allocation2 + $0x500] sm:$0xff]
        %v700 = vld [vmem:[#allocation2 + $0x508] sm:$0xff]
        %v701 = vld [vmem:[#allocation2 + $0x510] sm:$0xff]
        %v702 = vld [vmem:[#allocation2 + $0x518] sm:$0xff]
        %v703 = vld [vmem:[#allocation2 + $0x520] sm:$0xff]
        %v704 = vld [vmem:[#allocation2 + $0x528] sm:$0xff]
        %v705 = vld [vmem:[#allocation2 + $0x530] sm:$0xff]
        %v706 = vld [vmem:[#allocation2 + $0x538] sm:$0xff]
        %v707 = vld [vmem:[#allocation2 + $0x540] sm:$0xff]
        %v708 = vld [vmem:[#allocation2 + $0x548] sm:$0xff]
        %v709 = vld [vmem:[#allocation2 + $0x550] sm:$0xff]
        %v710 = vld [vmem:[#allocation2 + $0x558] sm:$0xff]
        %v711 = vld [vmem:[#allocation2 + $0x560] sm:$0xff]
        %v712 = vld [vmem:[#allocation2 + $0x568] sm:$0xff]
        %v713 = vld [vmem:[#allocation2 + $0x570] sm:$0xff]
        %v714 = vld [vmem:[#allocation2 + $0x578] sm:$0xff]
        %v715 = vld [vmem:[#allocation2 + $0x580] sm:$0xff]
        %v716 = vld [vmem:[#allocation2 + $0x588] sm:$0xff]
        %v717 = vld [vmem:[#allocation2 + $0x590] sm:$0xff]
        %v718 = vld [vmem:[#allocation2 + $0x598] sm:$0xff]
        %v719 = vld [vmem:[#allocation2 + $0x5a0] sm:$0xff]
        %v720 = vld [vmem:[#allocation2 + $0x5a8] sm:$0xff]
        %v721 = vld [vmem:[#allocation2 + $0x5b0] sm:$0xff]
        %v722 = vld [vmem:[#allocation2 + $0x5b8] sm:$0xff]
        %v723 = vld [vmem:[#allocation2 + $0x5c0] sm:$0xff]
        %v724 = vld [vmem:[#allocation2 + $0x5c8] sm:$0xff]
        %v725 = vld [vmem:[#allocation2 + $0x5d0] sm:$0xff]
        %v726 = vld [vmem:[#allocation2 + $0x5d8] sm:$0xff]
        %v727 = vld [vmem:[#allocation2 + $0x5e0] sm:$0xff]
        %v728 = vld [vmem:[#allocation2 + $0x5e8] sm:$0xff]
        %v729 = vld [vmem:[#allocation2 + $0x5f0] sm:$0xff]
        %v730 = vld [vmem:[#allocation2 + $0x5f8] sm:$0xff]
        %v731 = vld [vmem:[#allocation2 + $0x600] sm:$0xff]
        %v732 = vld [vmem:[#allocation2 + $0x608] sm:$0xff]
        %v733 = vld [vmem:[#allocation2 + $0x610] sm:$0xff]
        %v734 = vld [vmem:[#allocation2 + $0x618] sm:$0xff]
        %v735 = vld [vmem:[#allocation2 + $0x620] sm:$0xff]
        %v736 = vld [vmem:[#allocation2 + $0x628] sm:$0xff]
        %v737 = vld [vmem:[#allocation2 + $0x630] sm:$0xff]
        %v738 = vld [vmem:[#allocation2 + $0x638] sm:$0xff]
        %v739 = vld [vmem:[#allocation2 + $0x640] sm:$0xff]
        %v740 = vld [vmem:[#allocation2 + $0x648] sm:$0xff]
        %v741 = vld [vmem:[#allocation2 + $0x650] sm:$0xff]
        %v742 = vld [vmem:[#allocation2 + $0x658] sm:$0xff]
        %v743 = vld [vmem:[#allocation2 + $0x660] sm:$0xff]
        %v744 = vld [vmem:[#allocation2 + $0x668] sm:$0xff]
        %v745 = vld [vmem:[#allocation2 + $0x670] sm:$0xff]
        %v746 = vld [vmem:[#allocation2 + $0x678] sm:$0xff]
        %v747 = vld [vmem:[#allocation2 + $0x680] sm:$0xff]
        %v748 = vld [vmem:[#allocation2 + $0x688] sm:$0xff]
        %v749 = vld [vmem:[#allocation2 + $0x690] sm:$0xff]
        %v750 = vld [vmem:[#allocation2 + $0x698] sm:$0xff]
        %v751 = vld [vmem:[#allocation2 + $0x6a0] sm:$0xff]
        %v752 = vld [vmem:[#allocation2 + $0x6a8] sm:$0xff]
        %v753 = vld [vmem:[#allocation2 + $0x6b0] sm:$0xff]
        %v754 = vld [vmem:[#allocation2 + $0x6b8] sm:$0xff]
        %v755 = vld [vmem:[#allocation2 + $0x6c0] sm:$0xff]
        %v756 = vld [vmem:[#allocation2 + $0x6c8] sm:$0xff]
        %v757 = vld [vmem:[#allocation2 + $0x6d0] sm:$0xff]
        %v758 = vld [vmem:[#allocation2 + $0x6d8] sm:$0xff]
        %v759 = vld [vmem:[#allocation2 + $0x6e0] sm:$0xff]
        %v760 = vld [vmem:[#allocation2 + $0x6e8] sm:$0xff]
        %v761 = vld [vmem:[#allocation2 + $0x6f0] sm:$0xff]
        %v762 = vld [vmem:[#allocation2 + $0x6f8] sm:$0xff]
        %v763 = vld [vmem:[#allocation2 + $0x700] sm:$0xff]
        %v764 = vld [vmem:[#allocation2 + $0x708] sm:$0xff]
        %v765 = vld [vmem:[#allocation2 + $0x710] sm:$0xff]
        %v766 = vld [vmem:[#allocation2 + $0x718] sm:$0xff]
        %v767 = vld [vmem:[#allocation2 + $0x720] sm:$0xff]
        %v768 = vld [vmem:[#allocation2 + $0x728] sm:$0xff]
        %v769 = vld [vmem:[#allocation2 + $0x730] sm:$0xff]
        %v770 = vld [vmem:[#allocation2 + $0x738] sm:$0xff]
        %v771 = vld [vmem:[#allocation2 + $0x740] sm:$0xff]
        %v772 = vld [vmem:[#allocation2 + $0x748] sm:$0xff]
        %v773 = vld [vmem:[#allocation2 + $0x750] sm:$0xff]
        %v774 = vld [vmem:[#allocation2 + $0x758] sm:$0xff]
        %v775 = vld [vmem:[#allocation2 + $0x760] sm:$0xff]
        %v776 = vld [vmem:[#allocation2 + $0x768] sm:$0xff]
        %v777 = vld [vmem:[#allocation2 + $0x770] sm:$0xff]
        %v778 = vld [vmem:[#allocation2 + $0x778] sm:$0xff]
        %v779 = vld [vmem:[#allocation2 + $0x780] sm:$0xff]
        %v780 = vld [vmem:[#allocation2 + $0x788] sm:$0xff]
        %v781 = vld [vmem:[#allocation2 + $0x790] sm:$0xff]
        %v782 = vld [vmem:[#allocation2 + $0x798] sm:$0xff]
        %v783 = vld [vmem:[#allocation2 + $0x7a0] sm:$0xff]
        %v784 = vld [vmem:[#allocation2 + $0x7a8] sm:$0xff]
        %v785 = vld [vmem:[#allocation2 + $0x7b0] sm:$0xff]
        %v786 = vld [vmem:[#allocation2 + $0x7b8] sm:$0xff]
        %v787 = vld [vmem:[#allocation2 + $0x7c0] sm:$0xff]
        %v788 = vld [vmem:[#allocation2 + $0x7c8] sm:$0xff]
        %v789 = vld [vmem:[#allocation2 + $0x7d0] sm:$0xff]
        %v790 = vld [vmem:[#allocation2 + $0x7d8] sm:$0xff]
        %v791 = vld [vmem:[#allocation2 + $0x7e0] sm:$0xff]
        %v792 = vld [vmem:[#allocation2 + $0x7e8] sm:$0xff]
        %v793 = vld [vmem:[#allocation2 + $0x7f0] sm:$0xff]
        %v794 = vld [vmem:[#allocation2 + $0x7f8] sm:$0xff]
        %v827 = vunpack.c.l.b16 %v491
        %v828 = vunpack.c.h.b16 %v491
        %v829 = vunpack.c.l.b16 %v492
        %v830 = vunpack.c.h.b16 %v492
        %v831 = vunpack.c.l.b16 %v493
        %v832 = vunpack.c.h.b16 %v493
        %v833 = vunpack.c.l.b16 %v494
        %v834 = vunpack.c.h.b16 %v494
        %v835 = vunpack.c.l.b16 %v495
        %v836 = vunpack.c.h.b16 %v495
        %v837 = vunpack.c.l.b16 %v496
        %v838 = vunpack.c.h.b16 %v496
        %v839 = vunpack.c.l.b16 %v497
        %v840 = vunpack.c.h.b16 %v497
        %v841 = vunpack.c.l.b16 %v498
        %v842 = vunpack.c.h.b16 %v498
        %v843 = vunpack.c.l.b16 %v499
        %v844 = vunpack.c.h.b16 %v499
        %v845 = vunpack.c.l.b16 %v500
        %v846 = vunpack.c.h.b16 %v500
        %v847 = vunpack.c.l.b16 %v501
        %v848 = vunpack.c.h.b16 %v501
        %v849 = vunpack.c.l.b16 %v502
        %v850 = vunpack.c.h.b16 %v502
        %v851 = vunpack.c.l.b16 %v503
        %v852 = vunpack.c.h.b16 %v503
        %v853 = vunpack.c.l.b16 %v504
        %v854 = vunpack.c.h.b16 %v504
        %v855 = vunpack.c.l.b16 %v505
        %v856 = vunpack.c.h.b16 %v505
        %v857 = vunpack.c.l.b16 %v506
        %v858 = vunpack.c.h.b16 %v506
        %v859 = vunpack.c.l.b16 %v507
        %v860 = vunpack.c.h.b16 %v507
        %v861 = vunpack.c.l.b16 %v508
        %v862 = vunpack.c.h.b16 %v508
        %v863 = vunpack.c.l.b16 %v509
        %v864 = vunpack.c.h.b16 %v509
        %v865 = vunpack.c.l.b16 %v510
        %v866 = vunpack.c.h.b16 %v510
        %v867 = vunpack.c.l.b16 %v511
        %v868 = vunpack.c.h.b16 %v511
        %v869 = vunpack.c.l.b16 %v512
        %v870 = vunpack.c.h.b16 %v512
        %v871 = vunpack.c.l.b16 %v513
        %v872 = vunpack.c.h.b16 %v513
        %v873 = vunpack.c.l.b16 %v514
        %v874 = vunpack.c.h.b16 %v514
        %v875 = vunpack.c.l.b16 %v515
        %v876 = vunpack.c.h.b16 %v515
        %v877 = vunpack.c.l.b16 %v516
        %v878 = vunpack.c.h.b16 %v516
        %v879 = vunpack.c.l.b16 %v517
        %v880 = vunpack.c.h.b16 %v517
        %v881 = vunpack.c.l.b16 %v518
        %v882 = vunpack.c.h.b16 %v518
        %v883 = vunpack.c.l.b16 %v519
        %v884 = vunpack.c.h.b16 %v519
        %v885 = vunpack.c.l.b16 %v520
        %v886 = vunpack.c.h.b16 %v520
        %v887 = vunpack.c.l.b16 %v521
        %v888 = vunpack.c.h.b16 %v521
        %v889 = vunpack.c.l.b16 %v522
        %v890 = vunpack.c.h.b16 %v522
        %v891 = vpack.c.b16 %v831, %v827
        %v892 = vpack.c.b16 %v832, %v828
        %v893 = vpack.c.b16 %v833, %v829
        %v894 = vpack.c.b16 %v834, %v830
        %v895 = vpack.c.b16 %v839, %v835
        %v896 = vpack.c.b16 %v840, %v836
        %v897 = vpack.c.b16 %v841, %v837
        %v898 = vpack.c.b16 %v842, %v838
        %v899 = vpack.c.b16 %v847, %v843
        %v900 = vpack.c.b16 %v848, %v844
        %v901 = vpack.c.b16 %v849, %v845
        %v902 = vpack.c.b16 %v850, %v846
        %v903 = vpack.c.b16 %v855, %v851
        %v904 = vpack.c.b16 %v856, %v852
        %v905 = vpack.c.b16 %v857, %v853
        %v906 = vpack.c.b16 %v858, %v854
        %v907 = vpack.c.b16 %v863, %v859
        %v908 = vpack.c.b16 %v864, %v860
        %v909 = vpack.c.b16 %v865, %v861
        %v910 = vpack.c.b16 %v866, %v862
        %v911 = vpack.c.b16 %v871, %v867
        %v912 = vpack.c.b16 %v872, %v868
        %v913 = vpack.c.b16 %v873, %v869
        %v914 = vpack.c.b16 %v874, %v870
        %v915 = vpack.c.b16 %v879, %v875
        %v916 = vpack.c.b16 %v880, %v876
        %v917 = vpack.c.b16 %v881, %v877
        %v918 = vpack.c.b16 %v882, %v878
        %v919 = vpack.c.b16 %v887, %v883
        %v920 = vpack.c.b16 %v888, %v884
        %v921 = vpack.c.b16 %v889, %v885
        %v922 = vpack.c.b16 %v890, %v886
        %v1211 = vunpack.c.l.b16 %v539
        %v1212 = vunpack.c.h.b16 %v539
        %v1213 = vunpack.c.l.b16 %v540
        %v1214 = vunpack.c.h.b16 %v540
        %v1215 = vunpack.c.l.b16 %v541
        %v1216 = vunpack.c.h.b16 %v541
        %v1217 = vunpack.c.l.b16 %v542
        %v1218 = vunpack.c.h.b16 %v542
        %v1219 = vunpack.c.l.b16 %v543
        %v1220 = vunpack.c.h.b16 %v543
        %v1221 = vunpack.c.l.b16 %v544
        %v1222 = vunpack.c.h.b16 %v544
        %v1223 = vunpack.c.l.b16 %v545
        %v1224 = vunpack.c.h.b16 %v545
        %v1225 = vunpack.c.l.b16 %v546
        %v1226 = vunpack.c.h.b16 %v546
        %v1227 = vunpack.c.l.b16 %v547
        %v1228 = vunpack.c.h.b16 %v547
        %v1229 = vunpack.c.l.b16 %v548
        %v1230 = vunpack.c.h.b16 %v548
        %v1231 = vunpack.c.l.b16 %v549
        %v1232 = vunpack.c.h.b16 %v549
        %v1233 = vunpack.c.l.b16 %v550
        %v1234 = vunpack.c.h.b16 %v550
        %v1235 = vunpack.c.l.b16 %v551
        %v1236 = vunpack.c.h.b16 %v551
        %v1237 = vunpack.c.l.b16 %v552
        %v1238 = vunpack.c.h.b16 %v552
        %v1239 = vunpack.c.l.b16 %v553
        %v1240 = vunpack.c.h.b16 %v553
        %v1241 = vunpack.c.l.b16 %v554
        %v1242 = vunpack.c.h.b16 %v554
        %v1243 = vunpack.c.l.b16 %v555
        %v1244 = vunpack.c.h.b16 %v555
        %v1245 = vunpack.c.l.b16 %v556
        %v1246 = vunpack.c.h.b16 %v556
        %v1247 = vunpack.c.l.b16 %v557
        %v1248 = vunpack.c.h.b16 %v557
        %v1249 = vunpack.c.l.b16 %v558
        %v1250 = vunpack.c.h.b16 %v558
        %v1251 = vunpack.c.l.b16 %v559
        %v1252 = vunpack.c.h.b16 %v559
        %v1253 = vunpack.c.l.b16 %v560
        %v1254 = vunpack.c.h.b16 %v560
        %v1255 = vunpack.c.l.b16 %v561
        %v1256 = vunpack.c.h.b16 %v561
        %v1257 = vunpack.c.l.b16 %v562
        %v1258 = vunpack.c.h.b16 %v562
        %v1259 = vunpack.c.l.b16 %v563
        %v1260 = vunpack.c.h.b16 %v563
        %v1261 = vunpack.c.l.b16 %v564
        %v1262 = vunpack.c.h.b16 %v564
        %v1263 = vunpack.c.l.b16 %v565
        %v1264 = vunpack.c.h.b16 %v565
        %v1265 = vunpack.c.l.b16 %v566
        %v1266 = vunpack.c.h.b16 %v566
        %v1267 = vunpack.c.l.b16 %v567
        %v1268 = vunpack.c.h.b16 %v567
        %v1269 = vunpack.c.l.b16 %v568
        %v1270 = vunpack.c.h.b16 %v568
        %v1271 = vunpack.c.l.b16 %v569
        %v1272 = vunpack.c.h.b16 %v569
        %v1273 = vunpack.c.l.b16 %v570
        %v1274 = vunpack.c.h.b16 %v570
        %v1275 = vunpack.c.l.b16 %v571
        %v1276 = vunpack.c.h.b16 %v571
        %v1277 = vunpack.c.l.b16 %v572
        %v1278 = vunpack.c.h.b16 %v572
        %v1279 = vunpack.c.l.b16 %v573
        %v1280 = vunpack.c.h.b16 %v573
        %v1281 = vunpack.c.l.b16 %v574
        %v1282 = vunpack.c.h.b16 %v574
        %v1283 = vunpack.c.l.b16 %v575
        %v1284 = vunpack.c.h.b16 %v575
        %v1285 = vunpack.c.l.b16 %v576
        %v1286 = vunpack.c.h.b16 %v576
        %v1287 = vunpack.c.l.b16 %v577
        %v1288 = vunpack.c.h.b16 %v577
        %v1289 = vunpack.c.l.b16 %v578
        %v1290 = vunpack.c.h.b16 %v578
        %v1291 = vunpack.c.l.b16 %v579
        %v1292 = vunpack.c.h.b16 %v579
        %v1293 = vunpack.c.l.b16 %v580
        %v1294 = vunpack.c.h.b16 %v580
        %v1295 = vunpack.c.l.b16 %v581
        %v1296 = vunpack.c.h.b16 %v581
        %v1297 = vunpack.c.l.b16 %v582
        %v1298 = vunpack.c.h.b16 %v582
        %v1299 = vunpack.c.l.b16 %v583
        %v1300 = vunpack.c.h.b16 %v583
        %v1301 = vunpack.c.l.b16 %v584
        %v1302 = vunpack.c.h.b16 %v584
        %v1303 = vunpack.c.l.b16 %v585
        %v1304 = vunpack.c.h.b16 %v585
        %v1305 = vunpack.c.l.b16 %v586
        %v1306 = vunpack.c.h.b16 %v586
        %v1307 = vunpack.c.l.b16 %v587
        %v1308 = vunpack.c.h.b16 %v587
        %v1309 = vunpack.c.l.b16 %v588
        %v1310 = vunpack.c.h.b16 %v588
        %v1311 = vunpack.c.l.b16 %v589
        %v1312 = vunpack.c.h.b16 %v589
        %v1313 = vunpack.c.l.b16 %v590
        %v1314 = vunpack.c.h.b16 %v590
        %v1315 = vunpack.c.l.b16 %v591
        %v1316 = vunpack.c.h.b16 %v591
        %v1317 = vunpack.c.l.b16 %v592
        %v1318 = vunpack.c.h.b16 %v592
        %v1319 = vunpack.c.l.b16 %v593
        %v1320 = vunpack.c.h.b16 %v593
        %v1321 = vunpack.c.l.b16 %v594
        %v1322 = vunpack.c.h.b16 %v594
        %v1323 = vunpack.c.l.b16 %v595
        %v1324 = vunpack.c.h.b16 %v595
        %v1325 = vunpack.c.l.b16 %v596
        %v1326 = vunpack.c.h.b16 %v596
        %v1327 = vunpack.c.l.b16 %v597
        %v1328 = vunpack.c.h.b16 %v597
        %v1329 = vunpack.c.l.b16 %v598
        %v1330 = vunpack.c.h.b16 %v598
        %v1331 = vunpack.c.l.b16 %v599
        %v1332 = vunpack.c.h.b16 %v599
        %v1333 = vunpack.c.l.b16 %v600
        %v1334 = vunpack.c.h.b16 %v600
        %v1335 = vunpack.c.l.b16 %v601
        %v1336 = vunpack.c.h.b16 %v601
        %v1337 = vunpack.c.l.b16 %v602
        %v1338 = vunpack.c.h.b16 %v602
        %v1339 = vunpack.c.l.b16 %v603
        %v1340 = vunpack.c.h.b16 %v603
        %v1341 = vunpack.c.l.b16 %v604
        %v1342 = vunpack.c.h.b16 %v604
        %v1343 = vunpack.c.l.b16 %v605
        %v1344 = vunpack.c.h.b16 %v605
        %v1345 = vunpack.c.l.b16 %v606
        %v1346 = vunpack.c.h.b16 %v606
        %v1347 = vunpack.c.l.b16 %v607
        %v1348 = vunpack.c.h.b16 %v607
        %v1349 = vunpack.c.l.b16 %v608
        %v1350 = vunpack.c.h.b16 %v608
        %v1351 = vunpack.c.l.b16 %v609
        %v1352 = vunpack.c.h.b16 %v609
        %v1353 = vunpack.c.l.b16 %v610
        %v1354 = vunpack.c.h.b16 %v610
        %v1355 = vunpack.c.l.b16 %v611
        %v1356 = vunpack.c.h.b16 %v611
        %v1357 = vunpack.c.l.b16 %v612
        %v1358 = vunpack.c.h.b16 %v612
        %v1359 = vunpack.c.l.b16 %v613
        %v1360 = vunpack.c.h.b16 %v613
        %v1361 = vunpack.c.l.b16 %v614
        %v1362 = vunpack.c.h.b16 %v614
        %v1363 = vunpack.c.l.b16 %v615
        %v1364 = vunpack.c.h.b16 %v615
        %v1365 = vunpack.c.l.b16 %v616
        %v1366 = vunpack.c.h.b16 %v616
        %v1367 = vunpack.c.l.b16 %v617
        %v1368 = vunpack.c.h.b16 %v617
        %v1369 = vunpack.c.l.b16 %v618
        %v1370 = vunpack.c.h.b16 %v618
        %v1371 = vunpack.c.l.b16 %v619
        %v1372 = vunpack.c.h.b16 %v619
        %v1373 = vunpack.c.l.b16 %v620
        %v1374 = vunpack.c.h.b16 %v620
        %v1375 = vunpack.c.l.b16 %v621
        %v1376 = vunpack.c.h.b16 %v621
        %v1377 = vunpack.c.l.b16 %v622
        %v1378 = vunpack.c.h.b16 %v622
        %v1379 = vunpack.c.l.b16 %v623
        %v1380 = vunpack.c.h.b16 %v623
        %v1381 = vunpack.c.l.b16 %v624
        %v1382 = vunpack.c.h.b16 %v624
        %v1383 = vunpack.c.l.b16 %v625
        %v1384 = vunpack.c.h.b16 %v625
        %v1385 = vunpack.c.l.b16 %v626
        %v1386 = vunpack.c.h.b16 %v626
        %v1387 = vunpack.c.l.b16 %v627
        %v1388 = vunpack.c.h.b16 %v627
        %v1389 = vunpack.c.l.b16 %v628
        %v1390 = vunpack.c.h.b16 %v628
        %v1391 = vunpack.c.l.b16 %v629
        %v1392 = vunpack.c.h.b16 %v629
        %v1393 = vunpack.c.l.b16 %v630
        %v1394 = vunpack.c.h.b16 %v630
        %v1395 = vunpack.c.l.b16 %v631
        %v1396 = vunpack.c.h.b16 %v631
        %v1397 = vunpack.c.l.b16 %v632
        %v1398 = vunpack.c.h.b16 %v632
        %v1399 = vunpack.c.l.b16 %v633
        %v1400 = vunpack.c.h.b16 %v633
        %v1401 = vunpack.c.l.b16 %v634
        %v1402 = vunpack.c.h.b16 %v634
        %v1403 = vunpack.c.l.b16 %v635
        %v1404 = vunpack.c.h.b16 %v635
        %v1405 = vunpack.c.l.b16 %v636
        %v1406 = vunpack.c.h.b16 %v636
        %v1407 = vunpack.c.l.b16 %v637
        %v1408 = vunpack.c.h.b16 %v637
        %v1409 = vunpack.c.l.b16 %v638
        %v1410 = vunpack.c.h.b16 %v638
        %v1411 = vunpack.c.l.b16 %v639
        %v1412 = vunpack.c.h.b16 %v639
        %v1413 = vunpack.c.l.b16 %v640
        %v1414 = vunpack.c.h.b16 %v640
        %v1415 = vunpack.c.l.b16 %v641
        %v1416 = vunpack.c.h.b16 %v641
        %v1417 = vunpack.c.l.b16 %v642
        %v1418 = vunpack.c.h.b16 %v642
        %v1419 = vunpack.c.l.b16 %v643
        %v1420 = vunpack.c.h.b16 %v643
        %v1421 = vunpack.c.l.b16 %v644
        %v1422 = vunpack.c.h.b16 %v644
        %v1423 = vunpack.c.l.b16 %v645
        %v1424 = vunpack.c.h.b16 %v645
        %v1425 = vunpack.c.l.b16 %v646
        %v1426 = vunpack.c.h.b16 %v646
        %v1427 = vunpack.c.l.b16 %v647
        %v1428 = vunpack.c.h.b16 %v647
        %v1429 = vunpack.c.l.b16 %v648
        %v1430 = vunpack.c.h.b16 %v648
        %v1431 = vunpack.c.l.b16 %v649
        %v1432 = vunpack.c.h.b16 %v649
        %v1433 = vunpack.c.l.b16 %v650
        %v1434 = vunpack.c.h.b16 %v650
        %v1435 = vunpack.c.l.b16 %v651
        %v1436 = vunpack.c.h.b16 %v651
        %v1437 = vunpack.c.l.b16 %v652
        %v1438 = vunpack.c.h.b16 %v652
        %v1439 = vunpack.c.l.b16 %v653
        %v1440 = vunpack.c.h.b16 %v653
        %v1441 = vunpack.c.l.b16 %v654
        %v1442 = vunpack.c.h.b16 %v654
        %v1443 = vunpack.c.l.b16 %v655
        %v1444 = vunpack.c.h.b16 %v655
        %v1445 = vunpack.c.l.b16 %v656
        %v1446 = vunpack.c.h.b16 %v656
        %v1447 = vunpack.c.l.b16 %v657
        %v1448 = vunpack.c.h.b16 %v657
        %v1449 = vunpack.c.l.b16 %v658
        %v1450 = vunpack.c.h.b16 %v658
        %v1451 = vunpack.c.l.b16 %v659
        %v1452 = vunpack.c.h.b16 %v659
        %v1453 = vunpack.c.l.b16 %v660
        %v1454 = vunpack.c.h.b16 %v660
        %v1455 = vunpack.c.l.b16 %v661
        %v1456 = vunpack.c.h.b16 %v661
        %v1457 = vunpack.c.l.b16 %v662
        %v1458 = vunpack.c.h.b16 %v662
        %v1459 = vunpack.c.l.b16 %v663
        %v1460 = vunpack.c.h.b16 %v663
        %v1461 = vunpack.c.l.b16 %v664
        %v1462 = vunpack.c.h.b16 %v664
        %v1463 = vunpack.c.l.b16 %v665
        %v1464 = vunpack.c.h.b16 %v665
        %v1465 = vunpack.c.l.b16 %v666
        %v1466 = vunpack.c.h.b16 %v666
        %v1467 = vunpack.c.l.b16 %v667
        %v1468 = vunpack.c.h.b16 %v667
        %v1469 = vunpack.c.l.b16 %v668
        %v1470 = vunpack.c.h.b16 %v668
        %v1471 = vunpack.c.l.b16 %v669
        %v1472 = vunpack.c.h.b16 %v669
        %v1473 = vunpack.c.l.b16 %v670
        %v1474 = vunpack.c.h.b16 %v670
        %v1475 = vunpack.c.l.b16 %v671
        %v1476 = vunpack.c.h.b16 %v671
        %v1477 = vunpack.c.l.b16 %v672
        %v1478 = vunpack.c.h.b16 %v672
        %v1479 = vunpack.c.l.b16 %v673
        %v1480 = vunpack.c.h.b16 %v673
        %v1481 = vunpack.c.l.b16 %v674
        %v1482 = vunpack.c.h.b16 %v674
        %v1483 = vunpack.c.l.b16 %v675
        %v1484 = vunpack.c.h.b16 %v675
        %v1485 = vunpack.c.l.b16 %v676
        %v1486 = vunpack.c.h.b16 %v676
        %v1487 = vunpack.c.l.b16 %v677
        %v1488 = vunpack.c.h.b16 %v677
        %v1489 = vunpack.c.l.b16 %v678
        %v1490 = vunpack.c.h.b16 %v678
        %v1491 = vunpack.c.l.b16 %v679
        %v1492 = vunpack.c.h.b16 %v679
        %v1493 = vunpack.c.l.b16 %v680
        %v1494 = vunpack.c.h.b16 %v680
        %v1495 = vunpack.c.l.b16 %v681
        %v1496 = vunpack.c.h.b16 %v681
        %v1497 = vunpack.c.l.b16 %v682
        %v1498 = vunpack.c.h.b16 %v682
        %v1499 = vunpack.c.l.b16 %v683
        %v1500 = vunpack.c.h.b16 %v683
        %v1501 = vunpack.c.l.b16 %v684
        %v1502 = vunpack.c.h.b16 %v684
        %v1503 = vunpack.c.l.b16 %v685
        %v1504 = vunpack.c.h.b16 %v685
        %v1505 = vunpack.c.l.b16 %v686
        %v1506 = vunpack.c.h.b16 %v686
        %v1507 = vunpack.c.l.b16 %v687
        %v1508 = vunpack.c.h.b16 %v687
        %v1509 = vunpack.c.l.b16 %v688
        %v1510 = vunpack.c.h.b16 %v688
        %v1511 = vunpack.c.l.b16 %v689
        %v1512 = vunpack.c.h.b16 %v689
        %v1513 = vunpack.c.l.b16 %v690
        %v1514 = vunpack.c.h.b16 %v690
        %v1515 = vunpack.c.l.b16 %v691
        %v1516 = vunpack.c.h.b16 %v691
        %v1517 = vunpack.c.l.b16 %v692
        %v1518 = vunpack.c.h.b16 %v692
        %v1519 = vunpack.c.l.b16 %v693
        %v1520 = vunpack.c.h.b16 %v693
        %v1521 = vunpack.c.l.b16 %v694
        %v1522 = vunpack.c.h.b16 %v694
        %v1523 = vunpack.c.l.b16 %v695
        %v1524 = vunpack.c.h.b16 %v695
        %v1525 = vunpack.c.l.b16 %v696
        %v1526 = vunpack.c.h.b16 %v696
        %v1527 = vunpack.c.l.b16 %v697
        %v1528 = vunpack.c.h.b16 %v697
        %v1529 = vunpack.c.l.b16 %v698
        %v1530 = vunpack.c.h.b16 %v698
        %v1531 = vunpack.c.l.b16 %v699
        %v1532 = vunpack.c.h.b16 %v699
        %v1533 = vunpack.c.l.b16 %v700
        %v1534 = vunpack.c.h.b16 %v700
        %v1535 = vunpack.c.l.b16 %v701
        %v1536 = vunpack.c.h.b16 %v701
        %v1537 = vunpack.c.l.b16 %v702
        %v1538 = vunpack.c.h.b16 %v702
        %v1539 = vunpack.c.l.b16 %v703
        %v1540 = vunpack.c.h.b16 %v703
        %v1541 = vunpack.c.l.b16 %v704
        %v1542 = vunpack.c.h.b16 %v704
        %v1543 = vunpack.c.l.b16 %v705
        %v1544 = vunpack.c.h.b16 %v705
        %v1545 = vunpack.c.l.b16 %v706
        %v1546 = vunpack.c.h.b16 %v706
        %v1547 = vunpack.c.l.b16 %v707
        %v1548 = vunpack.c.h.b16 %v707
        %v1549 = vunpack.c.l.b16 %v708
        %v1550 = vunpack.c.h.b16 %v708
        %v1551 = vunpack.c.l.b16 %v709
        %v1552 = vunpack.c.h.b16 %v709
        %v1553 = vunpack.c.l.b16 %v710
        %v1554 = vunpack.c.h.b16 %v710
        %v1555 = vunpack.c.l.b16 %v711
        %v1556 = vunpack.c.h.b16 %v711
        %v1557 = vunpack.c.l.b16 %v712
        %v1558 = vunpack.c.h.b16 %v712
        %v1559 = vunpack.c.l.b16 %v713
        %v1560 = vunpack.c.h.b16 %v713
        %v1561 = vunpack.c.l.b16 %v714
        %v1562 = vunpack.c.h.b16 %v714
        %v1563 = vunpack.c.l.b16 %v715
        %v1564 = vunpack.c.h.b16 %v715
        %v1565 = vunpack.c.l.b16 %v716
        %v1566 = vunpack.c.h.b16 %v716
        %v1567 = vunpack.c.l.b16 %v717
        %v1568 = vunpack.c.h.b16 %v717
        %v1569 = vunpack.c.l.b16 %v718
        %v1570 = vunpack.c.h.b16 %v718
        %v1571 = vunpack.c.l.b16 %v719
        %v1572 = vunpack.c.h.b16 %v719
        %v1573 = vunpack.c.l.b16 %v720
        %v1574 = vunpack.c.h.b16 %v720
        %v1575 = vunpack.c.l.b16 %v721
        %v1576 = vunpack.c.h.b16 %v721
        %v1577 = vunpack.c.l.b16 %v722
        %v1578 = vunpack.c.h.b16 %v722
        %v1579 = vunpack.c.l.b16 %v723
        %v1580 = vunpack.c.h.b16 %v723
        %v1581 = vunpack.c.l.b16 %v724
        %v1582 = vunpack.c.h.b16 %v724
        %v1583 = vunpack.c.l.b16 %v725
        %v1584 = vunpack.c.h.b16 %v725
        %v1585 = vunpack.c.l.b16 %v726
        %v1586 = vunpack.c.h.b16 %v726
        %v1587 = vunpack.c.l.b16 %v727
        %v1588 = vunpack.c.h.b16 %v727
        %v1589 = vunpack.c.l.b16 %v728
        %v1590 = vunpack.c.h.b16 %v728
        %v1591 = vunpack.c.l.b16 %v729
        %v1592 = vunpack.c.h.b16 %v729
        %v1593 = vunpack.c.l.b16 %v730
        %v1594 = vunpack.c.h.b16 %v730
        %v1595 = vunpack.c.l.b16 %v731
        %v1596 = vunpack.c.h.b16 %v731
        %v1597 = vunpack.c.l.b16 %v732
        %v1598 = vunpack.c.h.b16 %v732
        %v1599 = vunpack.c.l.b16 %v733
        %v1600 = vunpack.c.h.b16 %v733
        %v1601 = vunpack.c.l.b16 %v734
        %v1602 = vunpack.c.h.b16 %v734
        %v1603 = vunpack.c.l.b16 %v735
        %v1604 = vunpack.c.h.b16 %v735
        %v1605 = vunpack.c.l.b16 %v736
        %v1606 = vunpack.c.h.b16 %v736
        %v1607 = vunpack.c.l.b16 %v737
        %v1608 = vunpack.c.h.b16 %v737
        %v1609 = vunpack.c.l.b16 %v738
        %v1610 = vunpack.c.h.b16 %v738
        %v1611 = vunpack.c.l.b16 %v739
        %v1612 = vunpack.c.h.b16 %v739
        %v1613 = vunpack.c.l.b16 %v740
        %v1614 = vunpack.c.h.b16 %v740
        %v1615 = vunpack.c.l.b16 %v741
        %v1616 = vunpack.c.h.b16 %v741
        %v1617 = vunpack.c.l.b16 %v742
        %v1618 = vunpack.c.h.b16 %v742
        %v1619 = vunpack.c.l.b16 %v743
        %v1620 = vunpack.c.h.b16 %v743
        %v1621 = vunpack.c.l.b16 %v744
        %v1622 = vunpack.c.h.b16 %v744
        %v1623 = vunpack.c.l.b16 %v745
        %v1624 = vunpack.c.h.b16 %v745
        %v1625 = vunpack.c.l.b16 %v746
        %v1626 = vunpack.c.h.b16 %v746
        %v1627 = vunpack.c.l.b16 %v747
        %v1628 = vunpack.c.h.b16 %v747
        %v1629 = vunpack.c.l.b16 %v748
        %v1630 = vunpack.c.h.b16 %v748
        %v1631 = vunpack.c.l.b16 %v749
        %v1632 = vunpack.c.h.b16 %v749
        %v1633 = vunpack.c.l.b16 %v750
        %v1634 = vunpack.c.h.b16 %v750
        %v1635 = vunpack.c.l.b16 %v751
        %v1636 = vunpack.c.h.b16 %v751
        %v1637 = vunpack.c.l.b16 %v752
        %v1638 = vunpack.c.h.b16 %v752
        %v1639 = vunpack.c.l.b16 %v753
        %v1640 = vunpack.c.h.b16 %v753
        %v1641 = vunpack.c.l.b16 %v754
        %v1642 = vunpack.c.h.b16 %v754
        %v1643 = vunpack.c.l.b16 %v755
        %v1644 = vunpack.c.h.b16 %v755
        %v1645 = vunpack.c.l.b16 %v756
        %v1646 = vunpack.c.h.b16 %v756
        %v1647 = vunpack.c.l.b16 %v757
        %v1648 = vunpack.c.h.b16 %v757
        %v1649 = vunpack.c.l.b16 %v758
        %v1650 = vunpack.c.h.b16 %v758
        %v1651 = vunpack.c.l.b16 %v759
        %v1652 = vunpack.c.h.b16 %v759
        %v1653 = vunpack.c.l.b16 %v760
        %v1654 = vunpack.c.h.b16 %v760
        %v1655 = vunpack.c.l.b16 %v761
        %v1656 = vunpack.c.h.b16 %v761
        %v1657 = vunpack.c.l.b16 %v762
        %v1658 = vunpack.c.h.b16 %v762
        %v1659 = vunpack.c.l.b16 %v763
        %v1660 = vunpack.c.h.b16 %v763
        %v1661 = vunpack.c.l.b16 %v764
        %v1662 = vunpack.c.h.b16 %v764
        %v1663 = vunpack.c.l.b16 %v765
        %v1664 = vunpack.c.h.b16 %v765
        %v1665 = vunpack.c.l.b16 %v766
        %v1666 = vunpack.c.h.b16 %v766
        %v1667 = vunpack.c.l.b16 %v767
        %v1668 = vunpack.c.h.b16 %v767
        %v1669 = vunpack.c.l.b16 %v768
        %v1670 = vunpack.c.h.b16 %v768
        %v1671 = vunpack.c.l.b16 %v769
        %v1672 = vunpack.c.h.b16 %v769
        %v1673 = vunpack.c.l.b16 %v770
        %v1674 = vunpack.c.h.b16 %v770
        %v1675 = vunpack.c.l.b16 %v771
        %v1676 = vunpack.c.h.b16 %v771
        %v1677 = vunpack.c.l.b16 %v772
        %v1678 = vunpack.c.h.b16 %v772
        %v1679 = vunpack.c.l.b16 %v773
        %v1680 = vunpack.c.h.b16 %v773
        %v1681 = vunpack.c.l.b16 %v774
        %v1682 = vunpack.c.h.b16 %v774
        %v1683 = vunpack.c.l.b16 %v775
        %v1684 = vunpack.c.h.b16 %v775
        %v1685 = vunpack.c.l.b16 %v776
        %v1686 = vunpack.c.h.b16 %v776
        %v1687 = vunpack.c.l.b16 %v777
        %v1688 = vunpack.c.h.b16 %v777
        %v1689 = vunpack.c.l.b16 %v778
        %v1690 = vunpack.c.h.b16 %v778
        %v1691 = vunpack.c.l.b16 %v779
        %v1692 = vunpack.c.h.b16 %v779
        %v1693 = vunpack.c.l.b16 %v780
        %v1694 = vunpack.c.h.b16 %v780
        %v1695 = vunpack.c.l.b16 %v781
        %v1696 = vunpack.c.h.b16 %v781
        %v1697 = vunpack.c.l.b16 %v782
        %v1698 = vunpack.c.h.b16 %v782
        %v1699 = vunpack.c.l.b16 %v783
        %v1700 = vunpack.c.h.b16 %v783
        %v1701 = vunpack.c.l.b16 %v784
        %v1702 = vunpack.c.h.b16 %v784
        %v1703 = vunpack.c.l.b16 %v785
        %v1704 = vunpack.c.h.b16 %v785
        %v1705 = vunpack.c.l.b16 %v786
        %v1706 = vunpack.c.h.b16 %v786
        %v1707 = vunpack.c.l.b16 %v787
        %v1708 = vunpack.c.h.b16 %v787
        %v1709 = vunpack.c.l.b16 %v788
        %v1710 = vunpack.c.h.b16 %v788
        %v1711 = vunpack.c.l.b16 %v789
        %v1712 = vunpack.c.h.b16 %v789
        %v1713 = vunpack.c.l.b16 %v790
        %v1714 = vunpack.c.h.b16 %v790
        %v1715 = vunpack.c.l.b16 %v791
        %v1716 = vunpack.c.h.b16 %v791
        %v1717 = vunpack.c.l.b16 %v792
        %v1718 = vunpack.c.h.b16 %v792
        %v1719 = vunpack.c.l.b16 %v793
        %v1720 = vunpack.c.h.b16 %v793
        %v1721 = vunpack.c.l.b16 %v794
        %v1722 = vunpack.c.h.b16 %v794
        %v1723 = vpack.c.b16 %v1219, %v1211
        %v1724 = vpack.c.b16 %v1220, %v1212
        %v1725 = vpack.c.b16 %v1221, %v1213
        %v1726 = vpack.c.b16 %v1222, %v1214
        %v1727 = vpack.c.b16 %v1223, %v1215
        %v1728 = vpack.c.b16 %v1224, %v1216
        %v1729 = vpack.c.b16 %v1225, %v1217
        %v1730 = vpack.c.b16 %v1226, %v1218
        %v1731 = vpack.c.b16 %v1235, %v1227
        %v1732 = vpack.c.b16 %v1236, %v1228
        %v1733 = vpack.c.b16 %v1237, %v1229
        %v1734 = vpack.c.b16 %v1238, %v1230
        %v1735 = vpack.c.b16 %v1239, %v1231
        %v1736 = vpack.c.b16 %v1240, %v1232
        %v1737 = vpack.c.b16 %v1241, %v1233
        %v1738 = vpack.c.b16 %v1242, %v1234
        %v1739 = vpack.c.b16 %v1251, %v1243
        %v1740 = vpack.c.b16 %v1252, %v1244
        %v1741 = vpack.c.b16 %v1253, %v1245
        %v1742 = vpack.c.b16 %v1254, %v1246
        %v1743 = vpack.c.b16 %v1255, %v1247
        %v1744 = vpack.c.b16 %v1256, %v1248
        %v1745 = vpack.c.b16 %v1257, %v1249
        %v1746 = vpack.c.b16 %v1258, %v1250
        %v1747 = vpack.c.b16 %v1267, %v1259
        %v1748 = vpack.c.b16 %v1268, %v1260
        %v1749 = vpack.c.b16 %v1269, %v1261
        %v1750 = vpack.c.b16 %v1270, %v1262
        %v1751 = vpack.c.b16 %v1271, %v1263
        %v1752 = vpack.c.b16 %v1272, %v1264
        %v1753 = vpack.c.b16 %v1273, %v1265
        %v1754 = vpack.c.b16 %v1274, %v1266
        %v1755 = vpack.c.b16 %v1283, %v1275
        %v1756 = vpack.c.b16 %v1284, %v1276
        %v1757 = vpack.c.b16 %v1285, %v1277
        %v1758 = vpack.c.b16 %v1286, %v1278
        %v1759 = vpack.c.b16 %v1287, %v1279
        %v1760 = vpack.c.b16 %v1288, %v1280
        %v1761 = vpack.c.b16 %v1289, %v1281
        %v1762 = vpack.c.b16 %v1290, %v1282
        %v1763 = vpack.c.b16 %v1299, %v1291
        %v1764 = vpack.c.b16 %v1300, %v1292
        %v1765 = vpack.c.b16 %v1301, %v1293
        %v1766 = vpack.c.b16 %v1302, %v1294
        %v1767 = vpack.c.b16 %v1303, %v1295
        %v1768 = vpack.c.b16 %v1304, %v1296
        %v1769 = vpack.c.b16 %v1305, %v1297
        %v1770 = vpack.c.b16 %v1306, %v1298
        %v1771 = vpack.c.b16 %v1315, %v1307
        %v1772 = vpack.c.b16 %v1316, %v1308
        %v1773 = vpack.c.b16 %v1317, %v1309
        %v1774 = vpack.c.b16 %v1318, %v1310
        %v1775 = vpack.c.b16 %v1319, %v1311
        %v1776 = vpack.c.b16 %v1320, %v1312
        %v1777 = vpack.c.b16 %v1321, %v1313
        %v1778 = vpack.c.b16 %v1322, %v1314
        %v1779 = vpack.c.b16 %v1331, %v1323
        %v1780 = vpack.c.b16 %v1332, %v1324
        %v1781 = vpack.c.b16 %v1333, %v1325
        %v1782 = vpack.c.b16 %v1334, %v1326
        %v1783 = vpack.c.b16 %v1335, %v1327
        %v1784 = vpack.c.b16 %v1336, %v1328
        %v1785 = vpack.c.b16 %v1337, %v1329
        %v1786 = vpack.c.b16 %v1338, %v1330
        %v1787 = vpack.c.b16 %v1347, %v1339
        %v1788 = vpack.c.b16 %v1348, %v1340
        %v1789 = vpack.c.b16 %v1349, %v1341
        %v1790 = vpack.c.b16 %v1350, %v1342
        %v1791 = vpack.c.b16 %v1351, %v1343
        %v1792 = vpack.c.b16 %v1352, %v1344
        %v1793 = vpack.c.b16 %v1353, %v1345
        %v1794 = vpack.c.b16 %v1354, %v1346
        %v1795 = vpack.c.b16 %v1363, %v1355
        %v1796 = vpack.c.b16 %v1364, %v1356
        %v1797 = vpack.c.b16 %v1365, %v1357
        %v1798 = vpack.c.b16 %v1366, %v1358
        %v1799 = vpack.c.b16 %v1367, %v1359
        %v1800 = vpack.c.b16 %v1368, %v1360
        %v1801 = vpack.c.b16 %v1369, %v1361
        %v1802 = vpack.c.b16 %v1370, %v1362
        %v1803 = vpack.c.b16 %v1379, %v1371
        %v1804 = vpack.c.b16 %v1380, %v1372
        %v1805 = vpack.c.b16 %v1381, %v1373
        %v1806 = vpack.c.b16 %v1382, %v1374
        %v1807 = vpack.c.b16 %v1383, %v1375
        %v1808 = vpack.c.b16 %v1384, %v1376
        %v1809 = vpack.c.b16 %v1385, %v1377
        %v1810 = vpack.c.b16 %v1386, %v1378
        %v1811 = vpack.c.b16 %v1395, %v1387
        %v1812 = vpack.c.b16 %v1396, %v1388
        %v1813 = vpack.c.b16 %v1397, %v1389
        %v1814 = vpack.c.b16 %v1398, %v1390
        %v1815 = vpack.c.b16 %v1399, %v1391
        %v1816 = vpack.c.b16 %v1400, %v1392
        %v1817 = vpack.c.b16 %v1401, %v1393
        %v1818 = vpack.c.b16 %v1402, %v1394
        %v1819 = vpack.c.b16 %v1411, %v1403
        %v1820 = vpack.c.b16 %v1412, %v1404
        %v1821 = vpack.c.b16 %v1413, %v1405
        %v1822 = vpack.c.b16 %v1414, %v1406
        %v1823 = vpack.c.b16 %v1415, %v1407
        %v1824 = vpack.c.b16 %v1416, %v1408
        %v1825 = vpack.c.b16 %v1417, %v1409
        %v1826 = vpack.c.b16 %v1418, %v1410
        %v1827 = vpack.c.b16 %v1427, %v1419
        %v1828 = vpack.c.b16 %v1428, %v1420
        %v1829 = vpack.c.b16 %v1429, %v1421
        %v1830 = vpack.c.b16 %v1430, %v1422
        %v1831 = vpack.c.b16 %v1431, %v1423
        %v1832 = vpack.c.b16 %v1432, %v1424
        %v1833 = vpack.c.b16 %v1433, %v1425
        %v1834 = vpack.c.b16 %v1434, %v1426
        %v1835 = vpack.c.b16 %v1443, %v1435
        %v1836 = vpack.c.b16 %v1444, %v1436
        %v1837 = vpack.c.b16 %v1445, %v1437
        %v1838 = vpack.c.b16 %v1446, %v1438
        %v1839 = vpack.c.b16 %v1447, %v1439
        %v1840 = vpack.c.b16 %v1448, %v1440
        %v1841 = vpack.c.b16 %v1449, %v1441
        %v1842 = vpack.c.b16 %v1450, %v1442
        %v1843 = vpack.c.b16 %v1459, %v1451
        %v1844 = vpack.c.b16 %v1460, %v1452
        %v1845 = vpack.c.b16 %v1461, %v1453
        %v1846 = vpack.c.b16 %v1462, %v1454
        %v1847 = vpack.c.b16 %v1463, %v1455
        %v1848 = vpack.c.b16 %v1464, %v1456
        %v1849 = vpack.c.b16 %v1465, %v1457
        %v1850 = vpack.c.b16 %v1466, %v1458
        %v1851 = vpack.c.b16 %v1475, %v1467
        %v1852 = vpack.c.b16 %v1476, %v1468
        %v1853 = vpack.c.b16 %v1477, %v1469
        %v1854 = vpack.c.b16 %v1478, %v1470
        %v1855 = vpack.c.b16 %v1479, %v1471
        %v1856 = vpack.c.b16 %v1480, %v1472
        %v1857 = vpack.c.b16 %v1481, %v1473
        %v1858 = vpack.c.b16 %v1482, %v1474
        %v1859 = vpack.c.b16 %v1491, %v1483
        %v1860 = vpack.c.b16 %v1492, %v1484
        %v1861 = vpack.c.b16 %v1493, %v1485
        %v1862 = vpack.c.b16 %v1494, %v1486
        %v1863 = vpack.c.b16 %v1495, %v1487
        %v1864 = vpack.c.b16 %v1496, %v1488
        %v1865 = vpack.c.b16 %v1497, %v1489
        %v1866 = vpack.c.b16 %v1498, %v1490
        %v1867 = vpack.c.b16 %v1507, %v1499
        %v1868 = vpack.c.b16 %v1508, %v1500
        %v1869 = vpack.c.b16 %v1509, %v1501
        %v1870 = vpack.c.b16 %v1510, %v1502
        %v1871 = vpack.c.b16 %v1511, %v1503
        %v1872 = vpack.c.b16 %v1512, %v1504
        %v1873 = vpack.c.b16 %v1513, %v1505
        %v1874 = vpack.c.b16 %v1514, %v1506
        %v1875 = vpack.c.b16 %v1523, %v1515
        %v1876 = vpack.c.b16 %v1524, %v1516
        %v1877 = vpack.c.b16 %v1525, %v1517
        %v1878 = vpack.c.b16 %v1526, %v1518
        %v1879 = vpack.c.b16 %v1527, %v1519
        %v1880 = vpack.c.b16 %v1528, %v1520
        %v1881 = vpack.c.b16 %v1529, %v1521
        %v1882 = vpack.c.b16 %v1530, %v1522
        %v1883 = vpack.c.b16 %v1539, %v1531
        %v1884 = vpack.c.b16 %v1540, %v1532
        %v1885 = vpack.c.b16 %v1541, %v1533
        %v1886 = vpack.c.b16 %v1542, %v1534
        %v1887 = vpack.c.b16 %v1543, %v1535
        %v1888 = vpack.c.b16 %v1544, %v1536
        %v1889 = vpack.c.b16 %v1545, %v1537
        %v1890 = vpack.c.b16 %v1546, %v1538
        %v1891 = vpack.c.b16 %v1555, %v1547
        %v1892 = vpack.c.b16 %v1556, %v1548
        %v1893 = vpack.c.b16 %v1557, %v1549
        %v1894 = vpack.c.b16 %v1558, %v1550
        %v1895 = vpack.c.b16 %v1559, %v1551
        %v1896 = vpack.c.b16 %v1560, %v1552
        %v1897 = vpack.c.b16 %v1561, %v1553
        %v1898 = vpack.c.b16 %v1562, %v1554
        %v1899 = vpack.c.b16 %v1571, %v1563
        %v1900 = vpack.c.b16 %v1572, %v1564
        %v1901 = vpack.c.b16 %v1573, %v1565
        %v1902 = vpack.c.b16 %v1574, %v1566
        %v1903 = vpack.c.b16 %v1575, %v1567
        %v1904 = vpack.c.b16 %v1576, %v1568
        %v1905 = vpack.c.b16 %v1577, %v1569
        %v1906 = vpack.c.b16 %v1578, %v1570
        %v1907 = vpack.c.b16 %v1587, %v1579
        %v1908 = vpack.c.b16 %v1588, %v1580
        %v1909 = vpack.c.b16 %v1589, %v1581
        %v1910 = vpack.c.b16 %v1590, %v1582
        %v1911 = vpack.c.b16 %v1591, %v1583
        %v1912 = vpack.c.b16 %v1592, %v1584
        %v1913 = vpack.c.b16 %v1593, %v1585
        %v1914 = vpack.c.b16 %v1594, %v1586
        %v1915 = vpack.c.b16 %v1603, %v1595
        %v1916 = vpack.c.b16 %v1604, %v1596
        %v1917 = vpack.c.b16 %v1605, %v1597
        %v1918 = vpack.c.b16 %v1606, %v1598
        %v1919 = vpack.c.b16 %v1607, %v1599
        %v1920 = vpack.c.b16 %v1608, %v1600
        %v1921 = vpack.c.b16 %v1609, %v1601
        %v1922 = vpack.c.b16 %v1610, %v1602
        %v1923 = vpack.c.b16 %v1619, %v1611
        %v1924 = vpack.c.b16 %v1620, %v1612
        %v1925 = vpack.c.b16 %v1621, %v1613
        %v1926 = vpack.c.b16 %v1622, %v1614
        %v1927 = vpack.c.b16 %v1623, %v1615
        %v1928 = vpack.c.b16 %v1624, %v1616
        %v1929 = vpack.c.b16 %v1625, %v1617
        %v1930 = vpack.c.b16 %v1626, %v1618
        %v1931 = vpack.c.b16 %v1635, %v1627
        %v1932 = vpack.c.b16 %v1636, %v1628
        %v1933 = vpack.c.b16 %v1637, %v1629
        %v1934 = vpack.c.b16 %v1638, %v1630
        %v1935 = vpack.c.b16 %v1639, %v1631
        %v1936 = vpack.c.b16 %v1640, %v1632
        %v1937 = vpack.c.b16 %v1641, %v1633
        %v1938 = vpack.c.b16 %v1642, %v1634
        %v1939 = vpack.c.b16 %v1651, %v1643
        %v1940 = vpack.c.b16 %v1652, %v1644
        %v1941 = vpack.c.b16 %v1653, %v1645
        %v1942 = vpack.c.b16 %v1654, %v1646
        %v1943 = vpack.c.b16 %v1655, %v1647
        %v1944 = vpack.c.b16 %v1656, %v1648
        %v1945 = vpack.c.b16 %v1657, %v1649
        %v1946 = vpack.c.b16 %v1658, %v1650
        %v1947 = vpack.c.b16 %v1667, %v1659
        %v1948 = vpack.c.b16 %v1668, %v1660
        %v1949 = vpack.c.b16 %v1669, %v1661
        %v1950 = vpack.c.b16 %v1670, %v1662
        %v1951 = vpack.c.b16 %v1671, %v1663
        %v1952 = vpack.c.b16 %v1672, %v1664
        %v1953 = vpack.c.b16 %v1673, %v1665
        %v1954 = vpack.c.b16 %v1674, %v1666
        %v1955 = vpack.c.b16 %v1683, %v1675
        %v1956 = vpack.c.b16 %v1684, %v1676
        %v1957 = vpack.c.b16 %v1685, %v1677
        %v1958 = vpack.c.b16 %v1686, %v1678
        %v1959 = vpack.c.b16 %v1687, %v1679
        %v1960 = vpack.c.b16 %v1688, %v1680
        %v1961 = vpack.c.b16 %v1689, %v1681
        %v1962 = vpack.c.b16 %v1690, %v1682
        %v1963 = vpack.c.b16 %v1699, %v1691
        %v1964 = vpack.c.b16 %v1700, %v1692
        %v1965 = vpack.c.b16 %v1701, %v1693
        %v1966 = vpack.c.b16 %v1702, %v1694
        %v1967 = vpack.c.b16 %v1703, %v1695
        %v1968 = vpack.c.b16 %v1704, %v1696
        %v1969 = vpack.c.b16 %v1705, %v1697
        %v1970 = vpack.c.b16 %v1706, %v1698
        %v1971 = vpack.c.b16 %v1715, %v1707
        %v1972 = vpack.c.b16 %v1716, %v1708
        %v1973 = vpack.c.b16 %v1717, %v1709
        %v1974 = vpack.c.b16 %v1718, %v1710
        %v1975 = vpack.c.b16 %v1719, %v1711
        %v1976 = vpack.c.b16 %v1720, %v1712
        %v1977 = vpack.c.b16 %v1721, %v1713
        %v1978 = vpack.c.b16 %v1722, %v1714
        %2235 = vmatprep.subr.bf16.mxu0 %v1780
        %2236 = vmatpush1.bf16.msra.mxu0 %v1779
        %2237 = vmatprep.subr.bf16.mxu0 %v1772
        %2238 = vmatpush1.bf16.msra.mxu0 %v1771
        %2239 = vmatprep.subr.bf16.mxu0 %v1764
        %2240 = vmatpush1.bf16.msra.mxu0 %v1763
        %2241 = vmatprep.subr.bf16.mxu0 %v1756
        %2242 = vmatpush1.bf16.msra.mxu0 %v1755
        %2243 = vmatprep.subr.bf16.mxu0 %v1748
        %2244 = vmatpush1.bf16.msra.mxu0 %v1747
        %2245 = vmatprep.subr.bf16.mxu0 %v1740
        %2246 = vmatpush1.bf16.msra.mxu0 %v1739
        %2247 = vmatprep.subr.bf16.mxu0 %v1732
        %2248 = vmatpush1.bf16.msra.mxu0 %v1731
        %2249 = vmatprep.subr.bf16.mxu0 %v1724
        %2250 = vmatpush1.bf16.msra.mxu0 %v1723
        %2251 = vmatprep.subr.bf16.mxu0 %v1844
        %2252 = vmatpush2.bf16.msra.mxu0 %v1843
        %2253 = vmatprep.subr.bf16.mxu0 %v1836
        %2254 = vmatpush2.bf16.msra.mxu0 %v1835
        %2255 = vmatprep.subr.bf16.mxu0 %v1828
        %2256 = vmatpush2.bf16.msra.mxu0 %v1827
        %2257 = vmatprep.subr.bf16.mxu0 %v1820
        %2258 = vmatpush2.bf16.msra.mxu0 %v1819
        %2259 = vmatprep.subr.bf16.mxu0 %v1812
        %2260 = vmatpush2.bf16.msra.mxu0 %v1811
        %2261 = vmatprep.subr.bf16.mxu0 %v1804
        %2262 = vmatpush2.bf16.msra.mxu0 %v1803
        %2263 = vmatprep.subr.bf16.mxu0 %v1796
        %2264 = vmatpush2.bf16.msra.mxu0 %v1795
        %2265 = vmatprep.subr.bf16.mxu0 %v1788
        %2266 = vmatpush2.bf16.msra.mxu0 %v1787
        %2267 = vmatprep.mubr.bf16.mxu0 %v892
        %2268 = vmatmul.mubr.bf16.gmra.mxu0 %v891
        %v2269 = vpop.f32.mrf.mxu0
        %v2270 = vadd.f32 0.0, %v2269
        %v2271 = vpop.f32.mrf.mxu0
        %v2272 = vadd.f32 0.0, %v2271
        %v2273 = vpop.f32.mrf.mxu0
        %v2274 = vadd.f32 0.0, %v2273
        %v2275 = vpop.f32.mrf.mxu0
        %v2276 = vadd.f32 0.0, %v2275
        %2277 = vmatprep.mubr.bf16.mxu0 %v896
        %2278 = vmatmul.mubr.bf16.gmra.mxu0 %v895
        %v2279 = vpop.f32.mrf.mxu0
        %v2280 = vadd.f32 0.0, %v2279
        %v2281 = vpop.f32.mrf.mxu0
        %v2282 = vadd.f32 0.0, %v2281
        %v2283 = vpop.f32.mrf.mxu0
        %v2284 = vadd.f32 0.0, %v2283
        %v2285 = vpop.f32.mrf.mxu0
        %v2286 = vadd.f32 0.0, %v2285
        %2287 = vmatprep.mubr.bf16.mxu0 %v900
        %2288 = vmatmul.mubr.bf16.gmra.mxu0 %v899
        %v2289 = vpop.f32.mrf.mxu0
        %v2290 = vadd.f32 0.0, %v2289
        %v2291 = vpop.f32.mrf.mxu0
        %v2292 = vadd.f32 0.0, %v2291
        %v2293 = vpop.f32.mrf.mxu0
        %v2294 = vadd.f32 0.0, %v2293
        %v2295 = vpop.f32.mrf.mxu0
        %v2296 = vadd.f32 0.0, %v2295
        %2297 = vmatprep.mubr.bf16.mxu0 %v904
        %2298 = vmatmul.mubr.bf16.gmra.mxu0 %v903
        %v2299 = vpop.f32.mrf.mxu0
        %v2300 = vadd.f32 0.0, %v2299
        %v2301 = vpop.f32.mrf.mxu0
        %v2302 = vadd.f32 0.0, %v2301
        %v2303 = vpop.f32.mrf.mxu0
        %v2304 = vadd.f32 0.0, %v2303
        %v2305 = vpop.f32.mrf.mxu0
        %v2306 = vadd.f32 0.0, %v2305
        %2307 = vmatprep.mubr.bf16.mxu0 %v908
        %2308 = vmatmul.mubr.bf16.gmra.mxu0 %v907
        %v2309 = vpop.f32.mrf.mxu0
        %v2310 = vadd.f32 0.0, %v2309
        %v2311 = vpop.f32.mrf.mxu0
        %v2312 = vadd.f32 0.0, %v2311
        %v2313 = vpop.f32.mrf.mxu0
        %v2314 = vadd.f32 0.0, %v2313
        %v2315 = vpop.f32.mrf.mxu0
        %v2316 = vadd.f32 0.0, %v2315
        %2317 = vmatprep.mubr.bf16.mxu0 %v912
        %2318 = vmatmul.mubr.bf16.gmra.mxu0 %v911
        %v2319 = vpop.f32.mrf.mxu0
        %v2320 = vadd.f32 0.0, %v2319
        %v2321 = vpop.f32.mrf.mxu0
        %v2322 = vadd.f32 0.0, %v2321
        %v2323 = vpop.f32.mrf.mxu0
        %v2324 = vadd.f32 0.0, %v2323
        %v2325 = vpop.f32.mrf.mxu0
        %v2326 = vadd.f32 0.0, %v2325
        %2327 = vmatprep.mubr.bf16.mxu0 %v916
        %2328 = vmatmul.mubr.bf16.gmra.mxu0 %v915
        %v2329 = vpop.f32.mrf.mxu0
        %v2330 = vadd.f32 0.0, %v2329
        %v2331 = vpop.f32.mrf.mxu0
        %v2332 = vadd.f32 0.0, %v2331
        %v2333 = vpop.f32.mrf.mxu0
        %v2334 = vadd.f32 0.0, %v2333
        %v2335 = vpop.f32.mrf.mxu0
        %v2336 = vadd.f32 0.0, %v2335
        %2337 = vmatprep.mubr.bf16.mxu0 %v920
        %2338 = vmatmul.mubr.bf16.gmra.mxu0 %v919
        %v2339 = vpop.f32.mrf.mxu0
        %v2340 = vadd.f32 0.0, %v2339
        %v2341 = vpop.f32.mrf.mxu0
        %v2342 = vadd.f32 0.0, %v2341
        %v2343 = vpop.f32.mrf.mxu0
        %v2344 = vadd.f32 0.0, %v2343
        %v2345 = vpop.f32.mrf.mxu0
        %v2346 = vadd.f32 0.0, %v2345
        %2347 = vdwg.mxu0
        %2348 = vmatprep.subr.bf16.mxu0 %v1908
        %2349 = vmatpush1.bf16.msra.mxu0 %v1907
        %2350 = vmatprep.subr.bf16.mxu0 %v1900
        %2351 = vmatpush1.bf16.msra.mxu0 %v1899
        %2352 = vmatprep.subr.bf16.mxu0 %v1892
        %2353 = vmatpush1.bf16.msra.mxu0 %v1891
        %2354 = vmatprep.subr.bf16.mxu0 %v1884
        %2355 = vmatpush1.bf16.msra.mxu0 %v1883
        %2356 = vmatprep.subr.bf16.mxu0 %v1876
        %2357 = vmatpush1.bf16.msra.mxu0 %v1875
        %2358 = vmatprep.subr.bf16.mxu0 %v1868
        %2359 = vmatpush1.bf16.msra.mxu0 %v1867
        %2360 = vmatprep.subr.bf16.mxu0 %v1860
        %2361 = vmatpush1.bf16.msra.mxu0 %v1859
        %2362 = vmatprep.subr.bf16.mxu0 %v1852
        %2363 = vmatpush1.bf16.msra.mxu0 %v1851
        %2364 = vmatprep.subr.bf16.mxu0 %v1972
        %2365 = vmatpush2.bf16.msra.mxu0 %v1971
        %2366 = vmatprep.subr.bf16.mxu0 %v1964
        %2367 = vmatpush2.bf16.msra.mxu0 %v1963
        %2368 = vmatprep.subr.bf16.mxu0 %v1956
        %2369 = vmatpush2.bf16.msra.mxu0 %v1955
        %2370 = vmatprep.subr.bf16.mxu0 %v1948
        %2371 = vmatpush2.bf16.msra.mxu0 %v1947
        %2372 = vmatprep.subr.bf16.mxu0 %v1940
        %2373 = vmatpush2.bf16.msra.mxu0 %v1939
        %2374 = vmatprep.subr.bf16.mxu0 %v1932
        %2375 = vmatpush2.bf16.msra.mxu0 %v1931
        %2376 = vmatprep.subr.bf16.mxu0 %v1924
        %2377 = vmatpush2.bf16.msra.mxu0 %v1923
        %2378 = vmatprep.subr.bf16.mxu0 %v1916
        %2379 = vmatpush2.bf16.msra.mxu0 %v1915
        %2380 = vmatprep.mubr.bf16.mxu0 %v894
        %2381 = vmatmul.mubr.bf16.gmra.mxu0 %v893
        %v2382 = vpop.f32.mrf.mxu0
        %v2383 = vadd.f32 %v2270, %v2382
        %v2384 = vpop.f32.mrf.mxu0
        %v2385 = vadd.f32 %v2272, %v2384
        %v2386 = vpop.f32.mrf.mxu0
        %v2387 = vadd.f32 %v2274, %v2386
        %v2388 = vpop.f32.mrf.mxu0
        %v2389 = vadd.f32 %v2276, %v2388
        %2390 = vmatprep.mubr.bf16.mxu0 %v898
        %2391 = vmatmul.mubr.bf16.gmra.mxu0 %v897
        %v2392 = vpop.f32.mrf.mxu0
        %v2393 = vadd.f32 %v2280, %v2392
        %v2394 = vpop.f32.mrf.mxu0
        %v2395 = vadd.f32 %v2282, %v2394
        %v2396 = vpop.f32.mrf.mxu0
        %v2397 = vadd.f32 %v2284, %v2396
        %v2398 = vpop.f32.mrf.mxu0
        %v2399 = vadd.f32 %v2286, %v2398
        %2400 = vmatprep.mubr.bf16.mxu0 %v902
        %2401 = vmatmul.mubr.bf16.gmra.mxu0 %v901
        %v2402 = vpop.f32.mrf.mxu0
        %v2403 = vadd.f32 %v2290, %v2402
        %v2404 = vpop.f32.mrf.mxu0
        %v2405 = vadd.f32 %v2292, %v2404
        %v2406 = vpop.f32.mrf.mxu0
        %v2407 = vadd.f32 %v2294, %v2406
        %v2408 = vpop.f32.mrf.mxu0
        %v2409 = vadd.f32 %v2296, %v2408
        %2410 = vmatprep.mubr.bf16.mxu0 %v906
        %2411 = vmatmul.mubr.bf16.gmra.mxu0 %v905
        %v2412 = vpop.f32.mrf.mxu0
        %v2413 = vadd.f32 %v2300, %v2412
        %v2414 = vpop.f32.mrf.mxu0
        %v2415 = vadd.f32 %v2302, %v2414
        %v2416 = vpop.f32.mrf.mxu0
        %v2417 = vadd.f32 %v2304, %v2416
        %v2418 = vpop.f32.mrf.mxu0
        %v2419 = vadd.f32 %v2306, %v2418
        %2420 = vmatprep.mubr.bf16.mxu0 %v910
        %2421 = vmatmul.mubr.bf16.gmra.mxu0 %v909
        %v2422 = vpop.f32.mrf.mxu0
        %v2423 = vadd.f32 %v2310, %v2422
        %v2424 = vpop.f32.mrf.mxu0
        %v2425 = vadd.f32 %v2312, %v2424
        %v2426 = vpop.f32.mrf.mxu0
        %v2427 = vadd.f32 %v2314, %v2426
        %v2428 = vpop.f32.mrf.mxu0
        %v2429 = vadd.f32 %v2316, %v2428
        %2430 = vmatprep.mubr.bf16.mxu0 %v914
        %2431 = vmatmul.mubr.bf16.gmra.mxu0 %v913
        %v2432 = vpop.f32.mrf.mxu0
        %v2433 = vadd.f32 %v2320, %v2432
        %v2434 = vpop.f32.mrf.mxu0
        %v2435 = vadd.f32 %v2322, %v2434
        %v2436 = vpop.f32.mrf.mxu0
        %v2437 = vadd.f32 %v2324, %v2436
        %v2438 = vpop.f32.mrf.mxu0
        %v2439 = vadd.f32 %v2326, %v2438
        %2440 = vmatprep.mubr.bf16.mxu0 %v918
        %2441 = vmatmul.mubr.bf16.gmra.mxu0 %v917
        %v2442 = vpop.f32.mrf.mxu0
        %v2443 = vadd.f32 %v2330, %v2442
        %v2444 = vpop.f32.mrf.mxu0
        %v2445 = vadd.f32 %v2332, %v2444
        %v2446 = vpop.f32.mrf.mxu0
        %v2447 = vadd.f32 %v2334, %v2446
        %v2448 = vpop.f32.mrf.mxu0
        %v2449 = vadd.f32 %v2336, %v2448
        %2450 = vmatprep.mubr.bf16.mxu0 %v922
        %2451 = vmatmul.mubr.bf16.gmra.mxu0 %v921
        %v2452 = vpop.f32.mrf.mxu0
        %v2453 = vadd.f32 %v2340, %v2452
        %v2454 = vpop.f32.mrf.mxu0
        %v2455 = vadd.f32 %v2342, %v2454
        %v2456 = vpop.f32.mrf.mxu0
        %v2457 = vadd.f32 %v2344, %v2456
        %v2458 = vpop.f32.mrf.mxu0
        %v2459 = vadd.f32 %v2346, %v2458
        %2460 = vdwg.mxu0
        %2461 = vmatprep.subr.bf16.mxu0 %v1782
        %2462 = vmatpush1.bf16.msra.mxu0 %v1781
        %2463 = vmatprep.subr.bf16.mxu0 %v1774
        %2464 = vmatpush1.bf16.msra.mxu0 %v1773
        %2465 = vmatprep.subr.bf16.mxu0 %v1766
        %2466 = vmatpush1.bf16.msra.mxu0 %v1765
        %2467 = vmatprep.subr.bf16.mxu0 %v1758
        %2468 = vmatpush1.bf16.msra.mxu0 %v1757
        %2469 = vmatprep.subr.bf16.mxu0 %v1750
        %2470 = vmatpush1.bf16.msra.mxu0 %v1749
        %2471 = vmatprep.subr.bf16.mxu0 %v1742
        %2472 = vmatpush1.bf16.msra.mxu0 %v1741
        %2473 = vmatprep.subr.bf16.mxu0 %v1734
        %2474 = vmatpush1.bf16.msra.mxu0 %v1733
        %2475 = vmatprep.subr.bf16.mxu0 %v1726
        %2476 = vmatpush1.bf16.msra.mxu0 %v1725
        %2477 = vmatprep.subr.bf16.mxu0 %v1846
        %2478 = vmatpush2.bf16.msra.mxu0 %v1845
        %2479 = vmatprep.subr.bf16.mxu0 %v1838
        %2480 = vmatpush2.bf16.msra.mxu0 %v1837
        %2481 = vmatprep.subr.bf16.mxu0 %v1830
        %2482 = vmatpush2.bf16.msra.mxu0 %v1829
        %2483 = vmatprep.subr.bf16.mxu0 %v1822
        %2484 = vmatpush2.bf16.msra.mxu0 %v1821
        %2485 = vmatprep.subr.bf16.mxu0 %v1814
        %2486 = vmatpush2.bf16.msra.mxu0 %v1813
        %2487 = vmatprep.subr.bf16.mxu0 %v1806
        %2488 = vmatpush2.bf16.msra.mxu0 %v1805
        %2489 = vmatprep.subr.bf16.mxu0 %v1798
        %2490 = vmatpush2.bf16.msra.mxu0 %v1797
        %2491 = vmatprep.subr.bf16.mxu0 %v1790
        %2492 = vmatpush2.bf16.msra.mxu0 %v1789
        %2493 = vmatprep.mubr.bf16.mxu0 %v892
        %2494 = vmatmul.mubr.bf16.gmra.mxu0 %v891
        %v2495 = vpop.f32.mrf.mxu0
        %v2496 = vadd.f32 0.0, %v2495
        %v2497 = vpop.f32.mrf.mxu0
        %v2498 = vadd.f32 0.0, %v2497
        %v2499 = vpop.f32.mrf.mxu0
        %v2500 = vadd.f32 0.0, %v2499
        %v2501 = vpop.f32.mrf.mxu0
        %v2502 = vadd.f32 0.0, %v2501
        %2503 = vmatprep.mubr.bf16.mxu0 %v896
        %2504 = vmatmul.mubr.bf16.gmra.mxu0 %v895
        %v2505 = vpop.f32.mrf.mxu0
        %v2506 = vadd.f32 0.0, %v2505
        %v2507 = vpop.f32.mrf.mxu0
        %v2508 = vadd.f32 0.0, %v2507
        %v2509 = vpop.f32.mrf.mxu0
        %v2510 = vadd.f32 0.0, %v2509
        %v2511 = vpop.f32.mrf.mxu0
        %v2512 = vadd.f32 0.0, %v2511
        %2513 = vmatprep.mubr.bf16.mxu0 %v900
        %2514 = vmatmul.mubr.bf16.gmra.mxu0 %v899
        %v2515 = vpop.f32.mrf.mxu0
        %v2516 = vadd.f32 0.0, %v2515
        %v2517 = vpop.f32.mrf.mxu0
        %v2518 = vadd.f32 0.0, %v2517
        %v2519 = vpop.f32.mrf.mxu0
        %v2520 = vadd.f32 0.0, %v2519
        %v2521 = vpop.f32.mrf.mxu0
        %v2522 = vadd.f32 0.0, %v2521
        %2523 = vmatprep.mubr.bf16.mxu0 %v904
        %2524 = vmatmul.mubr.bf16.gmra.mxu0 %v903
        %v2525 = vpop.f32.mrf.mxu0
        %v2526 = vadd.f32 0.0, %v2525
        %v2527 = vpop.f32.mrf.mxu0
        %v2528 = vadd.f32 0.0, %v2527
        %v2529 = vpop.f32.mrf.mxu0
        %v2530 = vadd.f32 0.0, %v2529
        %v2531 = vpop.f32.mrf.mxu0
        %v2532 = vadd.f32 0.0, %v2531
        %2533 = vmatprep.mubr.bf16.mxu0 %v908
        %2534 = vmatmul.mubr.bf16.gmra.mxu0 %v907
        %v2535 = vpop.f32.mrf.mxu0
        %v2536 = vadd.f32 0.0, %v2535
        %v2537 = vpop.f32.mrf.mxu0
        %v2538 = vadd.f32 0.0, %v2537
        %v2539 = vpop.f32.mrf.mxu0
        %v2540 = vadd.f32 0.0, %v2539
        %v2541 = vpop.f32.mrf.mxu0
        %v2542 = vadd.f32 0.0, %v2541
        %2543 = vmatprep.mubr.bf16.mxu0 %v912
        %2544 = vmatmul.mubr.bf16.gmra.mxu0 %v911
        %v2545 = vpop.f32.mrf.mxu0
        %v2546 = vadd.f32 0.0, %v2545
        %v2547 = vpop.f32.mrf.mxu0
        %v2548 = vadd.f32 0.0, %v2547
        %v2549 = vpop.f32.mrf.mxu0
        %v2550 = vadd.f32 0.0, %v2549
        %v2551 = vpop.f32.mrf.mxu0
        %v2552 = vadd.f32 0.0, %v2551
        %2553 = vmatprep.mubr.bf16.mxu0 %v916
        %2554 = vmatmul.mubr.bf16.gmra.mxu0 %v915
        %v2555 = vpop.f32.mrf.mxu0
        %v2556 = vadd.f32 0.0, %v2555
        %v2557 = vpop.f32.mrf.mxu0
        %v2558 = vadd.f32 0.0, %v2557
        %v2559 = vpop.f32.mrf.mxu0
        %v2560 = vadd.f32 0.0, %v2559
        %v2561 = vpop.f32.mrf.mxu0
        %v2562 = vadd.f32 0.0, %v2561
        %2563 = vmatprep.mubr.bf16.mxu0 %v920
        %2564 = vmatmul.mubr.bf16.gmra.mxu0 %v919
        %v2565 = vpop.f32.mrf.mxu0
        %v2566 = vadd.f32 0.0, %v2565
        %v2567 = vpop.f32.mrf.mxu0
        %v2568 = vadd.f32 0.0, %v2567
        %v2569 = vpop.f32.mrf.mxu0
        %v2570 = vadd.f32 0.0, %v2569
        %v2571 = vpop.f32.mrf.mxu0
        %v2572 = vadd.f32 0.0, %v2571
        %2573 = vdwg.mxu0
        %2574 = vmatprep.subr.bf16.mxu0 %v1910
        %2575 = vmatpush1.bf16.msra.mxu0 %v1909
        %2576 = vmatprep.subr.bf16.mxu0 %v1902
        %2577 = vmatpush1.bf16.msra.mxu0 %v1901
        %2578 = vmatprep.subr.bf16.mxu0 %v1894
        %2579 = vmatpush1.bf16.msra.mxu0 %v1893
        %2580 = vmatprep.subr.bf16.mxu0 %v1886
        %2581 = vmatpush1.bf16.msra.mxu0 %v1885
        %2582 = vmatprep.subr.bf16.mxu0 %v1878
        %2583 = vmatpush1.bf16.msra.mxu0 %v1877
        %2584 = vmatprep.subr.bf16.mxu0 %v1870
        %2585 = vmatpush1.bf16.msra.mxu0 %v1869
        %2586 = vmatprep.subr.bf16.mxu0 %v1862
        %2587 = vmatpush1.bf16.msra.mxu0 %v1861
        %2588 = vmatprep.subr.bf16.mxu0 %v1854
        %2589 = vmatpush1.bf16.msra.mxu0 %v1853
        %2590 = vmatprep.subr.bf16.mxu0 %v1974
        %2591 = vmatpush2.bf16.msra.mxu0 %v1973
        %2592 = vmatprep.subr.bf16.mxu0 %v1966
        %2593 = vmatpush2.bf16.msra.mxu0 %v1965
        %2594 = vmatprep.subr.bf16.mxu0 %v1958
        %2595 = vmatpush2.bf16.msra.mxu0 %v1957
        %2596 = vmatprep.subr.bf16.mxu0 %v1950
        %2597 = vmatpush2.bf16.msra.mxu0 %v1949
        %2598 = vmatprep.subr.bf16.mxu0 %v1942
        %2599 = vmatpush2.bf16.msra.mxu0 %v1941
        %2600 = vmatprep.subr.bf16.mxu0 %v1934
        %2601 = vmatpush2.bf16.msra.mxu0 %v1933
        %2602 = vmatprep.subr.bf16.mxu0 %v1926
        %2603 = vmatpush2.bf16.msra.mxu0 %v1925
        %2604 = vmatprep.subr.bf16.mxu0 %v1918
        %2605 = vmatpush2.bf16.msra.mxu0 %v1917
        %2606 = vmatprep.mubr.bf16.mxu0 %v894
        %2607 = vmatmul.mubr.bf16.gmra.mxu0 %v893
        %v2608 = vpop.f32.mrf.mxu0
        %v2609 = vadd.f32 %v2496, %v2608
        %v2610 = vpop.f32.mrf.mxu0
        %v2611 = vadd.f32 %v2498, %v2610
        %v2612 = vpop.f32.mrf.mxu0
        %v2613 = vadd.f32 %v2500, %v2612
        %v2614 = vpop.f32.mrf.mxu0
        %v2615 = vadd.f32 %v2502, %v2614
        %2616 = vmatprep.mubr.bf16.mxu0 %v898
        %2617 = vmatmul.mubr.bf16.gmra.mxu0 %v897
        %v2618 = vpop.f32.mrf.mxu0
        %v2619 = vadd.f32 %v2506, %v2618
        %v2620 = vpop.f32.mrf.mxu0
        %v2621 = vadd.f32 %v2508, %v2620
        %v2622 = vpop.f32.mrf.mxu0
        %v2623 = vadd.f32 %v2510, %v2622
        %v2624 = vpop.f32.mrf.mxu0
        %v2625 = vadd.f32 %v2512, %v2624
        %2626 = vmatprep.mubr.bf16.mxu0 %v902
        %2627 = vmatmul.mubr.bf16.gmra.mxu0 %v901
        %v2628 = vpop.f32.mrf.mxu0
        %v2629 = vadd.f32 %v2516, %v2628
        %v2630 = vpop.f32.mrf.mxu0
        %v2631 = vadd.f32 %v2518, %v2630
        %v2632 = vpop.f32.mrf.mxu0
        %v2633 = vadd.f32 %v2520, %v2632
        %v2634 = vpop.f32.mrf.mxu0
        %v2635 = vadd.f32 %v2522, %v2634
        %2636 = vmatprep.mubr.bf16.mxu0 %v906
        %2637 = vmatmul.mubr.bf16.gmra.mxu0 %v905
        %v2638 = vpop.f32.mrf.mxu0
        %v2639 = vadd.f32 %v2526, %v2638
        %v2640 = vpop.f32.mrf.mxu0
        %v2641 = vadd.f32 %v2528, %v2640
        %v2642 = vpop.f32.mrf.mxu0
        %v2643 = vadd.f32 %v2530, %v2642
        %v2644 = vpop.f32.mrf.mxu0
        %v2645 = vadd.f32 %v2532, %v2644
        %2646 = vmatprep.mubr.bf16.mxu0 %v910
        %2647 = vmatmul.mubr.bf16.gmra.mxu0 %v909
        %v2648 = vpop.f32.mrf.mxu0
        %v2649 = vadd.f32 %v2536, %v2648
        %v2650 = vpop.f32.mrf.mxu0
        %v2651 = vadd.f32 %v2538, %v2650
        %v2652 = vpop.f32.mrf.mxu0
        %v2653 = vadd.f32 %v2540, %v2652
        %v2654 = vpop.f32.mrf.mxu0
        %v2655 = vadd.f32 %v2542, %v2654
        %2656 = vmatprep.mubr.bf16.mxu0 %v914
        %2657 = vmatmul.mubr.bf16.gmra.mxu0 %v913
        %v2658 = vpop.f32.mrf.mxu0
        %v2659 = vadd.f32 %v2546, %v2658
        %v2660 = vpop.f32.mrf.mxu0
        %v2661 = vadd.f32 %v2548, %v2660
        %v2662 = vpop.f32.mrf.mxu0
        %v2663 = vadd.f32 %v2550, %v2662
        %v2664 = vpop.f32.mrf.mxu0
        %v2665 = vadd.f32 %v2552, %v2664
        %2666 = vmatprep.mubr.bf16.mxu0 %v918
        %2667 = vmatmul.mubr.bf16.gmra.mxu0 %v917
        %v2668 = vpop.f32.mrf.mxu0
        %v2669 = vadd.f32 %v2556, %v2668
        %v2670 = vpop.f32.mrf.mxu0
        %v2671 = vadd.f32 %v2558, %v2670
        %v2672 = vpop.f32.mrf.mxu0
        %v2673 = vadd.f32 %v2560, %v2672
        %v2674 = vpop.f32.mrf.mxu0
        %v2675 = vadd.f32 %v2562, %v2674
        %2676 = vmatprep.mubr.bf16.mxu0 %v922
        %2677 = vmatmul.mubr.bf16.gmra.mxu0 %v921
        %v2678 = vpop.f32.mrf.mxu0
        %v2679 = vadd.f32 %v2566, %v2678
        %v2680 = vpop.f32.mrf.mxu0
        %v2681 = vadd.f32 %v2568, %v2680
        %v2682 = vpop.f32.mrf.mxu0
        %v2683 = vadd.f32 %v2570, %v2682
        %v2684 = vpop.f32.mrf.mxu0
        %v2685 = vadd.f32 %v2572, %v2684
        %2686 = vdwg.mxu0
        %2687 = vmatprep.subr.bf16.mxu0 %v1784
        %2688 = vmatpush1.bf16.msra.mxu0 %v1783
        %2689 = vmatprep.subr.bf16.mxu0 %v1776
        %2690 = vmatpush1.bf16.msra.mxu0 %v1775
        %2691 = vmatprep.subr.bf16.mxu0 %v1768
        %2692 = vmatpush1.bf16.msra.mxu0 %v1767
        %2693 = vmatprep.subr.bf16.mxu0 %v1760
        %2694 = vmatpush1.bf16.msra.mxu0 %v1759
        %2695 = vmatprep.subr.bf16.mxu0 %v1752
        %2696 = vmatpush1.bf16.msra.mxu0 %v1751
        %2697 = vmatprep.subr.bf16.mxu0 %v1744
        %2698 = vmatpush1.bf16.msra.mxu0 %v1743
        %2699 = vmatprep.subr.bf16.mxu0 %v1736
        %2700 = vmatpush1.bf16.msra.mxu0 %v1735
        %2701 = vmatprep.subr.bf16.mxu0 %v1728
        %2702 = vmatpush1.bf16.msra.mxu0 %v1727
        %2703 = vmatprep.subr.bf16.mxu0 %v1848
        %2704 = vmatpush2.bf16.msra.mxu0 %v1847
        %2705 = vmatprep.subr.bf16.mxu0 %v1840
        %2706 = vmatpush2.bf16.msra.mxu0 %v1839
        %2707 = vmatprep.subr.bf16.mxu0 %v1832
        %2708 = vmatpush2.bf16.msra.mxu0 %v1831
        %2709 = vmatprep.subr.bf16.mxu0 %v1824
        %2710 = vmatpush2.bf16.msra.mxu0 %v1823
        %2711 = vmatprep.subr.bf16.mxu0 %v1816
        %2712 = vmatpush2.bf16.msra.mxu0 %v1815
        %2713 = vmatprep.subr.bf16.mxu0 %v1808
        %2714 = vmatpush2.bf16.msra.mxu0 %v1807
        %2715 = vmatprep.subr.bf16.mxu0 %v1800
        %2716 = vmatpush2.bf16.msra.mxu0 %v1799
        %2717 = vmatprep.subr.bf16.mxu0 %v1792
        %2718 = vmatpush2.bf16.msra.mxu0 %v1791
        %2719 = vmatprep.mubr.bf16.mxu0 %v892
        %2720 = vmatmul.mubr.bf16.gmra.mxu0 %v891
        %v2721 = vpop.f32.mrf.mxu0
        %v2722 = vadd.f32 0.0, %v2721
        %v2723 = vpop.f32.mrf.mxu0
        %v2724 = vadd.f32 0.0, %v2723
        %v2725 = vpop.f32.mrf.mxu0
        %v2726 = vadd.f32 0.0, %v2725
        %v2727 = vpop.f32.mrf.mxu0
        %v2728 = vadd.f32 0.0, %v2727
        %2729 = vmatprep.mubr.bf16.mxu0 %v896
        %2730 = vmatmul.mubr.bf16.gmra.mxu0 %v895
        %v2731 = vpop.f32.mrf.mxu0
        %v2732 = vadd.f32 0.0, %v2731
        %v2733 = vpop.f32.mrf.mxu0
        %v2734 = vadd.f32 0.0, %v2733
        %v2735 = vpop.f32.mrf.mxu0
        %v2736 = vadd.f32 0.0, %v2735
        %v2737 = vpop.f32.mrf.mxu0
        %v2738 = vadd.f32 0.0, %v2737
        %2739 = vmatprep.mubr.bf16.mxu0 %v900
        %2740 = vmatmul.mubr.bf16.gmra.mxu0 %v899
        %v2741 = vpop.f32.mrf.mxu0
        %v2742 = vadd.f32 0.0, %v2741
        %v2743 = vpop.f32.mrf.mxu0
        %v2744 = vadd.f32 0.0, %v2743
        %v2745 = vpop.f32.mrf.mxu0
        %v2746 = vadd.f32 0.0, %v2745
        %v2747 = vpop.f32.mrf.mxu0
        %v2748 = vadd.f32 0.0, %v2747
        %2749 = vmatprep.mubr.bf16.mxu0 %v904
        %2750 = vmatmul.mubr.bf16.gmra.mxu0 %v903
        %v2751 = vpop.f32.mrf.mxu0
        %v2752 = vadd.f32 0.0, %v2751
        %v2753 = vpop.f32.mrf.mxu0
        %v2754 = vadd.f32 0.0, %v2753
        %v2755 = vpop.f32.mrf.mxu0
        %v2756 = vadd.f32 0.0, %v2755
        %v2757 = vpop.f32.mrf.mxu0
        %v2758 = vadd.f32 0.0, %v2757
        %2759 = vmatprep.mubr.bf16.mxu0 %v908
        %2760 = vmatmul.mubr.bf16.gmra.mxu0 %v907
        %v2761 = vpop.f32.mrf.mxu0
        %v2762 = vadd.f32 0.0, %v2761
        %v2763 = vpop.f32.mrf.mxu0
        %v2764 = vadd.f32 0.0, %v2763
        %v2765 = vpop.f32.mrf.mxu0
        %v2766 = vadd.f32 0.0, %v2765
        %v2767 = vpop.f32.mrf.mxu0
        %v2768 = vadd.f32 0.0, %v2767
        %2769 = vmatprep.mubr.bf16.mxu0 %v912
        %2770 = vmatmul.mubr.bf16.gmra.mxu0 %v911
        %v2771 = vpop.f32.mrf.mxu0
        %v2772 = vadd.f32 0.0, %v2771
        %v2773 = vpop.f32.mrf.mxu0
        %v2774 = vadd.f32 0.0, %v2773
        %v2775 = vpop.f32.mrf.mxu0
        %v2776 = vadd.f32 0.0, %v2775
        %v2777 = vpop.f32.mrf.mxu0
        %v2778 = vadd.f32 0.0, %v2777
        %2779 = vmatprep.mubr.bf16.mxu0 %v916
        %2780 = vmatmul.mubr.bf16.gmra.mxu0 %v915
        %v2781 = vpop.f32.mrf.mxu0
        %v2782 = vadd.f32 0.0, %v2781
        %v2783 = vpop.f32.mrf.mxu0
        %v2784 = vadd.f32 0.0, %v2783
        %v2785 = vpop.f32.mrf.mxu0
        %v2786 = vadd.f32 0.0, %v2785
        %v2787 = vpop.f32.mrf.mxu0
        %v2788 = vadd.f32 0.0, %v2787
        %2789 = vmatprep.mubr.bf16.mxu0 %v920
        %2790 = vmatmul.mubr.bf16.gmra.mxu0 %v919
        %v2791 = vpop.f32.mrf.mxu0
        %v2792 = vadd.f32 0.0, %v2791
        %v2793 = vpop.f32.mrf.mxu0
        %v2794 = vadd.f32 0.0, %v2793
        %v2795 = vpop.f32.mrf.mxu0
        %v2796 = vadd.f32 0.0, %v2795
        %v2797 = vpop.f32.mrf.mxu0
        %v2798 = vadd.f32 0.0, %v2797
        %2799 = vdwg.mxu0
        %2800 = vmatprep.subr.bf16.mxu0 %v1912
        %2801 = vmatpush1.bf16.msra.mxu0 %v1911
        %2802 = vmatprep.subr.bf16.mxu0 %v1904
        %2803 = vmatpush1.bf16.msra.mxu0 %v1903
        %2804 = vmatprep.subr.bf16.mxu0 %v1896
        %2805 = vmatpush1.bf16.msra.mxu0 %v1895
        %2806 = vmatprep.subr.bf16.mxu0 %v1888
        %2807 = vmatpush1.bf16.msra.mxu0 %v1887
        %2808 = vmatprep.subr.bf16.mxu0 %v1880
        %2809 = vmatpush1.bf16.msra.mxu0 %v1879
        %2810 = vmatprep.subr.bf16.mxu0 %v1872
        %2811 = vmatpush1.bf16.msra.mxu0 %v1871
        %2812 = vmatprep.subr.bf16.mxu0 %v1864
        %2813 = vmatpush1.bf16.msra.mxu0 %v1863
        %2814 = vmatprep.subr.bf16.mxu0 %v1856
        %2815 = vmatpush1.bf16.msra.mxu0 %v1855
        %2816 = vmatprep.subr.bf16.mxu0 %v1976
        %2817 = vmatpush2.bf16.msra.mxu0 %v1975
        %2818 = vmatprep.subr.bf16.mxu0 %v1968
        %2819 = vmatpush2.bf16.msra.mxu0 %v1967
        %2820 = vmatprep.subr.bf16.mxu0 %v1960
        %2821 = vmatpush2.bf16.msra.mxu0 %v1959
        %2822 = vmatprep.subr.bf16.mxu0 %v1952
        %2823 = vmatpush2.bf16.msra.mxu0 %v1951
        %2824 = vmatprep.subr.bf16.mxu0 %v1944
        %2825 = vmatpush2.bf16.msra.mxu0 %v1943
        %2826 = vmatprep.subr.bf16.mxu0 %v1936
        %2827 = vmatpush2.bf16.msra.mxu0 %v1935
        %2828 = vmatprep.subr.bf16.mxu0 %v1928
        %2829 = vmatpush2.bf16.msra.mxu0 %v1927
        %2830 = vmatprep.subr.bf16.mxu0 %v1920
        %2831 = vmatpush2.bf16.msra.mxu0 %v1919
        %2832 = vmatprep.mubr.bf16.mxu0 %v894
        %2833 = vmatmul.mubr.bf16.gmra.mxu0 %v893
        %v2834 = vpop.f32.mrf.mxu0
        %v2835 = vadd.f32 %v2722, %v2834
        %v2836 = vpop.f32.mrf.mxu0
        %v2837 = vadd.f32 %v2724, %v2836
        %v2838 = vpop.f32.mrf.mxu0
        %v2839 = vadd.f32 %v2726, %v2838
        %v2840 = vpop.f32.mrf.mxu0
        %v2841 = vadd.f32 %v2728, %v2840
        %2842 = vmatprep.mubr.bf16.mxu0 %v898
        %2843 = vmatmul.mubr.bf16.gmra.mxu0 %v897
        %v2844 = vpop.f32.mrf.mxu0
        %v2845 = vadd.f32 %v2732, %v2844
        %v2846 = vpop.f32.mrf.mxu0
        %v2847 = vadd.f32 %v2734, %v2846
        %v2848 = vpop.f32.mrf.mxu0
        %v2849 = vadd.f32 %v2736, %v2848
        %v2850 = vpop.f32.mrf.mxu0
        %v2851 = vadd.f32 %v2738, %v2850
        %2852 = vmatprep.mubr.bf16.mxu0 %v902
        %2853 = vmatmul.mubr.bf16.gmra.mxu0 %v901
        %v2854 = vpop.f32.mrf.mxu0
        %v2855 = vadd.f32 %v2742, %v2854
        %v2856 = vpop.f32.mrf.mxu0
        %v2857 = vadd.f32 %v2744, %v2856
        %v2858 = vpop.f32.mrf.mxu0
        %v2859 = vadd.f32 %v2746, %v2858
        %v2860 = vpop.f32.mrf.mxu0
        %v2861 = vadd.f32 %v2748, %v2860
        %2862 = vmatprep.mubr.bf16.mxu0 %v906
        %2863 = vmatmul.mubr.bf16.gmra.mxu0 %v905
        %v2864 = vpop.f32.mrf.mxu0
        %v2865 = vadd.f32 %v2752, %v2864
        %v2866 = vpop.f32.mrf.mxu0
        %v2867 = vadd.f32 %v2754, %v2866
        %v2868 = vpop.f32.mrf.mxu0
        %v2869 = vadd.f32 %v2756, %v2868
        %v2870 = vpop.f32.mrf.mxu0
        %v2871 = vadd.f32 %v2758, %v2870
        %2872 = vmatprep.mubr.bf16.mxu0 %v910
        %2873 = vmatmul.mubr.bf16.gmra.mxu0 %v909
        %v2874 = vpop.f32.mrf.mxu0
        %v2875 = vadd.f32 %v2762, %v2874
        %v2876 = vpop.f32.mrf.mxu0
        %v2877 = vadd.f32 %v2764, %v2876
        %v2878 = vpop.f32.mrf.mxu0
        %v2879 = vadd.f32 %v2766, %v2878
        %v2880 = vpop.f32.mrf.mxu0
        %v2881 = vadd.f32 %v2768, %v2880
        %2882 = vmatprep.mubr.bf16.mxu0 %v914
        %2883 = vmatmul.mubr.bf16.gmra.mxu0 %v913
        %v2884 = vpop.f32.mrf.mxu0
        %v2885 = vadd.f32 %v2772, %v2884
        %v2886 = vpop.f32.mrf.mxu0
        %v2887 = vadd.f32 %v2774, %v2886
        %v2888 = vpop.f32.mrf.mxu0
        %v2889 = vadd.f32 %v2776, %v2888
        %v2890 = vpop.f32.mrf.mxu0
        %v2891 = vadd.f32 %v2778, %v2890
        %2892 = vmatprep.mubr.bf16.mxu0 %v918
        %2893 = vmatmul.mubr.bf16.gmra.mxu0 %v917
        %v2894 = vpop.f32.mrf.mxu0
        %v2895 = vadd.f32 %v2782, %v2894
        %v2896 = vpop.f32.mrf.mxu0
        %v2897 = vadd.f32 %v2784, %v2896
        %v2898 = vpop.f32.mrf.mxu0
        %v2899 = vadd.f32 %v2786, %v2898
        %v2900 = vpop.f32.mrf.mxu0
        %v2901 = vadd.f32 %v2788, %v2900
        %2902 = vmatprep.mubr.bf16.mxu0 %v922
        %2903 = vmatmul.mubr.bf16.gmra.mxu0 %v921
        %v2904 = vpop.f32.mrf.mxu0
        %v2905 = vadd.f32 %v2792, %v2904
        %v2906 = vpop.f32.mrf.mxu0
        %v2907 = vadd.f32 %v2794, %v2906
        %v2908 = vpop.f32.mrf.mxu0
        %v2909 = vadd.f32 %v2796, %v2908
        %v2910 = vpop.f32.mrf.mxu0
        %v2911 = vadd.f32 %v2798, %v2910
        %2912 = vdwg.mxu0
        %2913 = vmatprep.subr.bf16.mxu0 %v1786
        %2914 = vmatpush1.bf16.msra.mxu0 %v1785
        %2915 = vmatprep.subr.bf16.mxu0 %v1778
        %2916 = vmatpush1.bf16.msra.mxu0 %v1777
        %2917 = vmatprep.subr.bf16.mxu0 %v1770
        %2918 = vmatpush1.bf16.msra.mxu0 %v1769
        %2919 = vmatprep.subr.bf16.mxu0 %v1762
        %2920 = vmatpush1.bf16.msra.mxu0 %v1761
        %2921 = vmatprep.subr.bf16.mxu0 %v1754
        %2922 = vmatpush1.bf16.msra.mxu0 %v1753
        %2923 = vmatprep.subr.bf16.mxu0 %v1746
        %2924 = vmatpush1.bf16.msra.mxu0 %v1745
        %2925 = vmatprep.subr.bf16.mxu0 %v1738
        %2926 = vmatpush1.bf16.msra.mxu0 %v1737
        %2927 = vmatprep.subr.bf16.mxu0 %v1730
        %2928 = vmatpush1.bf16.msra.mxu0 %v1729
        %2929 = vmatprep.subr.bf16.mxu0 %v1850
        %2930 = vmatpush2.bf16.msra.mxu0 %v1849
        %2931 = vmatprep.subr.bf16.mxu0 %v1842
        %2932 = vmatpush2.bf16.msra.mxu0 %v1841
        %2933 = vmatprep.subr.bf16.mxu0 %v1834
        %2934 = vmatpush2.bf16.msra.mxu0 %v1833
        %2935 = vmatprep.subr.bf16.mxu0 %v1826
        %2936 = vmatpush2.bf16.msra.mxu0 %v1825
        %2937 = vmatprep.subr.bf16.mxu0 %v1818
        %2938 = vmatpush2.bf16.msra.mxu0 %v1817
        %2939 = vmatprep.subr.bf16.mxu0 %v1810
        %2940 = vmatpush2.bf16.msra.mxu0 %v1809
        %2941 = vmatprep.subr.bf16.mxu0 %v1802
        %2942 = vmatpush2.bf16.msra.mxu0 %v1801
        %2943 = vmatprep.subr.bf16.mxu0 %v1794
        %2944 = vmatpush2.bf16.msra.mxu0 %v1793
        %2945 = vmatprep.mubr.bf16.mxu0 %v892
        %2946 = vmatmul.mubr.bf16.gmra.mxu0 %v891
        %v2947 = vpop.f32.mrf.mxu0
        %v2948 = vadd.f32 0.0, %v2947
        %v2949 = vpop.f32.mrf.mxu0
        %v2950 = vadd.f32 0.0, %v2949
        %v2951 = vpop.f32.mrf.mxu0
        %v2952 = vadd.f32 0.0, %v2951
        %v2953 = vpop.f32.mrf.mxu0
        %v2954 = vadd.f32 0.0, %v2953
        %2955 = vmatprep.mubr.bf16.mxu0 %v896
        %2956 = vmatmul.mubr.bf16.gmra.mxu0 %v895
        %v2957 = vpop.f32.mrf.mxu0
        %v2958 = vadd.f32 0.0, %v2957
        %v2959 = vpop.f32.mrf.mxu0
        %v2960 = vadd.f32 0.0, %v2959
        %v2961 = vpop.f32.mrf.mxu0
        %v2962 = vadd.f32 0.0, %v2961
        %v2963 = vpop.f32.mrf.mxu0
        %v2964 = vadd.f32 0.0, %v2963
        %2965 = vmatprep.mubr.bf16.mxu0 %v900
        %2966 = vmatmul.mubr.bf16.gmra.mxu0 %v899
        %v2967 = vpop.f32.mrf.mxu0
        %v2968 = vadd.f32 0.0, %v2967
        %v2969 = vpop.f32.mrf.mxu0
        %v2970 = vadd.f32 0.0, %v2969
        %v2971 = vpop.f32.mrf.mxu0
        %v2972 = vadd.f32 0.0, %v2971
        %v2973 = vpop.f32.mrf.mxu0
        %v2974 = vadd.f32 0.0, %v2973
        %2975 = vmatprep.mubr.bf16.mxu0 %v904
        %2976 = vmatmul.mubr.bf16.gmra.mxu0 %v903
        %v2977 = vpop.f32.mrf.mxu0
        %v2978 = vadd.f32 0.0, %v2977
        %v2979 = vpop.f32.mrf.mxu0
        %v2980 = vadd.f32 0.0, %v2979
        %v2981 = vpop.f32.mrf.mxu0
        %v2982 = vadd.f32 0.0, %v2981
        %v2983 = vpop.f32.mrf.mxu0
        %v2984 = vadd.f32 0.0, %v2983
        %2985 = vmatprep.mubr.bf16.mxu0 %v908
        %2986 = vmatmul.mubr.bf16.gmra.mxu0 %v907
        %v2987 = vpop.f32.mrf.mxu0
        %v2988 = vadd.f32 0.0, %v2987
        %v2989 = vpop.f32.mrf.mxu0
        %v2990 = vadd.f32 0.0, %v2989
        %v2991 = vpop.f32.mrf.mxu0
        %v2992 = vadd.f32 0.0, %v2991
        %v2993 = vpop.f32.mrf.mxu0
        %v2994 = vadd.f32 0.0, %v2993
        %2995 = vmatprep.mubr.bf16.mxu0 %v912
        %2996 = vmatmul.mubr.bf16.gmra.mxu0 %v911
        %v2997 = vpop.f32.mrf.mxu0
        %v2998 = vadd.f32 0.0, %v2997
        %v2999 = vpop.f32.mrf.mxu0
        %v3000 = vadd.f32 0.0, %v2999
        %v3001 = vpop.f32.mrf.mxu0
        %v3002 = vadd.f32 0.0, %v3001
        %v3003 = vpop.f32.mrf.mxu0
        %v3004 = vadd.f32 0.0, %v3003
        %3005 = vmatprep.mubr.bf16.mxu0 %v916
        %3006 = vmatmul.mubr.bf16.gmra.mxu0 %v915
        %v3007 = vpop.f32.mrf.mxu0
        %v3008 = vadd.f32 0.0, %v3007
        %v3009 = vpop.f32.mrf.mxu0
        %v3010 = vadd.f32 0.0, %v3009
        %v3011 = vpop.f32.mrf.mxu0
        %v3012 = vadd.f32 0.0, %v3011
        %v3013 = vpop.f32.mrf.mxu0
        %v3014 = vadd.f32 0.0, %v3013
        %3015 = vmatprep.mubr.bf16.mxu0 %v920
        %3016 = vmatmul.mubr.bf16.gmra.mxu0 %v919
        %v3017 = vpop.f32.mrf.mxu0
        %v3018 = vadd.f32 0.0, %v3017
        %v3019 = vpop.f32.mrf.mxu0
        %v3020 = vadd.f32 0.0, %v3019
        %v3021 = vpop.f32.mrf.mxu0
        %v3022 = vadd.f32 0.0, %v3021
        %v3023 = vpop.f32.mrf.mxu0
        %v3024 = vadd.f32 0.0, %v3023
        %3025 = vdwg.mxu0
        %3026 = vmatprep.subr.bf16.mxu0 %v1914
        %3027 = vmatpush1.bf16.msra.mxu0 %v1913
        %3028 = vmatprep.subr.bf16.mxu0 %v1906
        %3029 = vmatpush1.bf16.msra.mxu0 %v1905
        %3030 = vmatprep.subr.bf16.mxu0 %v1898
        %3031 = vmatpush1.bf16.msra.mxu0 %v1897
        %3032 = vmatprep.subr.bf16.mxu0 %v1890
        %3033 = vmatpush1.bf16.msra.mxu0 %v1889
        %3034 = vmatprep.subr.bf16.mxu0 %v1882
        %3035 = vmatpush1.bf16.msra.mxu0 %v1881
        %3036 = vmatprep.subr.bf16.mxu0 %v1874
        %3037 = vmatpush1.bf16.msra.mxu0 %v1873
        %3038 = vmatprep.subr.bf16.mxu0 %v1866
        %3039 = vmatpush1.bf16.msra.mxu0 %v1865
        %3040 = vmatprep.subr.bf16.mxu0 %v1858
        %3041 = vmatpush1.bf16.msra.mxu0 %v1857
        %3042 = vmatprep.subr.bf16.mxu0 %v1978
        %3043 = vmatpush2.bf16.msra.mxu0 %v1977
        %3044 = vmatprep.subr.bf16.mxu0 %v1970
        %3045 = vmatpush2.bf16.msra.mxu0 %v1969
        %3046 = vmatprep.subr.bf16.mxu0 %v1962
        %3047 = vmatpush2.bf16.msra.mxu0 %v1961
        %3048 = vmatprep.subr.bf16.mxu0 %v1954
        %3049 = vmatpush2.bf16.msra.mxu0 %v1953
        %3050 = vmatprep.subr.bf16.mxu0 %v1946
        %3051 = vmatpush2.bf16.msra.mxu0 %v1945
        %3052 = vmatprep.subr.bf16.mxu0 %v1938
        %3053 = vmatpush2.bf16.msra.mxu0 %v1937
        %3054 = vmatprep.subr.bf16.mxu0 %v1930
        %3055 = vmatpush2.bf16.msra.mxu0 %v1929
        %3056 = vmatprep.subr.bf16.mxu0 %v1922
        %3057 = vmatpush2.bf16.msra.mxu0 %v1921
        %3058 = vmatprep.mubr.bf16.mxu0 %v894
        %3059 = vmatmul.mubr.bf16.gmra.mxu0 %v893
        %v3060 = vpop.f32.mrf.mxu0
        %v3061 = vadd.f32 %v2948, %v3060
        %v3062 = vpop.f32.mrf.mxu0
        %v3063 = vadd.f32 %v2950, %v3062
        %v3064 = vpop.f32.mrf.mxu0
        %v3065 = vadd.f32 %v2952, %v3064
        %v3066 = vpop.f32.mrf.mxu0
        %v3067 = vadd.f32 %v2954, %v3066
        %3068 = vmatprep.mubr.bf16.mxu0 %v898
        %3069 = vmatmul.mubr.bf16.gmra.mxu0 %v897
        %v3070 = vpop.f32.mrf.mxu0
        %v3071 = vadd.f32 %v2958, %v3070
        %v3072 = vpop.f32.mrf.mxu0
        %v3073 = vadd.f32 %v2960, %v3072
        %v3074 = vpop.f32.mrf.mxu0
        %v3075 = vadd.f32 %v2962, %v3074
        %v3076 = vpop.f32.mrf.mxu0
        %v3077 = vadd.f32 %v2964, %v3076
        %3078 = vmatprep.mubr.bf16.mxu0 %v902
        %3079 = vmatmul.mubr.bf16.gmra.mxu0 %v901
        %v3080 = vpop.f32.mrf.mxu0
        %v3081 = vadd.f32 %v2968, %v3080
        %v3082 = vpop.f32.mrf.mxu0
        %v3083 = vadd.f32 %v2970, %v3082
        %v3084 = vpop.f32.mrf.mxu0
        %v3085 = vadd.f32 %v2972, %v3084
        %v3086 = vpop.f32.mrf.mxu0
        %v3087 = vadd.f32 %v2974, %v3086
        %3088 = vmatprep.mubr.bf16.mxu0 %v906
        %3089 = vmatmul.mubr.bf16.gmra.mxu0 %v905
        %v3090 = vpop.f32.mrf.mxu0
        %v3091 = vadd.f32 %v2978, %v3090
        %v3092 = vpop.f32.mrf.mxu0
        %v3093 = vadd.f32 %v2980, %v3092
        %v3094 = vpop.f32.mrf.mxu0
        %v3095 = vadd.f32 %v2982, %v3094
        %v3096 = vpop.f32.mrf.mxu0
        %v3097 = vadd.f32 %v2984, %v3096
        %3098 = vmatprep.mubr.bf16.mxu0 %v910
        %3099 = vmatmul.mubr.bf16.gmra.mxu0 %v909
        %v3100 = vpop.f32.mrf.mxu0
        %v3101 = vadd.f32 %v2988, %v3100
        %v3102 = vpop.f32.mrf.mxu0
        %v3103 = vadd.f32 %v2990, %v3102
        %v3104 = vpop.f32.mrf.mxu0
        %v3105 = vadd.f32 %v2992, %v3104
        %v3106 = vpop.f32.mrf.mxu0
        %v3107 = vadd.f32 %v2994, %v3106
        %3108 = vmatprep.mubr.bf16.mxu0 %v914
        %3109 = vmatmul.mubr.bf16.gmra.mxu0 %v913
        %v3110 = vpop.f32.mrf.mxu0
        %v3111 = vadd.f32 %v2998, %v3110
        %v3112 = vpop.f32.mrf.mxu0
        %v3113 = vadd.f32 %v3000, %v3112
        %v3114 = vpop.f32.mrf.mxu0
        %v3115 = vadd.f32 %v3002, %v3114
        %v3116 = vpop.f32.mrf.mxu0
        %v3117 = vadd.f32 %v3004, %v3116
        %3118 = vmatprep.mubr.bf16.mxu0 %v918
        %3119 = vmatmul.mubr.bf16.gmra.mxu0 %v917
        %v3120 = vpop.f32.mrf.mxu0
        %v3121 = vadd.f32 %v3008, %v3120
        %v3122 = vpop.f32.mrf.mxu0
        %v3123 = vadd.f32 %v3010, %v3122
        %v3124 = vpop.f32.mrf.mxu0
        %v3125 = vadd.f32 %v3012, %v3124
        %v3126 = vpop.f32.mrf.mxu0
        %v3127 = vadd.f32 %v3014, %v3126
        %3128 = vmatprep.mubr.bf16.mxu0 %v922
        %3129 = vmatmul.mubr.bf16.gmra.mxu0 %v921
        %v3130 = vpop.f32.mrf.mxu0
        %v3131 = vadd.f32 %v3018, %v3130
        %v3132 = vpop.f32.mrf.mxu0
        %v3133 = vadd.f32 %v3020, %v3132
        %v3134 = vpop.f32.mrf.mxu0
        %v3135 = vadd.f32 %v3022, %v3134
        %v3136 = vpop.f32.mrf.mxu0
        %v3137 = vadd.f32 %v3024, %v3136
        %3138 = vdwg.mxu0
        %v3139 = vpack.c.bf16 %v2387, %v2383
        %v3140 = vpack.c.bf16 %v2389, %v2385
        %v3141 = vpack.c.bf16 %v2613, %v2609
        %v3142 = vpack.c.bf16 %v2615, %v2611
        %v3143 = vpack.c.bf16 %v2839, %v2835
        %v3144 = vpack.c.bf16 %v2841, %v2837
        %v3145 = vpack.c.bf16 %v3065, %v3061
        %v3146 = vpack.c.bf16 %v3067, %v3063
        %v3147 = vpack.c.bf16 %v2397, %v2393
        %v3148 = vpack.c.bf16 %v2399, %v2395
        %v3149 = vpack.c.bf16 %v2623, %v2619
        %v3150 = vpack.c.bf16 %v2625, %v2621
        %v3151 = vpack.c.bf16 %v2849, %v2845
        %v3152 = vpack.c.bf16 %v2851, %v2847
        %v3153 = vpack.c.bf16 %v3075, %v3071
        %v3154 = vpack.c.bf16 %v3077, %v3073
        %v3155 = vpack.c.bf16 %v2407, %v2403
        %v3156 = vpack.c.bf16 %v2409, %v2405
        %v3157 = vpack.c.bf16 %v2633, %v2629
        %v3158 = vpack.c.bf16 %v2635, %v2631
        %v3159 = vpack.c.bf16 %v2859, %v2855
        %v3160 = vpack.c.bf16 %v2861, %v2857
        %v3161 = vpack.c.bf16 %v3085, %v3081
        %v3162 = vpack.c.bf16 %v3087, %v3083
        %v3163 = vpack.c.bf16 %v2417, %v2413
        %v3164 = vpack.c.bf16 %v2419, %v2415
        %v3165 = vpack.c.bf16 %v2643, %v2639
        %v3166 = vpack.c.bf16 %v2645, %v2641
        %v3167 = vpack.c.bf16 %v2869, %v2865
        %v3168 = vpack.c.bf16 %v2871, %v2867
        %v3169 = vpack.c.bf16 %v3095, %v3091
        %v3170 = vpack.c.bf16 %v3097, %v3093
        %v3171 = vpack.c.bf16 %v2427, %v2423
        %v3172 = vpack.c.bf16 %v2429, %v2425
        %v3173 = vpack.c.bf16 %v2653, %v2649
        %v3174 = vpack.c.bf16 %v2655, %v2651
        %v3175 = vpack.c.bf16 %v2879, %v2875
        %v3176 = vpack.c.bf16 %v2881, %v2877
        %v3177 = vpack.c.bf16 %v3105, %v3101
        %v3178 = vpack.c.bf16 %v3107, %v3103
        %v3179 = vpack.c.bf16 %v2437, %v2433
        %v3180 = vpack.c.bf16 %v2439, %v2435
        %v3181 = vpack.c.bf16 %v2663, %v2659
        %v3182 = vpack.c.bf16 %v2665, %v2661
        %v3183 = vpack.c.bf16 %v2889, %v2885
        %v3184 = vpack.c.bf16 %v2891, %v2887
        %v3185 = vpack.c.bf16 %v3115, %v3111
        %v3186 = vpack.c.bf16 %v3117, %v3113
        %v3187 = vpack.c.bf16 %v2447, %v2443
        %v3188 = vpack.c.bf16 %v2449, %v2445
        %v3189 = vpack.c.bf16 %v2673, %v2669
        %v3190 = vpack.c.bf16 %v2675, %v2671
        %v3191 = vpack.c.bf16 %v2899, %v2895
        %v3192 = vpack.c.bf16 %v2901, %v2897
        %v3193 = vpack.c.bf16 %v3125, %v3121
        %v3194 = vpack.c.bf16 %v3127, %v3123
        %v3195 = vpack.c.bf16 %v2457, %v2453
        %v3196 = vpack.c.bf16 %v2459, %v2455
        %v3197 = vpack.c.bf16 %v2683, %v2679
        %v3198 = vpack.c.bf16 %v2685, %v2681
        %v3199 = vpack.c.bf16 %v2909, %v2905
        %v3200 = vpack.c.bf16 %v2911, %v2907
        %v3201 = vpack.c.bf16 %v3135, %v3131
        %v3202 = vpack.c.bf16 %v3137, %v3133
        %v3203 = vld [vmem:[%s5] sm:$0xf]
        %v3204 = vld [vmem:[%s5 + $0x4] sm:$0xf]
        %v3205 = vld [vmem:[%s5 + $0x8] sm:$0xf]
        %v3206 = vld [vmem:[%s5 + $0xc] sm:$0xf]
        %v3207 = vld [vmem:[%s5 + $0x10] sm:$0xf]
        %v3208 = vld [vmem:[%s5 + $0x14] sm:$0xf]
        %v3209 = vld [vmem:[%s5 + $0x18] sm:$0xf]
        %v3210 = vld [vmem:[%s5 + $0x1c] sm:$0xf]
        %v3211 = vld [vmem:[%s5 + $0x20] sm:$0xf]
        %v3212 = vld [vmem:[%s5 + $0x24] sm:$0xf]
        %v3213 = vld [vmem:[%s5 + $0x28] sm:$0xf]
        %v3214 = vld [vmem:[%s5 + $0x2c] sm:$0xf]
        %v3215 = vld [vmem:[%s5 + $0x30] sm:$0xf]
        %v3216 = vld [vmem:[%s5 + $0x34] sm:$0xf]
        %v3217 = vld [vmem:[%s5 + $0x38] sm:$0xf]
        %v3218 = vld [vmem:[%s5 + $0x3c] sm:$0xf]
        %v3219 = vld [vmem:[%s5 + $0x40] sm:$0xf]
        %v3220 = vld [vmem:[%s5 + $0x44] sm:$0xf]
        %v3221 = vld [vmem:[%s5 + $0x48] sm:$0xf]
        %v3222 = vld [vmem:[%s5 + $0x4c] sm:$0xf]
        %v3223 = vld [vmem:[%s5 + $0x50] sm:$0xf]
        %v3224 = vld [vmem:[%s5 + $0x54] sm:$0xf]
        %v3225 = vld [vmem:[%s5 + $0x58] sm:$0xf]
        %v3226 = vld [vmem:[%s5 + $0x5c] sm:$0xf]
        %v3227 = vld [vmem:[%s5 + $0x60] sm:$0xf]
        %v3228 = vld [vmem:[%s5 + $0x64] sm:$0xf]
        %v3229 = vld [vmem:[%s5 + $0x68] sm:$0xf]
        %v3230 = vld [vmem:[%s5 + $0x6c] sm:$0xf]
        %v3231 = vld [vmem:[%s5 + $0x70] sm:$0xf]
        %v3232 = vld [vmem:[%s5 + $0x74] sm:$0xf]
        %v3233 = vld [vmem:[%s5 + $0x78] sm:$0xf]
        %v3234 = vld [vmem:[%s5 + $0x7c] sm:$0xf]
        %v3235 = vld [vmem:[%s5 + $0x80] sm:$0xf]
        %v3236 = vld [vmem:[%s5 + $0x84] sm:$0xf]
        %v3237 = vld [vmem:[%s5 + $0x88] sm:$0xf]
        %v3238 = vld [vmem:[%s5 + $0x8c] sm:$0xf]
        %v3239 = vld [vmem:[%s5 + $0x90] sm:$0xf]
        %v3240 = vld [vmem:[%s5 + $0x94] sm:$0xf]
        %v3241 = vld [vmem:[%s5 + $0x98] sm:$0xf]
        %v3242 = vld [vmem:[%s5 + $0x9c] sm:$0xf]
        %v3243 = vld [vmem:[%s5 + $0xa0] sm:$0xf]
        %v3244 = vld [vmem:[%s5 + $0xa4] sm:$0xf]
        %v3245 = vld [vmem:[%s5 + $0xa8] sm:$0xf]
        %v3246 = vld [vmem:[%s5 + $0xac] sm:$0xf]
        %v3247 = vld [vmem:[%s5 + $0xb0] sm:$0xf]
        %v3248 = vld [vmem:[%s5 + $0xb4] sm:$0xf]
        %v3249 = vld [vmem:[%s5 + $0xb8] sm:$0xf]
        %v3250 = vld [vmem:[%s5 + $0xbc] sm:$0xf]
        %v3251 = vld [vmem:[%s5 + $0xc0] sm:$0xf]
        %v3252 = vld [vmem:[%s5 + $0xc4] sm:$0xf]
        %v3253 = vld [vmem:[%s5 + $0xc8] sm:$0xf]
        %v3254 = vld [vmem:[%s5 + $0xcc] sm:$0xf]
        %v3255 = vld [vmem:[%s5 + $0xd0] sm:$0xf]
        %v3256 = vld [vmem:[%s5 + $0xd4] sm:$0xf]
        %v3257 = vld [vmem:[%s5 + $0xd8] sm:$0xf]
        %v3258 = vld [vmem:[%s5 + $0xdc] sm:$0xf]
        %v3259 = vld [vmem:[%s5 + $0xe0] sm:$0xf]
        %v3260 = vld [vmem:[%s5 + $0xe4] sm:$0xf]
        %v3261 = vld [vmem:[%s5 + $0xe8] sm:$0xf]
        %v3262 = vld [vmem:[%s5 + $0xec] sm:$0xf]
        %v3263 = vld [vmem:[%s5 + $0xf0] sm:$0xf]
        %v3264 = vld [vmem:[%s5 + $0xf4] sm:$0xf]
        %v3265 = vld [vmem:[%s5 + $0xf8] sm:$0xf]
        %v3266 = vld [vmem:[%s5 + $0xfc] sm:$0xf]
        %v3267 = vld [vmem:[%s5 + $0x100] sm:$0xf]
        %v3268 = vld [vmem:[%s5 + $0x104] sm:$0xf]
        %v3269 = vld [vmem:[%s5 + $0x108] sm:$0xf]
        %v3270 = vld [vmem:[%s5 + $0x10c] sm:$0xf]
        %v3271 = vld [vmem:[%s5 + $0x110] sm:$0xf]
        %v3272 = vld [vmem:[%s5 + $0x114] sm:$0xf]
        %v3273 = vld [vmem:[%s5 + $0x118] sm:$0xf]
        %v3274 = vld [vmem:[%s5 + $0x11c] sm:$0xf]
        %v3275 = vld [vmem:[%s5 + $0x120] sm:$0xf]
        %v3276 = vld [vmem:[%s5 + $0x124] sm:$0xf]
        %v3277 = vld [vmem:[%s5 + $0x128] sm:$0xf]
        %v3278 = vld [vmem:[%s5 + $0x12c] sm:$0xf]
        %v3279 = vld [vmem:[%s5 + $0x130] sm:$0xf]
        %v3280 = vld [vmem:[%s5 + $0x134] sm:$0xf]
        %v3281 = vld [vmem:[%s5 + $0x138] sm:$0xf]
        %v3282 = vld [vmem:[%s5 + $0x13c] sm:$0xf]
        %v3283 = vld [vmem:[%s5 + $0x140] sm:$0xf]
        %v3284 = vld [vmem:[%s5 + $0x144] sm:$0xf]
        %v3285 = vld [vmem:[%s5 + $0x148] sm:$0xf]
        %v3286 = vld [vmem:[%s5 + $0x14c] sm:$0xf]
        %v3287 = vld [vmem:[%s5 + $0x150] sm:$0xf]
        %v3288 = vld [vmem:[%s5 + $0x154] sm:$0xf]
        %v3289 = vld [vmem:[%s5 + $0x158] sm:$0xf]
        %v3290 = vld [vmem:[%s5 + $0x15c] sm:$0xf]
        %v3291 = vld [vmem:[%s5 + $0x160] sm:$0xf]
        %v3292 = vld [vmem:[%s5 + $0x164] sm:$0xf]
        %v3293 = vld [vmem:[%s5 + $0x168] sm:$0xf]
        %v3294 = vld [vmem:[%s5 + $0x16c] sm:$0xf]
        %v3295 = vld [vmem:[%s5 + $0x170] sm:$0xf]
        %v3296 = vld [vmem:[%s5 + $0x174] sm:$0xf]
        %v3297 = vld [vmem:[%s5 + $0x178] sm:$0xf]
        %v3298 = vld [vmem:[%s5 + $0x17c] sm:$0xf]
        %v3299 = vld [vmem:[%s5 + $0x180] sm:$0xf]
        %v3300 = vld [vmem:[%s5 + $0x184] sm:$0xf]
        %v3301 = vld [vmem:[%s5 + $0x188] sm:$0xf]
        %v3302 = vld [vmem:[%s5 + $0x18c] sm:$0xf]
        %v3303 = vld [vmem:[%s5 + $0x190] sm:$0xf]
        %v3304 = vld [vmem:[%s5 + $0x194] sm:$0xf]
        %v3305 = vld [vmem:[%s5 + $0x198] sm:$0xf]
        %v3306 = vld [vmem:[%s5 + $0x19c] sm:$0xf]
        %v3307 = vld [vmem:[%s5 + $0x1a0] sm:$0xf]
        %v3308 = vld [vmem:[%s5 + $0x1a4] sm:$0xf]
        %v3309 = vld [vmem:[%s5 + $0x1a8] sm:$0xf]
        %v3310 = vld [vmem:[%s5 + $0x1ac] sm:$0xf]
        %v3311 = vld [vmem:[%s5 + $0x1b0] sm:$0xf]
        %v3312 = vld [vmem:[%s5 + $0x1b4] sm:$0xf]
        %v3313 = vld [vmem:[%s5 + $0x1b8] sm:$0xf]
        %v3314 = vld [vmem:[%s5 + $0x1bc] sm:$0xf]
        %v3315 = vld [vmem:[%s5 + $0x1c0] sm:$0xf]
        %v3316 = vld [vmem:[%s5 + $0x1c4] sm:$0xf]
        %v3317 = vld [vmem:[%s5 + $0x1c8] sm:$0xf]
        %v3318 = vld [vmem:[%s5 + $0x1cc] sm:$0xf]
        %v3319 = vld [vmem:[%s5 + $0x1d0] sm:$0xf]
        %v3320 = vld [vmem:[%s5 + $0x1d4] sm:$0xf]
        %v3321 = vld [vmem:[%s5 + $0x1d8] sm:$0xf]
        %v3322 = vld [vmem:[%s5 + $0x1dc] sm:$0xf]
        %v3323 = vld [vmem:[%s5 + $0x1e0] sm:$0xf]
        %v3324 = vld [vmem:[%s5 + $0x1e4] sm:$0xf]
        %v3325 = vld [vmem:[%s5 + $0x1e8] sm:$0xf]
        %v3326 = vld [vmem:[%s5 + $0x1ec] sm:$0xf]
        %v3327 = vld [vmem:[%s5 + $0x1f0] sm:$0xf]
        %v3328 = vld [vmem:[%s5 + $0x1f4] sm:$0xf]
        %v3329 = vld [vmem:[%s5 + $0x1f8] sm:$0xf]
        %v3330 = vld [vmem:[%s5 + $0x1fc] sm:$0xf]
        %v3459 = vunpack.c.l.b16 %v3203
        %v3460 = vunpack.c.l.b16 %v3204
        %v3461 = vunpack.c.l.b16 %v3205
        %v3462 = vunpack.c.l.b16 %v3206
        %v3463 = vunpack.c.l.b16 %v3207
        %v3464 = vunpack.c.l.b16 %v3208
        %v3465 = vunpack.c.l.b16 %v3209
        %v3466 = vunpack.c.l.b16 %v3210
        %v3467 = vunpack.c.l.b16 %v3211
        %v3468 = vunpack.c.l.b16 %v3212
        %v3469 = vunpack.c.l.b16 %v3213
        %v3470 = vunpack.c.l.b16 %v3214
        %v3471 = vunpack.c.l.b16 %v3215
        %v3472 = vunpack.c.l.b16 %v3216
        %v3473 = vunpack.c.l.b16 %v3217
        %v3474 = vunpack.c.l.b16 %v3218
        %v3475 = vunpack.c.l.b16 %v3219
        %v3476 = vunpack.c.l.b16 %v3220
        %v3477 = vunpack.c.l.b16 %v3221
        %v3478 = vunpack.c.l.b16 %v3222
        %v3479 = vunpack.c.l.b16 %v3223
        %v3480 = vunpack.c.l.b16 %v3224
        %v3481 = vunpack.c.l.b16 %v3225
        %v3482 = vunpack.c.l.b16 %v3226
        %v3483 = vunpack.c.l.b16 %v3227
        %v3484 = vunpack.c.l.b16 %v3228
        %v3485 = vunpack.c.l.b16 %v3229
        %v3486 = vunpack.c.l.b16 %v3230
        %v3487 = vunpack.c.l.b16 %v3231
        %v3488 = vunpack.c.l.b16 %v3232
        %v3489 = vunpack.c.l.b16 %v3233
        %v3490 = vunpack.c.l.b16 %v3234
        %v3491 = vunpack.c.l.b16 %v3235
        %v3492 = vunpack.c.l.b16 %v3236
        %v3493 = vunpack.c.l.b16 %v3237
        %v3494 = vunpack.c.l.b16 %v3238
        %v3495 = vunpack.c.l.b16 %v3239
        %v3496 = vunpack.c.l.b16 %v3240
        %v3497 = vunpack.c.l.b16 %v3241
        %v3498 = vunpack.c.l.b16 %v3242
        %v3499 = vunpack.c.l.b16 %v3243
        %v3500 = vunpack.c.l.b16 %v3244
        %v3501 = vunpack.c.l.b16 %v3245
        %v3502 = vunpack.c.l.b16 %v3246
        %v3503 = vunpack.c.l.b16 %v3247
        %v3504 = vunpack.c.l.b16 %v3248
        %v3505 = vunpack.c.l.b16 %v3249
        %v3506 = vunpack.c.l.b16 %v3250
        %v3507 = vunpack.c.l.b16 %v3251
        %v3508 = vunpack.c.l.b16 %v3252
        %v3509 = vunpack.c.l.b16 %v3253
        %v3510 = vunpack.c.l.b16 %v3254
        %v3511 = vunpack.c.l.b16 %v3255
        %v3512 = vunpack.c.l.b16 %v3256
        %v3513 = vunpack.c.l.b16 %v3257
        %v3514 = vunpack.c.l.b16 %v3258
        %v3515 = vunpack.c.l.b16 %v3259
        %v3516 = vunpack.c.l.b16 %v3260
        %v3517 = vunpack.c.l.b16 %v3261
        %v3518 = vunpack.c.l.b16 %v3262
        %v3519 = vunpack.c.l.b16 %v3263
        %v3520 = vunpack.c.l.b16 %v3264
        %v3521 = vunpack.c.l.b16 %v3265
        %v3522 = vunpack.c.l.b16 %v3266
        %v3523 = vunpack.c.l.b16 %v3267
        %v3524 = vunpack.c.l.b16 %v3268
        %v3525 = vunpack.c.l.b16 %v3269
        %v3526 = vunpack.c.l.b16 %v3270
        %v3527 = vunpack.c.l.b16 %v3271
        %v3528 = vunpack.c.l.b16 %v3272
        %v3529 = vunpack.c.l.b16 %v3273
        %v3530 = vunpack.c.l.b16 %v3274
        %v3531 = vunpack.c.l.b16 %v3275
        %v3532 = vunpack.c.l.b16 %v3276
        %v3533 = vunpack.c.l.b16 %v3277
        %v3534 = vunpack.c.l.b16 %v3278
        %v3535 = vunpack.c.l.b16 %v3279
        %v3536 = vunpack.c.l.b16 %v3280
        %v3537 = vunpack.c.l.b16 %v3281
        %v3538 = vunpack.c.l.b16 %v3282
        %v3539 = vunpack.c.l.b16 %v3283
        %v3540 = vunpack.c.l.b16 %v3284
        %v3541 = vunpack.c.l.b16 %v3285
        %v3542 = vunpack.c.l.b16 %v3286
        %v3543 = vunpack.c.l.b16 %v3287
        %v3544 = vunpack.c.l.b16 %v3288
        %v3545 = vunpack.c.l.b16 %v3289
        %v3546 = vunpack.c.l.b16 %v3290
        %v3547 = vunpack.c.l.b16 %v3291
        %v3548 = vunpack.c.l.b16 %v3292
        %v3549 = vunpack.c.l.b16 %v3293
        %v3550 = vunpack.c.l.b16 %v3294
        %v3551 = vunpack.c.l.b16 %v3295
        %v3552 = vunpack.c.l.b16 %v3296
        %v3553 = vunpack.c.l.b16 %v3297
        %v3554 = vunpack.c.l.b16 %v3298
        %v3555 = vunpack.c.l.b16 %v3299
        %v3556 = vunpack.c.l.b16 %v3300
        %v3557 = vunpack.c.l.b16 %v3301
        %v3558 = vunpack.c.l.b16 %v3302
        %v3559 = vunpack.c.l.b16 %v3303
        %v3560 = vunpack.c.l.b16 %v3304
        %v3561 = vunpack.c.l.b16 %v3305
        %v3562 = vunpack.c.l.b16 %v3306
        %v3563 = vunpack.c.l.b16 %v3307
        %v3564 = vunpack.c.l.b16 %v3308
        %v3565 = vunpack.c.l.b16 %v3309
        %v3566 = vunpack.c.l.b16 %v3310
        %v3567 = vunpack.c.l.b16 %v3311
        %v3568 = vunpack.c.l.b16 %v3312
        %v3569 = vunpack.c.l.b16 %v3313
        %v3570 = vunpack.c.l.b16 %v3314
        %v3571 = vunpack.c.l.b16 %v3315
        %v3572 = vunpack.c.l.b16 %v3316
        %v3573 = vunpack.c.l.b16 %v3317
        %v3574 = vunpack.c.l.b16 %v3318
        %v3575 = vunpack.c.l.b16 %v3319
        %v3576 = vunpack.c.l.b16 %v3320
        %v3577 = vunpack.c.l.b16 %v3321
        %v3578 = vunpack.c.l.b16 %v3322
        %v3579 = vunpack.c.l.b16 %v3323
        %v3580 = vunpack.c.l.b16 %v3324
        %v3581 = vunpack.c.l.b16 %v3325
        %v3582 = vunpack.c.l.b16 %v3326
        %v3583 = vunpack.c.l.b16 %v3327
        %v3584 = vunpack.c.l.b16 %v3328
        %v3585 = vunpack.c.l.b16 %v3329
        %v3586 = vunpack.c.l.b16 %v3330
        %v3587 = vpack.c.b16 %v3460, %v3459
        %v3588 = vpack.c.b16 %v3462, %v3461
        %v3589 = vpack.c.b16 %v3464, %v3463
        %v3590 = vpack.c.b16 %v3466, %v3465
        %v3591 = vpack.c.b16 %v3468, %v3467
        %v3592 = vpack.c.b16 %v3470, %v3469
        %v3593 = vpack.c.b16 %v3472, %v3471
        %v3594 = vpack.c.b16 %v3474, %v3473
        %v3595 = vpack.c.b16 %v3476, %v3475
        %v3596 = vpack.c.b16 %v3478, %v3477
        %v3597 = vpack.c.b16 %v3480, %v3479
        %v3598 = vpack.c.b16 %v3482, %v3481
        %v3599 = vpack.c.b16 %v3484, %v3483
        %v3600 = vpack.c.b16 %v3486, %v3485
        %v3601 = vpack.c.b16 %v3488, %v3487
        %v3602 = vpack.c.b16 %v3490, %v3489
        %v3603 = vpack.c.b16 %v3492, %v3491
        %v3604 = vpack.c.b16 %v3494, %v3493
        %v3605 = vpack.c.b16 %v3496, %v3495
        %v3606 = vpack.c.b16 %v3498, %v3497
        %v3607 = vpack.c.b16 %v3500, %v3499
        %v3608 = vpack.c.b16 %v3502, %v3501
        %v3609 = vpack.c.b16 %v3504, %v3503
        %v3610 = vpack.c.b16 %v3506, %v3505
        %v3611 = vpack.c.b16 %v3508, %v3507
        %v3612 = vpack.c.b16 %v3510, %v3509
        %v3613 = vpack.c.b16 %v3512, %v3511
        %v3614 = vpack.c.b16 %v3514, %v3513
        %v3615 = vpack.c.b16 %v3516, %v3515
        %v3616 = vpack.c.b16 %v3518, %v3517
        %v3617 = vpack.c.b16 %v3520, %v3519
        %v3618 = vpack.c.b16 %v3522, %v3521
        %v3619 = vpack.c.b16 %v3524, %v3523
        %v3620 = vpack.c.b16 %v3526, %v3525
        %v3621 = vpack.c.b16 %v3528, %v3527
        %v3622 = vpack.c.b16 %v3530, %v3529
        %v3623 = vpack.c.b16 %v3532, %v3531
        %v3624 = vpack.c.b16 %v3534, %v3533
        %v3625 = vpack.c.b16 %v3536, %v3535
        %v3626 = vpack.c.b16 %v3538, %v3537
        %v3627 = vpack.c.b16 %v3540, %v3539
        %v3628 = vpack.c.b16 %v3542, %v3541
        %v3629 = vpack.c.b16 %v3544, %v3543
        %v3630 = vpack.c.b16 %v3546, %v3545
        %v3631 = vpack.c.b16 %v3548, %v3547
        %v3632 = vpack.c.b16 %v3550, %v3549
        %v3633 = vpack.c.b16 %v3552, %v3551
        %v3634 = vpack.c.b16 %v3554, %v3553
        %v3635 = vpack.c.b16 %v3556, %v3555
        %v3636 = vpack.c.b16 %v3558, %v3557
        %v3637 = vpack.c.b16 %v3560, %v3559
        %v3638 = vpack.c.b16 %v3562, %v3561
        %v3639 = vpack.c.b16 %v3564, %v3563
        %v3640 = vpack.c.b16 %v3566, %v3565
        %v3641 = vpack.c.b16 %v3568, %v3567
        %v3642 = vpack.c.b16 %v3570, %v3569
        %v3643 = vpack.c.b16 %v3572, %v3571
        %v3644 = vpack.c.b16 %v3574, %v3573
        %v3645 = vpack.c.b16 %v3576, %v3575
        %v3646 = vpack.c.b16 %v3578, %v3577
        %v3647 = vpack.c.b16 %v3580, %v3579
        %v3648 = vpack.c.b16 %v3582, %v3581
        %v3649 = vpack.c.b16 %v3584, %v3583
        %v3650 = vpack.c.b16 %v3586, %v3585
        %3715 = vmatprep.subr.bf16.mxu0 0
        %3716 = vmatpush1.bf16.msra.mxu0 %v3594
        %3717 = vmatprep.subr.bf16.mxu0 0
        %3718 = vmatpush1.bf16.msra.mxu0 %v3593
        %3719 = vmatprep.subr.bf16.mxu0 0
        %3720 = vmatpush1.bf16.msra.mxu0 %v3592
        %3721 = vmatprep.subr.bf16.mxu0 0
        %3722 = vmatpush1.bf16.msra.mxu0 %v3591
        %3723 = vmatprep.subr.bf16.mxu0 0
        %3724 = vmatpush1.bf16.msra.mxu0 %v3590
        %3725 = vmatprep.subr.bf16.mxu0 0
        %3726 = vmatpush1.bf16.msra.mxu0 %v3589
        %3727 = vmatprep.subr.bf16.mxu0 0
        %3728 = vmatpush1.bf16.msra.mxu0 %v3588
        %3729 = vmatprep.subr.bf16.mxu0 0
        %3730 = vmatpush1.bf16.msra.mxu0 %v3587
        %3731 = vmatprep.subr.bf16.mxu0 0
        %3732 = vmatpush2.bf16.msra.mxu0 %v3602
        %3733 = vmatprep.subr.bf16.mxu0 0
        %3734 = vmatpush2.bf16.msra.mxu0 %v3601
        %3735 = vmatprep.subr.bf16.mxu0 0
        %3736 = vmatpush2.bf16.msra.mxu0 %v3600
        %3737 = vmatprep.subr.bf16.mxu0 0
        %3738 = vmatpush2.bf16.msra.mxu0 %v3599
        %3739 = vmatprep.subr.bf16.mxu0 0
        %3740 = vmatpush2.bf16.msra.mxu0 %v3598
        %3741 = vmatprep.subr.bf16.mxu0 0
        %3742 = vmatpush2.bf16.msra.mxu0 %v3597
        %3743 = vmatprep.subr.bf16.mxu0 0
        %3744 = vmatpush2.bf16.msra.mxu0 %v3596
        %3745 = vmatprep.subr.bf16.mxu0 0
        %3746 = vmatpush2.bf16.msra.mxu0 %v3595
        %3747 = vmatprep.mubr.bf16.mxu0 %v3140
        %3748 = vmatmul.mubr.bf16.gmra.mxu0 %v3139
        %v3749 = vpop.f32.mrf.mxu0
        %v3750 = vadd.f32 0.0, %v3749
        %v3751 = vpop.f32.mrf.mxu0
        %v3752 = vpop.f32.mrf.mxu0
        %v3753 = vadd.f32 0.0, %v3752
        %v3754 = vpop.f32.mrf.mxu0
        %3755 = vmatprep.mubr.bf16.mxu0 %v3148
        %3756 = vmatmul.mubr.bf16.gmra.mxu0 %v3147
        %v3757 = vpop.f32.mrf.mxu0
        %v3758 = vadd.f32 0.0, %v3757
        %v3759 = vpop.f32.mrf.mxu0
        %v3760 = vpop.f32.mrf.mxu0
        %v3761 = vadd.f32 0.0, %v3760
        %v3762 = vpop.f32.mrf.mxu0
        %3763 = vmatprep.mubr.bf16.mxu0 %v3156
        %3764 = vmatmul.mubr.bf16.gmra.mxu0 %v3155
        %v3765 = vpop.f32.mrf.mxu0
        %v3766 = vadd.f32 0.0, %v3765
        %v3767 = vpop.f32.mrf.mxu0
        %v3768 = vpop.f32.mrf.mxu0
        %v3769 = vadd.f32 0.0, %v3768
        %v3770 = vpop.f32.mrf.mxu0
        %3771 = vmatprep.mubr.bf16.mxu0 %v3164
        %3772 = vmatmul.mubr.bf16.gmra.mxu0 %v3163
        %v3773 = vpop.f32.mrf.mxu0
        %v3774 = vadd.f32 0.0, %v3773
        %v3775 = vpop.f32.mrf.mxu0
        %v3776 = vpop.f32.mrf.mxu0
        %v3777 = vadd.f32 0.0, %v3776
        %v3778 = vpop.f32.mrf.mxu0
        %3779 = vmatprep.mubr.bf16.mxu0 %v3172
        %3780 = vmatmul.mubr.bf16.gmra.mxu0 %v3171
        %v3781 = vpop.f32.mrf.mxu0
        %v3782 = vadd.f32 0.0, %v3781
        %v3783 = vpop.f32.mrf.mxu0
        %v3784 = vpop.f32.mrf.mxu0
        %v3785 = vadd.f32 0.0, %v3784
        %v3786 = vpop.f32.mrf.mxu0
        %3787 = vmatprep.mubr.bf16.mxu0 %v3180
        %3788 = vmatmul.mubr.bf16.gmra.mxu0 %v3179
        %v3789 = vpop.f32.mrf.mxu0
        %v3790 = vadd.f32 0.0, %v3789
        %v3791 = vpop.f32.mrf.mxu0
        %v3792 = vpop.f32.mrf.mxu0
        %v3793 = vadd.f32 0.0, %v3792
        %v3794 = vpop.f32.mrf.mxu0
        %3795 = vmatprep.mubr.bf16.mxu0 %v3188
        %3796 = vmatmul.mubr.bf16.gmra.mxu0 %v3187
        %v3797 = vpop.f32.mrf.mxu0
        %v3798 = vadd.f32 0.0, %v3797
        %v3799 = vpop.f32.mrf.mxu0
        %v3800 = vpop.f32.mrf.mxu0
        %v3801 = vadd.f32 0.0, %v3800
        %v3802 = vpop.f32.mrf.mxu0
        %3803 = vmatprep.mubr.bf16.mxu0 %v3196
        %3804 = vmatmul.mubr.bf16.gmra.mxu0 %v3195
        %v3805 = vpop.f32.mrf.mxu0
        %v3806 = vadd.f32 0.0, %v3805
        %v3807 = vpop.f32.mrf.mxu0
        %v3808 = vpop.f32.mrf.mxu0
        %v3809 = vadd.f32 0.0, %v3808
        %v3810 = vpop.f32.mrf.mxu0
        %3811 = vdwg.mxu0
        %3812 = vmatprep.subr.bf16.mxu0 0
        %3813 = vmatpush1.bf16.msra.mxu0 %v3610
        %3814 = vmatprep.subr.bf16.mxu0 0
        %3815 = vmatpush1.bf16.msra.mxu0 %v3609
        %3816 = vmatprep.subr.bf16.mxu0 0
        %3817 = vmatpush1.bf16.msra.mxu0 %v3608
        %3818 = vmatprep.subr.bf16.mxu0 0
        %3819 = vmatpush1.bf16.msra.mxu0 %v3607
        %3820 = vmatprep.subr.bf16.mxu0 0
        %3821 = vmatpush1.bf16.msra.mxu0 %v3606
        %3822 = vmatprep.subr.bf16.mxu0 0
        %3823 = vmatpush1.bf16.msra.mxu0 %v3605
        %3824 = vmatprep.subr.bf16.mxu0 0
        %3825 = vmatpush1.bf16.msra.mxu0 %v3604
        %3826 = vmatprep.subr.bf16.mxu0 0
        %3827 = vmatpush1.bf16.msra.mxu0 %v3603
        %3828 = vmatprep.subr.bf16.mxu0 0
        %3829 = vmatpush2.bf16.msra.mxu0 %v3618
        %3830 = vmatprep.subr.bf16.mxu0 0
        %3831 = vmatpush2.bf16.msra.mxu0 %v3617
        %3832 = vmatprep.subr.bf16.mxu0 0
        %3833 = vmatpush2.bf16.msra.mxu0 %v3616
        %3834 = vmatprep.subr.bf16.mxu0 0
        %3835 = vmatpush2.bf16.msra.mxu0 %v3615
        %3836 = vmatprep.subr.bf16.mxu0 0
        %3837 = vmatpush2.bf16.msra.mxu0 %v3614
        %3838 = vmatprep.subr.bf16.mxu0 0
        %3839 = vmatpush2.bf16.msra.mxu0 %v3613
        %3840 = vmatprep.subr.bf16.mxu0 0
        %3841 = vmatpush2.bf16.msra.mxu0 %v3612
        %3842 = vmatprep.subr.bf16.mxu0 0
        %3843 = vmatpush2.bf16.msra.mxu0 %v3611
        %3844 = vmatprep.mubr.bf16.mxu0 %v3142
        %3845 = vmatmul.mubr.bf16.gmra.mxu0 %v3141
        %v3846 = vpop.f32.mrf.mxu0
        %v3847 = vadd.f32 %v3750, %v3846
        %v3848 = vpop.f32.mrf.mxu0
        %v3849 = vpop.f32.mrf.mxu0
        %v3850 = vadd.f32 %v3753, %v3849
        %v3851 = vpop.f32.mrf.mxu0
        %3852 = vmatprep.mubr.bf16.mxu0 %v3150
        %3853 = vmatmul.mubr.bf16.gmra.mxu0 %v3149
        %v3854 = vpop.f32.mrf.mxu0
        %v3855 = vadd.f32 %v3758, %v3854
        %v3856 = vpop.f32.mrf.mxu0
        %v3857 = vpop.f32.mrf.mxu0
        %v3858 = vadd.f32 %v3761, %v3857
        %v3859 = vpop.f32.mrf.mxu0
        %3860 = vmatprep.mubr.bf16.mxu0 %v3158
        %3861 = vmatmul.mubr.bf16.gmra.mxu0 %v3157
        %v3862 = vpop.f32.mrf.mxu0
        %v3863 = vadd.f32 %v3766, %v3862
        %v3864 = vpop.f32.mrf.mxu0
        %v3865 = vpop.f32.mrf.mxu0
        %v3866 = vadd.f32 %v3769, %v3865
        %v3867 = vpop.f32.mrf.mxu0
        %3868 = vmatprep.mubr.bf16.mxu0 %v3166
        %3869 = vmatmul.mubr.bf16.gmra.mxu0 %v3165
        %v3870 = vpop.f32.mrf.mxu0
        %v3871 = vadd.f32 %v3774, %v3870
        %v3872 = vpop.f32.mrf.mxu0
        %v3873 = vpop.f32.mrf.mxu0
        %v3874 = vadd.f32 %v3777, %v3873
        %v3875 = vpop.f32.mrf.mxu0
        %3876 = vmatprep.mubr.bf16.mxu0 %v3174
        %3877 = vmatmul.mubr.bf16.gmra.mxu0 %v3173
        %v3878 = vpop.f32.mrf.mxu0
        %v3879 = vadd.f32 %v3782, %v3878
        %v3880 = vpop.f32.mrf.mxu0
        %v3881 = vpop.f32.mrf.mxu0
        %v3882 = vadd.f32 %v3785, %v3881
        %v3883 = vpop.f32.mrf.mxu0
        %3884 = vmatprep.mubr.bf16.mxu0 %v3182
        %3885 = vmatmul.mubr.bf16.gmra.mxu0 %v3181
        %v3886 = vpop.f32.mrf.mxu0
        %v3887 = vadd.f32 %v3790, %v3886
        %v3888 = vpop.f32.mrf.mxu0
        %v3889 = vpop.f32.mrf.mxu0
        %v3890 = vadd.f32 %v3793, %v3889
        %v3891 = vpop.f32.mrf.mxu0
        %3892 = vmatprep.mubr.bf16.mxu0 %v3190
        %3893 = vmatmul.mubr.bf16.gmra.mxu0 %v3189
        %v3894 = vpop.f32.mrf.mxu0
        %v3895 = vadd.f32 %v3798, %v3894
        %v3896 = vpop.f32.mrf.mxu0
        %v3897 = vpop.f32.mrf.mxu0
        %v3898 = vadd.f32 %v3801, %v3897
        %v3899 = vpop.f32.mrf.mxu0
        %3900 = vmatprep.mubr.bf16.mxu0 %v3198
        %3901 = vmatmul.mubr.bf16.gmra.mxu0 %v3197
        %v3902 = vpop.f32.mrf.mxu0
        %v3903 = vadd.f32 %v3806, %v3902
        %v3904 = vpop.f32.mrf.mxu0
        %v3905 = vpop.f32.mrf.mxu0
        %v3906 = vadd.f32 %v3809, %v3905
        %v3907 = vpop.f32.mrf.mxu0
        %3908 = vdwg.mxu0
        %3909 = vmatprep.subr.bf16.mxu0 0
        %3910 = vmatpush1.bf16.msra.mxu0 %v3626
        %3911 = vmatprep.subr.bf16.mxu0 0
        %3912 = vmatpush1.bf16.msra.mxu0 %v3625
        %3913 = vmatprep.subr.bf16.mxu0 0
        %3914 = vmatpush1.bf16.msra.mxu0 %v3624
        %3915 = vmatprep.subr.bf16.mxu0 0
        %3916 = vmatpush1.bf16.msra.mxu0 %v3623
        %3917 = vmatprep.subr.bf16.mxu0 0
        %3918 = vmatpush1.bf16.msra.mxu0 %v3622
        %3919 = vmatprep.subr.bf16.mxu0 0
        %3920 = vmatpush1.bf16.msra.mxu0 %v3621
        %3921 = vmatprep.subr.bf16.mxu0 0
        %3922 = vmatpush1.bf16.msra.mxu0 %v3620
        %3923 = vmatprep.subr.bf16.mxu0 0
        %3924 = vmatpush1.bf16.msra.mxu0 %v3619
        %3925 = vmatprep.subr.bf16.mxu0 0
        %3926 = vmatpush2.bf16.msra.mxu0 %v3634
        %3927 = vmatprep.subr.bf16.mxu0 0
        %3928 = vmatpush2.bf16.msra.mxu0 %v3633
        %3929 = vmatprep.subr.bf16.mxu0 0
        %3930 = vmatpush2.bf16.msra.mxu0 %v3632
        %3931 = vmatprep.subr.bf16.mxu0 0
        %3932 = vmatpush2.bf16.msra.mxu0 %v3631
        %3933 = vmatprep.subr.bf16.mxu0 0
        %3934 = vmatpush2.bf16.msra.mxu0 %v3630
        %3935 = vmatprep.subr.bf16.mxu0 0
        %3936 = vmatpush2.bf16.msra.mxu0 %v3629
        %3937 = vmatprep.subr.bf16.mxu0 0
        %3938 = vmatpush2.bf16.msra.mxu0 %v3628
        %3939 = vmatprep.subr.bf16.mxu0 0
        %3940 = vmatpush2.bf16.msra.mxu0 %v3627
        %3941 = vmatprep.mubr.bf16.mxu0 %v3144
        %3942 = vmatmul.mubr.bf16.gmra.mxu0 %v3143
        %v3943 = vpop.f32.mrf.mxu0
        %v3944 = vadd.f32 %v3847, %v3943
        %v3945 = vpop.f32.mrf.mxu0
        %v3946 = vpop.f32.mrf.mxu0
        %v3947 = vadd.f32 %v3850, %v3946
        %v3948 = vpop.f32.mrf.mxu0
        %3949 = vmatprep.mubr.bf16.mxu0 %v3152
        %3950 = vmatmul.mubr.bf16.gmra.mxu0 %v3151
        %v3951 = vpop.f32.mrf.mxu0
        %v3952 = vadd.f32 %v3855, %v3951
        %v3953 = vpop.f32.mrf.mxu0
        %v3954 = vpop.f32.mrf.mxu0
        %v3955 = vadd.f32 %v3858, %v3954
        %v3956 = vpop.f32.mrf.mxu0
        %3957 = vmatprep.mubr.bf16.mxu0 %v3160
        %3958 = vmatmul.mubr.bf16.gmra.mxu0 %v3159
        %v3959 = vpop.f32.mrf.mxu0
        %v3960 = vadd.f32 %v3863, %v3959
        %v3961 = vpop.f32.mrf.mxu0
        %v3962 = vpop.f32.mrf.mxu0
        %v3963 = vadd.f32 %v3866, %v3962
        %v3964 = vpop.f32.mrf.mxu0
        %3965 = vmatprep.mubr.bf16.mxu0 %v3168
        %3966 = vmatmul.mubr.bf16.gmra.mxu0 %v3167
        %v3967 = vpop.f32.mrf.mxu0
        %v3968 = vadd.f32 %v3871, %v3967
        %v3969 = vpop.f32.mrf.mxu0
        %v3970 = vpop.f32.mrf.mxu0
        %v3971 = vadd.f32 %v3874, %v3970
        %v3972 = vpop.f32.mrf.mxu0
        %3973 = vmatprep.mubr.bf16.mxu0 %v3176
        %3974 = vmatmul.mubr.bf16.gmra.mxu0 %v3175
        %v3975 = vpop.f32.mrf.mxu0
        %v3976 = vadd.f32 %v3879, %v3975
        %v3977 = vpop.f32.mrf.mxu0
        %v3978 = vpop.f32.mrf.mxu0
        %v3979 = vadd.f32 %v3882, %v3978
        %v3980 = vpop.f32.mrf.mxu0
        %3981 = vmatprep.mubr.bf16.mxu0 %v3184
        %3982 = vmatmul.mubr.bf16.gmra.mxu0 %v3183
        %v3983 = vpop.f32.mrf.mxu0
        %v3984 = vadd.f32 %v3887, %v3983
        %v3985 = vpop.f32.mrf.mxu0
        %v3986 = vpop.f32.mrf.mxu0
        %v3987 = vadd.f32 %v3890, %v3986
        %v3988 = vpop.f32.mrf.mxu0
        %3989 = vmatprep.mubr.bf16.mxu0 %v3192
        %3990 = vmatmul.mubr.bf16.gmra.mxu0 %v3191
        %v3991 = vpop.f32.mrf.mxu0
        %v3992 = vadd.f32 %v3895, %v3991
        %v3993 = vpop.f32.mrf.mxu0
        %v3994 = vpop.f32.mrf.mxu0
        %v3995 = vadd.f32 %v3898, %v3994
        %v3996 = vpop.f32.mrf.mxu0
        %3997 = vmatprep.mubr.bf16.mxu0 %v3200
        %3998 = vmatmul.mubr.bf16.gmra.mxu0 %v3199
        %v3999 = vpop.f32.mrf.mxu0
        %v4000 = vadd.f32 %v3903, %v3999
        %v4001 = vpop.f32.mrf.mxu0
        %v4002 = vpop.f32.mrf.mxu0
        %v4003 = vadd.f32 %v3906, %v4002
        %v4004 = vpop.f32.mrf.mxu0
        %4005 = vdwg.mxu0
        %4006 = vmatprep.subr.bf16.mxu0 0
        %4007 = vmatpush1.bf16.msra.mxu0 %v3642
        %4008 = vmatprep.subr.bf16.mxu0 0
        %4009 = vmatpush1.bf16.msra.mxu0 %v3641
        %4010 = vmatprep.subr.bf16.mxu0 0
        %4011 = vmatpush1.bf16.msra.mxu0 %v3640
        %4012 = vmatprep.subr.bf16.mxu0 0
        %4013 = vmatpush1.bf16.msra.mxu0 %v3639
        %4014 = vmatprep.subr.bf16.mxu0 0
        %4015 = vmatpush1.bf16.msra.mxu0 %v3638
        %4016 = vmatprep.subr.bf16.mxu0 0
        %4017 = vmatpush1.bf16.msra.mxu0 %v3637
        %4018 = vmatprep.subr.bf16.mxu0 0
        %4019 = vmatpush1.bf16.msra.mxu0 %v3636
        %4020 = vmatprep.subr.bf16.mxu0 0
        %4021 = vmatpush1.bf16.msra.mxu0 %v3635
        %4022 = vmatprep.subr.bf16.mxu0 0
        %4023 = vmatpush2.bf16.msra.mxu0 %v3650
        %4024 = vmatprep.subr.bf16.mxu0 0
        %4025 = vmatpush2.bf16.msra.mxu0 %v3649
        %4026 = vmatprep.subr.bf16.mxu0 0
        %4027 = vmatpush2.bf16.msra.mxu0 %v3648
        %4028 = vmatprep.subr.bf16.mxu0 0
        %4029 = vmatpush2.bf16.msra.mxu0 %v3647
        %4030 = vmatprep.subr.bf16.mxu0 0
        %4031 = vmatpush2.bf16.msra.mxu0 %v3646
        %4032 = vmatprep.subr.bf16.mxu0 0
        %4033 = vmatpush2.bf16.msra.mxu0 %v3645
        %4034 = vmatprep.subr.bf16.mxu0 0
        %4035 = vmatpush2.bf16.msra.mxu0 %v3644
        %4036 = vmatprep.subr.bf16.mxu0 0
        %4037 = vmatpush2.bf16.msra.mxu0 %v3643
        %4038 = vmatprep.mubr.bf16.mxu0 %v3146
        %4039 = vmatmul.mubr.bf16.gmra.mxu0 %v3145
        %v4040 = vpop.f32.mrf.mxu0
        %v4041 = vadd.f32 %v3944, %v4040
        %v4042 = vpop.f32.mrf.mxu0
        %v4043 = vpop.f32.mrf.mxu0
        %v4044 = vadd.f32 %v3947, %v4043
        %v4045 = vpop.f32.mrf.mxu0
        %4046 = vmatprep.mubr.bf16.mxu0 %v3154
        %4047 = vmatmul.mubr.bf16.gmra.mxu0 %v3153
        %v4048 = vpop.f32.mrf.mxu0
        %v4049 = vadd.f32 %v3952, %v4048
        %v4050 = vpop.f32.mrf.mxu0
        %v4051 = vpop.f32.mrf.mxu0
        %v4052 = vadd.f32 %v3955, %v4051
        %v4053 = vpop.f32.mrf.mxu0
        %4054 = vmatprep.mubr.bf16.mxu0 %v3162
        %4055 = vmatmul.mubr.bf16.gmra.mxu0 %v3161
        %v4056 = vpop.f32.mrf.mxu0
        %v4057 = vadd.f32 %v3960, %v4056
        %v4058 = vpop.f32.mrf.mxu0
        %v4059 = vpop.f32.mrf.mxu0
        %v4060 = vadd.f32 %v3963, %v4059
        %v4061 = vpop.f32.mrf.mxu0
        %4062 = vmatprep.mubr.bf16.mxu0 %v3170
        %4063 = vmatmul.mubr.bf16.gmra.mxu0 %v3169
        %v4064 = vpop.f32.mrf.mxu0
        %v4065 = vadd.f32 %v3968, %v4064
        %v4066 = vpop.f32.mrf.mxu0
        %v4067 = vpop.f32.mrf.mxu0
        %v4068 = vadd.f32 %v3971, %v4067
        %v4069 = vpop.f32.mrf.mxu0
        %4070 = vmatprep.mubr.bf16.mxu0 %v3178
        %4071 = vmatmul.mubr.bf16.gmra.mxu0 %v3177
        %v4072 = vpop.f32.mrf.mxu0
        %v4073 = vadd.f32 %v3976, %v4072
        %v4074 = vpop.f32.mrf.mxu0
        %v4075 = vpop.f32.mrf.mxu0
        %v4076 = vadd.f32 %v3979, %v4075
        %v4077 = vpop.f32.mrf.mxu0
        %4078 = vmatprep.mubr.bf16.mxu0 %v3186
        %4079 = vmatmul.mubr.bf16.gmra.mxu0 %v3185
        %v4080 = vpop.f32.mrf.mxu0
        %v4081 = vadd.f32 %v3984, %v4080
        %v4082 = vpop.f32.mrf.mxu0
        %v4083 = vpop.f32.mrf.mxu0
        %v4084 = vadd.f32 %v3987, %v4083
        %v4085 = vpop.f32.mrf.mxu0
        %4086 = vmatprep.mubr.bf16.mxu0 %v3194
        %4087 = vmatmul.mubr.bf16.gmra.mxu0 %v3193
        %v4088 = vpop.f32.mrf.mxu0
        %v4089 = vadd.f32 %v3992, %v4088
        %v4090 = vpop.f32.mrf.mxu0
        %v4091 = vpop.f32.mrf.mxu0
        %v4092 = vadd.f32 %v3995, %v4091
        %v4093 = vpop.f32.mrf.mxu0
        %4094 = vmatprep.mubr.bf16.mxu0 %v3202
        %4095 = vmatmul.mubr.bf16.gmra.mxu0 %v3201
        %v4096 = vpop.f32.mrf.mxu0
        %v4097 = vadd.f32 %v4000, %v4096
        %v4098 = vpop.f32.mrf.mxu0
        %v4099 = vpop.f32.mrf.mxu0
        %v4100 = vadd.f32 %v4003, %v4099
        %v4101 = vpop.f32.mrf.mxu0
        %4102 = vdwg.mxu0
        %4103 = vxpose.xlu0.b32.start [1/16] %v4041, 128
        %4104 = vxpose.xlu0.b32.cont [2/16] %v4044, 128
        %4105 = vxpose.xlu0.b32.cont [3/16] %v4049, 128
        %4106 = vxpose.xlu0.b32.cont [4/16] %v4052, 128
        %4107 = vxpose.xlu0.b32.cont [5/16] %v4057, 128
        %4108 = vxpose.xlu0.b32.cont [6/16] %v4060, 128
        %4109 = vxpose.xlu0.b32.cont [7/16] %v4065, 128
        %4110 = vxpose.xlu0.b32.cont [8/16] %v4068, 128
        %4111 = vxpose.xlu0.b32.cont [9/16] %v4073, 128
        %4112 = vxpose.xlu0.b32.cont [10/16] %v4076, 128
        %4113 = vxpose.xlu0.b32.cont [11/16] %v4081, 128
        %4114 = vxpose.xlu0.b32.cont [12/16] %v4084, 128
        %4115 = vxpose.xlu0.b32.cont [13/16] %v4089, 128
        %4116 = vxpose.xlu0.b32.cont [14/16] %v4092, 128
        %4117 = vxpose.xlu0.b32.cont [15/16] %v4097, 128
        %4118 = vxpose.xlu0.b32.end [16/16] %v4100, 128
        %v4119 = vpop.trf.xlu0
        %v4120 = vpop.trf.xlu0
        %v4121 = vpop.trf.xlu0
        %v4122 = vpop.trf.xlu0
        %v4123 = vpop.trf.xlu0
        %v4124 = vpop.trf.xlu0
        %v4125 = vpop.trf.xlu0
        %v4126 = vpop.trf.xlu0
        %v4127 = vpop.trf.xlu0
        %v4128 = vpop.trf.xlu0
        %v4129 = vpop.trf.xlu0
        %v4130 = vpop.trf.xlu0
        %v4131 = vpop.trf.xlu0
        %v4132 = vpop.trf.xlu0
        %v4133 = vpop.trf.xlu0
        %v4134 = vpop.trf.xlu0
        %4136 = vset.pattern.permute.xlu0 2
        %4137 = vperm.xlu0 %4136, %v4041
        %v4138 = vpop.permute.xlu0 %4137
        %4141 = vset.pattern.permute.xlu0 2
        %4142 = vperm.xlu0 %4141, %v4044
        %v4143 = vpop.permute.xlu0 %4142
        %4146 = vset.pattern.permute.xlu0 2
        %4147 = vperm.xlu0 %4146, %v4049
        %v4148 = vpop.permute.xlu0 %4147
        %4151 = vset.pattern.permute.xlu0 2
        %4152 = vperm.xlu0 %4151, %v4052
        %v4153 = vpop.permute.xlu0 %4152
        %4156 = vset.pattern.permute.xlu0 2
        %4157 = vperm.xlu0 %4156, %v4057
        %v4158 = vpop.permute.xlu0 %4157
        %4161 = vset.pattern.permute.xlu0 2
        %4162 = vperm.xlu0 %4161, %v4060
        %v4163 = vpop.permute.xlu0 %4162
        %4166 = vset.pattern.permute.xlu0 2
        %4167 = vperm.xlu0 %4166, %v4065
        %v4168 = vpop.permute.xlu0 %4167
        %4171 = vset.pattern.permute.xlu0 2
        %4172 = vperm.xlu0 %4171, %v4068
        %v4173 = vpop.permute.xlu0 %4172
        %4176 = vset.pattern.permute.xlu0 2
        %4177 = vperm.xlu0 %4176, %v4073
        %v4178 = vpop.permute.xlu0 %4177
        %4181 = vset.pattern.permute.xlu0 2
        %4182 = vperm.xlu0 %4181, %v4076
        %v4183 = vpop.permute.xlu0 %4182
        %4186 = vset.pattern.permute.xlu0 2
        %4187 = vperm.xlu0 %4186, %v4081
        %v4188 = vpop.permute.xlu0 %4187
        %4191 = vset.pattern.permute.xlu0 2
        %4192 = vperm.xlu0 %4191, %v4084
        %v4193 = vpop.permute.xlu0 %4192
        %4196 = vset.pattern.permute.xlu0 2
        %4197 = vperm.xlu0 %4196, %v4089
        %v4198 = vpop.permute.xlu0 %4197
        %4201 = vset.pattern.permute.xlu0 2
        %4202 = vperm.xlu0 %4201, %v4092
        %v4203 = vpop.permute.xlu0 %4202
        %4206 = vset.pattern.permute.xlu0 2
        %4207 = vperm.xlu0 %4206, %v4097
        %v4208 = vpop.permute.xlu0 %4207
        %4211 = vset.pattern.permute.xlu0 2
        %4212 = vperm.xlu0 %4211, %v4100
        %v4213 = vpop.permute.xlu0 %4212
        %v4215 = vlaneseq
        %v4216 = vshrl.u32 %v4215, 7
        %v4217 = vsub.s32 0, %v4216
        %v4218 = vrot.slane %v4119, %v4217
        %v4219 = vadd.f32 %v4138, %v4218
        %v4220 = vadd.f32 %v4143, %v4218
        %v4221 = vadd.f32 %v4148, %v4218
        %v4222 = vadd.f32 %v4153, %v4218
        %v4223 = vadd.f32 %v4158, %v4218
        %v4224 = vadd.f32 %v4163, %v4218
        %v4225 = vadd.f32 %v4168, %v4218
        %v4226 = vadd.f32 %v4173, %v4218
        %v4227 = vadd.f32 %v4178, %v4218
        %v4228 = vadd.f32 %v4183, %v4218
        %v4229 = vadd.f32 %v4188, %v4218
        %v4230 = vadd.f32 %v4193, %v4218
        %v4231 = vadd.f32 %v4198, %v4218
        %v4232 = vadd.f32 %v4203, %v4218
        %v4233 = vadd.f32 %v4208, %v4218
        %v4234 = vadd.f32 %v4213, %v4218
        %vm4235 = vcmp.gt.f32.partialorder %v4219, 0.0
        %vm4236 = vcmp.gt.f32.partialorder %v4220, 0.0
        %vm4237 = vcmp.gt.f32.partialorder %v4221, 0.0
        %vm4238 = vcmp.gt.f32.partialorder %v4222, 0.0
        %vm4239 = vcmp.gt.f32.partialorder %v4223, 0.0
        %vm4240 = vcmp.gt.f32.partialorder %v4224, 0.0
        %vm4241 = vcmp.gt.f32.partialorder %v4225, 0.0
        %vm4242 = vcmp.gt.f32.partialorder %v4226, 0.0
        %vm4243 = vcmp.gt.f32.partialorder %v4227, 0.0
        %vm4244 = vcmp.gt.f32.partialorder %v4228, 0.0
        %vm4245 = vcmp.gt.f32.partialorder %v4229, 0.0
        %vm4246 = vcmp.gt.f32.partialorder %v4230, 0.0
        %vm4247 = vcmp.gt.f32.partialorder %v4231, 0.0
        %vm4248 = vcmp.gt.f32.partialorder %v4232, 0.0
        %vm4249 = vcmp.gt.f32.partialorder %v4233, 0.0
        %vm4250 = vcmp.gt.f32.partialorder %v4234, 0.0
        %v4251 = vmul.f32 %v4219, 0.2
        %v4252 = vmul.f32 %v4220, 0.2
        %v4253 = vmul.f32 %v4221, 0.2
        %v4254 = vmul.f32 %v4222, 0.2
        %v4255 = vmul.f32 %v4223, 0.2
        %v4256 = vmul.f32 %v4224, 0.2
        %v4257 = vmul.f32 %v4225, 0.2
        %v4258 = vmul.f32 %v4226, 0.2
        %v4259 = vmul.f32 %v4227, 0.2
        %v4260 = vmul.f32 %v4228, 0.2
        %v4261 = vmul.f32 %v4229, 0.2
        %v4262 = vmul.f32 %v4230, 0.2
        %v4263 = vmul.f32 %v4231, 0.2
        %v4264 = vmul.f32 %v4232, 0.2
        %v4265 = vmul.f32 %v4233, 0.2
        %v4266 = vmul.f32 %v4234, 0.2
        %v4267 = vsel %vm4235, %v4219, %v4251
        %v4268 = vsel %vm4236, %v4220, %v4252
        %v4269 = vsel %vm4237, %v4221, %v4253
        %v4270 = vsel %vm4238, %v4222, %v4254
        %v4271 = vsel %vm4239, %v4223, %v4255
        %v4272 = vsel %vm4240, %v4224, %v4256
        %v4273 = vsel %vm4241, %v4225, %v4257
        %v4274 = vsel %vm4242, %v4226, %v4258
        %v4275 = vsel %vm4243, %v4227, %v4259
        %v4276 = vsel %vm4244, %v4228, %v4260
        %v4277 = vsel %vm4245, %v4229, %v4261
        %v4278 = vsel %vm4246, %v4230, %v4262
        %v4279 = vsel %vm4247, %v4231, %v4263
        %v4280 = vsel %vm4248, %v4232, %v4264
        %v4281 = vsel %vm4249, %v4233, %v4265
        %v4282 = vsel %vm4250, %v4234, %v4266
        %v4283 = vadd.f32 %v4267, %v523
        %v4284 = vadd.f32 %v4268, %v524
        %v4285 = vadd.f32 %v4269, %v525
        %v4286 = vadd.f32 %v4270, %v526
        %v4287 = vadd.f32 %v4271, %v527
        %v4288 = vadd.f32 %v4272, %v528
        %v4289 = vadd.f32 %v4273, %v529
        %v4290 = vadd.f32 %v4274, %v530
        %v4291 = vadd.f32 %v4275, %v531
        %v4292 = vadd.f32 %v4276, %v532
        %v4293 = vadd.f32 %v4277, %v533
        %v4294 = vadd.f32 %v4278, %v534
        %v4295 = vadd.f32 %v4279, %v535
        %v4296 = vadd.f32 %v4280, %v536
        %v4297 = vadd.f32 %v4281, %v537
        %v4298 = vadd.f32 %v4282, %v538
        %4299 = vmax.xlane.f32.xlu0 %v4283
        %v4300 = vpop.xlane.xlu0 %4299
        %4301 = vmax.xlane.f32.xlu0 %v4284
        %v4302 = vpop.xlane.xlu0 %4301
        %4303 = vmax.xlane.f32.xlu0 %v4285
        %v4304 = vpop.xlane.xlu0 %4303
        %4305 = vmax.xlane.f32.xlu0 %v4286
        %v4306 = vpop.xlane.xlu0 %4305
        %4307 = vmax.xlane.f32.xlu0 %v4287
        %v4308 = vpop.xlane.xlu0 %4307
        %4309 = vmax.xlane.f32.xlu0 %v4288
        %v4310 = vpop.xlane.xlu0 %4309
        %4311 = vmax.xlane.f32.xlu0 %v4289
        %v4312 = vpop.xlane.xlu0 %4311
        %4313 = vmax.xlane.f32.xlu0 %v4290
        %v4314 = vpop.xlane.xlu0 %4313
        %4315 = vmax.xlane.f32.xlu0 %v4291
        %v4316 = vpop.xlane.xlu0 %4315
        %4317 = vmax.xlane.f32.xlu0 %v4292
        %v4318 = vpop.xlane.xlu0 %4317
        %4319 = vmax.xlane.f32.xlu0 %v4293
        %v4320 = vpop.xlane.xlu0 %4319
        %4321 = vmax.xlane.f32.xlu0 %v4294
        %v4322 = vpop.xlane.xlu0 %4321
        %4323 = vmax.xlane.f32.xlu0 %v4295
        %v4324 = vpop.xlane.xlu0 %4323
        %4325 = vmax.xlane.f32.xlu0 %v4296
        %v4326 = vpop.xlane.xlu0 %4325
        %4327 = vmax.xlane.f32.xlu0 %v4297
        %v4328 = vpop.xlane.xlu0 %4327
        %4329 = vmax.xlane.f32.xlu0 %v4298
        %v4330 = vpop.xlane.xlu0 %4329
        %v4331 = vsub.f32 %v4283, %v4300
        %v4332 = vsub.f32 %v4284, %v4302
        %v4333 = vsub.f32 %v4285, %v4304
        %v4334 = vsub.f32 %v4286, %v4306
        %v4335 = vsub.f32 %v4287, %v4308
        %v4336 = vsub.f32 %v4288, %v4310
        %v4337 = vsub.f32 %v4289, %v4312
        %v4338 = vsub.f32 %v4290, %v4314
        %v4339 = vsub.f32 %v4291, %v4316
        %v4340 = vsub.f32 %v4292, %v4318
        %v4341 = vsub.f32 %v4293, %v4320
        %v4342 = vsub.f32 %v4294, %v4322
        %v4343 = vsub.f32 %v4295, %v4324
        %v4344 = vsub.f32 %v4296, %v4326
        %v4345 = vsub.f32 %v4297, %v4328
        %v4346 = vsub.f32 %v4298, %v4330
        %v4347 = vmul.f32 %v4331, 1.442695
        %v4348 = vpow.pop %v4347
        %v4349 = vmul.f32 %v4332, 1.442695
        %v4350 = vpow.pop %v4349
        %v4351 = vmul.f32 %v4333, 1.442695
        %v4352 = vpow.pop %v4351
        %v4353 = vmul.f32 %v4334, 1.442695
        %v4354 = vpow.pop %v4353
        %v4355 = vmul.f32 %v4335, 1.442695
        %v4356 = vpow.pop %v4355
        %v4357 = vmul.f32 %v4336, 1.442695
        %v4358 = vpow.pop %v4357
        %v4359 = vmul.f32 %v4337, 1.442695
        %v4360 = vpow.pop %v4359
        %v4361 = vmul.f32 %v4338, 1.442695
        %v4362 = vpow.pop %v4361
        %v4363 = vmul.f32 %v4339, 1.442695
        %v4364 = vpow.pop %v4363
        %v4365 = vmul.f32 %v4340, 1.442695
        %v4366 = vpow.pop %v4365
        %v4367 = vmul.f32 %v4341, 1.442695
        %v4368 = vpow.pop %v4367
        %v4369 = vmul.f32 %v4342, 1.442695
        %v4370 = vpow.pop %v4369
        %v4371 = vmul.f32 %v4343, 1.442695
        %v4372 = vpow.pop %v4371
        %v4373 = vmul.f32 %v4344, 1.442695
        %v4374 = vpow.pop %v4373
        %v4375 = vmul.f32 %v4345, 1.442695
        %v4376 = vpow.pop %v4375
        %v4377 = vmul.f32 %v4346, 1.442695
        %v4378 = vpow.pop %v4377
        %4379 = vadd.xlane.f32.xlu0 %v4348
        %v4380 = vpop.xlane.xlu0 %4379
        %4381 = vadd.xlane.f32.xlu0 %v4350
        %v4382 = vpop.xlane.xlu0 %4381
        %4383 = vadd.xlane.f32.xlu0 %v4352
        %v4384 = vpop.xlane.xlu0 %4383
        %4385 = vadd.xlane.f32.xlu0 %v4354
        %v4386 = vpop.xlane.xlu0 %4385
        %4387 = vadd.xlane.f32.xlu0 %v4356
        %v4388 = vpop.xlane.xlu0 %4387
        %4389 = vadd.xlane.f32.xlu0 %v4358
        %v4390 = vpop.xlane.xlu0 %4389
        %4391 = vadd.xlane.f32.xlu0 %v4360
        %v4392 = vpop.xlane.xlu0 %4391
        %4393 = vadd.xlane.f32.xlu0 %v4362
        %v4394 = vpop.xlane.xlu0 %4393
        %4395 = vadd.xlane.f32.xlu0 %v4364
        %v4396 = vpop.xlane.xlu0 %4395
        %4397 = vadd.xlane.f32.xlu0 %v4366
        %v4398 = vpop.xlane.xlu0 %4397
        %4399 = vadd.xlane.f32.xlu0 %v4368
        %v4400 = vpop.xlane.xlu0 %4399
        %4401 = vadd.xlane.f32.xlu0 %v4370
        %v4402 = vpop.xlane.xlu0 %4401
        %4403 = vadd.xlane.f32.xlu0 %v4372
        %v4404 = vpop.xlane.xlu0 %4403
        %4405 = vadd.xlane.f32.xlu0 %v4374
        %v4406 = vpop.xlane.xlu0 %4405
        %4407 = vadd.xlane.f32.xlu0 %v4376
        %v4408 = vpop.xlane.xlu0 %4407
        %4409 = vadd.xlane.f32.xlu0 %v4378
        %v4410 = vpop.xlane.xlu0 %4409
        %v4411 = vrcp.pop %v4380
        %v4412 = vmul.f32 %v4348, %v4411
        %v4413 = vrcp.pop %v4382
        %v4414 = vmul.f32 %v4350, %v4413
        %v4415 = vrcp.pop %v4384
        %v4416 = vmul.f32 %v4352, %v4415
        %v4417 = vrcp.pop %v4386
        %v4418 = vmul.f32 %v4354, %v4417
        %v4419 = vrcp.pop %v4388
        %v4420 = vmul.f32 %v4356, %v4419
        %v4421 = vrcp.pop %v4390
        %v4422 = vmul.f32 %v4358, %v4421
        %v4423 = vrcp.pop %v4392
        %v4424 = vmul.f32 %v4360, %v4423
        %v4425 = vrcp.pop %v4394
        %v4426 = vmul.f32 %v4362, %v4425
        %v4427 = vrcp.pop %v4396
        %v4428 = vmul.f32 %v4364, %v4427
        %v4429 = vrcp.pop %v4398
        %v4430 = vmul.f32 %v4366, %v4429
        %v4431 = vrcp.pop %v4400
        %v4432 = vmul.f32 %v4368, %v4431
        %v4433 = vrcp.pop %v4402
        %v4434 = vmul.f32 %v4370, %v4433
        %v4435 = vrcp.pop %v4404
        %v4436 = vmul.f32 %v4372, %v4435
        %v4437 = vrcp.pop %v4406
        %v4438 = vmul.f32 %v4374, %v4437
        %v4439 = vrcp.pop %v4408
        %v4440 = vmul.f32 %v4376, %v4439
        %v4441 = vrcp.pop %v4410
        %v4442 = vmul.f32 %v4378, %v4441
        %v4443 = vpack.c.bf16 %v4414, %v4412
        %v4444 = vpack.c.bf16 %v4418, %v4416
        %v4445 = vpack.c.bf16 %v4422, %v4420
        %v4446 = vpack.c.bf16 %v4426, %v4424
        %v4447 = vpack.c.bf16 %v4430, %v4428
        %v4448 = vpack.c.bf16 %v4434, %v4432
        %v4449 = vpack.c.bf16 %v4438, %v4436
        %v4450 = vpack.c.bf16 %v4442, %v4440
        %4451 = vrot.lane.b32.xlu0 %v4041, 127
        %v4452 = vpop.permute.xlu0 %4451
        %4453 = vrot.lane.b32.xlu0 %v4044, 127
        %v4454 = vpop.permute.xlu0 %4453
        %4455 = vrot.lane.b32.xlu0 %v4049, 127
        %v4456 = vpop.permute.xlu0 %4455
        %4457 = vrot.lane.b32.xlu0 %v4052, 127
        %v4458 = vpop.permute.xlu0 %4457
        %4459 = vrot.lane.b32.xlu0 %v4057, 127
        %v4460 = vpop.permute.xlu0 %4459
        %4461 = vrot.lane.b32.xlu0 %v4060, 127
        %v4462 = vpop.permute.xlu0 %4461
        %4463 = vrot.lane.b32.xlu0 %v4065, 127
        %v4464 = vpop.permute.xlu0 %4463
        %4465 = vrot.lane.b32.xlu0 %v4068, 127
        %v4466 = vpop.permute.xlu0 %4465
        %4467 = vrot.lane.b32.xlu0 %v4073, 127
        %v4468 = vpop.permute.xlu0 %4467
        %4469 = vrot.lane.b32.xlu0 %v4076, 127
        %v4470 = vpop.permute.xlu0 %4469
        %4471 = vrot.lane.b32.xlu0 %v4081, 127
        %v4472 = vpop.permute.xlu0 %4471
        %4473 = vrot.lane.b32.xlu0 %v4084, 127
        %v4474 = vpop.permute.xlu0 %4473
        %4475 = vrot.lane.b32.xlu0 %v4089, 127
        %v4476 = vpop.permute.xlu0 %4475
        %4477 = vrot.lane.b32.xlu0 %v4092, 127
        %v4478 = vpop.permute.xlu0 %4477
        %4479 = vrot.lane.b32.xlu0 %v4097, 127
        %v4480 = vpop.permute.xlu0 %4479
        %4481 = vrot.lane.b32.xlu0 %v4100, 127
        %v4482 = vpop.permute.xlu0 %4481
        %4499 = vxpose.xlu0.b32.start [1/16] %v4452, 128
        %4500 = vxpose.xlu0.b32.cont [2/16] %v4454, 128
        %4501 = vxpose.xlu0.b32.cont [3/16] %v4456, 128
        %4502 = vxpose.xlu0.b32.cont [4/16] %v4458, 128
        %4503 = vxpose.xlu0.b32.cont [5/16] %v4460, 128
        %4504 = vxpose.xlu0.b32.cont [6/16] %v4462, 128
        %4505 = vxpose.xlu0.b32.cont [7/16] %v4464, 128
        %4506 = vxpose.xlu0.b32.cont [8/16] %v4466, 128
        %4507 = vxpose.xlu0.b32.cont [9/16] %v4468, 128
        %4508 = vxpose.xlu0.b32.cont [10/16] %v4470, 128
        %4509 = vxpose.xlu0.b32.cont [11/16] %v4472, 128
        %4510 = vxpose.xlu0.b32.cont [12/16] %v4474, 128
        %4511 = vxpose.xlu0.b32.cont [13/16] %v4476, 128
        %4512 = vxpose.xlu0.b32.cont [14/16] %v4478, 128
        %4513 = vxpose.xlu0.b32.cont [15/16] %v4480, 128
        %4514 = vxpose.xlu0.b32.end [16/16] %v4482, 128
        %v4515 = vpop.trf.xlu0
        %v4516 = vpop.trf.xlu0
        %v4517 = vpop.trf.xlu0
        %v4518 = vpop.trf.xlu0
        %v4519 = vpop.trf.xlu0
        %v4520 = vpop.trf.xlu0
        %v4521 = vpop.trf.xlu0
        %v4522 = vpop.trf.xlu0
        %v4523 = vpop.trf.xlu0
        %v4524 = vpop.trf.xlu0
        %v4525 = vpop.trf.xlu0
        %v4526 = vpop.trf.xlu0
        %v4527 = vpop.trf.xlu0
        %v4528 = vpop.trf.xlu0
        %v4529 = vpop.trf.xlu0
        %v4530 = vpop.trf.xlu0
        %4531 = vset.pattern.permute.xlu0 3
        %4532 = vperm.xlu0 %4531, %v4041
        %v4533 = vpop.permute.xlu0 %4532
        %4535 = vset.pattern.permute.xlu0 3
        %4536 = vperm.xlu0 %4535, %v4044
        %v4537 = vpop.permute.xlu0 %4536
        %4539 = vset.pattern.permute.xlu0 3
        %4540 = vperm.xlu0 %4539, %v4049
        %v4541 = vpop.permute.xlu0 %4540
        %4543 = vset.pattern.permute.xlu0 3
        %4544 = vperm.xlu0 %4543, %v4052
        %v4545 = vpop.permute.xlu0 %4544
        %4547 = vset.pattern.permute.xlu0 3
        %4548 = vperm.xlu0 %4547, %v4057
        %v4549 = vpop.permute.xlu0 %4548
        %4551 = vset.pattern.permute.xlu0 3
        %4552 = vperm.xlu0 %4551, %v4060
        %v4553 = vpop.permute.xlu0 %4552
        %4555 = vset.pattern.permute.xlu0 3
        %4556 = vperm.xlu0 %4555, %v4065
        %v4557 = vpop.permute.xlu0 %4556
        %4559 = vset.pattern.permute.xlu0 3
        %4560 = vperm.xlu0 %4559, %v4068
        %v4561 = vpop.permute.xlu0 %4560
        %4563 = vset.pattern.permute.xlu0 3
        %4564 = vperm.xlu0 %4563, %v4073
        %v4565 = vpop.permute.xlu0 %4564
        %4567 = vset.pattern.permute.xlu0 3
        %4568 = vperm.xlu0 %4567, %v4076
        %v4569 = vpop.permute.xlu0 %4568
        %4571 = vset.pattern.permute.xlu0 3
        %4572 = vperm.xlu0 %4571, %v4081
        %v4573 = vpop.permute.xlu0 %4572
        %4575 = vset.pattern.permute.xlu0 3
        %4576 = vperm.xlu0 %4575, %v4084
        %v4577 = vpop.permute.xlu0 %4576
        %4579 = vset.pattern.permute.xlu0 3
        %4580 = vperm.xlu0 %4579, %v4089
        %v4581 = vpop.permute.xlu0 %4580
        %4583 = vset.pattern.permute.xlu0 3
        %4584 = vperm.xlu0 %4583, %v4092
        %v4585 = vpop.permute.xlu0 %4584
        %4587 = vset.pattern.permute.xlu0 3
        %4588 = vperm.xlu0 %4587, %v4097
        %v4589 = vpop.permute.xlu0 %4588
        %4591 = vset.pattern.permute.xlu0 3
        %4592 = vperm.xlu0 %4591, %v4100
        %v4593 = vpop.permute.xlu0 %4592
        %v4595 = vlaneseq
        %v4596 = vshrl.u32 %v4595, 7
        %v4597 = vsub.s32 0, %v4596
        %v4598 = vrot.slane %v4515, %v4597
        %v4599 = vadd.f32 %v4533, %v4598
        %v4600 = vadd.f32 %v4537, %v4598
        %v4601 = vadd.f32 %v4541, %v4598
        %v4602 = vadd.f32 %v4545, %v4598
        %v4603 = vadd.f32 %v4549, %v4598
        %v4604 = vadd.f32 %v4553, %v4598
        %v4605 = vadd.f32 %v4557, %v4598
        %v4606 = vadd.f32 %v4561, %v4598
        %v4607 = vadd.f32 %v4565, %v4598
        %v4608 = vadd.f32 %v4569, %v4598
        %v4609 = vadd.f32 %v4573, %v4598
        %v4610 = vadd.f32 %v4577, %v4598
        %v4611 = vadd.f32 %v4581, %v4598
        %v4612 = vadd.f32 %v4585, %v4598
        %v4613 = vadd.f32 %v4589, %v4598
        %v4614 = vadd.f32 %v4593, %v4598
        %vm4615 = vcmp.gt.f32.partialorder %v4599, 0.0
        %vm4616 = vcmp.gt.f32.partialorder %v4600, 0.0
        %vm4617 = vcmp.gt.f32.partialorder %v4601, 0.0
        %vm4618 = vcmp.gt.f32.partialorder %v4602, 0.0
        %vm4619 = vcmp.gt.f32.partialorder %v4603, 0.0
        %vm4620 = vcmp.gt.f32.partialorder %v4604, 0.0
        %vm4621 = vcmp.gt.f32.partialorder %v4605, 0.0
        %vm4622 = vcmp.gt.f32.partialorder %v4606, 0.0
        %vm4623 = vcmp.gt.f32.partialorder %v4607, 0.0
        %vm4624 = vcmp.gt.f32.partialorder %v4608, 0.0
        %vm4625 = vcmp.gt.f32.partialorder %v4609, 0.0
        %vm4626 = vcmp.gt.f32.partialorder %v4610, 0.0
        %vm4627 = vcmp.gt.f32.partialorder %v4611, 0.0
        %vm4628 = vcmp.gt.f32.partialorder %v4612, 0.0
        %vm4629 = vcmp.gt.f32.partialorder %v4613, 0.0
        %vm4630 = vcmp.gt.f32.partialorder %v4614, 0.0
        %v4631 = vmul.f32 %v4599, 0.2
        %v4632 = vmul.f32 %v4600, 0.2
        %v4633 = vmul.f32 %v4601, 0.2
        %v4634 = vmul.f32 %v4602, 0.2
        %v4635 = vmul.f32 %v4603, 0.2
        %v4636 = vmul.f32 %v4604, 0.2
        %v4637 = vmul.f32 %v4605, 0.2
        %v4638 = vmul.f32 %v4606, 0.2
        %v4639 = vmul.f32 %v4607, 0.2
        %v4640 = vmul.f32 %v4608, 0.2
        %v4641 = vmul.f32 %v4609, 0.2
        %v4642 = vmul.f32 %v4610, 0.2
        %v4643 = vmul.f32 %v4611, 0.2
        %v4644 = vmul.f32 %v4612, 0.2
        %v4645 = vmul.f32 %v4613, 0.2
        %v4646 = vmul.f32 %v4614, 0.2
        %v4647 = vsel %vm4615, %v4599, %v4631
        %v4648 = vsel %vm4616, %v4600, %v4632
        %v4649 = vsel %vm4617, %v4601, %v4633
        %v4650 = vsel %vm4618, %v4602, %v4634
        %v4651 = vsel %vm4619, %v4603, %v4635
        %v4652 = vsel %vm4620, %v4604, %v4636
        %v4653 = vsel %vm4621, %v4605, %v4637
        %v4654 = vsel %vm4622, %v4606, %v4638
        %v4655 = vsel %vm4623, %v4607, %v4639
        %v4656 = vsel %vm4624, %v4608, %v4640
        %v4657 = vsel %vm4625, %v4609, %v4641
        %v4658 = vsel %vm4626, %v4610, %v4642
        %v4659 = vsel %vm4627, %v4611, %v4643
        %v4660 = vsel %vm4628, %v4612, %v4644
        %v4661 = vsel %vm4629, %v4613, %v4645
        %v4662 = vsel %vm4630, %v4614, %v4646
        %v4663 = vadd.f32 %v4647, %v523
        %v4664 = vadd.f32 %v4648, %v524
        %v4665 = vadd.f32 %v4649, %v525
        %v4666 = vadd.f32 %v4650, %v526
        %v4667 = vadd.f32 %v4651, %v527
        %v4668 = vadd.f32 %v4652, %v528
        %v4669 = vadd.f32 %v4653, %v529
        %v4670 = vadd.f32 %v4654, %v530
        %v4671 = vadd.f32 %v4655, %v531
        %v4672 = vadd.f32 %v4656, %v532
        %v4673 = vadd.f32 %v4657, %v533
        %v4674 = vadd.f32 %v4658, %v534
        %v4675 = vadd.f32 %v4659, %v535
        %v4676 = vadd.f32 %v4660, %v536
        %v4677 = vadd.f32 %v4661, %v537
        %v4678 = vadd.f32 %v4662, %v538
        %4679 = vmax.xlane.f32.xlu0 %v4663
        %v4680 = vpop.xlane.xlu0 %4679
        %4681 = vmax.xlane.f32.xlu0 %v4664
        %v4682 = vpop.xlane.xlu0 %4681
        %4683 = vmax.xlane.f32.xlu0 %v4665
        %v4684 = vpop.xlane.xlu0 %4683
        %4685 = vmax.xlane.f32.xlu0 %v4666
        %v4686 = vpop.xlane.xlu0 %4685
        %4687 = vmax.xlane.f32.xlu0 %v4667
        %v4688 = vpop.xlane.xlu0 %4687
        %4689 = vmax.xlane.f32.xlu0 %v4668
        %v4690 = vpop.xlane.xlu0 %4689
        %4691 = vmax.xlane.f32.xlu0 %v4669
        %v4692 = vpop.xlane.xlu0 %4691
        %4693 = vmax.xlane.f32.xlu0 %v4670
        %v4694 = vpop.xlane.xlu0 %4693
        %4695 = vmax.xlane.f32.xlu0 %v4671
        %v4696 = vpop.xlane.xlu0 %4695
        %4697 = vmax.xlane.f32.xlu0 %v4672
        %v4698 = vpop.xlane.xlu0 %4697
        %4699 = vmax.xlane.f32.xlu0 %v4673
        %v4700 = vpop.xlane.xlu0 %4699
        %4701 = vmax.xlane.f32.xlu0 %v4674
        %v4702 = vpop.xlane.xlu0 %4701
        %4703 = vmax.xlane.f32.xlu0 %v4675
        %v4704 = vpop.xlane.xlu0 %4703
        %4705 = vmax.xlane.f32.xlu0 %v4676
        %v4706 = vpop.xlane.xlu0 %4705
        %4707 = vmax.xlane.f32.xlu0 %v4677
        %v4708 = vpop.xlane.xlu0 %4707
        %4709 = vmax.xlane.f32.xlu0 %v4678
        %v4710 = vpop.xlane.xlu0 %4709
        %v4711 = vsub.f32 %v4663, %v4680
        %v4712 = vsub.f32 %v4664, %v4682
        %v4713 = vsub.f32 %v4665, %v4684
        %v4714 = vsub.f32 %v4666, %v4686
        %v4715 = vsub.f32 %v4667, %v4688
        %v4716 = vsub.f32 %v4668, %v4690
        %v4717 = vsub.f32 %v4669, %v4692
        %v4718 = vsub.f32 %v4670, %v4694
        %v4719 = vsub.f32 %v4671, %v4696
        %v4720 = vsub.f32 %v4672, %v4698
        %v4721 = vsub.f32 %v4673, %v4700
        %v4722 = vsub.f32 %v4674, %v4702
        %v4723 = vsub.f32 %v4675, %v4704
        %v4724 = vsub.f32 %v4676, %v4706
        %v4725 = vsub.f32 %v4677, %v4708
        %v4726 = vsub.f32 %v4678, %v4710
        %v4727 = vmul.f32 %v4711, 1.442695
        %v4728 = vpow.pop %v4727
        %v4729 = vmul.f32 %v4712, 1.442695
        %v4730 = vpow.pop %v4729
        %v4731 = vmul.f32 %v4713, 1.442695
        %v4732 = vpow.pop %v4731
        %v4733 = vmul.f32 %v4714, 1.442695
        %v4734 = vpow.pop %v4733
        %v4735 = vmul.f32 %v4715, 1.442695
        %v4736 = vpow.pop %v4735
        %v4737 = vmul.f32 %v4716, 1.442695
        %v4738 = vpow.pop %v4737
        %v4739 = vmul.f32 %v4717, 1.442695
        %v4740 = vpow.pop %v4739
        %v4741 = vmul.f32 %v4718, 1.442695
        %v4742 = vpow.pop %v4741
        %v4743 = vmul.f32 %v4719, 1.442695
        %v4744 = vpow.pop %v4743
        %v4745 = vmul.f32 %v4720, 1.442695
        %v4746 = vpow.pop %v4745
        %v4747 = vmul.f32 %v4721, 1.442695
        %v4748 = vpow.pop %v4747
        %v4749 = vmul.f32 %v4722, 1.442695
        %v4750 = vpow.pop %v4749
        %v4751 = vmul.f32 %v4723, 1.442695
        %v4752 = vpow.pop %v4751
        %v4753 = vmul.f32 %v4724, 1.442695
        %v4754 = vpow.pop %v4753
        %v4755 = vmul.f32 %v4725, 1.442695
        %v4756 = vpow.pop %v4755
        %v4757 = vmul.f32 %v4726, 1.442695
        %v4758 = vpow.pop %v4757
        %4759 = vadd.xlane.f32.xlu0 %v4728
        %v4760 = vpop.xlane.xlu0 %4759
        %4761 = vadd.xlane.f32.xlu0 %v4730
        %v4762 = vpop.xlane.xlu0 %4761
        %4763 = vadd.xlane.f32.xlu0 %v4732
        %v4764 = vpop.xlane.xlu0 %4763
        %4765 = vadd.xlane.f32.xlu0 %v4734
        %v4766 = vpop.xlane.xlu0 %4765
        %4767 = vadd.xlane.f32.xlu0 %v4736
        %v4768 = vpop.xlane.xlu0 %4767
        %4769 = vadd.xlane.f32.xlu0 %v4738
        %v4770 = vpop.xlane.xlu0 %4769
        %4771 = vadd.xlane.f32.xlu0 %v4740
        %v4772 = vpop.xlane.xlu0 %4771
        %4773 = vadd.xlane.f32.xlu0 %v4742
        %v4774 = vpop.xlane.xlu0 %4773
        %4775 = vadd.xlane.f32.xlu0 %v4744
        %v4776 = vpop.xlane.xlu0 %4775
        %4777 = vadd.xlane.f32.xlu0 %v4746
        %v4778 = vpop.xlane.xlu0 %4777
        %4779 = vadd.xlane.f32.xlu0 %v4748
        %v4780 = vpop.xlane.xlu0 %4779
        %4781 = vadd.xlane.f32.xlu0 %v4750
        %v4782 = vpop.xlane.xlu0 %4781
        %4783 = vadd.xlane.f32.xlu0 %v4752
        %v4784 = vpop.xlane.xlu0 %4783
        %4785 = vadd.xlane.f32.xlu0 %v4754
        %v4786 = vpop.xlane.xlu0 %4785
        %4787 = vadd.xlane.f32.xlu0 %v4756
        %v4788 = vpop.xlane.xlu0 %4787
        %4789 = vadd.xlane.f32.xlu0 %v4758
        %v4790 = vpop.xlane.xlu0 %4789
        %v4791 = vrcp.pop %v4760
        %v4792 = vmul.f32 %v4728, %v4791
        %v4793 = vrcp.pop %v4762
        %v4794 = vmul.f32 %v4730, %v4793
        %v4795 = vrcp.pop %v4764
        %v4796 = vmul.f32 %v4732, %v4795
        %v4797 = vrcp.pop %v4766
        %v4798 = vmul.f32 %v4734, %v4797
        %v4799 = vrcp.pop %v4768
        %v4800 = vmul.f32 %v4736, %v4799
        %v4801 = vrcp.pop %v4770
        %v4802 = vmul.f32 %v4738, %v4801
        %v4803 = vrcp.pop %v4772
        %v4804 = vmul.f32 %v4740, %v4803
        %v4805 = vrcp.pop %v4774
        %v4806 = vmul.f32 %v4742, %v4805
        %v4807 = vrcp.pop %v4776
        %v4808 = vmul.f32 %v4744, %v4807
        %v4809 = vrcp.pop %v4778
        %v4810 = vmul.f32 %v4746, %v4809
        %v4811 = vrcp.pop %v4780
        %v4812 = vmul.f32 %v4748, %v4811
        %v4813 = vrcp.pop %v4782
        %v4814 = vmul.f32 %v4750, %v4813
        %v4815 = vrcp.pop %v4784
        %v4816 = vmul.f32 %v4752, %v4815
        %v4817 = vrcp.pop %v4786
        %v4818 = vmul.f32 %v4754, %v4817
        %v4819 = vrcp.pop %v4788
        %v4820 = vmul.f32 %v4756, %v4819
        %v4821 = vrcp.pop %v4790
        %v4822 = vmul.f32 %v4758, %v4821
        %v4823 = vpack.c.bf16 %v4794, %v4792
        %v4824 = vpack.c.bf16 %v4798, %v4796
        %v4825 = vpack.c.bf16 %v4802, %v4800
        %v4826 = vpack.c.bf16 %v4806, %v4804
        %v4827 = vpack.c.bf16 %v4810, %v4808
        %v4828 = vpack.c.bf16 %v4814, %v4812
        %v4829 = vpack.c.bf16 %v4818, %v4816
        %v4830 = vpack.c.bf16 %v4822, %v4820
        %v4831 = vld [vmem:[%s4] sm:$0xf]
        %v4833 = vlaneseq
        %v4834 = vshrl.u32 %v4833, 7
        %v4835 = vsub.s32 0, %v4834
        %v4836 = vrot.slane %v4831, %v4835
        %v4837 = vlaneseq
        %v4838 = vshrl.u32 %v4837, 7
        %v4839 = vsub.s32 1, %v4838
        %v4840 = vrot.slane %v4831, %v4839
        %v4841 = vlaneseq
        %v4842 = vshrl.u32 %v4841, 7
        %v4843 = vsub.s32 2, %v4842
        %v4844 = vrot.slane %v4831, %v4843
        %v4845 = vlaneseq
        %v4846 = vshrl.u32 %v4845, 7
        %v4847 = vsub.s32 3, %v4846
        %v4848 = vrot.slane %v4831, %v4847
        %4853 = vmatprep.subr.bf16.mxu0 %v3196
        %4854 = vmatpush1.bf16.msra.mxu0 %v3195
        %4855 = vmatprep.subr.bf16.mxu0 %v3188
        %4856 = vmatpush1.bf16.msra.mxu0 %v3187
        %4857 = vmatprep.subr.bf16.mxu0 %v3180
        %4858 = vmatpush1.bf16.msra.mxu0 %v3179
        %4859 = vmatprep.subr.bf16.mxu0 %v3172
        %4860 = vmatpush1.bf16.msra.mxu0 %v3171
        %4861 = vmatprep.subr.bf16.mxu0 %v3164
        %4862 = vmatpush1.bf16.msra.mxu0 %v3163
        %4863 = vmatprep.subr.bf16.mxu0 %v3156
        %4864 = vmatpush1.bf16.msra.mxu0 %v3155
        %4865 = vmatprep.subr.bf16.mxu0 %v3148
        %4866 = vmatpush1.bf16.msra.mxu0 %v3147
        %4867 = vmatprep.subr.bf16.mxu0 %v3140
        %4868 = vmatpush1.bf16.msra.mxu0 %v3139
        %4869 = vmatprep.subr.bf16.mxu0 0
        %4870 = vmatpush2.bf16.msra.mxu0 0
        %4871 = vmatprep.subr.bf16.mxu0 0
        %4872 = vmatpush2.bf16.msra.mxu0 0
        %4873 = vmatprep.subr.bf16.mxu0 0
        %4874 = vmatpush2.bf16.msra.mxu0 0
        %4875 = vmatprep.subr.bf16.mxu0 0
        %4876 = vmatpush2.bf16.msra.mxu0 0
        %4877 = vmatprep.subr.bf16.mxu0 0
        %4878 = vmatpush2.bf16.msra.mxu0 0
        %4879 = vmatprep.subr.bf16.mxu0 0
        %4880 = vmatpush2.bf16.msra.mxu0 0
        %4881 = vmatprep.subr.bf16.mxu0 0
        %4882 = vmatpush2.bf16.msra.mxu0 0
        %4883 = vmatprep.subr.bf16.mxu0 0
        %4884 = vmatpush2.bf16.msra.mxu0 0
        %4885 = vmatprep.mubr.bf16.mxu0 0
        %4886 = vmatmul.mubr.bf16.gmra.mxu0 %v4443
        %v4887 = vpop.f32.mrf.mxu0
        %v4888 = vadd.f32 %v4836, %v4887
        %v4889 = vpop.f32.mrf.mxu0
        %v4890 = vadd.f32 %v4840, %v4889
        %v4891 = vpop.f32.mrf.mxu0
        %v4892 = vadd.f32 %v4836, %v4891
        %v4893 = vpop.f32.mrf.mxu0
        %v4894 = vadd.f32 %v4840, %v4893
        %4895 = vmatprep.mubr.bf16.mxu0 0
        %4896 = vmatmul.mubr.bf16.gmra.mxu0 %v4444
        %v4897 = vpop.f32.mrf.mxu0
        %v4898 = vadd.f32 %v4836, %v4897
        %v4899 = vpop.f32.mrf.mxu0
        %v4900 = vadd.f32 %v4840, %v4899
        %v4901 = vpop.f32.mrf.mxu0
        %v4902 = vadd.f32 %v4836, %v4901
        %v4903 = vpop.f32.mrf.mxu0
        %v4904 = vadd.f32 %v4840, %v4903
        %4905 = vmatprep.mubr.bf16.mxu0 0
        %4906 = vmatmul.mubr.bf16.gmra.mxu0 %v4445
        %v4907 = vpop.f32.mrf.mxu0
        %v4908 = vadd.f32 %v4836, %v4907
        %v4909 = vpop.f32.mrf.mxu0
        %v4910 = vadd.f32 %v4840, %v4909
        %v4911 = vpop.f32.mrf.mxu0
        %v4912 = vadd.f32 %v4836, %v4911
        %v4913 = vpop.f32.mrf.mxu0
        %v4914 = vadd.f32 %v4840, %v4913
        %4915 = vmatprep.mubr.bf16.mxu0 0
        %4916 = vmatmul.mubr.bf16.gmra.mxu0 %v4446
        %v4917 = vpop.f32.mrf.mxu0
        %v4918 = vadd.f32 %v4836, %v4917
        %v4919 = vpop.f32.mrf.mxu0
        %v4920 = vadd.f32 %v4840, %v4919
        %v4921 = vpop.f32.mrf.mxu0
        %v4922 = vadd.f32 %v4836, %v4921
        %v4923 = vpop.f32.mrf.mxu0
        %v4924 = vadd.f32 %v4840, %v4923
        %4925 = vmatprep.mubr.bf16.mxu0 0
        %4926 = vmatmul.mubr.bf16.gmra.mxu0 %v4447
        %v4927 = vpop.f32.mrf.mxu0
        %v4928 = vadd.f32 %v4836, %v4927
        %v4929 = vpop.f32.mrf.mxu0
        %v4930 = vadd.f32 %v4840, %v4929
        %v4931 = vpop.f32.mrf.mxu0
        %v4932 = vadd.f32 %v4836, %v4931
        %v4933 = vpop.f32.mrf.mxu0
        %v4934 = vadd.f32 %v4840, %v4933
        %4935 = vmatprep.mubr.bf16.mxu0 0
        %4936 = vmatmul.mubr.bf16.gmra.mxu0 %v4448
        %v4937 = vpop.f32.mrf.mxu0
        %v4938 = vadd.f32 %v4836, %v4937
        %v4939 = vpop.f32.mrf.mxu0
        %v4940 = vadd.f32 %v4840, %v4939
        %v4941 = vpop.f32.mrf.mxu0
        %v4942 = vadd.f32 %v4836, %v4941
        %v4943 = vpop.f32.mrf.mxu0
        %v4944 = vadd.f32 %v4840, %v4943
        %4945 = vmatprep.mubr.bf16.mxu0 0
        %4946 = vmatmul.mubr.bf16.gmra.mxu0 %v4449
        %v4947 = vpop.f32.mrf.mxu0
        %v4948 = vadd.f32 %v4836, %v4947
        %v4949 = vpop.f32.mrf.mxu0
        %v4950 = vadd.f32 %v4840, %v4949
        %v4951 = vpop.f32.mrf.mxu0
        %v4952 = vadd.f32 %v4836, %v4951
        %v4953 = vpop.f32.mrf.mxu0
        %v4954 = vadd.f32 %v4840, %v4953
        %4955 = vmatprep.mubr.bf16.mxu0 0
        %4956 = vmatmul.mubr.bf16.gmra.mxu0 %v4450
        %v4957 = vpop.f32.mrf.mxu0
        %v4958 = vadd.f32 %v4836, %v4957
        %v4959 = vpop.f32.mrf.mxu0
        %v4960 = vadd.f32 %v4840, %v4959
        %v4961 = vpop.f32.mrf.mxu0
        %v4962 = vadd.f32 %v4836, %v4961
        %v4963 = vpop.f32.mrf.mxu0
        %v4964 = vadd.f32 %v4840, %v4963
        %4965 = vdwg.mxu0
        %4966 = vmatprep.subr.bf16.mxu0 %v3198
        %4967 = vmatpush1.bf16.msra.mxu0 %v3197
        %4968 = vmatprep.subr.bf16.mxu0 %v3190
        %4969 = vmatpush1.bf16.msra.mxu0 %v3189
        %4970 = vmatprep.subr.bf16.mxu0 %v3182
        %4971 = vmatpush1.bf16.msra.mxu0 %v3181
        %4972 = vmatprep.subr.bf16.mxu0 %v3174
        %4973 = vmatpush1.bf16.msra.mxu0 %v3173
        %4974 = vmatprep.subr.bf16.mxu0 %v3166
        %4975 = vmatpush1.bf16.msra.mxu0 %v3165
        %4976 = vmatprep.subr.bf16.mxu0 %v3158
        %4977 = vmatpush1.bf16.msra.mxu0 %v3157
        %4978 = vmatprep.subr.bf16.mxu0 %v3150
        %4979 = vmatpush1.bf16.msra.mxu0 %v3149
        %4980 = vmatprep.subr.bf16.mxu0 %v3142
        %4981 = vmatpush1.bf16.msra.mxu0 %v3141
        %4982 = vmatprep.subr.bf16.mxu0 0
        %4983 = vmatpush2.bf16.msra.mxu0 0
        %4984 = vmatprep.subr.bf16.mxu0 0
        %4985 = vmatpush2.bf16.msra.mxu0 0
        %4986 = vmatprep.subr.bf16.mxu0 0
        %4987 = vmatpush2.bf16.msra.mxu0 0
        %4988 = vmatprep.subr.bf16.mxu0 0
        %4989 = vmatpush2.bf16.msra.mxu0 0
        %4990 = vmatprep.subr.bf16.mxu0 0
        %4991 = vmatpush2.bf16.msra.mxu0 0
        %4992 = vmatprep.subr.bf16.mxu0 0
        %4993 = vmatpush2.bf16.msra.mxu0 0
        %4994 = vmatprep.subr.bf16.mxu0 0
        %4995 = vmatpush2.bf16.msra.mxu0 0
        %4996 = vmatprep.subr.bf16.mxu0 0
        %4997 = vmatpush2.bf16.msra.mxu0 0
        %4998 = vmatprep.mubr.bf16.mxu0 0
        %4999 = vmatmul.mubr.bf16.gmra.mxu0 %v4443
        %v5000 = vpop.f32.mrf.mxu0
        %v5001 = vadd.f32 %v4844, %v5000
        %v5002 = vpop.f32.mrf.mxu0
        %v5003 = vadd.f32 %v4848, %v5002
        %v5004 = vpop.f32.mrf.mxu0
        %v5005 = vadd.f32 %v4844, %v5004
        %v5006 = vpop.f32.mrf.mxu0
        %v5007 = vadd.f32 %v4848, %v5006
        %5008 = vmatprep.mubr.bf16.mxu0 0
        %5009 = vmatmul.mubr.bf16.gmra.mxu0 %v4444
        %v5010 = vpop.f32.mrf.mxu0
        %v5011 = vadd.f32 %v4844, %v5010
        %v5012 = vpop.f32.mrf.mxu0
        %v5013 = vadd.f32 %v4848, %v5012
        %v5014 = vpop.f32.mrf.mxu0
        %v5015 = vadd.f32 %v4844, %v5014
        %v5016 = vpop.f32.mrf.mxu0
        %v5017 = vadd.f32 %v4848, %v5016
        %5018 = vmatprep.mubr.bf16.mxu0 0
        %5019 = vmatmul.mubr.bf16.gmra.mxu0 %v4445
        %v5020 = vpop.f32.mrf.mxu0
        %v5021 = vadd.f32 %v4844, %v5020
        %v5022 = vpop.f32.mrf.mxu0
        %v5023 = vadd.f32 %v4848, %v5022
        %v5024 = vpop.f32.mrf.mxu0
        %v5025 = vadd.f32 %v4844, %v5024
        %v5026 = vpop.f32.mrf.mxu0
        %v5027 = vadd.f32 %v4848, %v5026
        %5028 = vmatprep.mubr.bf16.mxu0 0
        %5029 = vmatmul.mubr.bf16.gmra.mxu0 %v4446
        %v5030 = vpop.f32.mrf.mxu0
        %v5031 = vadd.f32 %v4844, %v5030
        %v5032 = vpop.f32.mrf.mxu0
        %v5033 = vadd.f32 %v4848, %v5032
        %v5034 = vpop.f32.mrf.mxu0
        %v5035 = vadd.f32 %v4844, %v5034
        %v5036 = vpop.f32.mrf.mxu0
        %v5037 = vadd.f32 %v4848, %v5036
        %5038 = vmatprep.mubr.bf16.mxu0 0
        %5039 = vmatmul.mubr.bf16.gmra.mxu0 %v4447
        %v5040 = vpop.f32.mrf.mxu0
        %v5041 = vadd.f32 %v4844, %v5040
        %v5042 = vpop.f32.mrf.mxu0
        %v5043 = vadd.f32 %v4848, %v5042
        %v5044 = vpop.f32.mrf.mxu0
        %v5045 = vadd.f32 %v4844, %v5044
        %v5046 = vpop.f32.mrf.mxu0
        %v5047 = vadd.f32 %v4848, %v5046
        %5048 = vmatprep.mubr.bf16.mxu0 0
        %5049 = vmatmul.mubr.bf16.gmra.mxu0 %v4448
        %v5050 = vpop.f32.mrf.mxu0
        %v5051 = vadd.f32 %v4844, %v5050
        %v5052 = vpop.f32.mrf.mxu0
        %v5053 = vadd.f32 %v4848, %v5052
        %v5054 = vpop.f32.mrf.mxu0
        %v5055 = vadd.f32 %v4844, %v5054
        %v5056 = vpop.f32.mrf.mxu0
        %v5057 = vadd.f32 %v4848, %v5056
        %5058 = vmatprep.mubr.bf16.mxu0 0
        %5059 = vmatmul.mubr.bf16.gmra.mxu0 %v4449
        %v5060 = vpop.f32.mrf.mxu0
        %v5061 = vadd.f32 %v4844, %v5060
        %v5062 = vpop.f32.mrf.mxu0
        %v5063 = vadd.f32 %v4848, %v5062
        %v5064 = vpop.f32.mrf.mxu0
        %v5065 = vadd.f32 %v4844, %v5064
        %v5066 = vpop.f32.mrf.mxu0
        %v5067 = vadd.f32 %v4848, %v5066
        %5068 = vmatprep.mubr.bf16.mxu0 0
        %5069 = vmatmul.mubr.bf16.gmra.mxu0 %v4450
        %v5070 = vpop.f32.mrf.mxu0
        %v5071 = vadd.f32 %v4844, %v5070
        %v5072 = vpop.f32.mrf.mxu0
        %v5073 = vadd.f32 %v4848, %v5072
        %v5074 = vpop.f32.mrf.mxu0
        %v5075 = vadd.f32 %v4844, %v5074
        %v5076 = vpop.f32.mrf.mxu0
        %v5077 = vadd.f32 %v4848, %v5076
        %5078 = vdwg.mxu0
        %v5079 = vmax.f32 %v4888, 0.0
        %v5080 = vmax.f32 %v4890, 0.0
        %v5081 = vmax.f32 %v5001, 0.0
        %v5082 = vmax.f32 %v5003, 0.0
        %v5083 = vmax.f32 %v4892, 0.0
        %v5084 = vmax.f32 %v4894, 0.0
        %v5085 = vmax.f32 %v5005, 0.0
        %v5086 = vmax.f32 %v5007, 0.0
        %v5087 = vmax.f32 %v4898, 0.0
        %v5088 = vmax.f32 %v4900, 0.0
        %v5089 = vmax.f32 %v5011, 0.0
        %v5090 = vmax.f32 %v5013, 0.0
        %v5091 = vmax.f32 %v4902, 0.0
        %v5092 = vmax.f32 %v4904, 0.0
        %v5093 = vmax.f32 %v5015, 0.0
        %v5094 = vmax.f32 %v5017, 0.0
        %v5095 = vmax.f32 %v4908, 0.0
        %v5096 = vmax.f32 %v4910, 0.0
        %v5097 = vmax.f32 %v5021, 0.0
        %v5098 = vmax.f32 %v5023, 0.0
        %v5099 = vmax.f32 %v4912, 0.0
        %v5100 = vmax.f32 %v4914, 0.0
        %v5101 = vmax.f32 %v5025, 0.0
        %v5102 = vmax.f32 %v5027, 0.0
        %v5103 = vmax.f32 %v4918, 0.0
        %v5104 = vmax.f32 %v4920, 0.0
        %v5105 = vmax.f32 %v5031, 0.0
        %v5106 = vmax.f32 %v5033, 0.0
        %v5107 = vmax.f32 %v4922, 0.0
        %v5108 = vmax.f32 %v4924, 0.0
        %v5109 = vmax.f32 %v5035, 0.0
        %v5110 = vmax.f32 %v5037, 0.0
        %v5111 = vmax.f32 %v4928, 0.0
        %v5112 = vmax.f32 %v4930, 0.0
        %v5113 = vmax.f32 %v5041, 0.0
        %v5114 = vmax.f32 %v5043, 0.0
        %v5115 = vmax.f32 %v4932, 0.0
        %v5116 = vmax.f32 %v4934, 0.0
        %v5117 = vmax.f32 %v5045, 0.0
        %v5118 = vmax.f32 %v5047, 0.0
        %v5119 = vmax.f32 %v4938, 0.0
        %v5120 = vmax.f32 %v4940, 0.0
        %v5121 = vmax.f32 %v5051, 0.0
        %v5122 = vmax.f32 %v5053, 0.0
        %v5123 = vmax.f32 %v4942, 0.0
        %v5124 = vmax.f32 %v4944, 0.0
        %v5125 = vmax.f32 %v5055, 0.0
        %v5126 = vmax.f32 %v5057, 0.0
        %v5127 = vmax.f32 %v4948, 0.0
        %v5128 = vmax.f32 %v4950, 0.0
        %v5129 = vmax.f32 %v5061, 0.0
        %v5130 = vmax.f32 %v5063, 0.0
        %v5131 = vmax.f32 %v4952, 0.0
        %v5132 = vmax.f32 %v4954, 0.0
        %v5133 = vmax.f32 %v5065, 0.0
        %v5134 = vmax.f32 %v5067, 0.0
        %v5135 = vmax.f32 %v4958, 0.0
        %v5136 = vmax.f32 %v4960, 0.0
        %v5137 = vmax.f32 %v5071, 0.0
        %v5138 = vmax.f32 %v5073, 0.0
        %v5139 = vmax.f32 %v4962, 0.0
        %v5140 = vmax.f32 %v4964, 0.0
        %v5141 = vmax.f32 %v5075, 0.0
        %v5142 = vmax.f32 %v5077, 0.0
        %v5143 = vld [vmem:[%s4 + $0x4] sm:$0xf]
        %v5145 = vlaneseq
        %v5146 = vshrl.u32 %v5145, 7
        %v5147 = vsub.s32 0, %v5146
        %v5148 = vrot.slane %v5143, %v5147
        %v5149 = vlaneseq
        %v5150 = vshrl.u32 %v5149, 7
        %v5151 = vsub.s32 1, %v5150
        %v5152 = vrot.slane %v5143, %v5151
        %v5153 = vlaneseq
        %v5154 = vshrl.u32 %v5153, 7
        %v5155 = vsub.s32 2, %v5154
        %v5156 = vrot.slane %v5143, %v5155
        %v5157 = vlaneseq
        %v5158 = vshrl.u32 %v5157, 7
        %v5159 = vsub.s32 3, %v5158
        %v5160 = vrot.slane %v5143, %v5159
        %5165 = vmatprep.subr.bf16.mxu0 %v3200
        %5166 = vmatpush1.bf16.msra.mxu0 %v3199
        %5167 = vmatprep.subr.bf16.mxu0 %v3192
        %5168 = vmatpush1.bf16.msra.mxu0 %v3191
        %5169 = vmatprep.subr.bf16.mxu0 %v3184
        %5170 = vmatpush1.bf16.msra.mxu0 %v3183
        %5171 = vmatprep.subr.bf16.mxu0 %v3176
        %5172 = vmatpush1.bf16.msra.mxu0 %v3175
        %5173 = vmatprep.subr.bf16.mxu0 %v3168
        %5174 = vmatpush1.bf16.msra.mxu0 %v3167
        %5175 = vmatprep.subr.bf16.mxu0 %v3160
        %5176 = vmatpush1.bf16.msra.mxu0 %v3159
        %5177 = vmatprep.subr.bf16.mxu0 %v3152
        %5178 = vmatpush1.bf16.msra.mxu0 %v3151
        %5179 = vmatprep.subr.bf16.mxu0 %v3144
        %5180 = vmatpush1.bf16.msra.mxu0 %v3143
        %5181 = vmatprep.subr.bf16.mxu0 0
        %5182 = vmatpush2.bf16.msra.mxu0 0
        %5183 = vmatprep.subr.bf16.mxu0 0
        %5184 = vmatpush2.bf16.msra.mxu0 0
        %5185 = vmatprep.subr.bf16.mxu0 0
        %5186 = vmatpush2.bf16.msra.mxu0 0
        %5187 = vmatprep.subr.bf16.mxu0 0
        %5188 = vmatpush2.bf16.msra.mxu0 0
        %5189 = vmatprep.subr.bf16.mxu0 0
        %5190 = vmatpush2.bf16.msra.mxu0 0
        %5191 = vmatprep.subr.bf16.mxu0 0
        %5192 = vmatpush2.bf16.msra.mxu0 0
        %5193 = vmatprep.subr.bf16.mxu0 0
        %5194 = vmatpush2.bf16.msra.mxu0 0
        %5195 = vmatprep.subr.bf16.mxu0 0
        %5196 = vmatpush2.bf16.msra.mxu0 0
        %5197 = vmatprep.mubr.bf16.mxu0 0
        %5198 = vmatmul.mubr.bf16.gmra.mxu0 %v4823
        %v5199 = vpop.f32.mrf.mxu0
        %v5200 = vadd.f32 %v5148, %v5199
        %v5201 = vpop.f32.mrf.mxu0
        %v5202 = vadd.f32 %v5152, %v5201
        %v5203 = vpop.f32.mrf.mxu0
        %v5204 = vadd.f32 %v5148, %v5203
        %v5205 = vpop.f32.mrf.mxu0
        %v5206 = vadd.f32 %v5152, %v5205
        %5207 = vmatprep.mubr.bf16.mxu0 0
        %5208 = vmatmul.mubr.bf16.gmra.mxu0 %v4824
        %v5209 = vpop.f32.mrf.mxu0
        %v5210 = vadd.f32 %v5148, %v5209
        %v5211 = vpop.f32.mrf.mxu0
        %v5212 = vadd.f32 %v5152, %v5211
        %v5213 = vpop.f32.mrf.mxu0
        %v5214 = vadd.f32 %v5148, %v5213
        %v5215 = vpop.f32.mrf.mxu0
        %v5216 = vadd.f32 %v5152, %v5215
        %5217 = vmatprep.mubr.bf16.mxu0 0
        %5218 = vmatmul.mubr.bf16.gmra.mxu0 %v4825
        %v5219 = vpop.f32.mrf.mxu0
        %v5220 = vadd.f32 %v5148, %v5219
        %v5221 = vpop.f32.mrf.mxu0
        %v5222 = vadd.f32 %v5152, %v5221
        %v5223 = vpop.f32.mrf.mxu0
        %v5224 = vadd.f32 %v5148, %v5223
        %v5225 = vpop.f32.mrf.mxu0
        %v5226 = vadd.f32 %v5152, %v5225
        %5227 = vmatprep.mubr.bf16.mxu0 0
        %5228 = vmatmul.mubr.bf16.gmra.mxu0 %v4826
        %v5229 = vpop.f32.mrf.mxu0
        %v5230 = vadd.f32 %v5148, %v5229
        %v5231 = vpop.f32.mrf.mxu0
        %v5232 = vadd.f32 %v5152, %v5231
        %v5233 = vpop.f32.mrf.mxu0
        %v5234 = vadd.f32 %v5148, %v5233
        %v5235 = vpop.f32.mrf.mxu0
        %v5236 = vadd.f32 %v5152, %v5235
        %5237 = vmatprep.mubr.bf16.mxu0 0
        %5238 = vmatmul.mubr.bf16.gmra.mxu0 %v4827
        %v5239 = vpop.f32.mrf.mxu0
        %v5240 = vadd.f32 %v5148, %v5239
        %v5241 = vpop.f32.mrf.mxu0
        %v5242 = vadd.f32 %v5152, %v5241
        %v5243 = vpop.f32.mrf.mxu0
        %v5244 = vadd.f32 %v5148, %v5243
        %v5245 = vpop.f32.mrf.mxu0
        %v5246 = vadd.f32 %v5152, %v5245
        %5247 = vmatprep.mubr.bf16.mxu0 0
        %5248 = vmatmul.mubr.bf16.gmra.mxu0 %v4828
        %v5249 = vpop.f32.mrf.mxu0
        %v5250 = vadd.f32 %v5148, %v5249
        %v5251 = vpop.f32.mrf.mxu0
        %v5252 = vadd.f32 %v5152, %v5251
        %v5253 = vpop.f32.mrf.mxu0
        %v5254 = vadd.f32 %v5148, %v5253
        %v5255 = vpop.f32.mrf.mxu0
        %v5256 = vadd.f32 %v5152, %v5255
        %5257 = vmatprep.mubr.bf16.mxu0 0
        %5258 = vmatmul.mubr.bf16.gmra.mxu0 %v4829
        %v5259 = vpop.f32.mrf.mxu0
        %v5260 = vadd.f32 %v5148, %v5259
        %v5261 = vpop.f32.mrf.mxu0
        %v5262 = vadd.f32 %v5152, %v5261
        %v5263 = vpop.f32.mrf.mxu0
        %v5264 = vadd.f32 %v5148, %v5263
        %v5265 = vpop.f32.mrf.mxu0
        %v5266 = vadd.f32 %v5152, %v5265
        %5267 = vmatprep.mubr.bf16.mxu0 0
        %5268 = vmatmul.mubr.bf16.gmra.mxu0 %v4830
        %v5269 = vpop.f32.mrf.mxu0
        %v5270 = vadd.f32 %v5148, %v5269
        %v5271 = vpop.f32.mrf.mxu0
        %v5272 = vadd.f32 %v5152, %v5271
        %v5273 = vpop.f32.mrf.mxu0
        %v5274 = vadd.f32 %v5148, %v5273
        %v5275 = vpop.f32.mrf.mxu0
        %v5276 = vadd.f32 %v5152, %v5275
        %5277 = vdwg.mxu0
        %5278 = vmatprep.subr.bf16.mxu0 %v3202
        %5279 = vmatpush1.bf16.msra.mxu0 %v3201
        %5280 = vmatprep.subr.bf16.mxu0 %v3194
        %5281 = vmatpush1.bf16.msra.mxu0 %v3193
        %5282 = vmatprep.subr.bf16.mxu0 %v3186
        %5283 = vmatpush1.bf16.msra.mxu0 %v3185
        %5284 = vmatprep.subr.bf16.mxu0 %v3178
        %5285 = vmatpush1.bf16.msra.mxu0 %v3177
        %5286 = vmatprep.subr.bf16.mxu0 %v3170
        %5287 = vmatpush1.bf16.msra.mxu0 %v3169
        %5288 = vmatprep.subr.bf16.mxu0 %v3162
        %5289 = vmatpush1.bf16.msra.mxu0 %v3161
        %5290 = vmatprep.subr.bf16.mxu0 %v3154
        %5291 = vmatpush1.bf16.msra.mxu0 %v3153
        %5292 = vmatprep.subr.bf16.mxu0 %v3146
        %5293 = vmatpush1.bf16.msra.mxu0 %v3145
        %5294 = vmatprep.subr.bf16.mxu0 0
        %5295 = vmatpush2.bf16.msra.mxu0 0
        %5296 = vmatprep.subr.bf16.mxu0 0
        %5297 = vmatpush2.bf16.msra.mxu0 0
        %5298 = vmatprep.subr.bf16.mxu0 0
        %5299 = vmatpush2.bf16.msra.mxu0 0
        %5300 = vmatprep.subr.bf16.mxu0 0
        %5301 = vmatpush2.bf16.msra.mxu0 0
        %5302 = vmatprep.subr.bf16.mxu0 0
        %5303 = vmatpush2.bf16.msra.mxu0 0
        %5304 = vmatprep.subr.bf16.mxu0 0
        %5305 = vmatpush2.bf16.msra.mxu0 0
        %5306 = vmatprep.subr.bf16.mxu0 0
        %5307 = vmatpush2.bf16.msra.mxu0 0
        %5308 = vmatprep.subr.bf16.mxu0 0
        %5309 = vmatpush2.bf16.msra.mxu0 0
        %5310 = vmatprep.mubr.bf16.mxu0 0
        %5311 = vmatmul.mubr.bf16.gmra.mxu0 %v4823
        %v5312 = vpop.f32.mrf.mxu0
        %v5313 = vadd.f32 %v5156, %v5312
        %v5314 = vpop.f32.mrf.mxu0
        %v5315 = vadd.f32 %v5160, %v5314
        %v5316 = vpop.f32.mrf.mxu0
        %v5317 = vadd.f32 %v5156, %v5316
        %v5318 = vpop.f32.mrf.mxu0
        %v5319 = vadd.f32 %v5160, %v5318
        %5320 = vmatprep.mubr.bf16.mxu0 0
        %5321 = vmatmul.mubr.bf16.gmra.mxu0 %v4824
        %v5322 = vpop.f32.mrf.mxu0
        %v5323 = vadd.f32 %v5156, %v5322
        %v5324 = vpop.f32.mrf.mxu0
        %v5325 = vadd.f32 %v5160, %v5324
        %v5326 = vpop.f32.mrf.mxu0
        %v5327 = vadd.f32 %v5156, %v5326
        %v5328 = vpop.f32.mrf.mxu0
        %v5329 = vadd.f32 %v5160, %v5328
        %5330 = vmatprep.mubr.bf16.mxu0 0
        %5331 = vmatmul.mubr.bf16.gmra.mxu0 %v4825
        %v5332 = vpop.f32.mrf.mxu0
        %v5333 = vadd.f32 %v5156, %v5332
        %v5334 = vpop.f32.mrf.mxu0
        %v5335 = vadd.f32 %v5160, %v5334
        %v5336 = vpop.f32.mrf.mxu0
        %v5337 = vadd.f32 %v5156, %v5336
        %v5338 = vpop.f32.mrf.mxu0
        %v5339 = vadd.f32 %v5160, %v5338
        %5340 = vmatprep.mubr.bf16.mxu0 0
        %5341 = vmatmul.mubr.bf16.gmra.mxu0 %v4826
        %v5342 = vpop.f32.mrf.mxu0
        %v5343 = vadd.f32 %v5156, %v5342
        %v5344 = vpop.f32.mrf.mxu0
        %v5345 = vadd.f32 %v5160, %v5344
        %v5346 = vpop.f32.mrf.mxu0
        %v5347 = vadd.f32 %v5156, %v5346
        %v5348 = vpop.f32.mrf.mxu0
        %v5349 = vadd.f32 %v5160, %v5348
        %5350 = vmatprep.mubr.bf16.mxu0 0
        %5351 = vmatmul.mubr.bf16.gmra.mxu0 %v4827
        %v5352 = vpop.f32.mrf.mxu0
        %v5353 = vadd.f32 %v5156, %v5352
        %v5354 = vpop.f32.mrf.mxu0
        %v5355 = vadd.f32 %v5160, %v5354
        %v5356 = vpop.f32.mrf.mxu0
        %v5357 = vadd.f32 %v5156, %v5356
        %v5358 = vpop.f32.mrf.mxu0
        %v5359 = vadd.f32 %v5160, %v5358
        %5360 = vmatprep.mubr.bf16.mxu0 0
        %5361 = vmatmul.mubr.bf16.gmra.mxu0 %v4828
        %v5362 = vpop.f32.mrf.mxu0
        %v5363 = vadd.f32 %v5156, %v5362
        %v5364 = vpop.f32.mrf.mxu0
        %v5365 = vadd.f32 %v5160, %v5364
        %v5366 = vpop.f32.mrf.mxu0
        %v5367 = vadd.f32 %v5156, %v5366
        %v5368 = vpop.f32.mrf.mxu0
        %v5369 = vadd.f32 %v5160, %v5368
        %5370 = vmatprep.mubr.bf16.mxu0 0
        %5371 = vmatmul.mubr.bf16.gmra.mxu0 %v4829
        %v5372 = vpop.f32.mrf.mxu0
        %v5373 = vadd.f32 %v5156, %v5372
        %v5374 = vpop.f32.mrf.mxu0
        %v5375 = vadd.f32 %v5160, %v5374
        %v5376 = vpop.f32.mrf.mxu0
        %v5377 = vadd.f32 %v5156, %v5376
        %v5378 = vpop.f32.mrf.mxu0
        %v5379 = vadd.f32 %v5160, %v5378
        %5380 = vmatprep.mubr.bf16.mxu0 0
        %5381 = vmatmul.mubr.bf16.gmra.mxu0 %v4830
        %v5382 = vpop.f32.mrf.mxu0
        %v5383 = vadd.f32 %v5156, %v5382
        %v5384 = vpop.f32.mrf.mxu0
        %v5385 = vadd.f32 %v5160, %v5384
        %v5386 = vpop.f32.mrf.mxu0
        %v5387 = vadd.f32 %v5156, %v5386
        %v5388 = vpop.f32.mrf.mxu0
        %v5389 = vadd.f32 %v5160, %v5388
        %5390 = vdwg.mxu0
        %v5391 = vmax.f32 %v5200, 0.0
        %v5392 = vmax.f32 %v5202, 0.0
        %v5393 = vmax.f32 %v5313, 0.0
        %v5394 = vmax.f32 %v5315, 0.0
        %v5395 = vmax.f32 %v5204, 0.0
        %v5396 = vmax.f32 %v5206, 0.0
        %v5397 = vmax.f32 %v5317, 0.0
        %v5398 = vmax.f32 %v5319, 0.0
        %v5399 = vmax.f32 %v5210, 0.0
        %v5400 = vmax.f32 %v5212, 0.0
        %v5401 = vmax.f32 %v5323, 0.0
        %v5402 = vmax.f32 %v5325, 0.0
        %v5403 = vmax.f32 %v5214, 0.0
        %v5404 = vmax.f32 %v5216, 0.0
        %v5405 = vmax.f32 %v5327, 0.0
        %v5406 = vmax.f32 %v5329, 0.0
        %v5407 = vmax.f32 %v5220, 0.0
        %v5408 = vmax.f32 %v5222, 0.0
        %v5409 = vmax.f32 %v5333, 0.0
        %v5410 = vmax.f32 %v5335, 0.0
        %v5411 = vmax.f32 %v5224, 0.0
        %v5412 = vmax.f32 %v5226, 0.0
        %v5413 = vmax.f32 %v5337, 0.0
        %v5414 = vmax.f32 %v5339, 0.0
        %v5415 = vmax.f32 %v5230, 0.0
        %v5416 = vmax.f32 %v5232, 0.0
        %v5417 = vmax.f32 %v5343, 0.0
        %v5418 = vmax.f32 %v5345, 0.0
        %v5419 = vmax.f32 %v5234, 0.0
        %v5420 = vmax.f32 %v5236, 0.0
        %v5421 = vmax.f32 %v5347, 0.0
        %v5422 = vmax.f32 %v5349, 0.0
        %v5423 = vmax.f32 %v5240, 0.0
        %v5424 = vmax.f32 %v5242, 0.0
        %v5425 = vmax.f32 %v5353, 0.0
        %v5426 = vmax.f32 %v5355, 0.0
        %v5427 = vmax.f32 %v5244, 0.0
        %v5428 = vmax.f32 %v5246, 0.0
        %v5429 = vmax.f32 %v5357, 0.0
        %v5430 = vmax.f32 %v5359, 0.0
        %v5431 = vmax.f32 %v5250, 0.0
        %v5432 = vmax.f32 %v5252, 0.0
        %v5433 = vmax.f32 %v5363, 0.0
        %v5434 = vmax.f32 %v5365, 0.0
        %v5435 = vmax.f32 %v5254, 0.0
        %v5436 = vmax.f32 %v5256, 0.0
        %v5437 = vmax.f32 %v5367, 0.0
        %v5438 = vmax.f32 %v5369, 0.0
        %v5439 = vmax.f32 %v5260, 0.0
        %v5440 = vmax.f32 %v5262, 0.0
        %v5441 = vmax.f32 %v5373, 0.0
        %v5442 = vmax.f32 %v5375, 0.0
        %v5443 = vmax.f32 %v5264, 0.0
        %v5444 = vmax.f32 %v5266, 0.0
        %v5445 = vmax.f32 %v5377, 0.0
        %v5446 = vmax.f32 %v5379, 0.0
        %v5447 = vmax.f32 %v5270, 0.0
        %v5448 = vmax.f32 %v5272, 0.0
        %v5449 = vmax.f32 %v5383, 0.0
        %v5450 = vmax.f32 %v5385, 0.0
        %v5451 = vmax.f32 %v5274, 0.0
        %v5452 = vmax.f32 %v5276, 0.0
        %v5453 = vmax.f32 %v5387, 0.0
        %v5454 = vmax.f32 %v5389, 0.0
        %v5455 = vpack.c.bf16 %v5083, %v5079
        %v5456 = vpack.c.bf16 %v5084, %v5080
        %v5457 = vpack.c.bf16 %v5085, %v5081
        %v5458 = vpack.c.bf16 %v5086, %v5082
        %v5459 = vpack.c.bf16 %v5091, %v5087
        %v5460 = vpack.c.bf16 %v5092, %v5088
        %v5461 = vpack.c.bf16 %v5093, %v5089
        %v5462 = vpack.c.bf16 %v5094, %v5090
        %v5463 = vpack.c.bf16 %v5099, %v5095
        %v5464 = vpack.c.bf16 %v5100, %v5096
        %v5465 = vpack.c.bf16 %v5101, %v5097
        %v5466 = vpack.c.bf16 %v5102, %v5098
        %v5467 = vpack.c.bf16 %v5107, %v5103
        %v5468 = vpack.c.bf16 %v5108, %v5104
        %v5469 = vpack.c.bf16 %v5109, %v5105
        %v5470 = vpack.c.bf16 %v5110, %v5106
        %v5471 = vpack.c.bf16 %v5115, %v5111
        %v5472 = vpack.c.bf16 %v5116, %v5112
        %v5473 = vpack.c.bf16 %v5117, %v5113
        %v5474 = vpack.c.bf16 %v5118, %v5114
        %v5475 = vpack.c.bf16 %v5123, %v5119
        %v5476 = vpack.c.bf16 %v5124, %v5120
        %v5477 = vpack.c.bf16 %v5125, %v5121
        %v5478 = vpack.c.bf16 %v5126, %v5122
        %v5479 = vpack.c.bf16 %v5131, %v5127
        %v5480 = vpack.c.bf16 %v5132, %v5128
        %v5481 = vpack.c.bf16 %v5133, %v5129
        %v5482 = vpack.c.bf16 %v5134, %v5130
        %v5483 = vpack.c.bf16 %v5139, %v5135
        %v5484 = vpack.c.bf16 %v5140, %v5136
        %v5485 = vpack.c.bf16 %v5141, %v5137
        %v5486 = vpack.c.bf16 %v5142, %v5138
        %v5487 = vld [vmem:[#allocation4] sm:$0xff]
        %v5488 = vld [vmem:[#allocation4 + $0x8] sm:$0xff]
        %v5489 = vld [vmem:[#allocation4 + $0x10] sm:$0xff]
        %v5490 = vld [vmem:[#allocation4 + $0x18] sm:$0xff]
        %v5491 = vld [vmem:[#allocation4 + $0x20] sm:$0xff]
        %v5492 = vld [vmem:[#allocation4 + $0x28] sm:$0xff]
        %v5493 = vld [vmem:[#allocation4 + $0x30] sm:$0xff]
        %v5494 = vld [vmem:[#allocation4 + $0x38] sm:$0xff]
        %v5495 = vld [vmem:[#allocation4 + $0x40] sm:$0xff]
        %v5496 = vld [vmem:[#allocation4 + $0x48] sm:$0xff]
        %v5497 = vld [vmem:[#allocation4 + $0x50] sm:$0xff]
        %v5498 = vld [vmem:[#allocation4 + $0x58] sm:$0xff]
        %v5499 = vld [vmem:[#allocation4 + $0x60] sm:$0xff]
        %v5500 = vld [vmem:[#allocation4 + $0x68] sm:$0xff]
        %v5501 = vld [vmem:[#allocation4 + $0x70] sm:$0xff]
        %v5502 = vld [vmem:[#allocation4 + $0x78] sm:$0xff]
        %v5503 = vld [vmem:[#allocation4 + $0x80] sm:$0xff]
        %v5504 = vld [vmem:[#allocation4 + $0x88] sm:$0xff]
        %v5505 = vld [vmem:[#allocation4 + $0x90] sm:$0xff]
        %v5506 = vld [vmem:[#allocation4 + $0x98] sm:$0xff]
        %v5507 = vld [vmem:[#allocation4 + $0xa0] sm:$0xff]
        %v5508 = vld [vmem:[#allocation4 + $0xa8] sm:$0xff]
        %v5509 = vld [vmem:[#allocation4 + $0xb0] sm:$0xff]
        %v5510 = vld [vmem:[#allocation4 + $0xb8] sm:$0xff]
        %v5511 = vld [vmem:[#allocation4 + $0xc0] sm:$0xff]
        %v5512 = vld [vmem:[#allocation4 + $0xc8] sm:$0xff]
        %v5513 = vld [vmem:[#allocation4 + $0xd0] sm:$0xff]
        %v5514 = vld [vmem:[#allocation4 + $0xd8] sm:$0xff]
        %v5515 = vld [vmem:[#allocation4 + $0xe0] sm:$0xff]
        %v5516 = vld [vmem:[#allocation4 + $0xe8] sm:$0xff]
        %v5517 = vld [vmem:[#allocation4 + $0xf0] sm:$0xff]
        %v5518 = vld [vmem:[#allocation4 + $0xf8] sm:$0xff]
        %v5519 = vld [vmem:[#allocation4 + $0x100] sm:$0xff]
        %v5520 = vld [vmem:[#allocation4 + $0x108] sm:$0xff]
        %v5521 = vld [vmem:[#allocation4 + $0x110] sm:$0xff]
        %v5522 = vld [vmem:[#allocation4 + $0x118] sm:$0xff]
        %v5523 = vld [vmem:[#allocation4 + $0x120] sm:$0xff]
        %v5524 = vld [vmem:[#allocation4 + $0x128] sm:$0xff]
        %v5525 = vld [vmem:[#allocation4 + $0x130] sm:$0xff]
        %v5526 = vld [vmem:[#allocation4 + $0x138] sm:$0xff]
        %v5527 = vld [vmem:[#allocation4 + $0x140] sm:$0xff]
        %v5528 = vld [vmem:[#allocation4 + $0x148] sm:$0xff]
        %v5529 = vld [vmem:[#allocation4 + $0x150] sm:$0xff]
        %v5530 = vld [vmem:[#allocation4 + $0x158] sm:$0xff]
        %v5531 = vld [vmem:[#allocation4 + $0x160] sm:$0xff]
        %v5532 = vld [vmem:[#allocation4 + $0x168] sm:$0xff]
        %v5533 = vld [vmem:[#allocation4 + $0x170] sm:$0xff]
        %v5534 = vld [vmem:[#allocation4 + $0x178] sm:$0xff]
        %v5535 = vld [vmem:[#allocation4 + $0x180] sm:$0xff]
        %v5536 = vld [vmem:[#allocation4 + $0x188] sm:$0xff]
        %v5537 = vld [vmem:[#allocation4 + $0x190] sm:$0xff]
        %v5538 = vld [vmem:[#allocation4 + $0x198] sm:$0xff]
        %v5539 = vld [vmem:[#allocation4 + $0x1a0] sm:$0xff]
        %v5540 = vld [vmem:[#allocation4 + $0x1a8] sm:$0xff]
        %v5541 = vld [vmem:[#allocation4 + $0x1b0] sm:$0xff]
        %v5542 = vld [vmem:[#allocation4 + $0x1b8] sm:$0xff]
        %v5543 = vld [vmem:[#allocation4 + $0x1c0] sm:$0xff]
        %v5544 = vld [vmem:[#allocation4 + $0x1c8] sm:$0xff]
        %v5545 = vld [vmem:[#allocation4 + $0x1d0] sm:$0xff]
        %v5546 = vld [vmem:[#allocation4 + $0x1d8] sm:$0xff]
        %v5547 = vld [vmem:[#allocation4 + $0x1e0] sm:$0xff]
        %v5548 = vld [vmem:[#allocation4 + $0x1e8] sm:$0xff]
        %v5549 = vld [vmem:[#allocation4 + $0x1f0] sm:$0xff]
        %v5550 = vld [vmem:[#allocation4 + $0x1f8] sm:$0xff]
        %v5551 = vld [vmem:[#allocation4 + $0x200] sm:$0xff]
        %v5552 = vld [vmem:[#allocation4 + $0x208] sm:$0xff]
        %v5553 = vld [vmem:[#allocation4 + $0x210] sm:$0xff]
        %v5554 = vld [vmem:[#allocation4 + $0x218] sm:$0xff]
        %v5555 = vld [vmem:[#allocation4 + $0x220] sm:$0xff]
        %v5556 = vld [vmem:[#allocation4 + $0x228] sm:$0xff]
        %v5557 = vld [vmem:[#allocation4 + $0x230] sm:$0xff]
        %v5558 = vld [vmem:[#allocation4 + $0x238] sm:$0xff]
        %v5559 = vld [vmem:[#allocation4 + $0x240] sm:$0xff]
        %v5560 = vld [vmem:[#allocation4 + $0x248] sm:$0xff]
        %v5561 = vld [vmem:[#allocation4 + $0x250] sm:$0xff]
        %v5562 = vld [vmem:[#allocation4 + $0x258] sm:$0xff]
        %v5563 = vld [vmem:[#allocation4 + $0x260] sm:$0xff]
        %v5564 = vld [vmem:[#allocation4 + $0x268] sm:$0xff]
        %v5565 = vld [vmem:[#allocation4 + $0x270] sm:$0xff]
        %v5566 = vld [vmem:[#allocation4 + $0x278] sm:$0xff]
        %v5567 = vld [vmem:[#allocation4 + $0x280] sm:$0xff]
        %v5568 = vld [vmem:[#allocation4 + $0x288] sm:$0xff]
        %v5569 = vld [vmem:[#allocation4 + $0x290] sm:$0xff]
        %v5570 = vld [vmem:[#allocation4 + $0x298] sm:$0xff]
        %v5571 = vld [vmem:[#allocation4 + $0x2a0] sm:$0xff]
        %v5572 = vld [vmem:[#allocation4 + $0x2a8] sm:$0xff]
        %v5573 = vld [vmem:[#allocation4 + $0x2b0] sm:$0xff]
        %v5574 = vld [vmem:[#allocation4 + $0x2b8] sm:$0xff]
        %v5575 = vld [vmem:[#allocation4 + $0x2c0] sm:$0xff]
        %v5576 = vld [vmem:[#allocation4 + $0x2c8] sm:$0xff]
        %v5577 = vld [vmem:[#allocation4 + $0x2d0] sm:$0xff]
        %v5578 = vld [vmem:[#allocation4 + $0x2d8] sm:$0xff]
        %v5579 = vld [vmem:[#allocation4 + $0x2e0] sm:$0xff]
        %v5580 = vld [vmem:[#allocation4 + $0x2e8] sm:$0xff]
        %v5581 = vld [vmem:[#allocation4 + $0x2f0] sm:$0xff]
        %v5582 = vld [vmem:[#allocation4 + $0x2f8] sm:$0xff]
        %v5583 = vld [vmem:[#allocation4 + $0x300] sm:$0xff]
        %v5584 = vld [vmem:[#allocation4 + $0x308] sm:$0xff]
        %v5585 = vld [vmem:[#allocation4 + $0x310] sm:$0xff]
        %v5586 = vld [vmem:[#allocation4 + $0x318] sm:$0xff]
        %v5587 = vld [vmem:[#allocation4 + $0x320] sm:$0xff]
        %v5588 = vld [vmem:[#allocation4 + $0x328] sm:$0xff]
        %v5589 = vld [vmem:[#allocation4 + $0x330] sm:$0xff]
        %v5590 = vld [vmem:[#allocation4 + $0x338] sm:$0xff]
        %v5591 = vld [vmem:[#allocation4 + $0x340] sm:$0xff]
        %v5592 = vld [vmem:[#allocation4 + $0x348] sm:$0xff]
        %v5593 = vld [vmem:[#allocation4 + $0x350] sm:$0xff]
        %v5594 = vld [vmem:[#allocation4 + $0x358] sm:$0xff]
        %v5595 = vld [vmem:[#allocation4 + $0x360] sm:$0xff]
        %v5596 = vld [vmem:[#allocation4 + $0x368] sm:$0xff]
        %v5597 = vld [vmem:[#allocation4 + $0x370] sm:$0xff]
        %v5598 = vld [vmem:[#allocation4 + $0x378] sm:$0xff]
        %v5599 = vld [vmem:[#allocation4 + $0x380] sm:$0xff]
        %v5600 = vld [vmem:[#allocation4 + $0x388] sm:$0xff]
        %v5601 = vld [vmem:[#allocation4 + $0x390] sm:$0xff]
        %v5602 = vld [vmem:[#allocation4 + $0x398] sm:$0xff]
        %v5603 = vld [vmem:[#allocation4 + $0x3a0] sm:$0xff]
        %v5604 = vld [vmem:[#allocation4 + $0x3a8] sm:$0xff]
        %v5605 = vld [vmem:[#allocation4 + $0x3b0] sm:$0xff]
        %v5606 = vld [vmem:[#allocation4 + $0x3b8] sm:$0xff]
        %v5607 = vld [vmem:[#allocation4 + $0x3c0] sm:$0xff]
        %v5608 = vld [vmem:[#allocation4 + $0x3c8] sm:$0xff]
        %v5609 = vld [vmem:[#allocation4 + $0x3d0] sm:$0xff]
        %v5610 = vld [vmem:[#allocation4 + $0x3d8] sm:$0xff]
        %v5611 = vld [vmem:[#allocation4 + $0x3e0] sm:$0xff]
        %v5612 = vld [vmem:[#allocation4 + $0x3e8] sm:$0xff]
        %v5613 = vld [vmem:[#allocation4 + $0x3f0] sm:$0xff]
        %v5614 = vld [vmem:[#allocation4 + $0x3f8] sm:$0xff]
        %v5615 = vpack.c.bf16 %v5395, %v5391
        %v5616 = vpack.c.bf16 %v5396, %v5392
        %v5617 = vpack.c.bf16 %v5397, %v5393
        %v5618 = vpack.c.bf16 %v5398, %v5394
        %v5619 = vpack.c.bf16 %v5403, %v5399
        %v5620 = vpack.c.bf16 %v5404, %v5400
        %v5621 = vpack.c.bf16 %v5405, %v5401
        %v5622 = vpack.c.bf16 %v5406, %v5402
        %v5623 = vpack.c.bf16 %v5411, %v5407
        %v5624 = vpack.c.bf16 %v5412, %v5408
        %v5625 = vpack.c.bf16 %v5413, %v5409
        %v5626 = vpack.c.bf16 %v5414, %v5410
        %v5627 = vpack.c.bf16 %v5419, %v5415
        %v5628 = vpack.c.bf16 %v5420, %v5416
        %v5629 = vpack.c.bf16 %v5421, %v5417
        %v5630 = vpack.c.bf16 %v5422, %v5418
        %v5631 = vpack.c.bf16 %v5427, %v5423
        %v5632 = vpack.c.bf16 %v5428, %v5424
        %v5633 = vpack.c.bf16 %v5429, %v5425
        %v5634 = vpack.c.bf16 %v5430, %v5426
        %v5635 = vpack.c.bf16 %v5435, %v5431
        %v5636 = vpack.c.bf16 %v5436, %v5432
        %v5637 = vpack.c.bf16 %v5437, %v5433
        %v5638 = vpack.c.bf16 %v5438, %v5434
        %v5639 = vpack.c.bf16 %v5443, %v5439
        %v5640 = vpack.c.bf16 %v5444, %v5440
        %v5641 = vpack.c.bf16 %v5445, %v5441
        %v5642 = vpack.c.bf16 %v5446, %v5442
        %v5643 = vpack.c.bf16 %v5451, %v5447
        %v5644 = vpack.c.bf16 %v5452, %v5448
        %v5645 = vpack.c.bf16 %v5453, %v5449
        %v5646 = vpack.c.bf16 %v5454, %v5450
        %v5647 = vld [vmem:[#allocation4 + $0x400] sm:$0xff]
        %v5648 = vld [vmem:[#allocation4 + $0x408] sm:$0xff]
        %v5649 = vld [vmem:[#allocation4 + $0x410] sm:$0xff]
        %v5650 = vld [vmem:[#allocation4 + $0x418] sm:$0xff]
        %v5651 = vld [vmem:[#allocation4 + $0x420] sm:$0xff]
        %v5652 = vld [vmem:[#allocation4 + $0x428] sm:$0xff]
        %v5653 = vld [vmem:[#allocation4 + $0x430] sm:$0xff]
        %v5654 = vld [vmem:[#allocation4 + $0x438] sm:$0xff]
        %v5655 = vld [vmem:[#allocation4 + $0x440] sm:$0xff]
        %v5656 = vld [vmem:[#allocation4 + $0x448] sm:$0xff]
        %v5657 = vld [vmem:[#allocation4 + $0x450] sm:$0xff]
        %v5658 = vld [vmem:[#allocation4 + $0x458] sm:$0xff]
        %v5659 = vld [vmem:[#allocation4 + $0x460] sm:$0xff]
        %v5660 = vld [vmem:[#allocation4 + $0x468] sm:$0xff]
        %v5661 = vld [vmem:[#allocation4 + $0x470] sm:$0xff]
        %v5662 = vld [vmem:[#allocation4 + $0x478] sm:$0xff]
        %v5663 = vld [vmem:[#allocation4 + $0x480] sm:$0xff]
        %v5664 = vld [vmem:[#allocation4 + $0x488] sm:$0xff]
        %v5665 = vld [vmem:[#allocation4 + $0x490] sm:$0xff]
        %v5666 = vld [vmem:[#allocation4 + $0x498] sm:$0xff]
        %v5667 = vld [vmem:[#allocation4 + $0x4a0] sm:$0xff]
        %v5668 = vld [vmem:[#allocation4 + $0x4a8] sm:$0xff]
        %v5669 = vld [vmem:[#allocation4 + $0x4b0] sm:$0xff]
        %v5670 = vld [vmem:[#allocation4 + $0x4b8] sm:$0xff]
        %v5671 = vld [vmem:[#allocation4 + $0x4c0] sm:$0xff]
        %v5672 = vld [vmem:[#allocation4 + $0x4c8] sm:$0xff]
        %v5673 = vld [vmem:[#allocation4 + $0x4d0] sm:$0xff]
        %v5674 = vld [vmem:[#allocation4 + $0x4d8] sm:$0xff]
        %v5675 = vld [vmem:[#allocation4 + $0x4e0] sm:$0xff]
        %v5676 = vld [vmem:[#allocation4 + $0x4e8] sm:$0xff]
        %v5677 = vld [vmem:[#allocation4 + $0x4f0] sm:$0xff]
        %v5678 = vld [vmem:[#allocation4 + $0x4f8] sm:$0xff]
        %v5679 = vld [vmem:[#allocation4 + $0x500] sm:$0xff]
        %v5680 = vld [vmem:[#allocation4 + $0x508] sm:$0xff]
        %v5681 = vld [vmem:[#allocation4 + $0x510] sm:$0xff]
        %v5682 = vld [vmem:[#allocation4 + $0x518] sm:$0xff]
        %v5683 = vld [vmem:[#allocation4 + $0x520] sm:$0xff]
        %v5684 = vld [vmem:[#allocation4 + $0x528] sm:$0xff]
        %v5685 = vld [vmem:[#allocation4 + $0x530] sm:$0xff]
        %v5686 = vld [vmem:[#allocation4 + $0x538] sm:$0xff]
        %v5687 = vld [vmem:[#allocation4 + $0x540] sm:$0xff]
        %v5688 = vld [vmem:[#allocation4 + $0x548] sm:$0xff]
        %v5689 = vld [vmem:[#allocation4 + $0x550] sm:$0xff]
        %v5690 = vld [vmem:[#allocation4 + $0x558] sm:$0xff]
        %v5691 = vld [vmem:[#allocation4 + $0x560] sm:$0xff]
        %v5692 = vld [vmem:[#allocation4 + $0x568] sm:$0xff]
        %v5693 = vld [vmem:[#allocation4 + $0x570] sm:$0xff]
        %v5694 = vld [vmem:[#allocation4 + $0x578] sm:$0xff]
        %v5695 = vld [vmem:[#allocation4 + $0x580] sm:$0xff]
        %v5696 = vld [vmem:[#allocation4 + $0x588] sm:$0xff]
        %v5697 = vld [vmem:[#allocation4 + $0x590] sm:$0xff]
        %v5698 = vld [vmem:[#allocation4 + $0x598] sm:$0xff]
        %v5699 = vld [vmem:[#allocation4 + $0x5a0] sm:$0xff]
        %v5700 = vld [vmem:[#allocation4 + $0x5a8] sm:$0xff]
        %v5701 = vld [vmem:[#allocation4 + $0x5b0] sm:$0xff]
        %v5702 = vld [vmem:[#allocation4 + $0x5b8] sm:$0xff]
        %v5703 = vld [vmem:[#allocation4 + $0x5c0] sm:$0xff]
        %v5704 = vld [vmem:[#allocation4 + $0x5c8] sm:$0xff]
        %v5705 = vld [vmem:[#allocation4 + $0x5d0] sm:$0xff]
        %v5706 = vld [vmem:[#allocation4 + $0x5d8] sm:$0xff]
        %v5707 = vld [vmem:[#allocation4 + $0x5e0] sm:$0xff]
        %v5708 = vld [vmem:[#allocation4 + $0x5e8] sm:$0xff]
        %v5709 = vld [vmem:[#allocation4 + $0x5f0] sm:$0xff]
        %v5710 = vld [vmem:[#allocation4 + $0x5f8] sm:$0xff]
        %v5711 = vld [vmem:[#allocation4 + $0x600] sm:$0xff]
        %v5712 = vld [vmem:[#allocation4 + $0x608] sm:$0xff]
        %v5713 = vld [vmem:[#allocation4 + $0x610] sm:$0xff]
        %v5714 = vld [vmem:[#allocation4 + $0x618] sm:$0xff]
        %v5715 = vld [vmem:[#allocation4 + $0x620] sm:$0xff]
        %v5716 = vld [vmem:[#allocation4 + $0x628] sm:$0xff]
        %v5717 = vld [vmem:[#allocation4 + $0x630] sm:$0xff]
        %v5718 = vld [vmem:[#allocation4 + $0x638] sm:$0xff]
        %v5719 = vld [vmem:[#allocation4 + $0x640] sm:$0xff]
        %v5720 = vld [vmem:[#allocation4 + $0x648] sm:$0xff]
        %v5721 = vld [vmem:[#allocation4 + $0x650] sm:$0xff]
        %v5722 = vld [vmem:[#allocation4 + $0x658] sm:$0xff]
        %v5723 = vld [vmem:[#allocation4 + $0x660] sm:$0xff]
        %v5724 = vld [vmem:[#allocation4 + $0x668] sm:$0xff]
        %v5725 = vld [vmem:[#allocation4 + $0x670] sm:$0xff]
        %v5726 = vld [vmem:[#allocation4 + $0x678] sm:$0xff]
        %v5727 = vld [vmem:[#allocation4 + $0x680] sm:$0xff]
        %v5728 = vld [vmem:[#allocation4 + $0x688] sm:$0xff]
        %v5729 = vld [vmem:[#allocation4 + $0x690] sm:$0xff]
        %v5730 = vld [vmem:[#allocation4 + $0x698] sm:$0xff]
        %v5731 = vld [vmem:[#allocation4 + $0x6a0] sm:$0xff]
        %v5732 = vld [vmem:[#allocation4 + $0x6a8] sm:$0xff]
        %v5733 = vld [vmem:[#allocation4 + $0x6b0] sm:$0xff]
        %v5734 = vld [vmem:[#allocation4 + $0x6b8] sm:$0xff]
        %v5735 = vld [vmem:[#allocation4 + $0x6c0] sm:$0xff]
        %v5736 = vld [vmem:[#allocation4 + $0x6c8] sm:$0xff]
        %v5737 = vld [vmem:[#allocation4 + $0x6d0] sm:$0xff]
        %v5738 = vld [vmem:[#allocation4 + $0x6d8] sm:$0xff]
        %v5739 = vld [vmem:[#allocation4 + $0x6e0] sm:$0xff]
        %v5740 = vld [vmem:[#allocation4 + $0x6e8] sm:$0xff]
        %v5741 = vld [vmem:[#allocation4 + $0x6f0] sm:$0xff]
        %v5742 = vld [vmem:[#allocation4 + $0x6f8] sm:$0xff]
        %v5743 = vld [vmem:[#allocation4 + $0x700] sm:$0xff]
        %v5744 = vld [vmem:[#allocation4 + $0x708] sm:$0xff]
        %v5745 = vld [vmem:[#allocation4 + $0x710] sm:$0xff]
        %v5746 = vld [vmem:[#allocation4 + $0x718] sm:$0xff]
        %v5747 = vld [vmem:[#allocation4 + $0x720] sm:$0xff]
        %v5748 = vld [vmem:[#allocation4 + $0x728] sm:$0xff]
        %v5749 = vld [vmem:[#allocation4 + $0x730] sm:$0xff]
        %v5750 = vld [vmem:[#allocation4 + $0x738] sm:$0xff]
        %v5751 = vld [vmem:[#allocation4 + $0x740] sm:$0xff]
        %v5752 = vld [vmem:[#allocation4 + $0x748] sm:$0xff]
        %v5753 = vld [vmem:[#allocation4 + $0x750] sm:$0xff]
        %v5754 = vld [vmem:[#allocation4 + $0x758] sm:$0xff]
        %v5755 = vld [vmem:[#allocation4 + $0x760] sm:$0xff]
        %v5756 = vld [vmem:[#allocation4 + $0x768] sm:$0xff]
        %v5757 = vld [vmem:[#allocation4 + $0x770] sm:$0xff]
        %v5758 = vld [vmem:[#allocation4 + $0x778] sm:$0xff]
        %v5759 = vld [vmem:[#allocation4 + $0x780] sm:$0xff]
        %v5760 = vld [vmem:[#allocation4 + $0x788] sm:$0xff]
        %v5761 = vld [vmem:[#allocation4 + $0x790] sm:$0xff]
        %v5762 = vld [vmem:[#allocation4 + $0x798] sm:$0xff]
        %v5763 = vld [vmem:[#allocation4 + $0x7a0] sm:$0xff]
        %v5764 = vld [vmem:[#allocation4 + $0x7a8] sm:$0xff]
        %v5765 = vld [vmem:[#allocation4 + $0x7b0] sm:$0xff]
        %v5766 = vld [vmem:[#allocation4 + $0x7b8] sm:$0xff]
        %v5767 = vld [vmem:[#allocation4 + $0x7c0] sm:$0xff]
        %v5768 = vld [vmem:[#allocation4 + $0x7c8] sm:$0xff]
        %v5769 = vld [vmem:[#allocation4 + $0x7d0] sm:$0xff]
        %v5770 = vld [vmem:[#allocation4 + $0x7d8] sm:$0xff]
        %v5771 = vld [vmem:[#allocation4 + $0x7e0] sm:$0xff]
        %v5772 = vld [vmem:[#allocation4 + $0x7e8] sm:$0xff]
        %v5773 = vld [vmem:[#allocation4 + $0x7f0] sm:$0xff]
        %v5774 = vld [vmem:[#allocation4 + $0x7f8] sm:$0xff]
        %v5903 = vunpack.c.l.b16 %v5647
        %v5904 = vunpack.c.h.b16 %v5647
        %v5905 = vunpack.c.l.b16 %v5648
        %v5906 = vunpack.c.h.b16 %v5648
        %v5907 = vunpack.c.l.b16 %v5649
        %v5908 = vunpack.c.h.b16 %v5649
        %v5909 = vunpack.c.l.b16 %v5650
        %v5910 = vunpack.c.h.b16 %v5650
        %v5911 = vunpack.c.l.b16 %v5651
        %v5912 = vunpack.c.h.b16 %v5651
        %v5913 = vunpack.c.l.b16 %v5652
        %v5914 = vunpack.c.h.b16 %v5652
        %v5915 = vunpack.c.l.b16 %v5653
        %v5916 = vunpack.c.h.b16 %v5653
        %v5917 = vunpack.c.l.b16 %v5654
        %v5918 = vunpack.c.h.b16 %v5654
        %v5919 = vunpack.c.l.b16 %v5655
        %v5920 = vunpack.c.h.b16 %v5655
        %v5921 = vunpack.c.l.b16 %v5656
        %v5922 = vunpack.c.h.b16 %v5656
        %v5923 = vunpack.c.l.b16 %v5657
        %v5924 = vunpack.c.h.b16 %v5657
        %v5925 = vunpack.c.l.b16 %v5658
        %v5926 = vunpack.c.h.b16 %v5658
        %v5927 = vunpack.c.l.b16 %v5659
        %v5928 = vunpack.c.h.b16 %v5659
        %v5929 = vunpack.c.l.b16 %v5660
        %v5930 = vunpack.c.h.b16 %v5660
        %v5931 = vunpack.c.l.b16 %v5661
        %v5932 = vunpack.c.h.b16 %v5661
        %v5933 = vunpack.c.l.b16 %v5662
        %v5934 = vunpack.c.h.b16 %v5662
        %v5935 = vunpack.c.l.b16 %v5663
        %v5936 = vunpack.c.h.b16 %v5663
        %v5937 = vunpack.c.l.b16 %v5664
        %v5938 = vunpack.c.h.b16 %v5664
        %v5939 = vunpack.c.l.b16 %v5665
        %v5940 = vunpack.c.h.b16 %v5665
        %v5941 = vunpack.c.l.b16 %v5666
        %v5942 = vunpack.c.h.b16 %v5666
        %v5943 = vunpack.c.l.b16 %v5667
        %v5944 = vunpack.c.h.b16 %v5667
        %v5945 = vunpack.c.l.b16 %v5668
        %v5946 = vunpack.c.h.b16 %v5668
        %v5947 = vunpack.c.l.b16 %v5669
        %v5948 = vunpack.c.h.b16 %v5669
        %v5949 = vunpack.c.l.b16 %v5670
        %v5950 = vunpack.c.h.b16 %v5670
        %v5951 = vunpack.c.l.b16 %v5671
        %v5952 = vunpack.c.h.b16 %v5671
        %v5953 = vunpack.c.l.b16 %v5672
        %v5954 = vunpack.c.h.b16 %v5672
        %v5955 = vunpack.c.l.b16 %v5673
        %v5956 = vunpack.c.h.b16 %v5673
        %v5957 = vunpack.c.l.b16 %v5674
        %v5958 = vunpack.c.h.b16 %v5674
        %v5959 = vunpack.c.l.b16 %v5675
        %v5960 = vunpack.c.h.b16 %v5675
        %v5961 = vunpack.c.l.b16 %v5676
        %v5962 = vunpack.c.h.b16 %v5676
        %v5963 = vunpack.c.l.b16 %v5677
        %v5964 = vunpack.c.h.b16 %v5677
        %v5965 = vunpack.c.l.b16 %v5678
        %v5966 = vunpack.c.h.b16 %v5678
        %v5967 = vunpack.c.l.b16 %v5679
        %v5968 = vunpack.c.h.b16 %v5679
        %v5969 = vunpack.c.l.b16 %v5680
        %v5970 = vunpack.c.h.b16 %v5680
        %v5971 = vunpack.c.l.b16 %v5681
        %v5972 = vunpack.c.h.b16 %v5681
        %v5973 = vunpack.c.l.b16 %v5682
        %v5974 = vunpack.c.h.b16 %v5682
        %v5975 = vunpack.c.l.b16 %v5683
        %v5976 = vunpack.c.h.b16 %v5683
        %v5977 = vunpack.c.l.b16 %v5684
        %v5978 = vunpack.c.h.b16 %v5684
        %v5979 = vunpack.c.l.b16 %v5685
        %v5980 = vunpack.c.h.b16 %v5685
        %v5981 = vunpack.c.l.b16 %v5686
        %v5982 = vunpack.c.h.b16 %v5686
        %v5983 = vunpack.c.l.b16 %v5687
        %v5984 = vunpack.c.h.b16 %v5687
        %v5985 = vunpack.c.l.b16 %v5688
        %v5986 = vunpack.c.h.b16 %v5688
        %v5987 = vunpack.c.l.b16 %v5689
        %v5988 = vunpack.c.h.b16 %v5689
        %v5989 = vunpack.c.l.b16 %v5690
        %v5990 = vunpack.c.h.b16 %v5690
        %v5991 = vunpack.c.l.b16 %v5691
        %v5992 = vunpack.c.h.b16 %v5691
        %v5993 = vunpack.c.l.b16 %v5692
        %v5994 = vunpack.c.h.b16 %v5692
        %v5995 = vunpack.c.l.b16 %v5693
        %v5996 = vunpack.c.h.b16 %v5693
        %v5997 = vunpack.c.l.b16 %v5694
        %v5998 = vunpack.c.h.b16 %v5694
        %v5999 = vunpack.c.l.b16 %v5695
        %v6000 = vunpack.c.h.b16 %v5695
        %v6001 = vunpack.c.l.b16 %v5696
        %v6002 = vunpack.c.h.b16 %v5696
        %v6003 = vunpack.c.l.b16 %v5697
        %v6004 = vunpack.c.h.b16 %v5697
        %v6005 = vunpack.c.l.b16 %v5698
        %v6006 = vunpack.c.h.b16 %v5698
        %v6007 = vunpack.c.l.b16 %v5699
        %v6008 = vunpack.c.h.b16 %v5699
        %v6009 = vunpack.c.l.b16 %v5700
        %v6010 = vunpack.c.h.b16 %v5700
        %v6011 = vunpack.c.l.b16 %v5701
        %v6012 = vunpack.c.h.b16 %v5701
        %v6013 = vunpack.c.l.b16 %v5702
        %v6014 = vunpack.c.h.b16 %v5702
        %v6015 = vunpack.c.l.b16 %v5703
        %v6016 = vunpack.c.h.b16 %v5703
        %v6017 = vunpack.c.l.b16 %v5704
        %v6018 = vunpack.c.h.b16 %v5704
        %v6019 = vunpack.c.l.b16 %v5705
        %v6020 = vunpack.c.h.b16 %v5705
        %v6021 = vunpack.c.l.b16 %v5706
        %v6022 = vunpack.c.h.b16 %v5706
        %v6023 = vunpack.c.l.b16 %v5707
        %v6024 = vunpack.c.h.b16 %v5707
        %v6025 = vunpack.c.l.b16 %v5708
        %v6026 = vunpack.c.h.b16 %v5708
        %v6027 = vunpack.c.l.b16 %v5709
        %v6028 = vunpack.c.h.b16 %v5709
        %v6029 = vunpack.c.l.b16 %v5710
        %v6030 = vunpack.c.h.b16 %v5710
        %v6031 = vunpack.c.l.b16 %v5711
        %v6032 = vunpack.c.h.b16 %v5711
        %v6033 = vunpack.c.l.b16 %v5712
        %v6034 = vunpack.c.h.b16 %v5712
        %v6035 = vunpack.c.l.b16 %v5713
        %v6036 = vunpack.c.h.b16 %v5713
        %v6037 = vunpack.c.l.b16 %v5714
        %v6038 = vunpack.c.h.b16 %v5714
        %v6039 = vunpack.c.l.b16 %v5715
        %v6040 = vunpack.c.h.b16 %v5715
        %v6041 = vunpack.c.l.b16 %v5716
        %v6042 = vunpack.c.h.b16 %v5716
        %v6043 = vunpack.c.l.b16 %v5717
        %v6044 = vunpack.c.h.b16 %v5717
        %v6045 = vunpack.c.l.b16 %v5718
        %v6046 = vunpack.c.h.b16 %v5718
        %v6047 = vunpack.c.l.b16 %v5719
        %v6048 = vunpack.c.h.b16 %v5719
        %v6049 = vunpack.c.l.b16 %v5720
        %v6050 = vunpack.c.h.b16 %v5720
        %v6051 = vunpack.c.l.b16 %v5721
        %v6052 = vunpack.c.h.b16 %v5721
        %v6053 = vunpack.c.l.b16 %v5722
        %v6054 = vunpack.c.h.b16 %v5722
        %v6055 = vunpack.c.l.b16 %v5723
        %v6056 = vunpack.c.h.b16 %v5723
        %v6057 = vunpack.c.l.b16 %v5724
        %v6058 = vunpack.c.h.b16 %v5724
        %v6059 = vunpack.c.l.b16 %v5725
        %v6060 = vunpack.c.h.b16 %v5725
        %v6061 = vunpack.c.l.b16 %v5726
        %v6062 = vunpack.c.h.b16 %v5726
        %v6063 = vunpack.c.l.b16 %v5727
        %v6064 = vunpack.c.h.b16 %v5727
        %v6065 = vunpack.c.l.b16 %v5728
        %v6066 = vunpack.c.h.b16 %v5728
        %v6067 = vunpack.c.l.b16 %v5729
        %v6068 = vunpack.c.h.b16 %v5729
        %v6069 = vunpack.c.l.b16 %v5730
        %v6070 = vunpack.c.h.b16 %v5730
        %v6071 = vunpack.c.l.b16 %v5731
        %v6072 = vunpack.c.h.b16 %v5731
        %v6073 = vunpack.c.l.b16 %v5732
        %v6074 = vunpack.c.h.b16 %v5732
        %v6075 = vunpack.c.l.b16 %v5733
        %v6076 = vunpack.c.h.b16 %v5733
        %v6077 = vunpack.c.l.b16 %v5734
        %v6078 = vunpack.c.h.b16 %v5734
        %v6079 = vunpack.c.l.b16 %v5735
        %v6080 = vunpack.c.h.b16 %v5735
        %v6081 = vunpack.c.l.b16 %v5736
        %v6082 = vunpack.c.h.b16 %v5736
        %v6083 = vunpack.c.l.b16 %v5737
        %v6084 = vunpack.c.h.b16 %v5737
        %v6085 = vunpack.c.l.b16 %v5738
        %v6086 = vunpack.c.h.b16 %v5738
        %v6087 = vunpack.c.l.b16 %v5739
        %v6088 = vunpack.c.h.b16 %v5739
        %v6089 = vunpack.c.l.b16 %v5740
        %v6090 = vunpack.c.h.b16 %v5740
        %v6091 = vunpack.c.l.b16 %v5741
        %v6092 = vunpack.c.h.b16 %v5741
        %v6093 = vunpack.c.l.b16 %v5742
        %v6094 = vunpack.c.h.b16 %v5742
        %v6095 = vunpack.c.l.b16 %v5743
        %v6096 = vunpack.c.h.b16 %v5743
        %v6097 = vunpack.c.l.b16 %v5744
        %v6098 = vunpack.c.h.b16 %v5744
        %v6099 = vunpack.c.l.b16 %v5745
        %v6100 = vunpack.c.h.b16 %v5745
        %v6101 = vunpack.c.l.b16 %v5746
        %v6102 = vunpack.c.h.b16 %v5746
        %v6103 = vunpack.c.l.b16 %v5747
        %v6104 = vunpack.c.h.b16 %v5747
        %v6105 = vunpack.c.l.b16 %v5748
        %v6106 = vunpack.c.h.b16 %v5748
        %v6107 = vunpack.c.l.b16 %v5749
        %v6108 = vunpack.c.h.b16 %v5749
        %v6109 = vunpack.c.l.b16 %v5750
        %v6110 = vunpack.c.h.b16 %v5750
        %v6111 = vunpack.c.l.b16 %v5751
        %v6112 = vunpack.c.h.b16 %v5751
        %v6113 = vunpack.c.l.b16 %v5752
        %v6114 = vunpack.c.h.b16 %v5752
        %v6115 = vunpack.c.l.b16 %v5753
        %v6116 = vunpack.c.h.b16 %v5753
        %v6117 = vunpack.c.l.b16 %v5754
        %v6118 = vunpack.c.h.b16 %v5754
        %v6119 = vunpack.c.l.b16 %v5755
        %v6120 = vunpack.c.h.b16 %v5755
        %v6121 = vunpack.c.l.b16 %v5756
        %v6122 = vunpack.c.h.b16 %v5756
        %v6123 = vunpack.c.l.b16 %v5757
        %v6124 = vunpack.c.h.b16 %v5757
        %v6125 = vunpack.c.l.b16 %v5758
        %v6126 = vunpack.c.h.b16 %v5758
        %v6127 = vunpack.c.l.b16 %v5759
        %v6128 = vunpack.c.h.b16 %v5759
        %v6129 = vunpack.c.l.b16 %v5760
        %v6130 = vunpack.c.h.b16 %v5760
        %v6131 = vunpack.c.l.b16 %v5761
        %v6132 = vunpack.c.h.b16 %v5761
        %v6133 = vunpack.c.l.b16 %v5762
        %v6134 = vunpack.c.h.b16 %v5762
        %v6135 = vunpack.c.l.b16 %v5763
        %v6136 = vunpack.c.h.b16 %v5763
        %v6137 = vunpack.c.l.b16 %v5764
        %v6138 = vunpack.c.h.b16 %v5764
        %v6139 = vunpack.c.l.b16 %v5765
        %v6140 = vunpack.c.h.b16 %v5765
        %v6141 = vunpack.c.l.b16 %v5766
        %v6142 = vunpack.c.h.b16 %v5766
        %v6143 = vunpack.c.l.b16 %v5767
        %v6144 = vunpack.c.h.b16 %v5767
        %v6145 = vunpack.c.l.b16 %v5768
        %v6146 = vunpack.c.h.b16 %v5768
        %v6147 = vunpack.c.l.b16 %v5769
        %v6148 = vunpack.c.h.b16 %v5769
        %v6149 = vunpack.c.l.b16 %v5770
        %v6150 = vunpack.c.h.b16 %v5770
        %v6151 = vunpack.c.l.b16 %v5771
        %v6152 = vunpack.c.h.b16 %v5771
        %v6153 = vunpack.c.l.b16 %v5772
        %v6154 = vunpack.c.h.b16 %v5772
        %v6155 = vunpack.c.l.b16 %v5773
        %v6156 = vunpack.c.h.b16 %v5773
        %v6157 = vunpack.c.l.b16 %v5774
        %v6158 = vunpack.c.h.b16 %v5774
        %v6159 = vpack.c.b16 %v5907, %v5903
        %v6160 = vpack.c.b16 %v5908, %v5904
        %v6161 = vpack.c.b16 %v5909, %v5905
        %v6162 = vpack.c.b16 %v5910, %v5906
        %v6163 = vpack.c.b16 %v5915, %v5911
        %v6164 = vpack.c.b16 %v5916, %v5912
        %v6165 = vpack.c.b16 %v5917, %v5913
        %v6166 = vpack.c.b16 %v5918, %v5914
        %v6167 = vpack.c.b16 %v5923, %v5919
        %v6168 = vpack.c.b16 %v5924, %v5920
        %v6169 = vpack.c.b16 %v5925, %v5921
        %v6170 = vpack.c.b16 %v5926, %v5922
        %v6171 = vpack.c.b16 %v5931, %v5927
        %v6172 = vpack.c.b16 %v5932, %v5928
        %v6173 = vpack.c.b16 %v5933, %v5929
        %v6174 = vpack.c.b16 %v5934, %v5930
        %v6175 = vpack.c.b16 %v5939, %v5935
        %v6176 = vpack.c.b16 %v5940, %v5936
        %v6177 = vpack.c.b16 %v5941, %v5937
        %v6178 = vpack.c.b16 %v5942, %v5938
        %v6179 = vpack.c.b16 %v5947, %v5943
        %v6180 = vpack.c.b16 %v5948, %v5944
        %v6181 = vpack.c.b16 %v5949, %v5945
        %v6182 = vpack.c.b16 %v5950, %v5946
        %v6183 = vpack.c.b16 %v5955, %v5951
        %v6184 = vpack.c.b16 %v5956, %v5952
        %v6185 = vpack.c.b16 %v5957, %v5953
        %v6186 = vpack.c.b16 %v5958, %v5954
        %v6187 = vpack.c.b16 %v5963, %v5959
        %v6188 = vpack.c.b16 %v5964, %v5960
        %v6189 = vpack.c.b16 %v5965, %v5961
        %v6190 = vpack.c.b16 %v5966, %v5962
        %v6191 = vpack.c.b16 %v5971, %v5967
        %v6192 = vpack.c.b16 %v5972, %v5968
        %v6193 = vpack.c.b16 %v5973, %v5969
        %v6194 = vpack.c.b16 %v5974, %v5970
        %v6195 = vpack.c.b16 %v5979, %v5975
        %v6196 = vpack.c.b16 %v5980, %v5976
        %v6197 = vpack.c.b16 %v5981, %v5977
        %v6198 = vpack.c.b16 %v5982, %v5978
        %v6199 = vpack.c.b16 %v5987, %v5983
        %v6200 = vpack.c.b16 %v5988, %v5984
        %v6201 = vpack.c.b16 %v5989, %v5985
        %v6202 = vpack.c.b16 %v5990, %v5986
        %v6203 = vpack.c.b16 %v5995, %v5991
        %v6204 = vpack.c.b16 %v5996, %v5992
        %v6205 = vpack.c.b16 %v5997, %v5993
        %v6206 = vpack.c.b16 %v5998, %v5994
        %v6207 = vpack.c.b16 %v6003, %v5999
        %v6208 = vpack.c.b16 %v6004, %v6000
        %v6209 = vpack.c.b16 %v6005, %v6001
        %v6210 = vpack.c.b16 %v6006, %v6002
        %v6211 = vpack.c.b16 %v6011, %v6007
        %v6212 = vpack.c.b16 %v6012, %v6008
        %v6213 = vpack.c.b16 %v6013, %v6009
        %v6214 = vpack.c.b16 %v6014, %v6010
        %v6215 = vpack.c.b16 %v6019, %v6015
        %v6216 = vpack.c.b16 %v6020, %v6016
        %v6217 = vpack.c.b16 %v6021, %v6017
        %v6218 = vpack.c.b16 %v6022, %v6018
        %v6219 = vpack.c.b16 %v6027, %v6023
        %v6220 = vpack.c.b16 %v6028, %v6024
        %v6221 = vpack.c.b16 %v6029, %v6025
        %v6222 = vpack.c.b16 %v6030, %v6026
        %v6223 = vpack.c.b16 %v6035, %v6031
        %v6224 = vpack.c.b16 %v6036, %v6032
        %v6225 = vpack.c.b16 %v6037, %v6033
        %v6226 = vpack.c.b16 %v6038, %v6034
        %v6227 = vpack.c.b16 %v6043, %v6039
        %v6228 = vpack.c.b16 %v6044, %v6040
        %v6229 = vpack.c.b16 %v6045, %v6041
        %v6230 = vpack.c.b16 %v6046, %v6042
        %v6231 = vpack.c.b16 %v6051, %v6047
        %v6232 = vpack.c.b16 %v6052, %v6048
        %v6233 = vpack.c.b16 %v6053, %v6049
        %v6234 = vpack.c.b16 %v6054, %v6050
        %v6235 = vpack.c.b16 %v6059, %v6055
        %v6236 = vpack.c.b16 %v6060, %v6056
        %v6237 = vpack.c.b16 %v6061, %v6057
        %v6238 = vpack.c.b16 %v6062, %v6058
        %v6239 = vpack.c.b16 %v6067, %v6063
        %v6240 = vpack.c.b16 %v6068, %v6064
        %v6241 = vpack.c.b16 %v6069, %v6065
        %v6242 = vpack.c.b16 %v6070, %v6066
        %v6243 = vpack.c.b16 %v6075, %v6071
        %v6244 = vpack.c.b16 %v6076, %v6072
        %v6245 = vpack.c.b16 %v6077, %v6073
        %v6246 = vpack.c.b16 %v6078, %v6074
        %v6247 = vpack.c.b16 %v6083, %v6079
        %v6248 = vpack.c.b16 %v6084, %v6080
        %v6249 = vpack.c.b16 %v6085, %v6081
        %v6250 = vpack.c.b16 %v6086, %v6082
        %v6251 = vpack.c.b16 %v6091, %v6087
        %v6252 = vpack.c.b16 %v6092, %v6088
        %v6253 = vpack.c.b16 %v6093, %v6089
        %v6254 = vpack.c.b16 %v6094, %v6090
        %v6255 = vpack.c.b16 %v6099, %v6095
        %v6256 = vpack.c.b16 %v6100, %v6096
        %v6257 = vpack.c.b16 %v6101, %v6097
        %v6258 = vpack.c.b16 %v6102, %v6098
        %v6259 = vpack.c.b16 %v6107, %v6103
        %v6260 = vpack.c.b16 %v6108, %v6104
        %v6261 = vpack.c.b16 %v6109, %v6105
        %v6262 = vpack.c.b16 %v6110, %v6106
        %v6263 = vpack.c.b16 %v6115, %v6111
        %v6264 = vpack.c.b16 %v6116, %v6112
        %v6265 = vpack.c.b16 %v6117, %v6113
        %v6266 = vpack.c.b16 %v6118, %v6114
        %v6267 = vpack.c.b16 %v6123, %v6119
        %v6268 = vpack.c.b16 %v6124, %v6120
        %v6269 = vpack.c.b16 %v6125, %v6121
        %v6270 = vpack.c.b16 %v6126, %v6122
        %v6271 = vpack.c.b16 %v6131, %v6127
        %v6272 = vpack.c.b16 %v6132, %v6128
        %v6273 = vpack.c.b16 %v6133, %v6129
        %v6274 = vpack.c.b16 %v6134, %v6130
        %v6275 = vpack.c.b16 %v6139, %v6135
        %v6276 = vpack.c.b16 %v6140, %v6136
        %v6277 = vpack.c.b16 %v6141, %v6137
        %v6278 = vpack.c.b16 %v6142, %v6138
        %v6279 = vpack.c.b16 %v6147, %v6143
        %v6280 = vpack.c.b16 %v6148, %v6144
        %v6281 = vpack.c.b16 %v6149, %v6145
        %v6282 = vpack.c.b16 %v6150, %v6146
        %v6283 = vpack.c.b16 %v6155, %v6151
        %v6284 = vpack.c.b16 %v6156, %v6152
        %v6285 = vpack.c.b16 %v6157, %v6153
        %v6286 = vpack.c.b16 %v6158, %v6154
        %6415 = vmatprep.subr.bf16.mxu0 %v6188
        %6416 = vmatpush1.bf16.msra.mxu0 %v6187
        %6417 = vmatprep.subr.bf16.mxu0 %v6184
        %6418 = vmatpush1.bf16.msra.mxu0 %v6183
        %6419 = vmatprep.subr.bf16.mxu0 %v6180
        %6420 = vmatpush1.bf16.msra.mxu0 %v6179
        %6421 = vmatprep.subr.bf16.mxu0 %v6176
        %6422 = vmatpush1.bf16.msra.mxu0 %v6175
        %6423 = vmatprep.subr.bf16.mxu0 %v6172
        %6424 = vmatpush1.bf16.msra.mxu0 %v6171
        %6425 = vmatprep.subr.bf16.mxu0 %v6168
        %6426 = vmatpush1.bf16.msra.mxu0 %v6167
        %6427 = vmatprep.subr.bf16.mxu0 %v6164
        %6428 = vmatpush1.bf16.msra.mxu0 %v6163
        %6429 = vmatprep.subr.bf16.mxu0 %v6160
        %6430 = vmatpush1.bf16.msra.mxu0 %v6159
        %6431 = vmatprep.subr.bf16.mxu0 %v6220
        %6432 = vmatpush2.bf16.msra.mxu0 %v6219
        %6433 = vmatprep.subr.bf16.mxu0 %v6216
        %6434 = vmatpush2.bf16.msra.mxu0 %v6215
        %6435 = vmatprep.subr.bf16.mxu0 %v6212
        %6436 = vmatpush2.bf16.msra.mxu0 %v6211
        %6437 = vmatprep.subr.bf16.mxu0 %v6208
        %6438 = vmatpush2.bf16.msra.mxu0 %v6207
        %6439 = vmatprep.subr.bf16.mxu0 %v6204
        %6440 = vmatpush2.bf16.msra.mxu0 %v6203
        %6441 = vmatprep.subr.bf16.mxu0 %v6200
        %6442 = vmatpush2.bf16.msra.mxu0 %v6199
        %6443 = vmatprep.subr.bf16.mxu0 %v6196
        %6444 = vmatpush2.bf16.msra.mxu0 %v6195
        %6445 = vmatprep.subr.bf16.mxu0 %v6192
        %6446 = vmatpush2.bf16.msra.mxu0 %v6191
        %6447 = vmatprep.mubr.bf16.mxu0 %v5616
        %6448 = vmatmul.mubr.bf16.gmra.mxu0 %v5615
        %v6449 = vpop.f32.mrf.mxu0
        %v6450 = vadd.f32 0.0, %v6449
        %v6451 = vpop.f32.mrf.mxu0
        %v6452 = vadd.f32 0.0, %v6451
        %v6453 = vpop.f32.mrf.mxu0
        %v6454 = vadd.f32 0.0, %v6453
        %v6455 = vpop.f32.mrf.mxu0
        %v6456 = vadd.f32 0.0, %v6455
        %6457 = vmatprep.mubr.bf16.mxu0 %v5620
        %6458 = vmatmul.mubr.bf16.gmra.mxu0 %v5619
        %v6459 = vpop.f32.mrf.mxu0
        %v6460 = vadd.f32 0.0, %v6459
        %v6461 = vpop.f32.mrf.mxu0
        %v6462 = vadd.f32 0.0, %v6461
        %v6463 = vpop.f32.mrf.mxu0
        %v6464 = vadd.f32 0.0, %v6463
        %v6465 = vpop.f32.mrf.mxu0
        %v6466 = vadd.f32 0.0, %v6465
        %6467 = vmatprep.mubr.bf16.mxu0 %v5624
        %6468 = vmatmul.mubr.bf16.gmra.mxu0 %v5623
        %v6469 = vpop.f32.mrf.mxu0
        %v6470 = vadd.f32 0.0, %v6469
        %v6471 = vpop.f32.mrf.mxu0
        %v6472 = vadd.f32 0.0, %v6471
        %v6473 = vpop.f32.mrf.mxu0
        %v6474 = vadd.f32 0.0, %v6473
        %v6475 = vpop.f32.mrf.mxu0
        %v6476 = vadd.f32 0.0, %v6475
        %6477 = vmatprep.mubr.bf16.mxu0 %v5628
        %6478 = vmatmul.mubr.bf16.gmra.mxu0 %v5627
        %v6479 = vpop.f32.mrf.mxu0
        %v6480 = vadd.f32 0.0, %v6479
        %v6481 = vpop.f32.mrf.mxu0
        %v6482 = vadd.f32 0.0, %v6481
        %v6483 = vpop.f32.mrf.mxu0
        %v6484 = vadd.f32 0.0, %v6483
        %v6485 = vpop.f32.mrf.mxu0
        %v6486 = vadd.f32 0.0, %v6485
        %6487 = vmatprep.mubr.bf16.mxu0 %v5632
        %6488 = vmatmul.mubr.bf16.gmra.mxu0 %v5631
        %v6489 = vpop.f32.mrf.mxu0
        %v6490 = vadd.f32 0.0, %v6489
        %v6491 = vpop.f32.mrf.mxu0
        %v6492 = vadd.f32 0.0, %v6491
        %v6493 = vpop.f32.mrf.mxu0
        %v6494 = vadd.f32 0.0, %v6493
        %v6495 = vpop.f32.mrf.mxu0
        %v6496 = vadd.f32 0.0, %v6495
        %6497 = vmatprep.mubr.bf16.mxu0 %v5636
        %6498 = vmatmul.mubr.bf16.gmra.mxu0 %v5635
        %v6499 = vpop.f32.mrf.mxu0
        %v6500 = vadd.f32 0.0, %v6499
        %v6501 = vpop.f32.mrf.mxu0
        %v6502 = vadd.f32 0.0, %v6501
        %v6503 = vpop.f32.mrf.mxu0
        %v6504 = vadd.f32 0.0, %v6503
        %v6505 = vpop.f32.mrf.mxu0
        %v6506 = vadd.f32 0.0, %v6505
        %6507 = vmatprep.mubr.bf16.mxu0 %v5640
        %6508 = vmatmul.mubr.bf16.gmra.mxu0 %v5639
        %v6509 = vpop.f32.mrf.mxu0
        %v6510 = vadd.f32 0.0, %v6509
        %v6511 = vpop.f32.mrf.mxu0
        %v6512 = vadd.f32 0.0, %v6511
        %v6513 = vpop.f32.mrf.mxu0
        %v6514 = vadd.f32 0.0, %v6513
        %v6515 = vpop.f32.mrf.mxu0
        %v6516 = vadd.f32 0.0, %v6515
        %6517 = vmatprep.mubr.bf16.mxu0 %v5644
        %6518 = vmatmul.mubr.bf16.gmra.mxu0 %v5643
        %v6519 = vpop.f32.mrf.mxu0
        %v6520 = vadd.f32 0.0, %v6519
        %v6521 = vpop.f32.mrf.mxu0
        %v6522 = vadd.f32 0.0, %v6521
        %v6523 = vpop.f32.mrf.mxu0
        %v6524 = vadd.f32 0.0, %v6523
        %v6525 = vpop.f32.mrf.mxu0
        %v6526 = vadd.f32 0.0, %v6525
        %6527 = vdwg.mxu0
        %6528 = vmatprep.subr.bf16.mxu0 %v6252
        %6529 = vmatpush1.bf16.msra.mxu0 %v6251
        %6530 = vmatprep.subr.bf16.mxu0 %v6248
        %6531 = vmatpush1.bf16.msra.mxu0 %v6247
        %6532 = vmatprep.subr.bf16.mxu0 %v6244
        %6533 = vmatpush1.bf16.msra.mxu0 %v6243
        %6534 = vmatprep.subr.bf16.mxu0 %v6240
        %6535 = vmatpush1.bf16.msra.mxu0 %v6239
        %6536 = vmatprep.subr.bf16.mxu0 %v6236
        %6537 = vmatpush1.bf16.msra.mxu0 %v6235
        %6538 = vmatprep.subr.bf16.mxu0 %v6232
        %6539 = vmatpush1.bf16.msra.mxu0 %v6231
        %6540 = vmatprep.subr.bf16.mxu0 %v6228
        %6541 = vmatpush1.bf16.msra.mxu0 %v6227
        %6542 = vmatprep.subr.bf16.mxu0 %v6224
        %6543 = vmatpush1.bf16.msra.mxu0 %v6223
        %6544 = vmatprep.subr.bf16.mxu0 %v6284
        %6545 = vmatpush2.bf16.msra.mxu0 %v6283
        %6546 = vmatprep.subr.bf16.mxu0 %v6280
        %6547 = vmatpush2.bf16.msra.mxu0 %v6279
        %6548 = vmatprep.subr.bf16.mxu0 %v6276
        %6549 = vmatpush2.bf16.msra.mxu0 %v6275
        %6550 = vmatprep.subr.bf16.mxu0 %v6272
        %6551 = vmatpush2.bf16.msra.mxu0 %v6271
        %6552 = vmatprep.subr.bf16.mxu0 %v6268
        %6553 = vmatpush2.bf16.msra.mxu0 %v6267
        %6554 = vmatprep.subr.bf16.mxu0 %v6264
        %6555 = vmatpush2.bf16.msra.mxu0 %v6263
        %6556 = vmatprep.subr.bf16.mxu0 %v6260
        %6557 = vmatpush2.bf16.msra.mxu0 %v6259
        %6558 = vmatprep.subr.bf16.mxu0 %v6256
        %6559 = vmatpush2.bf16.msra.mxu0 %v6255
        %6560 = vmatprep.mubr.bf16.mxu0 %v5618
        %6561 = vmatmul.mubr.bf16.gmra.mxu0 %v5617
        %v6562 = vpop.f32.mrf.mxu0
        %v6563 = vadd.f32 %v6450, %v6562
        %v6564 = vpop.f32.mrf.mxu0
        %v6565 = vadd.f32 %v6452, %v6564
        %v6566 = vpop.f32.mrf.mxu0
        %v6567 = vadd.f32 %v6454, %v6566
        %v6568 = vpop.f32.mrf.mxu0
        %v6569 = vadd.f32 %v6456, %v6568
        %6570 = vmatprep.mubr.bf16.mxu0 %v5622
        %6571 = vmatmul.mubr.bf16.gmra.mxu0 %v5621
        %v6572 = vpop.f32.mrf.mxu0
        %v6573 = vadd.f32 %v6460, %v6572
        %v6574 = vpop.f32.mrf.mxu0
        %v6575 = vadd.f32 %v6462, %v6574
        %v6576 = vpop.f32.mrf.mxu0
        %v6577 = vadd.f32 %v6464, %v6576
        %v6578 = vpop.f32.mrf.mxu0
        %v6579 = vadd.f32 %v6466, %v6578
        %6580 = vmatprep.mubr.bf16.mxu0 %v5626
        %6581 = vmatmul.mubr.bf16.gmra.mxu0 %v5625
        %v6582 = vpop.f32.mrf.mxu0
        %v6583 = vadd.f32 %v6470, %v6582
        %v6584 = vpop.f32.mrf.mxu0
        %v6585 = vadd.f32 %v6472, %v6584
        %v6586 = vpop.f32.mrf.mxu0
        %v6587 = vadd.f32 %v6474, %v6586
        %v6588 = vpop.f32.mrf.mxu0
        %v6589 = vadd.f32 %v6476, %v6588
        %6590 = vmatprep.mubr.bf16.mxu0 %v5630
        %6591 = vmatmul.mubr.bf16.gmra.mxu0 %v5629
        %v6592 = vpop.f32.mrf.mxu0
        %v6593 = vadd.f32 %v6480, %v6592
        %v6594 = vpop.f32.mrf.mxu0
        %v6595 = vadd.f32 %v6482, %v6594
        %v6596 = vpop.f32.mrf.mxu0
        %v6597 = vadd.f32 %v6484, %v6596
        %v6598 = vpop.f32.mrf.mxu0
        %v6599 = vadd.f32 %v6486, %v6598
        %6600 = vmatprep.mubr.bf16.mxu0 %v5634
        %6601 = vmatmul.mubr.bf16.gmra.mxu0 %v5633
        %v6602 = vpop.f32.mrf.mxu0
        %v6603 = vadd.f32 %v6490, %v6602
        %v6604 = vpop.f32.mrf.mxu0
        %v6605 = vadd.f32 %v6492, %v6604
        %v6606 = vpop.f32.mrf.mxu0
        %v6607 = vadd.f32 %v6494, %v6606
        %v6608 = vpop.f32.mrf.mxu0
        %v6609 = vadd.f32 %v6496, %v6608
        %6610 = vmatprep.mubr.bf16.mxu0 %v5638
        %6611 = vmatmul.mubr.bf16.gmra.mxu0 %v5637
        %v6612 = vpop.f32.mrf.mxu0
        %v6613 = vadd.f32 %v6500, %v6612
        %v6614 = vpop.f32.mrf.mxu0
        %v6615 = vadd.f32 %v6502, %v6614
        %v6616 = vpop.f32.mrf.mxu0
        %v6617 = vadd.f32 %v6504, %v6616
        %v6618 = vpop.f32.mrf.mxu0
        %v6619 = vadd.f32 %v6506, %v6618
        %6620 = vmatprep.mubr.bf16.mxu0 %v5642
        %6621 = vmatmul.mubr.bf16.gmra.mxu0 %v5641
        %v6622 = vpop.f32.mrf.mxu0
        %v6623 = vadd.f32 %v6510, %v6622
        %v6624 = vpop.f32.mrf.mxu0
        %v6625 = vadd.f32 %v6512, %v6624
        %v6626 = vpop.f32.mrf.mxu0
        %v6627 = vadd.f32 %v6514, %v6626
        %v6628 = vpop.f32.mrf.mxu0
        %v6629 = vadd.f32 %v6516, %v6628
        %6630 = vmatprep.mubr.bf16.mxu0 %v5646
        %6631 = vmatmul.mubr.bf16.gmra.mxu0 %v5645
        %v6632 = vpop.f32.mrf.mxu0
        %v6633 = vadd.f32 %v6520, %v6632
        %v6634 = vpop.f32.mrf.mxu0
        %v6635 = vadd.f32 %v6522, %v6634
        %v6636 = vpop.f32.mrf.mxu0
        %v6637 = vadd.f32 %v6524, %v6636
        %v6638 = vpop.f32.mrf.mxu0
        %v6639 = vadd.f32 %v6526, %v6638
        %6640 = vdwg.mxu0
        %6641 = vmatprep.subr.bf16.mxu0 %v6190
        %6642 = vmatpush1.bf16.msra.mxu0 %v6189
        %6643 = vmatprep.subr.bf16.mxu0 %v6186
        %6644 = vmatpush1.bf16.msra.mxu0 %v6185
        %6645 = vmatprep.subr.bf16.mxu0 %v6182
        %6646 = vmatpush1.bf16.msra.mxu0 %v6181
        %6647 = vmatprep.subr.bf16.mxu0 %v6178
        %6648 = vmatpush1.bf16.msra.mxu0 %v6177
        %6649 = vmatprep.subr.bf16.mxu0 %v6174
        %6650 = vmatpush1.bf16.msra.mxu0 %v6173
        %6651 = vmatprep.subr.bf16.mxu0 %v6170
        %6652 = vmatpush1.bf16.msra.mxu0 %v6169
        %6653 = vmatprep.subr.bf16.mxu0 %v6166
        %6654 = vmatpush1.bf16.msra.mxu0 %v6165
        %6655 = vmatprep.subr.bf16.mxu0 %v6162
        %6656 = vmatpush1.bf16.msra.mxu0 %v6161
        %6657 = vmatprep.subr.bf16.mxu0 %v6222
        %6658 = vmatpush2.bf16.msra.mxu0 %v6221
        %6659 = vmatprep.subr.bf16.mxu0 %v6218
        %6660 = vmatpush2.bf16.msra.mxu0 %v6217
        %6661 = vmatprep.subr.bf16.mxu0 %v6214
        %6662 = vmatpush2.bf16.msra.mxu0 %v6213
        %6663 = vmatprep.subr.bf16.mxu0 %v6210
        %6664 = vmatpush2.bf16.msra.mxu0 %v6209
        %6665 = vmatprep.subr.bf16.mxu0 %v6206
        %6666 = vmatpush2.bf16.msra.mxu0 %v6205
        %6667 = vmatprep.subr.bf16.mxu0 %v6202
        %6668 = vmatpush2.bf16.msra.mxu0 %v6201
        %6669 = vmatprep.subr.bf16.mxu0 %v6198
        %6670 = vmatpush2.bf16.msra.mxu0 %v6197
        %6671 = vmatprep.subr.bf16.mxu0 %v6194
        %6672 = vmatpush2.bf16.msra.mxu0 %v6193
        %6673 = vmatprep.mubr.bf16.mxu0 %v5616
        %6674 = vmatmul.mubr.bf16.gmra.mxu0 %v5615
        %v6675 = vpop.f32.mrf.mxu0
        %v6676 = vadd.f32 0.0, %v6675
        %v6677 = vpop.f32.mrf.mxu0
        %v6678 = vadd.f32 0.0, %v6677
        %v6679 = vpop.f32.mrf.mxu0
        %v6680 = vadd.f32 0.0, %v6679
        %v6681 = vpop.f32.mrf.mxu0
        %v6682 = vadd.f32 0.0, %v6681
        %6683 = vmatprep.mubr.bf16.mxu0 %v5620
        %6684 = vmatmul.mubr.bf16.gmra.mxu0 %v5619
        %v6685 = vpop.f32.mrf.mxu0
        %v6686 = vadd.f32 0.0, %v6685
        %v6687 = vpop.f32.mrf.mxu0
        %v6688 = vadd.f32 0.0, %v6687
        %v6689 = vpop.f32.mrf.mxu0
        %v6690 = vadd.f32 0.0, %v6689
        %v6691 = vpop.f32.mrf.mxu0
        %v6692 = vadd.f32 0.0, %v6691
        %6693 = vmatprep.mubr.bf16.mxu0 %v5624
        %6694 = vmatmul.mubr.bf16.gmra.mxu0 %v5623
        %v6695 = vpop.f32.mrf.mxu0
        %v6696 = vadd.f32 0.0, %v6695
        %v6697 = vpop.f32.mrf.mxu0
        %v6698 = vadd.f32 0.0, %v6697
        %v6699 = vpop.f32.mrf.mxu0
        %v6700 = vadd.f32 0.0, %v6699
        %v6701 = vpop.f32.mrf.mxu0
        %v6702 = vadd.f32 0.0, %v6701
        %6703 = vmatprep.mubr.bf16.mxu0 %v5628
        %6704 = vmatmul.mubr.bf16.gmra.mxu0 %v5627
        %v6705 = vpop.f32.mrf.mxu0
        %v6706 = vadd.f32 0.0, %v6705
        %v6707 = vpop.f32.mrf.mxu0
        %v6708 = vadd.f32 0.0, %v6707
        %v6709 = vpop.f32.mrf.mxu0
        %v6710 = vadd.f32 0.0, %v6709
        %v6711 = vpop.f32.mrf.mxu0
        %v6712 = vadd.f32 0.0, %v6711
        %6713 = vmatprep.mubr.bf16.mxu0 %v5632
        %6714 = vmatmul.mubr.bf16.gmra.mxu0 %v5631
        %v6715 = vpop.f32.mrf.mxu0
        %v6716 = vadd.f32 0.0, %v6715
        %v6717 = vpop.f32.mrf.mxu0
        %v6718 = vadd.f32 0.0, %v6717
        %v6719 = vpop.f32.mrf.mxu0
        %v6720 = vadd.f32 0.0, %v6719
        %v6721 = vpop.f32.mrf.mxu0
        %v6722 = vadd.f32 0.0, %v6721
        %6723 = vmatprep.mubr.bf16.mxu0 %v5636
        %6724 = vmatmul.mubr.bf16.gmra.mxu0 %v5635
        %v6725 = vpop.f32.mrf.mxu0
        %v6726 = vadd.f32 0.0, %v6725
        %v6727 = vpop.f32.mrf.mxu0
        %v6728 = vadd.f32 0.0, %v6727
        %v6729 = vpop.f32.mrf.mxu0
        %v6730 = vadd.f32 0.0, %v6729
        %v6731 = vpop.f32.mrf.mxu0
        %v6732 = vadd.f32 0.0, %v6731
        %6733 = vmatprep.mubr.bf16.mxu0 %v5640
        %6734 = vmatmul.mubr.bf16.gmra.mxu0 %v5639
        %v6735 = vpop.f32.mrf.mxu0
        %v6736 = vadd.f32 0.0, %v6735
        %v6737 = vpop.f32.mrf.mxu0
        %v6738 = vadd.f32 0.0, %v6737
        %v6739 = vpop.f32.mrf.mxu0
        %v6740 = vadd.f32 0.0, %v6739
        %v6741 = vpop.f32.mrf.mxu0
        %v6742 = vadd.f32 0.0, %v6741
        %6743 = vmatprep.mubr.bf16.mxu0 %v5644
        %6744 = vmatmul.mubr.bf16.gmra.mxu0 %v5643
        %v6745 = vpop.f32.mrf.mxu0
        %v6746 = vadd.f32 0.0, %v6745
        %v6747 = vpop.f32.mrf.mxu0
        %v6748 = vadd.f32 0.0, %v6747
        %v6749 = vpop.f32.mrf.mxu0
        %v6750 = vadd.f32 0.0, %v6749
        %v6751 = vpop.f32.mrf.mxu0
        %v6752 = vadd.f32 0.0, %v6751
        %6753 = vdwg.mxu0
        %6754 = vmatprep.subr.bf16.mxu0 %v6254
        %6755 = vmatpush1.bf16.msra.mxu0 %v6253
        %6756 = vmatprep.subr.bf16.mxu0 %v6250
        %6757 = vmatpush1.bf16.msra.mxu0 %v6249
        %6758 = vmatprep.subr.bf16.mxu0 %v6246
        %6759 = vmatpush1.bf16.msra.mxu0 %v6245
        %6760 = vmatprep.subr.bf16.mxu0 %v6242
        %6761 = vmatpush1.bf16.msra.mxu0 %v6241
        %6762 = vmatprep.subr.bf16.mxu0 %v6238
        %6763 = vmatpush1.bf16.msra.mxu0 %v6237
        %6764 = vmatprep.subr.bf16.mxu0 %v6234
        %6765 = vmatpush1.bf16.msra.mxu0 %v6233
        %6766 = vmatprep.subr.bf16.mxu0 %v6230
        %6767 = vmatpush1.bf16.msra.mxu0 %v6229
        %6768 = vmatprep.subr.bf16.mxu0 %v6226
        %6769 = vmatpush1.bf16.msra.mxu0 %v6225
        %6770 = vmatprep.subr.bf16.mxu0 %v6286
        %6771 = vmatpush2.bf16.msra.mxu0 %v6285
        %6772 = vmatprep.subr.bf16.mxu0 %v6282
        %6773 = vmatpush2.bf16.msra.mxu0 %v6281
        %6774 = vmatprep.subr.bf16.mxu0 %v6278
        %6775 = vmatpush2.bf16.msra.mxu0 %v6277
        %6776 = vmatprep.subr.bf16.mxu0 %v6274
        %6777 = vmatpush2.bf16.msra.mxu0 %v6273
        %6778 = vmatprep.subr.bf16.mxu0 %v6270
        %6779 = vmatpush2.bf16.msra.mxu0 %v6269
        %6780 = vmatprep.subr.bf16.mxu0 %v6266
        %6781 = vmatpush2.bf16.msra.mxu0 %v6265
        %6782 = vmatprep.subr.bf16.mxu0 %v6262
        %6783 = vmatpush2.bf16.msra.mxu0 %v6261
        %6784 = vmatprep.subr.bf16.mxu0 %v6258
        %6785 = vmatpush2.bf16.msra.mxu0 %v6257
        %6786 = vmatprep.mubr.bf16.mxu0 %v5618
        %6787 = vmatmul.mubr.bf16.gmra.mxu0 %v5617
        %v6788 = vpop.f32.mrf.mxu0
        %v6789 = vadd.f32 %v6676, %v6788
        %v6790 = vpop.f32.mrf.mxu0
        %v6791 = vadd.f32 %v6678, %v6790
        %v6792 = vpop.f32.mrf.mxu0
        %v6793 = vadd.f32 %v6680, %v6792
        %v6794 = vpop.f32.mrf.mxu0
        %v6795 = vadd.f32 %v6682, %v6794
        %6796 = vmatprep.mubr.bf16.mxu0 %v5622
        %6797 = vmatmul.mubr.bf16.gmra.mxu0 %v5621
        %v6798 = vpop.f32.mrf.mxu0
        %v6799 = vadd.f32 %v6686, %v6798
        %v6800 = vpop.f32.mrf.mxu0
        %v6801 = vadd.f32 %v6688, %v6800
        %v6802 = vpop.f32.mrf.mxu0
        %v6803 = vadd.f32 %v6690, %v6802
        %v6804 = vpop.f32.mrf.mxu0
        %v6805 = vadd.f32 %v6692, %v6804
        %6806 = vmatprep.mubr.bf16.mxu0 %v5626
        %6807 = vmatmul.mubr.bf16.gmra.mxu0 %v5625
        %v6808 = vpop.f32.mrf.mxu0
        %v6809 = vadd.f32 %v6696, %v6808
        %v6810 = vpop.f32.mrf.mxu0
        %v6811 = vadd.f32 %v6698, %v6810
        %v6812 = vpop.f32.mrf.mxu0
        %v6813 = vadd.f32 %v6700, %v6812
        %v6814 = vpop.f32.mrf.mxu0
        %v6815 = vadd.f32 %v6702, %v6814
        %6816 = vmatprep.mubr.bf16.mxu0 %v5630
        %6817 = vmatmul.mubr.bf16.gmra.mxu0 %v5629
        %v6818 = vpop.f32.mrf.mxu0
        %v6819 = vadd.f32 %v6706, %v6818
        %v6820 = vpop.f32.mrf.mxu0
        %v6821 = vadd.f32 %v6708, %v6820
        %v6822 = vpop.f32.mrf.mxu0
        %v6823 = vadd.f32 %v6710, %v6822
        %v6824 = vpop.f32.mrf.mxu0
        %v6825 = vadd.f32 %v6712, %v6824
        %6826 = vmatprep.mubr.bf16.mxu0 %v5634
        %6827 = vmatmul.mubr.bf16.gmra.mxu0 %v5633
        %v6828 = vpop.f32.mrf.mxu0
        %v6829 = vadd.f32 %v6716, %v6828
        %v6830 = vpop.f32.mrf.mxu0
        %v6831 = vadd.f32 %v6718, %v6830
        %v6832 = vpop.f32.mrf.mxu0
        %v6833 = vadd.f32 %v6720, %v6832
        %v6834 = vpop.f32.mrf.mxu0
        %v6835 = vadd.f32 %v6722, %v6834
        %6836 = vmatprep.mubr.bf16.mxu0 %v5638
        %6837 = vmatmul.mubr.bf16.gmra.mxu0 %v5637
        %v6838 = vpop.f32.mrf.mxu0
        %v6839 = vadd.f32 %v6726, %v6838
        %v6840 = vpop.f32.mrf.mxu0
        %v6841 = vadd.f32 %v6728, %v6840
        %v6842 = vpop.f32.mrf.mxu0
        %v6843 = vadd.f32 %v6730, %v6842
        %v6844 = vpop.f32.mrf.mxu0
        %v6845 = vadd.f32 %v6732, %v6844
        %6846 = vmatprep.mubr.bf16.mxu0 %v5642
        %6847 = vmatmul.mubr.bf16.gmra.mxu0 %v5641
        %v6848 = vpop.f32.mrf.mxu0
        %v6849 = vadd.f32 %v6736, %v6848
        %v6850 = vpop.f32.mrf.mxu0
        %v6851 = vadd.f32 %v6738, %v6850
        %v6852 = vpop.f32.mrf.mxu0
        %v6853 = vadd.f32 %v6740, %v6852
        %v6854 = vpop.f32.mrf.mxu0
        %v6855 = vadd.f32 %v6742, %v6854
        %6856 = vmatprep.mubr.bf16.mxu0 %v5646
        %6857 = vmatmul.mubr.bf16.gmra.mxu0 %v5645
        %v6858 = vpop.f32.mrf.mxu0
        %v6859 = vadd.f32 %v6746, %v6858
        %v6860 = vpop.f32.mrf.mxu0
        %v6861 = vadd.f32 %v6748, %v6860
        %v6862 = vpop.f32.mrf.mxu0
        %v6863 = vadd.f32 %v6750, %v6862
        %v6864 = vpop.f32.mrf.mxu0
        %v6865 = vadd.f32 %v6752, %v6864
        %6866 = vdwg.mxu0
        %v6995 = vunpack.c.l.b16 %v5487
        %v6996 = vunpack.c.h.b16 %v5487
        %v6997 = vunpack.c.l.b16 %v5488
        %v6998 = vunpack.c.h.b16 %v5488
        %v6999 = vunpack.c.l.b16 %v5489
        %v7000 = vunpack.c.h.b16 %v5489
        %v7001 = vunpack.c.l.b16 %v5490
        %v7002 = vunpack.c.h.b16 %v5490
        %v7003 = vunpack.c.l.b16 %v5491
        %v7004 = vunpack.c.h.b16 %v5491
        %v7005 = vunpack.c.l.b16 %v5492
        %v7006 = vunpack.c.h.b16 %v5492
        %v7007 = vunpack.c.l.b16 %v5493
        %v7008 = vunpack.c.h.b16 %v5493
        %v7009 = vunpack.c.l.b16 %v5494
        %v7010 = vunpack.c.h.b16 %v5494
        %v7011 = vunpack.c.l.b16 %v5495
        %v7012 = vunpack.c.h.b16 %v5495
        %v7013 = vunpack.c.l.b16 %v5496
        %v7014 = vunpack.c.h.b16 %v5496
        %v7015 = vunpack.c.l.b16 %v5497
        %v7016 = vunpack.c.h.b16 %v5497
        %v7017 = vunpack.c.l.b16 %v5498
        %v7018 = vunpack.c.h.b16 %v5498
        %v7019 = vunpack.c.l.b16 %v5499
        %v7020 = vunpack.c.h.b16 %v5499
        %v7021 = vunpack.c.l.b16 %v5500
        %v7022 = vunpack.c.h.b16 %v5500
        %v7023 = vunpack.c.l.b16 %v5501
        %v7024 = vunpack.c.h.b16 %v5501
        %v7025 = vunpack.c.l.b16 %v5502
        %v7026 = vunpack.c.h.b16 %v5502
        %v7027 = vunpack.c.l.b16 %v5503
        %v7028 = vunpack.c.h.b16 %v5503
        %v7029 = vunpack.c.l.b16 %v5504
        %v7030 = vunpack.c.h.b16 %v5504
        %v7031 = vunpack.c.l.b16 %v5505
        %v7032 = vunpack.c.h.b16 %v5505
        %v7033 = vunpack.c.l.b16 %v5506
        %v7034 = vunpack.c.h.b16 %v5506
        %v7035 = vunpack.c.l.b16 %v5507
        %v7036 = vunpack.c.h.b16 %v5507
        %v7037 = vunpack.c.l.b16 %v5508
        %v7038 = vunpack.c.h.b16 %v5508
        %v7039 = vunpack.c.l.b16 %v5509
        %v7040 = vunpack.c.h.b16 %v5509
        %v7041 = vunpack.c.l.b16 %v5510
        %v7042 = vunpack.c.h.b16 %v5510
        %v7043 = vunpack.c.l.b16 %v5511
        %v7044 = vunpack.c.h.b16 %v5511
        %v7045 = vunpack.c.l.b16 %v5512
        %v7046 = vunpack.c.h.b16 %v5512
        %v7047 = vunpack.c.l.b16 %v5513
        %v7048 = vunpack.c.h.b16 %v5513
        %v7049 = vunpack.c.l.b16 %v5514
        %v7050 = vunpack.c.h.b16 %v5514
        %v7051 = vunpack.c.l.b16 %v5515
        %v7052 = vunpack.c.h.b16 %v5515
        %v7053 = vunpack.c.l.b16 %v5516
        %v7054 = vunpack.c.h.b16 %v5516
        %v7055 = vunpack.c.l.b16 %v5517
        %v7056 = vunpack.c.h.b16 %v5517
        %v7057 = vunpack.c.l.b16 %v5518
        %v7058 = vunpack.c.h.b16 %v5518
        %v7059 = vunpack.c.l.b16 %v5519
        %v7060 = vunpack.c.h.b16 %v5519
        %v7061 = vunpack.c.l.b16 %v5520
        %v7062 = vunpack.c.h.b16 %v5520
        %v7063 = vunpack.c.l.b16 %v5521
        %v7064 = vunpack.c.h.b16 %v5521
        %v7065 = vunpack.c.l.b16 %v5522
        %v7066 = vunpack.c.h.b16 %v5522
        %v7067 = vunpack.c.l.b16 %v5523
        %v7068 = vunpack.c.h.b16 %v5523
        %v7069 = vunpack.c.l.b16 %v5524
        %v7070 = vunpack.c.h.b16 %v5524
        %v7071 = vunpack.c.l.b16 %v5525
        %v7072 = vunpack.c.h.b16 %v5525
        %v7073 = vunpack.c.l.b16 %v5526
        %v7074 = vunpack.c.h.b16 %v5526
        %v7075 = vunpack.c.l.b16 %v5527
        %v7076 = vunpack.c.h.b16 %v5527
        %v7077 = vunpack.c.l.b16 %v5528
        %v7078 = vunpack.c.h.b16 %v5528
        %v7079 = vunpack.c.l.b16 %v5529
        %v7080 = vunpack.c.h.b16 %v5529
        %v7081 = vunpack.c.l.b16 %v5530
        %v7082 = vunpack.c.h.b16 %v5530
        %v7083 = vunpack.c.l.b16 %v5531
        %v7084 = vunpack.c.h.b16 %v5531
        %v7085 = vunpack.c.l.b16 %v5532
        %v7086 = vunpack.c.h.b16 %v5532
        %v7087 = vunpack.c.l.b16 %v5533
        %v7088 = vunpack.c.h.b16 %v5533
        %v7089 = vunpack.c.l.b16 %v5534
        %v7090 = vunpack.c.h.b16 %v5534
        %v7091 = vunpack.c.l.b16 %v5535
        %v7092 = vunpack.c.h.b16 %v5535
        %v7093 = vunpack.c.l.b16 %v5536
        %v7094 = vunpack.c.h.b16 %v5536
        %v7095 = vunpack.c.l.b16 %v5537
        %v7096 = vunpack.c.h.b16 %v5537
        %v7097 = vunpack.c.l.b16 %v5538
        %v7098 = vunpack.c.h.b16 %v5538
        %v7099 = vunpack.c.l.b16 %v5539
        %v7100 = vunpack.c.h.b16 %v5539
        %v7101 = vunpack.c.l.b16 %v5540
        %v7102 = vunpack.c.h.b16 %v5540
        %v7103 = vunpack.c.l.b16 %v5541
        %v7104 = vunpack.c.h.b16 %v5541
        %v7105 = vunpack.c.l.b16 %v5542
        %v7106 = vunpack.c.h.b16 %v5542
        %v7107 = vunpack.c.l.b16 %v5543
        %v7108 = vunpack.c.h.b16 %v5543
        %v7109 = vunpack.c.l.b16 %v5544
        %v7110 = vunpack.c.h.b16 %v5544
        %v7111 = vunpack.c.l.b16 %v5545
        %v7112 = vunpack.c.h.b16 %v5545
        %v7113 = vunpack.c.l.b16 %v5546
        %v7114 = vunpack.c.h.b16 %v5546
        %v7115 = vunpack.c.l.b16 %v5547
        %v7116 = vunpack.c.h.b16 %v5547
        %v7117 = vunpack.c.l.b16 %v5548
        %v7118 = vunpack.c.h.b16 %v5548
        %v7119 = vunpack.c.l.b16 %v5549
        %v7120 = vunpack.c.h.b16 %v5549
        %v7121 = vunpack.c.l.b16 %v5550
        %v7122 = vunpack.c.h.b16 %v5550
        %v7123 = vunpack.c.l.b16 %v5551
        %v7124 = vunpack.c.h.b16 %v5551
        %v7125 = vunpack.c.l.b16 %v5552
        %v7126 = vunpack.c.h.b16 %v5552
        %v7127 = vunpack.c.l.b16 %v5553
        %v7128 = vunpack.c.h.b16 %v5553
        %v7129 = vunpack.c.l.b16 %v5554
        %v7130 = vunpack.c.h.b16 %v5554
        %v7131 = vunpack.c.l.b16 %v5555
        %v7132 = vunpack.c.h.b16 %v5555
        %v7133 = vunpack.c.l.b16 %v5556
        %v7134 = vunpack.c.h.b16 %v5556
        %v7135 = vunpack.c.l.b16 %v5557
        %v7136 = vunpack.c.h.b16 %v5557
        %v7137 = vunpack.c.l.b16 %v5558
        %v7138 = vunpack.c.h.b16 %v5558
        %v7139 = vunpack.c.l.b16 %v5559
        %v7140 = vunpack.c.h.b16 %v5559
        %v7141 = vunpack.c.l.b16 %v5560
        %v7142 = vunpack.c.h.b16 %v5560
        %v7143 = vunpack.c.l.b16 %v5561
        %v7144 = vunpack.c.h.b16 %v5561
        %v7145 = vunpack.c.l.b16 %v5562
        %v7146 = vunpack.c.h.b16 %v5562
        %v7147 = vunpack.c.l.b16 %v5563
        %v7148 = vunpack.c.h.b16 %v5563
        %v7149 = vunpack.c.l.b16 %v5564
        %v7150 = vunpack.c.h.b16 %v5564
        %v7151 = vunpack.c.l.b16 %v5565
        %v7152 = vunpack.c.h.b16 %v5565
        %v7153 = vunpack.c.l.b16 %v5566
        %v7154 = vunpack.c.h.b16 %v5566
        %v7155 = vunpack.c.l.b16 %v5567
        %v7156 = vunpack.c.h.b16 %v5567
        %v7157 = vunpack.c.l.b16 %v5568
        %v7158 = vunpack.c.h.b16 %v5568
        %v7159 = vunpack.c.l.b16 %v5569
        %v7160 = vunpack.c.h.b16 %v5569
        %v7161 = vunpack.c.l.b16 %v5570
        %v7162 = vunpack.c.h.b16 %v5570
        %v7163 = vunpack.c.l.b16 %v5571
        %v7164 = vunpack.c.h.b16 %v5571
        %v7165 = vunpack.c.l.b16 %v5572
        %v7166 = vunpack.c.h.b16 %v5572
        %v7167 = vunpack.c.l.b16 %v5573
        %v7168 = vunpack.c.h.b16 %v5573
        %v7169 = vunpack.c.l.b16 %v5574
        %v7170 = vunpack.c.h.b16 %v5574
        %v7171 = vunpack.c.l.b16 %v5575
        %v7172 = vunpack.c.h.b16 %v5575
        %v7173 = vunpack.c.l.b16 %v5576
        %v7174 = vunpack.c.h.b16 %v5576
        %v7175 = vunpack.c.l.b16 %v5577
        %v7176 = vunpack.c.h.b16 %v5577
        %v7177 = vunpack.c.l.b16 %v5578
        %v7178 = vunpack.c.h.b16 %v5578
        %v7179 = vunpack.c.l.b16 %v5579
        %v7180 = vunpack.c.h.b16 %v5579
        %v7181 = vunpack.c.l.b16 %v5580
        %v7182 = vunpack.c.h.b16 %v5580
        %v7183 = vunpack.c.l.b16 %v5581
        %v7184 = vunpack.c.h.b16 %v5581
        %v7185 = vunpack.c.l.b16 %v5582
        %v7186 = vunpack.c.h.b16 %v5582
        %v7187 = vunpack.c.l.b16 %v5583
        %v7188 = vunpack.c.h.b16 %v5583
        %v7189 = vunpack.c.l.b16 %v5584
        %v7190 = vunpack.c.h.b16 %v5584
        %v7191 = vunpack.c.l.b16 %v5585
        %v7192 = vunpack.c.h.b16 %v5585
        %v7193 = vunpack.c.l.b16 %v5586
        %v7194 = vunpack.c.h.b16 %v5586
        %v7195 = vunpack.c.l.b16 %v5587
        %v7196 = vunpack.c.h.b16 %v5587
        %v7197 = vunpack.c.l.b16 %v5588
        %v7198 = vunpack.c.h.b16 %v5588
        %v7199 = vunpack.c.l.b16 %v5589
        %v7200 = vunpack.c.h.b16 %v5589
        %v7201 = vunpack.c.l.b16 %v5590
        %v7202 = vunpack.c.h.b16 %v5590
        %v7203 = vunpack.c.l.b16 %v5591
        %v7204 = vunpack.c.h.b16 %v5591
        %v7205 = vunpack.c.l.b16 %v5592
        %v7206 = vunpack.c.h.b16 %v5592
        %v7207 = vunpack.c.l.b16 %v5593
        %v7208 = vunpack.c.h.b16 %v5593
        %v7209 = vunpack.c.l.b16 %v5594
        %v7210 = vunpack.c.h.b16 %v5594
        %v7211 = vunpack.c.l.b16 %v5595
        %v7212 = vunpack.c.h.b16 %v5595
        %v7213 = vunpack.c.l.b16 %v5596
        %v7214 = vunpack.c.h.b16 %v5596
        %v7215 = vunpack.c.l.b16 %v5597
        %v7216 = vunpack.c.h.b16 %v5597
        %v7217 = vunpack.c.l.b16 %v5598
        %v7218 = vunpack.c.h.b16 %v5598
        %v7219 = vunpack.c.l.b16 %v5599
        %v7220 = vunpack.c.h.b16 %v5599
        %v7221 = vunpack.c.l.b16 %v5600
        %v7222 = vunpack.c.h.b16 %v5600
        %v7223 = vunpack.c.l.b16 %v5601
        %v7224 = vunpack.c.h.b16 %v5601
        %v7225 = vunpack.c.l.b16 %v5602
        %v7226 = vunpack.c.h.b16 %v5602
        %v7227 = vunpack.c.l.b16 %v5603
        %v7228 = vunpack.c.h.b16 %v5603
        %v7229 = vunpack.c.l.b16 %v5604
        %v7230 = vunpack.c.h.b16 %v5604
        %v7231 = vunpack.c.l.b16 %v5605
        %v7232 = vunpack.c.h.b16 %v5605
        %v7233 = vunpack.c.l.b16 %v5606
        %v7234 = vunpack.c.h.b16 %v5606
        %v7235 = vunpack.c.l.b16 %v5607
        %v7236 = vunpack.c.h.b16 %v5607
        %v7237 = vunpack.c.l.b16 %v5608
        %v7238 = vunpack.c.h.b16 %v5608
        %v7239 = vunpack.c.l.b16 %v5609
        %v7240 = vunpack.c.h.b16 %v5609
        %v7241 = vunpack.c.l.b16 %v5610
        %v7242 = vunpack.c.h.b16 %v5610
        %v7243 = vunpack.c.l.b16 %v5611
        %v7244 = vunpack.c.h.b16 %v5611
        %v7245 = vunpack.c.l.b16 %v5612
        %v7246 = vunpack.c.h.b16 %v5612
        %v7247 = vunpack.c.l.b16 %v5613
        %v7248 = vunpack.c.h.b16 %v5613
        %v7249 = vunpack.c.l.b16 %v5614
        %v7250 = vunpack.c.h.b16 %v5614
        %v7251 = vpack.c.b16 %v6999, %v6995
        %v7252 = vpack.c.b16 %v7000, %v6996
        %v7253 = vpack.c.b16 %v7001, %v6997
        %v7254 = vpack.c.b16 %v7002, %v6998
        %v7255 = vpack.c.b16 %v7007, %v7003
        %v7256 = vpack.c.b16 %v7008, %v7004
        %v7257 = vpack.c.b16 %v7009, %v7005
        %v7258 = vpack.c.b16 %v7010, %v7006
        %v7259 = vpack.c.b16 %v7015, %v7011
        %v7260 = vpack.c.b16 %v7016, %v7012
        %v7261 = vpack.c.b16 %v7017, %v7013
        %v7262 = vpack.c.b16 %v7018, %v7014
        %v7263 = vpack.c.b16 %v7023, %v7019
        %v7264 = vpack.c.b16 %v7024, %v7020
        %v7265 = vpack.c.b16 %v7025, %v7021
        %v7266 = vpack.c.b16 %v7026, %v7022
        %v7267 = vpack.c.b16 %v7031, %v7027
        %v7268 = vpack.c.b16 %v7032, %v7028
        %v7269 = vpack.c.b16 %v7033, %v7029
        %v7270 = vpack.c.b16 %v7034, %v7030
        %v7271 = vpack.c.b16 %v7039, %v7035
        %v7272 = vpack.c.b16 %v7040, %v7036
        %v7273 = vpack.c.b16 %v7041, %v7037
        %v7274 = vpack.c.b16 %v7042, %v7038
        %v7275 = vpack.c.b16 %v7047, %v7043
        %v7276 = vpack.c.b16 %v7048, %v7044
        %v7277 = vpack.c.b16 %v7049, %v7045
        %v7278 = vpack.c.b16 %v7050, %v7046
        %v7279 = vpack.c.b16 %v7055, %v7051
        %v7280 = vpack.c.b16 %v7056, %v7052
        %v7281 = vpack.c.b16 %v7057, %v7053
        %v7282 = vpack.c.b16 %v7058, %v7054
        %v7283 = vpack.c.b16 %v7063, %v7059
        %v7284 = vpack.c.b16 %v7064, %v7060
        %v7285 = vpack.c.b16 %v7065, %v7061
        %v7286 = vpack.c.b16 %v7066, %v7062
        %v7287 = vpack.c.b16 %v7071, %v7067
        %v7288 = vpack.c.b16 %v7072, %v7068
        %v7289 = vpack.c.b16 %v7073, %v7069
        %v7290 = vpack.c.b16 %v7074, %v7070
        %v7291 = vpack.c.b16 %v7079, %v7075
        %v7292 = vpack.c.b16 %v7080, %v7076
        %v7293 = vpack.c.b16 %v7081, %v7077
        %v7294 = vpack.c.b16 %v7082, %v7078
        %v7295 = vpack.c.b16 %v7087, %v7083
        %v7296 = vpack.c.b16 %v7088, %v7084
        %v7297 = vpack.c.b16 %v7089, %v7085
        %v7298 = vpack.c.b16 %v7090, %v7086
        %v7299 = vpack.c.b16 %v7095, %v7091
        %v7300 = vpack.c.b16 %v7096, %v7092
        %v7301 = vpack.c.b16 %v7097, %v7093
        %v7302 = vpack.c.b16 %v7098, %v7094
        %v7303 = vpack.c.b16 %v7103, %v7099
        %v7304 = vpack.c.b16 %v7104, %v7100
        %v7305 = vpack.c.b16 %v7105, %v7101
        %v7306 = vpack.c.b16 %v7106, %v7102
        %v7307 = vpack.c.b16 %v7111, %v7107
        %v7308 = vpack.c.b16 %v7112, %v7108
        %v7309 = vpack.c.b16 %v7113, %v7109
        %v7310 = vpack.c.b16 %v7114, %v7110
        %v7311 = vpack.c.b16 %v7119, %v7115
        %v7312 = vpack.c.b16 %v7120, %v7116
        %v7313 = vpack.c.b16 %v7121, %v7117
        %v7314 = vpack.c.b16 %v7122, %v7118
        %v7315 = vpack.c.b16 %v7127, %v7123
        %v7316 = vpack.c.b16 %v7128, %v7124
        %v7317 = vpack.c.b16 %v7129, %v7125
        %v7318 = vpack.c.b16 %v7130, %v7126
        %v7319 = vpack.c.b16 %v7135, %v7131
        %v7320 = vpack.c.b16 %v7136, %v7132
        %v7321 = vpack.c.b16 %v7137, %v7133
        %v7322 = vpack.c.b16 %v7138, %v7134
        %v7323 = vpack.c.b16 %v7143, %v7139
        %v7324 = vpack.c.b16 %v7144, %v7140
        %v7325 = vpack.c.b16 %v7145, %v7141
        %v7326 = vpack.c.b16 %v7146, %v7142
        %v7327 = vpack.c.b16 %v7151, %v7147
        %v7328 = vpack.c.b16 %v7152, %v7148
        %v7329 = vpack.c.b16 %v7153, %v7149
        %v7330 = vpack.c.b16 %v7154, %v7150
        %v7331 = vpack.c.b16 %v7159, %v7155
        %v7332 = vpack.c.b16 %v7160, %v7156
        %v7333 = vpack.c.b16 %v7161, %v7157
        %v7334 = vpack.c.b16 %v7162, %v7158
        %v7335 = vpack.c.b16 %v7167, %v7163
        %v7336 = vpack.c.b16 %v7168, %v7164
        %v7337 = vpack.c.b16 %v7169, %v7165
        %v7338 = vpack.c.b16 %v7170, %v7166
        %v7339 = vpack.c.b16 %v7175, %v7171
        %v7340 = vpack.c.b16 %v7176, %v7172
        %v7341 = vpack.c.b16 %v7177, %v7173
        %v7342 = vpack.c.b16 %v7178, %v7174
        %v7343 = vpack.c.b16 %v7183, %v7179
        %v7344 = vpack.c.b16 %v7184, %v7180
        %v7345 = vpack.c.b16 %v7185, %v7181
        %v7346 = vpack.c.b16 %v7186, %v7182
        %v7347 = vpack.c.b16 %v7191, %v7187
        %v7348 = vpack.c.b16 %v7192, %v7188
        %v7349 = vpack.c.b16 %v7193, %v7189
        %v7350 = vpack.c.b16 %v7194, %v7190
        %v7351 = vpack.c.b16 %v7199, %v7195
        %v7352 = vpack.c.b16 %v7200, %v7196
        %v7353 = vpack.c.b16 %v7201, %v7197
        %v7354 = vpack.c.b16 %v7202, %v7198
        %v7355 = vpack.c.b16 %v7207, %v7203
        %v7356 = vpack.c.b16 %v7208, %v7204
        %v7357 = vpack.c.b16 %v7209, %v7205
        %v7358 = vpack.c.b16 %v7210, %v7206
        %v7359 = vpack.c.b16 %v7215, %v7211
        %v7360 = vpack.c.b16 %v7216, %v7212
        %v7361 = vpack.c.b16 %v7217, %v7213
        %v7362 = vpack.c.b16 %v7218, %v7214
        %v7363 = vpack.c.b16 %v7223, %v7219
        %v7364 = vpack.c.b16 %v7224, %v7220
        %v7365 = vpack.c.b16 %v7225, %v7221
        %v7366 = vpack.c.b16 %v7226, %v7222
        %v7367 = vpack.c.b16 %v7231, %v7227
        %v7368 = vpack.c.b16 %v7232, %v7228
        %v7369 = vpack.c.b16 %v7233, %v7229
        %v7370 = vpack.c.b16 %v7234, %v7230
        %v7371 = vpack.c.b16 %v7239, %v7235
        %v7372 = vpack.c.b16 %v7240, %v7236
        %v7373 = vpack.c.b16 %v7241, %v7237
        %v7374 = vpack.c.b16 %v7242, %v7238
        %v7375 = vpack.c.b16 %v7247, %v7243
        %v7376 = vpack.c.b16 %v7248, %v7244
        %v7377 = vpack.c.b16 %v7249, %v7245
        %v7378 = vpack.c.b16 %v7250, %v7246
        %7507 = vmatprep.subr.bf16.mxu0 %v7280
        %7508 = vmatpush1.bf16.msra.mxu0 %v7279
        %7509 = vmatprep.subr.bf16.mxu0 %v7276
        %7510 = vmatpush1.bf16.msra.mxu0 %v7275
        %7511 = vmatprep.subr.bf16.mxu0 %v7272
        %7512 = vmatpush1.bf16.msra.mxu0 %v7271
        %7513 = vmatprep.subr.bf16.mxu0 %v7268
        %7514 = vmatpush1.bf16.msra.mxu0 %v7267
        %7515 = vmatprep.subr.bf16.mxu0 %v7264
        %7516 = vmatpush1.bf16.msra.mxu0 %v7263
        %7517 = vmatprep.subr.bf16.mxu0 %v7260
        %7518 = vmatpush1.bf16.msra.mxu0 %v7259
        %7519 = vmatprep.subr.bf16.mxu0 %v7256
        %7520 = vmatpush1.bf16.msra.mxu0 %v7255
        %7521 = vmatprep.subr.bf16.mxu0 %v7252
        %7522 = vmatpush1.bf16.msra.mxu0 %v7251
        %7523 = vmatprep.subr.bf16.mxu0 %v7312
        %7524 = vmatpush2.bf16.msra.mxu0 %v7311
        %7525 = vmatprep.subr.bf16.mxu0 %v7308
        %7526 = vmatpush2.bf16.msra.mxu0 %v7307
        %7527 = vmatprep.subr.bf16.mxu0 %v7304
        %7528 = vmatpush2.bf16.msra.mxu0 %v7303
        %7529 = vmatprep.subr.bf16.mxu0 %v7300
        %7530 = vmatpush2.bf16.msra.mxu0 %v7299
        %7531 = vmatprep.subr.bf16.mxu0 %v7296
        %7532 = vmatpush2.bf16.msra.mxu0 %v7295
        %7533 = vmatprep.subr.bf16.mxu0 %v7292
        %7534 = vmatpush2.bf16.msra.mxu0 %v7291
        %7535 = vmatprep.subr.bf16.mxu0 %v7288
        %7536 = vmatpush2.bf16.msra.mxu0 %v7287
        %7537 = vmatprep.subr.bf16.mxu0 %v7284
        %7538 = vmatpush2.bf16.msra.mxu0 %v7283
        %7539 = vmatprep.mubr.bf16.mxu0 %v5456
        %7540 = vmatmul.mubr.bf16.gmra.mxu0 %v5455
        %v7541 = vpop.f32.mrf.mxu0
        %v7542 = vadd.f32 %v6563, %v7541
        %v7543 = vpop.f32.mrf.mxu0
        %v7544 = vadd.f32 %v6565, %v7543
        %v7545 = vpop.f32.mrf.mxu0
        %v7546 = vadd.f32 %v6567, %v7545
        %v7547 = vpop.f32.mrf.mxu0
        %v7548 = vadd.f32 %v6569, %v7547
        %7549 = vmatprep.mubr.bf16.mxu0 %v5460
        %7550 = vmatmul.mubr.bf16.gmra.mxu0 %v5459
        %v7551 = vpop.f32.mrf.mxu0
        %v7552 = vadd.f32 %v6573, %v7551
        %v7553 = vpop.f32.mrf.mxu0
        %v7554 = vadd.f32 %v6575, %v7553
        %v7555 = vpop.f32.mrf.mxu0
        %v7556 = vadd.f32 %v6577, %v7555
        %v7557 = vpop.f32.mrf.mxu0
        %v7558 = vadd.f32 %v6579, %v7557
        %7559 = vmatprep.mubr.bf16.mxu0 %v5464
        %7560 = vmatmul.mubr.bf16.gmra.mxu0 %v5463
        %v7561 = vpop.f32.mrf.mxu0
        %v7562 = vadd.f32 %v6583, %v7561
        %v7563 = vpop.f32.mrf.mxu0
        %v7564 = vadd.f32 %v6585, %v7563
        %v7565 = vpop.f32.mrf.mxu0
        %v7566 = vadd.f32 %v6587, %v7565
        %v7567 = vpop.f32.mrf.mxu0
        %v7568 = vadd.f32 %v6589, %v7567
        %7569 = vmatprep.mubr.bf16.mxu0 %v5468
        %7570 = vmatmul.mubr.bf16.gmra.mxu0 %v5467
        %v7571 = vpop.f32.mrf.mxu0
        %v7572 = vadd.f32 %v6593, %v7571
        %v7573 = vpop.f32.mrf.mxu0
        %v7574 = vadd.f32 %v6595, %v7573
        %v7575 = vpop.f32.mrf.mxu0
        %v7576 = vadd.f32 %v6597, %v7575
        %v7577 = vpop.f32.mrf.mxu0
        %v7578 = vadd.f32 %v6599, %v7577
        %7579 = vmatprep.mubr.bf16.mxu0 %v5472
        %7580 = vmatmul.mubr.bf16.gmra.mxu0 %v5471
        %v7581 = vpop.f32.mrf.mxu0
        %v7582 = vadd.f32 %v6603, %v7581
        %v7583 = vpop.f32.mrf.mxu0
        %v7584 = vadd.f32 %v6605, %v7583
        %v7585 = vpop.f32.mrf.mxu0
        %v7586 = vadd.f32 %v6607, %v7585
        %v7587 = vpop.f32.mrf.mxu0
        %v7588 = vadd.f32 %v6609, %v7587
        %7589 = vmatprep.mubr.bf16.mxu0 %v5476
        %7590 = vmatmul.mubr.bf16.gmra.mxu0 %v5475
        %v7591 = vpop.f32.mrf.mxu0
        %v7592 = vadd.f32 %v6613, %v7591
        %v7593 = vpop.f32.mrf.mxu0
        %v7594 = vadd.f32 %v6615, %v7593
        %v7595 = vpop.f32.mrf.mxu0
        %v7596 = vadd.f32 %v6617, %v7595
        %v7597 = vpop.f32.mrf.mxu0
        %v7598 = vadd.f32 %v6619, %v7597
        %7599 = vmatprep.mubr.bf16.mxu0 %v5480
        %7600 = vmatmul.mubr.bf16.gmra.mxu0 %v5479
        %v7601 = vpop.f32.mrf.mxu0
        %v7602 = vadd.f32 %v6623, %v7601
        %v7603 = vpop.f32.mrf.mxu0
        %v7604 = vadd.f32 %v6625, %v7603
        %v7605 = vpop.f32.mrf.mxu0
        %v7606 = vadd.f32 %v6627, %v7605
        %v7607 = vpop.f32.mrf.mxu0
        %v7608 = vadd.f32 %v6629, %v7607
        %7609 = vmatprep.mubr.bf16.mxu0 %v5484
        %7610 = vmatmul.mubr.bf16.gmra.mxu0 %v5483
        %v7611 = vpop.f32.mrf.mxu0
        %v7612 = vadd.f32 %v6633, %v7611
        %v7613 = vpop.f32.mrf.mxu0
        %v7614 = vadd.f32 %v6635, %v7613
        %v7615 = vpop.f32.mrf.mxu0
        %v7616 = vadd.f32 %v6637, %v7615
        %v7617 = vpop.f32.mrf.mxu0
        %v7618 = vadd.f32 %v6639, %v7617
        %7619 = vdwg.mxu0
        %7620 = vmatprep.subr.bf16.mxu0 %v7344
        %7621 = vmatpush1.bf16.msra.mxu0 %v7343
        %7622 = vmatprep.subr.bf16.mxu0 %v7340
        %7623 = vmatpush1.bf16.msra.mxu0 %v7339
        %7624 = vmatprep.subr.bf16.mxu0 %v7336
        %7625 = vmatpush1.bf16.msra.mxu0 %v7335
        %7626 = vmatprep.subr.bf16.mxu0 %v7332
        %7627 = vmatpush1.bf16.msra.mxu0 %v7331
        %7628 = vmatprep.subr.bf16.mxu0 %v7328
        %7629 = vmatpush1.bf16.msra.mxu0 %v7327
        %7630 = vmatprep.subr.bf16.mxu0 %v7324
        %7631 = vmatpush1.bf16.msra.mxu0 %v7323
        %7632 = vmatprep.subr.bf16.mxu0 %v7320
        %7633 = vmatpush1.bf16.msra.mxu0 %v7319
        %7634 = vmatprep.subr.bf16.mxu0 %v7316
        %7635 = vmatpush1.bf16.msra.mxu0 %v7315
        %7636 = vmatprep.subr.bf16.mxu0 %v7376
        %7637 = vmatpush2.bf16.msra.mxu0 %v7375
        %7638 = vmatprep.subr.bf16.mxu0 %v7372
        %7639 = vmatpush2.bf16.msra.mxu0 %v7371
        %7640 = vmatprep.subr.bf16.mxu0 %v7368
        %7641 = vmatpush2.bf16.msra.mxu0 %v7367
        %7642 = vmatprep.subr.bf16.mxu0 %v7364
        %7643 = vmatpush2.bf16.msra.mxu0 %v7363
        %7644 = vmatprep.subr.bf16.mxu0 %v7360
        %7645 = vmatpush2.bf16.msra.mxu0 %v7359
        %7646 = vmatprep.subr.bf16.mxu0 %v7356
        %7647 = vmatpush2.bf16.msra.mxu0 %v7355
        %7648 = vmatprep.subr.bf16.mxu0 %v7352
        %7649 = vmatpush2.bf16.msra.mxu0 %v7351
        %7650 = vmatprep.subr.bf16.mxu0 %v7348
        %7651 = vmatpush2.bf16.msra.mxu0 %v7347
        %7652 = vmatprep.mubr.bf16.mxu0 %v5458
        %7653 = vmatmul.mubr.bf16.gmra.mxu0 %v5457
        %v7654 = vpop.f32.mrf.mxu0
        %v7655 = vadd.f32 %v7542, %v7654
        %v7656 = vpop.f32.mrf.mxu0
        %v7657 = vadd.f32 %v7544, %v7656
        %v7658 = vpop.f32.mrf.mxu0
        %v7659 = vadd.f32 %v7546, %v7658
        %v7660 = vpop.f32.mrf.mxu0
        %v7661 = vadd.f32 %v7548, %v7660
        %7662 = vmatprep.mubr.bf16.mxu0 %v5462
        %7663 = vmatmul.mubr.bf16.gmra.mxu0 %v5461
        %v7664 = vpop.f32.mrf.mxu0
        %v7665 = vadd.f32 %v7552, %v7664
        %v7666 = vpop.f32.mrf.mxu0
        %v7667 = vadd.f32 %v7554, %v7666
        %v7668 = vpop.f32.mrf.mxu0
        %v7669 = vadd.f32 %v7556, %v7668
        %v7670 = vpop.f32.mrf.mxu0
        %v7671 = vadd.f32 %v7558, %v7670
        %7672 = vmatprep.mubr.bf16.mxu0 %v5466
        %7673 = vmatmul.mubr.bf16.gmra.mxu0 %v5465
        %v7674 = vpop.f32.mrf.mxu0
        %v7675 = vadd.f32 %v7562, %v7674
        %v7676 = vpop.f32.mrf.mxu0
        %v7677 = vadd.f32 %v7564, %v7676
        %v7678 = vpop.f32.mrf.mxu0
        %v7679 = vadd.f32 %v7566, %v7678
        %v7680 = vpop.f32.mrf.mxu0
        %v7681 = vadd.f32 %v7568, %v7680
        %7682 = vmatprep.mubr.bf16.mxu0 %v5470
        %7683 = vmatmul.mubr.bf16.gmra.mxu0 %v5469
        %v7684 = vpop.f32.mrf.mxu0
        %v7685 = vadd.f32 %v7572, %v7684
        %v7686 = vpop.f32.mrf.mxu0
        %v7687 = vadd.f32 %v7574, %v7686
        %v7688 = vpop.f32.mrf.mxu0
        %v7689 = vadd.f32 %v7576, %v7688
        %v7690 = vpop.f32.mrf.mxu0
        %v7691 = vadd.f32 %v7578, %v7690
        %7692 = vmatprep.mubr.bf16.mxu0 %v5474
        %7693 = vmatmul.mubr.bf16.gmra.mxu0 %v5473
        %v7694 = vpop.f32.mrf.mxu0
        %v7695 = vadd.f32 %v7582, %v7694
        %v7696 = vpop.f32.mrf.mxu0
        %v7697 = vadd.f32 %v7584, %v7696
        %v7698 = vpop.f32.mrf.mxu0
        %v7699 = vadd.f32 %v7586, %v7698
        %v7700 = vpop.f32.mrf.mxu0
        %v7701 = vadd.f32 %v7588, %v7700
        %7702 = vmatprep.mubr.bf16.mxu0 %v5478
        %7703 = vmatmul.mubr.bf16.gmra.mxu0 %v5477
        %v7704 = vpop.f32.mrf.mxu0
        %v7705 = vadd.f32 %v7592, %v7704
        %v7706 = vpop.f32.mrf.mxu0
        %v7707 = vadd.f32 %v7594, %v7706
        %v7708 = vpop.f32.mrf.mxu0
        %v7709 = vadd.f32 %v7596, %v7708
        %v7710 = vpop.f32.mrf.mxu0
        %v7711 = vadd.f32 %v7598, %v7710
        %7712 = vmatprep.mubr.bf16.mxu0 %v5482
        %7713 = vmatmul.mubr.bf16.gmra.mxu0 %v5481
        %v7714 = vpop.f32.mrf.mxu0
        %v7715 = vadd.f32 %v7602, %v7714
        %v7716 = vpop.f32.mrf.mxu0
        %v7717 = vadd.f32 %v7604, %v7716
        %v7718 = vpop.f32.mrf.mxu0
        %v7719 = vadd.f32 %v7606, %v7718
        %v7720 = vpop.f32.mrf.mxu0
        %v7721 = vadd.f32 %v7608, %v7720
        %7722 = vmatprep.mubr.bf16.mxu0 %v5486
        %7723 = vmatmul.mubr.bf16.gmra.mxu0 %v5485
        %v7724 = vpop.f32.mrf.mxu0
        %v7725 = vadd.f32 %v7612, %v7724
        %v7726 = vpop.f32.mrf.mxu0
        %v7727 = vadd.f32 %v7614, %v7726
        %v7728 = vpop.f32.mrf.mxu0
        %v7729 = vadd.f32 %v7616, %v7728
        %v7730 = vpop.f32.mrf.mxu0
        %v7731 = vadd.f32 %v7618, %v7730
        %7732 = vdwg.mxu0
        %7733 = vmatprep.subr.bf16.mxu0 %v7282
        %7734 = vmatpush1.bf16.msra.mxu0 %v7281
        %7735 = vmatprep.subr.bf16.mxu0 %v7278
        %7736 = vmatpush1.bf16.msra.mxu0 %v7277
        %7737 = vmatprep.subr.bf16.mxu0 %v7274
        %7738 = vmatpush1.bf16.msra.mxu0 %v7273
        %7739 = vmatprep.subr.bf16.mxu0 %v7270
        %7740 = vmatpush1.bf16.msra.mxu0 %v7269
        %7741 = vmatprep.subr.bf16.mxu0 %v7266
        %7742 = vmatpush1.bf16.msra.mxu0 %v7265
        %7743 = vmatprep.subr.bf16.mxu0 %v7262
        %7744 = vmatpush1.bf16.msra.mxu0 %v7261
        %7745 = vmatprep.subr.bf16.mxu0 %v7258
        %7746 = vmatpush1.bf16.msra.mxu0 %v7257
        %7747 = vmatprep.subr.bf16.mxu0 %v7254
        %7748 = vmatpush1.bf16.msra.mxu0 %v7253
        %7749 = vmatprep.subr.bf16.mxu0 %v7314
        %7750 = vmatpush2.bf16.msra.mxu0 %v7313
        %7751 = vmatprep.subr.bf16.mxu0 %v7310
        %7752 = vmatpush2.bf16.msra.mxu0 %v7309
        %7753 = vmatprep.subr.bf16.mxu0 %v7306
        %7754 = vmatpush2.bf16.msra.mxu0 %v7305
        %7755 = vmatprep.subr.bf16.mxu0 %v7302
        %7756 = vmatpush2.bf16.msra.mxu0 %v7301
        %7757 = vmatprep.subr.bf16.mxu0 %v7298
        %7758 = vmatpush2.bf16.msra.mxu0 %v7297
        %7759 = vmatprep.subr.bf16.mxu0 %v7294
        %7760 = vmatpush2.bf16.msra.mxu0 %v7293
        %7761 = vmatprep.subr.bf16.mxu0 %v7290
        %7762 = vmatpush2.bf16.msra.mxu0 %v7289
        %7763 = vmatprep.subr.bf16.mxu0 %v7286
        %7764 = vmatpush2.bf16.msra.mxu0 %v7285
        %7765 = vmatprep.mubr.bf16.mxu0 %v5456
        %7766 = vmatmul.mubr.bf16.gmra.mxu0 %v5455
        %v7767 = vpop.f32.mrf.mxu0
        %v7768 = vadd.f32 %v6789, %v7767
        %v7769 = vpop.f32.mrf.mxu0
        %v7770 = vadd.f32 %v6791, %v7769
        %v7771 = vpop.f32.mrf.mxu0
        %v7772 = vadd.f32 %v6793, %v7771
        %v7773 = vpop.f32.mrf.mxu0
        %v7774 = vadd.f32 %v6795, %v7773
        %7775 = vmatprep.mubr.bf16.mxu0 %v5460
        %7776 = vmatmul.mubr.bf16.gmra.mxu0 %v5459
        %v7777 = vpop.f32.mrf.mxu0
        %v7778 = vadd.f32 %v6799, %v7777
        %v7779 = vpop.f32.mrf.mxu0
        %v7780 = vadd.f32 %v6801, %v7779
        %v7781 = vpop.f32.mrf.mxu0
        %v7782 = vadd.f32 %v6803, %v7781
        %v7783 = vpop.f32.mrf.mxu0
        %v7784 = vadd.f32 %v6805, %v7783
        %7785 = vmatprep.mubr.bf16.mxu0 %v5464
        %7786 = vmatmul.mubr.bf16.gmra.mxu0 %v5463
        %v7787 = vpop.f32.mrf.mxu0
        %v7788 = vadd.f32 %v6809, %v7787
        %v7789 = vpop.f32.mrf.mxu0
        %v7790 = vadd.f32 %v6811, %v7789
        %v7791 = vpop.f32.mrf.mxu0
        %v7792 = vadd.f32 %v6813, %v7791
        %v7793 = vpop.f32.mrf.mxu0
        %v7794 = vadd.f32 %v6815, %v7793
        %7795 = vmatprep.mubr.bf16.mxu0 %v5468
        %7796 = vmatmul.mubr.bf16.gmra.mxu0 %v5467
        %v7797 = vpop.f32.mrf.mxu0
        %v7798 = vadd.f32 %v6819, %v7797
        %v7799 = vpop.f32.mrf.mxu0
        %v7800 = vadd.f32 %v6821, %v7799
        %v7801 = vpop.f32.mrf.mxu0
        %v7802 = vadd.f32 %v6823, %v7801
        %v7803 = vpop.f32.mrf.mxu0
        %v7804 = vadd.f32 %v6825, %v7803
        %7805 = vmatprep.mubr.bf16.mxu0 %v5472
        %7806 = vmatmul.mubr.bf16.gmra.mxu0 %v5471
        %v7807 = vpop.f32.mrf.mxu0
        %v7808 = vadd.f32 %v6829, %v7807
        %v7809 = vpop.f32.mrf.mxu0
        %v7810 = vadd.f32 %v6831, %v7809
        %v7811 = vpop.f32.mrf.mxu0
        %v7812 = vadd.f32 %v6833, %v7811
        %v7813 = vpop.f32.mrf.mxu0
        %v7814 = vadd.f32 %v6835, %v7813
        %7815 = vmatprep.mubr.bf16.mxu0 %v5476
        %7816 = vmatmul.mubr.bf16.gmra.mxu0 %v5475
        %v7817 = vpop.f32.mrf.mxu0
        %v7818 = vadd.f32 %v6839, %v7817
        %v7819 = vpop.f32.mrf.mxu0
        %v7820 = vadd.f32 %v6841, %v7819
        %v7821 = vpop.f32.mrf.mxu0
        %v7822 = vadd.f32 %v6843, %v7821
        %v7823 = vpop.f32.mrf.mxu0
        %v7824 = vadd.f32 %v6845, %v7823
        %7825 = vmatprep.mubr.bf16.mxu0 %v5480
        %7826 = vmatmul.mubr.bf16.gmra.mxu0 %v5479
        %v7827 = vpop.f32.mrf.mxu0
        %v7828 = vadd.f32 %v6849, %v7827
        %v7829 = vpop.f32.mrf.mxu0
        %v7830 = vadd.f32 %v6851, %v7829
        %v7831 = vpop.f32.mrf.mxu0
        %v7832 = vadd.f32 %v6853, %v7831
        %v7833 = vpop.f32.mrf.mxu0
        %v7834 = vadd.f32 %v6855, %v7833
        %7835 = vmatprep.mubr.bf16.mxu0 %v5484
        %7836 = vmatmul.mubr.bf16.gmra.mxu0 %v5483
        %v7837 = vpop.f32.mrf.mxu0
        %v7838 = vadd.f32 %v6859, %v7837
        %v7839 = vpop.f32.mrf.mxu0
        %v7840 = vadd.f32 %v6861, %v7839
        %v7841 = vpop.f32.mrf.mxu0
        %v7842 = vadd.f32 %v6863, %v7841
        %v7843 = vpop.f32.mrf.mxu0
        %v7844 = vadd.f32 %v6865, %v7843
        %7845 = vdwg.mxu0
        %7846 = vmatprep.subr.bf16.mxu0 %v7346
        %7847 = vmatpush1.bf16.msra.mxu0 %v7345
        %7848 = vmatprep.subr.bf16.mxu0 %v7342
        %7849 = vmatpush1.bf16.msra.mxu0 %v7341
        %7850 = vmatprep.subr.bf16.mxu0 %v7338
        %7851 = vmatpush1.bf16.msra.mxu0 %v7337
        %7852 = vmatprep.subr.bf16.mxu0 %v7334
        %7853 = vmatpush1.bf16.msra.mxu0 %v7333
        %7854 = vmatprep.subr.bf16.mxu0 %v7330
        %7855 = vmatpush1.bf16.msra.mxu0 %v7329
        %7856 = vmatprep.subr.bf16.mxu0 %v7326
        %7857 = vmatpush1.bf16.msra.mxu0 %v7325
        %7858 = vmatprep.subr.bf16.mxu0 %v7322
        %7859 = vmatpush1.bf16.msra.mxu0 %v7321
        %7860 = vmatprep.subr.bf16.mxu0 %v7318
        %7861 = vmatpush1.bf16.msra.mxu0 %v7317
        %7862 = vmatprep.subr.bf16.mxu0 %v7378
        %7863 = vmatpush2.bf16.msra.mxu0 %v7377
        %7864 = vmatprep.subr.bf16.mxu0 %v7374
        %7865 = vmatpush2.bf16.msra.mxu0 %v7373
        %7866 = vmatprep.subr.bf16.mxu0 %v7370
        %7867 = vmatpush2.bf16.msra.mxu0 %v7369
        %7868 = vmatprep.subr.bf16.mxu0 %v7366
        %7869 = vmatpush2.bf16.msra.mxu0 %v7365
        %7870 = vmatprep.subr.bf16.mxu0 %v7362
        %7871 = vmatpush2.bf16.msra.mxu0 %v7361
        %7872 = vmatprep.subr.bf16.mxu0 %v7358
        %7873 = vmatpush2.bf16.msra.mxu0 %v7357
        %7874 = vmatprep.subr.bf16.mxu0 %v7354
        %7875 = vmatpush2.bf16.msra.mxu0 %v7353
        %7876 = vmatprep.subr.bf16.mxu0 %v7350
        %7877 = vmatpush2.bf16.msra.mxu0 %v7349
        %7878 = vmatprep.mubr.bf16.mxu0 %v5458
        %7879 = vmatmul.mubr.bf16.gmra.mxu0 %v5457
        %v7880 = vpop.f32.mrf.mxu0
        %v7881 = vadd.f32 %v7768, %v7880
        %v7882 = vpop.f32.mrf.mxu0
        %v7883 = vadd.f32 %v7770, %v7882
        %v7884 = vpop.f32.mrf.mxu0
        %v7885 = vadd.f32 %v7772, %v7884
        %v7886 = vpop.f32.mrf.mxu0
        %v7887 = vadd.f32 %v7774, %v7886
        %7888 = vmatprep.mubr.bf16.mxu0 %v5462
        %7889 = vmatmul.mubr.bf16.gmra.mxu0 %v5461
        %v7890 = vpop.f32.mrf.mxu0
        %v7891 = vadd.f32 %v7778, %v7890
        %v7892 = vpop.f32.mrf.mxu0
        %v7893 = vadd.f32 %v7780, %v7892
        %v7894 = vpop.f32.mrf.mxu0
        %v7895 = vadd.f32 %v7782, %v7894
        %v7896 = vpop.f32.mrf.mxu0
        %v7897 = vadd.f32 %v7784, %v7896
        %7898 = vmatprep.mubr.bf16.mxu0 %v5466
        %7899 = vmatmul.mubr.bf16.gmra.mxu0 %v5465
        %v7900 = vpop.f32.mrf.mxu0
        %v7901 = vadd.f32 %v7788, %v7900
        %v7902 = vpop.f32.mrf.mxu0
        %v7903 = vadd.f32 %v7790, %v7902
        %v7904 = vpop.f32.mrf.mxu0
        %v7905 = vadd.f32 %v7792, %v7904
        %v7906 = vpop.f32.mrf.mxu0
        %v7907 = vadd.f32 %v7794, %v7906
        %7908 = vmatprep.mubr.bf16.mxu0 %v5470
        %7909 = vmatmul.mubr.bf16.gmra.mxu0 %v5469
        %v7910 = vpop.f32.mrf.mxu0
        %v7911 = vadd.f32 %v7798, %v7910
        %v7912 = vpop.f32.mrf.mxu0
        %v7913 = vadd.f32 %v7800, %v7912
        %v7914 = vpop.f32.mrf.mxu0
        %v7915 = vadd.f32 %v7802, %v7914
        %v7916 = vpop.f32.mrf.mxu0
        %v7917 = vadd.f32 %v7804, %v7916
        %7918 = vmatprep.mubr.bf16.mxu0 %v5474
        %7919 = vmatmul.mubr.bf16.gmra.mxu0 %v5473
        %v7920 = vpop.f32.mrf.mxu0
        %v7921 = vadd.f32 %v7808, %v7920
        %v7922 = vpop.f32.mrf.mxu0
        %v7923 = vadd.f32 %v7810, %v7922
        %v7924 = vpop.f32.mrf.mxu0
        %v7925 = vadd.f32 %v7812, %v7924
        %v7926 = vpop.f32.mrf.mxu0
        %v7927 = vadd.f32 %v7814, %v7926
        %7928 = vmatprep.mubr.bf16.mxu0 %v5478
        %7929 = vmatmul.mubr.bf16.gmra.mxu0 %v5477
        %v7930 = vpop.f32.mrf.mxu0
        %v7931 = vadd.f32 %v7818, %v7930
        %v7932 = vpop.f32.mrf.mxu0
        %v7933 = vadd.f32 %v7820, %v7932
        %v7934 = vpop.f32.mrf.mxu0
        %v7935 = vadd.f32 %v7822, %v7934
        %v7936 = vpop.f32.mrf.mxu0
        %v7937 = vadd.f32 %v7824, %v7936
        %7938 = vmatprep.mubr.bf16.mxu0 %v5482
        %7939 = vmatmul.mubr.bf16.gmra.mxu0 %v5481
        %v7940 = vpop.f32.mrf.mxu0
        %v7941 = vadd.f32 %v7828, %v7940
        %v7942 = vpop.f32.mrf.mxu0
        %v7943 = vadd.f32 %v7830, %v7942
        %v7944 = vpop.f32.mrf.mxu0
        %v7945 = vadd.f32 %v7832, %v7944
        %v7946 = vpop.f32.mrf.mxu0
        %v7947 = vadd.f32 %v7834, %v7946
        %7948 = vmatprep.mubr.bf16.mxu0 %v5486
        %7949 = vmatmul.mubr.bf16.gmra.mxu0 %v5485
        %v7950 = vpop.f32.mrf.mxu0
        %v7951 = vadd.f32 %v7838, %v7950
        %v7952 = vpop.f32.mrf.mxu0
        %v7953 = vadd.f32 %v7840, %v7952
        %v7954 = vpop.f32.mrf.mxu0
        %v7955 = vadd.f32 %v7842, %v7954
        %v7956 = vpop.f32.mrf.mxu0
        %v7957 = vadd.f32 %v7844, %v7956
        %7958 = vdwg.mxu0
        %v7959 = vld [vmem:[%s483] sm:$0xf]
        %v7960 = vld [vmem:[%s483 + $0x4] sm:$0xf]
        %v7961 = vld [vmem:[%s483 + $0x8] sm:$0xf]
        %v7962 = vld [vmem:[%s483 + $0xc] sm:$0xf]
        %v7963 = vld [vmem:[%s483 + $0x10] sm:$0xf]
        %v7964 = vld [vmem:[%s483 + $0x14] sm:$0xf]
        %v7965 = vld [vmem:[%s483 + $0x18] sm:$0xf]
        %v7966 = vld [vmem:[%s483 + $0x1c] sm:$0xf]
        %v7967 = vld [vmem:[%s483 + $0x20] sm:$0xf]
        %v7968 = vld [vmem:[%s483 + $0x24] sm:$0xf]
        %v7969 = vld [vmem:[%s483 + $0x28] sm:$0xf]
        %v7970 = vld [vmem:[%s483 + $0x2c] sm:$0xf]
        %v7971 = vld [vmem:[%s483 + $0x30] sm:$0xf]
        %v7972 = vld [vmem:[%s483 + $0x34] sm:$0xf]
        %v7973 = vld [vmem:[%s483 + $0x38] sm:$0xf]
        %v7974 = vld [vmem:[%s483 + $0x3c] sm:$0xf]
        %v7975 = vpack.c.bf16 %v7659, %v7655
        %v7976 = vpack.c.bf16 %v7661, %v7657
        %v7977 = vpack.c.bf16 %v7885, %v7881
        %v7978 = vpack.c.bf16 %v7887, %v7883
        %v7979 = vpack.c.bf16 %v7669, %v7665
        %v7980 = vpack.c.bf16 %v7671, %v7667
        %v7981 = vpack.c.bf16 %v7895, %v7891
        %v7982 = vpack.c.bf16 %v7897, %v7893
        %v7983 = vpack.c.bf16 %v7679, %v7675
        %v7984 = vpack.c.bf16 %v7681, %v7677
        %v7985 = vpack.c.bf16 %v7905, %v7901
        %v7986 = vpack.c.bf16 %v7907, %v7903
        %v7987 = vpack.c.bf16 %v7689, %v7685
        %v7988 = vpack.c.bf16 %v7691, %v7687
        %v7989 = vpack.c.bf16 %v7915, %v7911
        %v7990 = vpack.c.bf16 %v7917, %v7913
        %v7991 = vpack.c.bf16 %v7699, %v7695
        %v7992 = vpack.c.bf16 %v7701, %v7697
        %v7993 = vpack.c.bf16 %v7925, %v7921
        %v7994 = vpack.c.bf16 %v7927, %v7923
        %v7995 = vpack.c.bf16 %v7709, %v7705
        %v7996 = vpack.c.bf16 %v7711, %v7707
        %v7997 = vpack.c.bf16 %v7935, %v7931
        %v7998 = vpack.c.bf16 %v7937, %v7933
        %v7999 = vpack.c.bf16 %v7719, %v7715
        %v8000 = vpack.c.bf16 %v7721, %v7717
        %v8001 = vpack.c.bf16 %v7945, %v7941
        %v8002 = vpack.c.bf16 %v7947, %v7943
        %v8003 = vpack.c.bf16 %v7729, %v7725
        %v8004 = vpack.c.bf16 %v7731, %v7727
        %v8005 = vpack.c.bf16 %v7955, %v7951
        %v8006 = vpack.c.bf16 %v7957, %v7953
        %v8007 = vld [vmem:[%s7] sm:$0xf]
        %v8009 = vlaneseq
        %v8010 = vshrl.u32 %v8009, 7
        %v8011 = vsub.s32 0, %v8010
        %v8012 = vrot.slane %v8007, %v8011
        %v8013 = vlaneseq
        %v8014 = vshrl.u32 %v8013, 7
        %v8015 = vsub.s32 1, %v8014
        %v8016 = vrot.slane %v8007, %v8015
        %v8017 = vlaneseq
        %v8018 = vshrl.u32 %v8017, 7
        %v8019 = vsub.s32 2, %v8018
        %v8020 = vrot.slane %v8007, %v8019
        %v8021 = vlaneseq
        %v8022 = vshrl.u32 %v8021, 7
        %v8023 = vsub.s32 3, %v8022
        %v8024 = vrot.slane %v8007, %v8023
        %v8045 = vunpack.c.l.b16 %v7959
        %v8046 = vunpack.c.l.b16 %v7960
        %v8047 = vunpack.c.l.b16 %v7961
        %v8048 = vunpack.c.l.b16 %v7962
        %v8049 = vunpack.c.l.b16 %v7963
        %v8050 = vunpack.c.l.b16 %v7964
        %v8051 = vunpack.c.l.b16 %v7965
        %v8052 = vunpack.c.l.b16 %v7966
        %v8053 = vunpack.c.l.b16 %v7967
        %v8054 = vunpack.c.l.b16 %v7968
        %v8055 = vunpack.c.l.b16 %v7969
        %v8056 = vunpack.c.l.b16 %v7970
        %v8057 = vunpack.c.l.b16 %v7971
        %v8058 = vunpack.c.l.b16 %v7972
        %v8059 = vunpack.c.l.b16 %v7973
        %v8060 = vunpack.c.l.b16 %v7974
        %v8061 = vpack.c.b16 %v8046, %v8045
        %v8062 = vpack.c.b16 %v8048, %v8047
        %v8063 = vpack.c.b16 %v8050, %v8049
        %v8064 = vpack.c.b16 %v8052, %v8051
        %v8065 = vpack.c.b16 %v8054, %v8053
        %v8066 = vpack.c.b16 %v8056, %v8055
        %v8067 = vpack.c.b16 %v8058, %v8057
        %v8068 = vpack.c.b16 %v8060, %v8059
        %8077 = vmatprep.subr.bf16.mxu0 %v8004
        %8078 = vmatpush1.bf16.msra.mxu0 %v8003
        %8079 = vmatprep.subr.bf16.mxu0 %v8000
        %8080 = vmatpush1.bf16.msra.mxu0 %v7999
        %8081 = vmatprep.subr.bf16.mxu0 %v7996
        %8082 = vmatpush1.bf16.msra.mxu0 %v7995
        %8083 = vmatprep.subr.bf16.mxu0 %v7992
        %8084 = vmatpush1.bf16.msra.mxu0 %v7991
        %8085 = vmatprep.subr.bf16.mxu0 %v7988
        %8086 = vmatpush1.bf16.msra.mxu0 %v7987
        %8087 = vmatprep.subr.bf16.mxu0 %v7984
        %8088 = vmatpush1.bf16.msra.mxu0 %v7983
        %8089 = vmatprep.subr.bf16.mxu0 %v7980
        %8090 = vmatpush1.bf16.msra.mxu0 %v7979
        %8091 = vmatprep.subr.bf16.mxu0 %v7976
        %8092 = vmatpush1.bf16.msra.mxu0 %v7975
        %8093 = vmatprep.subr.bf16.mxu0 0
        %8094 = vmatpush2.bf16.msra.mxu0 0
        %8095 = vmatprep.subr.bf16.mxu0 0
        %8096 = vmatpush2.bf16.msra.mxu0 0
        %8097 = vmatprep.subr.bf16.mxu0 0
        %8098 = vmatpush2.bf16.msra.mxu0 0
        %8099 = vmatprep.subr.bf16.mxu0 0
        %8100 = vmatpush2.bf16.msra.mxu0 0
        %8101 = vmatprep.subr.bf16.mxu0 0
        %8102 = vmatpush2.bf16.msra.mxu0 0
        %8103 = vmatprep.subr.bf16.mxu0 0
        %8104 = vmatpush2.bf16.msra.mxu0 0
        %8105 = vmatprep.subr.bf16.mxu0 0
        %8106 = vmatpush2.bf16.msra.mxu0 0
        %8107 = vmatprep.subr.bf16.mxu0 0
        %8108 = vmatpush2.bf16.msra.mxu0 0
        %8109 = vmatprep.mubr.bf16.mxu0 0
        %8110 = vmatmul.mubr.bf16.gmra.mxu0 %v8061
        %v8111 = vpop.f32.mrf.mxu0
        %v8112 = vadd.f32 %v8012, %v8111
        %v8113 = vpop.f32.mrf.mxu0
        %v8114 = vadd.f32 %v8016, %v8113
        %v8115 = vpop.f32.mrf.mxu0
        %v8116 = vadd.f32 %v8012, %v8115
        %v8117 = vpop.f32.mrf.mxu0
        %v8118 = vadd.f32 %v8016, %v8117
        %8119 = vmatprep.mubr.bf16.mxu0 0
        %8120 = vmatmul.mubr.bf16.gmra.mxu0 %v8062
        %v8121 = vpop.f32.mrf.mxu0
        %v8122 = vadd.f32 %v8012, %v8121
        %v8123 = vpop.f32.mrf.mxu0
        %v8124 = vadd.f32 %v8016, %v8123
        %v8125 = vpop.f32.mrf.mxu0
        %v8126 = vadd.f32 %v8012, %v8125
        %v8127 = vpop.f32.mrf.mxu0
        %v8128 = vadd.f32 %v8016, %v8127
        %8129 = vmatprep.mubr.bf16.mxu0 0
        %8130 = vmatmul.mubr.bf16.gmra.mxu0 %v8063
        %v8131 = vpop.f32.mrf.mxu0
        %v8132 = vadd.f32 %v8012, %v8131
        %v8133 = vpop.f32.mrf.mxu0
        %v8134 = vadd.f32 %v8016, %v8133
        %v8135 = vpop.f32.mrf.mxu0
        %v8136 = vadd.f32 %v8012, %v8135
        %v8137 = vpop.f32.mrf.mxu0
        %v8138 = vadd.f32 %v8016, %v8137
        %8139 = vmatprep.mubr.bf16.mxu0 0
        %8140 = vmatmul.mubr.bf16.gmra.mxu0 %v8064
        %v8141 = vpop.f32.mrf.mxu0
        %v8142 = vadd.f32 %v8012, %v8141
        %v8143 = vpop.f32.mrf.mxu0
        %v8144 = vadd.f32 %v8016, %v8143
        %v8145 = vpop.f32.mrf.mxu0
        %v8146 = vadd.f32 %v8012, %v8145
        %v8147 = vpop.f32.mrf.mxu0
        %v8148 = vadd.f32 %v8016, %v8147
        %8149 = vmatprep.mubr.bf16.mxu0 0
        %8150 = vmatmul.mubr.bf16.gmra.mxu0 %v8065
        %v8151 = vpop.f32.mrf.mxu0
        %v8152 = vadd.f32 %v8012, %v8151
        %v8153 = vpop.f32.mrf.mxu0
        %v8154 = vadd.f32 %v8016, %v8153
        %v8155 = vpop.f32.mrf.mxu0
        %v8156 = vadd.f32 %v8012, %v8155
        %v8157 = vpop.f32.mrf.mxu0
        %v8158 = vadd.f32 %v8016, %v8157
        %8159 = vmatprep.mubr.bf16.mxu0 0
        %8160 = vmatmul.mubr.bf16.gmra.mxu0 %v8066
        %v8161 = vpop.f32.mrf.mxu0
        %v8162 = vadd.f32 %v8012, %v8161
        %v8163 = vpop.f32.mrf.mxu0
        %v8164 = vadd.f32 %v8016, %v8163
        %v8165 = vpop.f32.mrf.mxu0
        %v8166 = vadd.f32 %v8012, %v8165
        %v8167 = vpop.f32.mrf.mxu0
        %v8168 = vadd.f32 %v8016, %v8167
        %8169 = vmatprep.mubr.bf16.mxu0 0
        %8170 = vmatmul.mubr.bf16.gmra.mxu0 %v8067
        %v8171 = vpop.f32.mrf.mxu0
        %v8172 = vadd.f32 %v8012, %v8171
        %v8173 = vpop.f32.mrf.mxu0
        %v8174 = vadd.f32 %v8016, %v8173
        %v8175 = vpop.f32.mrf.mxu0
        %v8176 = vadd.f32 %v8012, %v8175
        %v8177 = vpop.f32.mrf.mxu0
        %v8178 = vadd.f32 %v8016, %v8177
        %8179 = vmatprep.mubr.bf16.mxu0 0
        %8180 = vmatmul.mubr.bf16.gmra.mxu0 %v8068
        %v8181 = vpop.f32.mrf.mxu0
        %v8182 = vadd.f32 %v8012, %v8181
        %v8183 = vpop.f32.mrf.mxu0
        %v8184 = vadd.f32 %v8016, %v8183
        %v8185 = vpop.f32.mrf.mxu0
        %v8186 = vadd.f32 %v8012, %v8185
        %v8187 = vpop.f32.mrf.mxu0
        %v8188 = vadd.f32 %v8016, %v8187
        %8189 = vdwg.mxu0
        %8190 = vmatprep.subr.bf16.mxu0 %v8006
        %8191 = vmatpush1.bf16.msra.mxu0 %v8005
        %8192 = vmatprep.subr.bf16.mxu0 %v8002
        %8193 = vmatpush1.bf16.msra.mxu0 %v8001
        %8194 = vmatprep.subr.bf16.mxu0 %v7998
        %8195 = vmatpush1.bf16.msra.mxu0 %v7997
        %8196 = vmatprep.subr.bf16.mxu0 %v7994
        %8197 = vmatpush1.bf16.msra.mxu0 %v7993
        %8198 = vmatprep.subr.bf16.mxu0 %v7990
        %8199 = vmatpush1.bf16.msra.mxu0 %v7989
        %8200 = vmatprep.subr.bf16.mxu0 %v7986
        %8201 = vmatpush1.bf16.msra.mxu0 %v7985
        %8202 = vmatprep.subr.bf16.mxu0 %v7982
        %8203 = vmatpush1.bf16.msra.mxu0 %v7981
        %8204 = vmatprep.subr.bf16.mxu0 %v7978
        %8205 = vmatpush1.bf16.msra.mxu0 %v7977
        %8206 = vmatprep.subr.bf16.mxu0 0
        %8207 = vmatpush2.bf16.msra.mxu0 0
        %8208 = vmatprep.subr.bf16.mxu0 0
        %8209 = vmatpush2.bf16.msra.mxu0 0
        %8210 = vmatprep.subr.bf16.mxu0 0
        %8211 = vmatpush2.bf16.msra.mxu0 0
        %8212 = vmatprep.subr.bf16.mxu0 0
        %8213 = vmatpush2.bf16.msra.mxu0 0
        %8214 = vmatprep.subr.bf16.mxu0 0
        %8215 = vmatpush2.bf16.msra.mxu0 0
        %8216 = vmatprep.subr.bf16.mxu0 0
        %8217 = vmatpush2.bf16.msra.mxu0 0
        %8218 = vmatprep.subr.bf16.mxu0 0
        %8219 = vmatpush2.bf16.msra.mxu0 0
        %8220 = vmatprep.subr.bf16.mxu0 0
        %8221 = vmatpush2.bf16.msra.mxu0 0
        %8222 = vmatprep.mubr.bf16.mxu0 0
        %8223 = vmatmul.mubr.bf16.gmra.mxu0 %v8061
        %v8224 = vpop.f32.mrf.mxu0
        %v8225 = vadd.f32 %v8020, %v8224
        %v8226 = vpop.f32.mrf.mxu0
        %v8227 = vadd.f32 %v8024, %v8226
        %v8228 = vpop.f32.mrf.mxu0
        %v8229 = vadd.f32 %v8020, %v8228
        %v8230 = vpop.f32.mrf.mxu0
        %v8231 = vadd.f32 %v8024, %v8230
        %8232 = vmatprep.mubr.bf16.mxu0 0
        %8233 = vmatmul.mubr.bf16.gmra.mxu0 %v8062
        %v8234 = vpop.f32.mrf.mxu0
        %v8235 = vadd.f32 %v8020, %v8234
        %v8236 = vpop.f32.mrf.mxu0
        %v8237 = vadd.f32 %v8024, %v8236
        %v8238 = vpop.f32.mrf.mxu0
        %v8239 = vadd.f32 %v8020, %v8238
        %v8240 = vpop.f32.mrf.mxu0
        %v8241 = vadd.f32 %v8024, %v8240
        %8242 = vmatprep.mubr.bf16.mxu0 0
        %8243 = vmatmul.mubr.bf16.gmra.mxu0 %v8063
        %v8244 = vpop.f32.mrf.mxu0
        %v8245 = vadd.f32 %v8020, %v8244
        %v8246 = vpop.f32.mrf.mxu0
        %v8247 = vadd.f32 %v8024, %v8246
        %v8248 = vpop.f32.mrf.mxu0
        %v8249 = vadd.f32 %v8020, %v8248
        %v8250 = vpop.f32.mrf.mxu0
        %v8251 = vadd.f32 %v8024, %v8250
        %8252 = vmatprep.mubr.bf16.mxu0 0
        %8253 = vmatmul.mubr.bf16.gmra.mxu0 %v8064
        %v8254 = vpop.f32.mrf.mxu0
        %v8255 = vadd.f32 %v8020, %v8254
        %v8256 = vpop.f32.mrf.mxu0
        %v8257 = vadd.f32 %v8024, %v8256
        %v8258 = vpop.f32.mrf.mxu0
        %v8259 = vadd.f32 %v8020, %v8258
        %v8260 = vpop.f32.mrf.mxu0
        %v8261 = vadd.f32 %v8024, %v8260
        %8262 = vmatprep.mubr.bf16.mxu0 0
        %8263 = vmatmul.mubr.bf16.gmra.mxu0 %v8065
        %v8264 = vpop.f32.mrf.mxu0
        %v8265 = vadd.f32 %v8020, %v8264
        %v8266 = vpop.f32.mrf.mxu0
        %v8267 = vadd.f32 %v8024, %v8266
        %v8268 = vpop.f32.mrf.mxu0
        %v8269 = vadd.f32 %v8020, %v8268
        %v8270 = vpop.f32.mrf.mxu0
        %v8271 = vadd.f32 %v8024, %v8270
        %8272 = vmatprep.mubr.bf16.mxu0 0
        %8273 = vmatmul.mubr.bf16.gmra.mxu0 %v8066
        %v8274 = vpop.f32.mrf.mxu0
        %v8275 = vadd.f32 %v8020, %v8274
        %v8276 = vpop.f32.mrf.mxu0
        %v8277 = vadd.f32 %v8024, %v8276
        %v8278 = vpop.f32.mrf.mxu0
        %v8279 = vadd.f32 %v8020, %v8278
        %v8280 = vpop.f32.mrf.mxu0
        %v8281 = vadd.f32 %v8024, %v8280
        %8282 = vmatprep.mubr.bf16.mxu0 0
        %8283 = vmatmul.mubr.bf16.gmra.mxu0 %v8067
        %v8284 = vpop.f32.mrf.mxu0
        %v8285 = vadd.f32 %v8020, %v8284
        %v8286 = vpop.f32.mrf.mxu0
        %v8287 = vadd.f32 %v8024, %v8286
        %v8288 = vpop.f32.mrf.mxu0
        %v8289 = vadd.f32 %v8020, %v8288
        %v8290 = vpop.f32.mrf.mxu0
        %v8291 = vadd.f32 %v8024, %v8290
        %8292 = vmatprep.mubr.bf16.mxu0 0
        %8293 = vmatmul.mubr.bf16.gmra.mxu0 %v8068
        %v8294 = vpop.f32.mrf.mxu0
        %v8295 = vadd.f32 %v8020, %v8294
        %v8296 = vpop.f32.mrf.mxu0
        %v8297 = vadd.f32 %v8024, %v8296
        %v8298 = vpop.f32.mrf.mxu0
        %v8299 = vadd.f32 %v8020, %v8298
        %v8300 = vpop.f32.mrf.mxu0
        %v8301 = vadd.f32 %v8024, %v8300
        %8302 = vdwg.mxu0
        %v8303 = vmax.f32 %v8112, 0.0
        %v8304 = vmax.f32 %v8114, 0.0
        %v8305 = vmax.f32 %v8225, 0.0
        %v8306 = vmax.f32 %v8227, 0.0
        %v8307 = vmax.f32 %v8116, 0.0
        %v8308 = vmax.f32 %v8118, 0.0
        %v8309 = vmax.f32 %v8229, 0.0
        %v8310 = vmax.f32 %v8231, 0.0
        %v8311 = vmax.f32 %v8122, 0.0
        %v8312 = vmax.f32 %v8124, 0.0
        %v8313 = vmax.f32 %v8235, 0.0
        %v8314 = vmax.f32 %v8237, 0.0
        %v8315 = vmax.f32 %v8126, 0.0
        %v8316 = vmax.f32 %v8128, 0.0
        %v8317 = vmax.f32 %v8239, 0.0
        %v8318 = vmax.f32 %v8241, 0.0
        %v8319 = vmax.f32 %v8132, 0.0
        %v8320 = vmax.f32 %v8134, 0.0
        %v8321 = vmax.f32 %v8245, 0.0
        %v8322 = vmax.f32 %v8247, 0.0
        %v8323 = vmax.f32 %v8136, 0.0
        %v8324 = vmax.f32 %v8138, 0.0
        %v8325 = vmax.f32 %v8249, 0.0
        %v8326 = vmax.f32 %v8251, 0.0
        %v8327 = vmax.f32 %v8142, 0.0
        %v8328 = vmax.f32 %v8144, 0.0
        %v8329 = vmax.f32 %v8255, 0.0
        %v8330 = vmax.f32 %v8257, 0.0
        %v8331 = vmax.f32 %v8146, 0.0
        %v8332 = vmax.f32 %v8148, 0.0
        %v8333 = vmax.f32 %v8259, 0.0
        %v8334 = vmax.f32 %v8261, 0.0
        %v8335 = vmax.f32 %v8152, 0.0
        %v8336 = vmax.f32 %v8154, 0.0
        %v8337 = vmax.f32 %v8265, 0.0
        %v8338 = vmax.f32 %v8267, 0.0
        %v8339 = vmax.f32 %v8156, 0.0
        %v8340 = vmax.f32 %v8158, 0.0
        %v8341 = vmax.f32 %v8269, 0.0
        %v8342 = vmax.f32 %v8271, 0.0
        %v8343 = vmax.f32 %v8162, 0.0
        %v8344 = vmax.f32 %v8164, 0.0
        %v8345 = vmax.f32 %v8275, 0.0
        %v8346 = vmax.f32 %v8277, 0.0
        %v8347 = vmax.f32 %v8166, 0.0
        %v8348 = vmax.f32 %v8168, 0.0
        %v8349 = vmax.f32 %v8279, 0.0
        %v8350 = vmax.f32 %v8281, 0.0
        %v8351 = vmax.f32 %v8172, 0.0
        %v8352 = vmax.f32 %v8174, 0.0
        %v8353 = vmax.f32 %v8285, 0.0
        %v8354 = vmax.f32 %v8287, 0.0
        %v8355 = vmax.f32 %v8176, 0.0
        %v8356 = vmax.f32 %v8178, 0.0
        %v8357 = vmax.f32 %v8289, 0.0
        %v8358 = vmax.f32 %v8291, 0.0
        %v8359 = vmax.f32 %v8182, 0.0
        %v8360 = vmax.f32 %v8184, 0.0
        %v8361 = vmax.f32 %v8295, 0.0
        %v8362 = vmax.f32 %v8297, 0.0
        %v8363 = vmax.f32 %v8186, 0.0
        %v8364 = vmax.f32 %v8188, 0.0
        %v8365 = vmax.f32 %v8299, 0.0
        %v8366 = vmax.f32 %v8301, 0.0
        %v8367 = vpack.c.bf16 %v8307, %v8303
        %v8368 = vpack.c.bf16 %v8308, %v8304
        %v8369 = vpack.c.bf16 %v8309, %v8305
        %v8370 = vpack.c.bf16 %v8310, %v8306
        %v8371 = vpack.c.bf16 %v8315, %v8311
        %v8372 = vpack.c.bf16 %v8316, %v8312
        %v8373 = vpack.c.bf16 %v8317, %v8313
        %v8374 = vpack.c.bf16 %v8318, %v8314
        %v8375 = vpack.c.bf16 %v8323, %v8319
        %v8376 = vpack.c.bf16 %v8324, %v8320
        %v8377 = vpack.c.bf16 %v8325, %v8321
        %v8378 = vpack.c.bf16 %v8326, %v8322
        %v8379 = vpack.c.bf16 %v8331, %v8327
        %v8380 = vpack.c.bf16 %v8332, %v8328
        %v8381 = vpack.c.bf16 %v8333, %v8329
        %v8382 = vpack.c.bf16 %v8334, %v8330
        %v8383 = vpack.c.bf16 %v8339, %v8335
        %v8384 = vpack.c.bf16 %v8340, %v8336
        %v8385 = vpack.c.bf16 %v8341, %v8337
        %v8386 = vpack.c.bf16 %v8342, %v8338
        %v8387 = vpack.c.bf16 %v8347, %v8343
        %v8388 = vpack.c.bf16 %v8348, %v8344
        %v8389 = vpack.c.bf16 %v8349, %v8345
        %v8390 = vpack.c.bf16 %v8350, %v8346
        %v8391 = vpack.c.bf16 %v8355, %v8351
        %v8392 = vpack.c.bf16 %v8356, %v8352
        %v8393 = vpack.c.bf16 %v8357, %v8353
        %v8394 = vpack.c.bf16 %v8358, %v8354
        %v8395 = vpack.c.bf16 %v8363, %v8359
        %v8396 = vpack.c.bf16 %v8364, %v8360
        %v8397 = vpack.c.bf16 %v8365, %v8361
        %v8398 = vpack.c.bf16 %v8366, %v8362
        %v8399 = vld [vmem:[%s8] sm:$0xf]
        %v8400 = vld [vmem:[%s8 + $0x4] sm:$0xf]
        %v8401 = vld [vmem:[%s8 + $0x8] sm:$0xf]
        %v8402 = vld [vmem:[%s8 + $0xc] sm:$0xf]
        %v8403 = vld [vmem:[%s8 + $0x10] sm:$0xf]
        %v8404 = vld [vmem:[%s8 + $0x14] sm:$0xf]
        %v8405 = vld [vmem:[%s8 + $0x18] sm:$0xf]
        %v8406 = vld [vmem:[%s8 + $0x1c] sm:$0xf]
        %v8407 = vld [vmem:[%s8 + $0x20] sm:$0xf]
        %v8408 = vld [vmem:[%s8 + $0x24] sm:$0xf]
        %v8409 = vld [vmem:[%s8 + $0x28] sm:$0xf]
        %v8410 = vld [vmem:[%s8 + $0x2c] sm:$0xf]
        %v8411 = vld [vmem:[%s8 + $0x30] sm:$0xf]
        %v8412 = vld [vmem:[%s8 + $0x34] sm:$0xf]
        %v8413 = vld [vmem:[%s8 + $0x38] sm:$0xf]
        %v8414 = vld [vmem:[%s8 + $0x3c] sm:$0xf]
        %v8415 = vld [vmem:[%s8 + $0x40] sm:$0xf]
        %v8416 = vld [vmem:[%s8 + $0x44] sm:$0xf]
        %v8417 = vld [vmem:[%s8 + $0x48] sm:$0xf]
        %v8418 = vld [vmem:[%s8 + $0x4c] sm:$0xf]
        %v8419 = vld [vmem:[%s8 + $0x50] sm:$0xf]
        %v8420 = vld [vmem:[%s8 + $0x54] sm:$0xf]
        %v8421 = vld [vmem:[%s8 + $0x58] sm:$0xf]
        %v8422 = vld [vmem:[%s8 + $0x5c] sm:$0xf]
        %v8423 = vld [vmem:[%s8 + $0x60] sm:$0xf]
        %v8424 = vld [vmem:[%s8 + $0x64] sm:$0xf]
        %v8425 = vld [vmem:[%s8 + $0x68] sm:$0xf]
        %v8426 = vld [vmem:[%s8 + $0x6c] sm:$0xf]
        %v8427 = vld [vmem:[%s8 + $0x70] sm:$0xf]
        %v8428 = vld [vmem:[%s8 + $0x74] sm:$0xf]
        %v8429 = vld [vmem:[%s8 + $0x78] sm:$0xf]
        %v8430 = vld [vmem:[%s8 + $0x7c] sm:$0xf]
        %v8431 = vld [vmem:[%s8 + $0x80] sm:$0xf]
        %v8432 = vld [vmem:[%s8 + $0x84] sm:$0xf]
        %v8433 = vld [vmem:[%s8 + $0x88] sm:$0xf]
        %v8434 = vld [vmem:[%s8 + $0x8c] sm:$0xf]
        %v8435 = vld [vmem:[%s8 + $0x90] sm:$0xf]
        %v8436 = vld [vmem:[%s8 + $0x94] sm:$0xf]
        %v8437 = vld [vmem:[%s8 + $0x98] sm:$0xf]
        %v8438 = vld [vmem:[%s8 + $0x9c] sm:$0xf]
        %v8439 = vld [vmem:[%s8 + $0xa0] sm:$0xf]
        %v8440 = vld [vmem:[%s8 + $0xa4] sm:$0xf]
        %v8441 = vld [vmem:[%s8 + $0xa8] sm:$0xf]
        %v8442 = vld [vmem:[%s8 + $0xac] sm:$0xf]
        %v8443 = vld [vmem:[%s8 + $0xb0] sm:$0xf]
        %v8444 = vld [vmem:[%s8 + $0xb4] sm:$0xf]
        %v8445 = vld [vmem:[%s8 + $0xb8] sm:$0xf]
        %v8446 = vld [vmem:[%s8 + $0xbc] sm:$0xf]
        %v8447 = vld [vmem:[%s8 + $0xc0] sm:$0xf]
        %v8448 = vld [vmem:[%s8 + $0xc4] sm:$0xf]
        %v8449 = vld [vmem:[%s8 + $0xc8] sm:$0xf]
        %v8450 = vld [vmem:[%s8 + $0xcc] sm:$0xf]
        %v8451 = vld [vmem:[%s8 + $0xd0] sm:$0xf]
        %v8452 = vld [vmem:[%s8 + $0xd4] sm:$0xf]
        %v8453 = vld [vmem:[%s8 + $0xd8] sm:$0xf]
        %v8454 = vld [vmem:[%s8 + $0xdc] sm:$0xf]
        %v8455 = vld [vmem:[%s8 + $0xe0] sm:$0xf]
        %v8456 = vld [vmem:[%s8 + $0xe4] sm:$0xf]
        %v8457 = vld [vmem:[%s8 + $0xe8] sm:$0xf]
        %v8458 = vld [vmem:[%s8 + $0xec] sm:$0xf]
        %v8459 = vld [vmem:[%s8 + $0xf0] sm:$0xf]
        %v8460 = vld [vmem:[%s8 + $0xf4] sm:$0xf]
        %v8461 = vld [vmem:[%s8 + $0xf8] sm:$0xf]
        %v8462 = vld [vmem:[%s8 + $0xfc] sm:$0xf]
        %v8463 = vld [vmem:[%s9] sm:$0x1]
        %v8465 = vlaneseq
        %v8466 = vshrl.u32 %v8465, 7
        %v8467 = vsub.s32 0, %v8466
        %v8468 = vrot.slane %v8463, %v8467
        %v8534 = vunpack.c.l.b16 %v8399
        %v8535 = vunpack.c.l.b16 %v8400
        %v8536 = vunpack.c.l.b16 %v8401
        %v8537 = vunpack.c.l.b16 %v8402
        %v8538 = vunpack.c.l.b16 %v8403
        %v8539 = vunpack.c.l.b16 %v8404
        %v8540 = vunpack.c.l.b16 %v8405
        %v8541 = vunpack.c.l.b16 %v8406
        %v8542 = vunpack.c.l.b16 %v8407
        %v8543 = vunpack.c.l.b16 %v8408
        %v8544 = vunpack.c.l.b16 %v8409
        %v8545 = vunpack.c.l.b16 %v8410
        %v8546 = vunpack.c.l.b16 %v8411
        %v8547 = vunpack.c.l.b16 %v8412
        %v8548 = vunpack.c.l.b16 %v8413
        %v8549 = vunpack.c.l.b16 %v8414
        %v8550 = vunpack.c.l.b16 %v8415
        %v8551 = vunpack.c.l.b16 %v8416
        %v8552 = vunpack.c.l.b16 %v8417
        %v8553 = vunpack.c.l.b16 %v8418
        %v8554 = vunpack.c.l.b16 %v8419
        %v8555 = vunpack.c.l.b16 %v8420
        %v8556 = vunpack.c.l.b16 %v8421
        %v8557 = vunpack.c.l.b16 %v8422
        %v8558 = vunpack.c.l.b16 %v8423
        %v8559 = vunpack.c.l.b16 %v8424
        %v8560 = vunpack.c.l.b16 %v8425
        %v8561 = vunpack.c.l.b16 %v8426
        %v8562 = vunpack.c.l.b16 %v8427
        %v8563 = vunpack.c.l.b16 %v8428
        %v8564 = vunpack.c.l.b16 %v8429
        %v8565 = vunpack.c.l.b16 %v8430
        %v8566 = vunpack.c.l.b16 %v8431
        %v8567 = vunpack.c.l.b16 %v8432
        %v8568 = vunpack.c.l.b16 %v8433
        %v8569 = vunpack.c.l.b16 %v8434
        %v8570 = vunpack.c.l.b16 %v8435
        %v8571 = vunpack.c.l.b16 %v8436
        %v8572 = vunpack.c.l.b16 %v8437
        %v8573 = vunpack.c.l.b16 %v8438
        %v8574 = vunpack.c.l.b16 %v8439
        %v8575 = vunpack.c.l.b16 %v8440
        %v8576 = vunpack.c.l.b16 %v8441
        %v8577 = vunpack.c.l.b16 %v8442
        %v8578 = vunpack.c.l.b16 %v8443
        %v8579 = vunpack.c.l.b16 %v8444
        %v8580 = vunpack.c.l.b16 %v8445
        %v8581 = vunpack.c.l.b16 %v8446
        %v8582 = vunpack.c.l.b16 %v8447
        %v8583 = vunpack.c.l.b16 %v8448
        %v8584 = vunpack.c.l.b16 %v8449
        %v8585 = vunpack.c.l.b16 %v8450
        %v8586 = vunpack.c.l.b16 %v8451
        %v8587 = vunpack.c.l.b16 %v8452
        %v8588 = vunpack.c.l.b16 %v8453
        %v8589 = vunpack.c.l.b16 %v8454
        %v8590 = vunpack.c.l.b16 %v8455
        %v8591 = vunpack.c.l.b16 %v8456
        %v8592 = vunpack.c.l.b16 %v8457
        %v8593 = vunpack.c.l.b16 %v8458
        %v8594 = vunpack.c.l.b16 %v8459
        %v8595 = vunpack.c.l.b16 %v8460
        %v8596 = vunpack.c.l.b16 %v8461
        %v8597 = vunpack.c.l.b16 %v8462
        %v8598 = vpack.c.b16 %v8535, %v8534
        %v8599 = vpack.c.b16 %v8537, %v8536
        %v8600 = vpack.c.b16 %v8539, %v8538
        %v8601 = vpack.c.b16 %v8541, %v8540
        %v8602 = vpack.c.b16 %v8543, %v8542
        %v8603 = vpack.c.b16 %v8545, %v8544
        %v8604 = vpack.c.b16 %v8547, %v8546
        %v8605 = vpack.c.b16 %v8549, %v8548
        %v8606 = vpack.c.b16 %v8551, %v8550
        %v8607 = vpack.c.b16 %v8553, %v8552
        %v8608 = vpack.c.b16 %v8555, %v8554
        %v8609 = vpack.c.b16 %v8557, %v8556
        %v8610 = vpack.c.b16 %v8559, %v8558
        %v8611 = vpack.c.b16 %v8561, %v8560
        %v8612 = vpack.c.b16 %v8563, %v8562
        %v8613 = vpack.c.b16 %v8565, %v8564
        %v8614 = vpack.c.b16 %v8567, %v8566
        %v8615 = vpack.c.b16 %v8569, %v8568
        %v8616 = vpack.c.b16 %v8571, %v8570
        %v8617 = vpack.c.b16 %v8573, %v8572
        %v8618 = vpack.c.b16 %v8575, %v8574
        %v8619 = vpack.c.b16 %v8577, %v8576
        %v8620 = vpack.c.b16 %v8579, %v8578
        %v8621 = vpack.c.b16 %v8581, %v8580
        %v8622 = vpack.c.b16 %v8583, %v8582
        %v8623 = vpack.c.b16 %v8585, %v8584
        %v8624 = vpack.c.b16 %v8587, %v8586
        %v8625 = vpack.c.b16 %v8589, %v8588
        %v8626 = vpack.c.b16 %v8591, %v8590
        %v8627 = vpack.c.b16 %v8593, %v8592
        %v8628 = vpack.c.b16 %v8595, %v8594
        %v8629 = vpack.c.b16 %v8597, %v8596
        %8662 = vmatprep.subr.bf16.mxu0 0
        %8663 = vmatpush1.bf16.msra.mxu0 %v8605
        %8664 = vmatprep.subr.bf16.mxu0 0
        %8665 = vmatpush1.bf16.msra.mxu0 %v8604
        %8666 = vmatprep.subr.bf16.mxu0 0
        %8667 = vmatpush1.bf16.msra.mxu0 %v8603
        %8668 = vmatprep.subr.bf16.mxu0 0
        %8669 = vmatpush1.bf16.msra.mxu0 %v8602
        %8670 = vmatprep.subr.bf16.mxu0 0
        %8671 = vmatpush1.bf16.msra.mxu0 %v8601
        %8672 = vmatprep.subr.bf16.mxu0 0
        %8673 = vmatpush1.bf16.msra.mxu0 %v8600
        %8674 = vmatprep.subr.bf16.mxu0 0
        %8675 = vmatpush1.bf16.msra.mxu0 %v8599
        %8676 = vmatprep.subr.bf16.mxu0 0
        %8677 = vmatpush1.bf16.msra.mxu0 %v8598
        %8678 = vmatprep.subr.bf16.mxu0 0
        %8679 = vmatpush2.bf16.msra.mxu0 %v8613
        %8680 = vmatprep.subr.bf16.mxu0 0
        %8681 = vmatpush2.bf16.msra.mxu0 %v8612
        %8682 = vmatprep.subr.bf16.mxu0 0
        %8683 = vmatpush2.bf16.msra.mxu0 %v8611
        %8684 = vmatprep.subr.bf16.mxu0 0
        %8685 = vmatpush2.bf16.msra.mxu0 %v8610
        %8686 = vmatprep.subr.bf16.mxu0 0
        %8687 = vmatpush2.bf16.msra.mxu0 %v8609
        %8688 = vmatprep.subr.bf16.mxu0 0
        %8689 = vmatpush2.bf16.msra.mxu0 %v8608
        %8690 = vmatprep.subr.bf16.mxu0 0
        %8691 = vmatpush2.bf16.msra.mxu0 %v8607
        %8692 = vmatprep.subr.bf16.mxu0 0
        %8693 = vmatpush2.bf16.msra.mxu0 %v8606
        %8694 = vmatprep.mubr.bf16.mxu0 %v8368
        %8695 = vmatmul.mubr.bf16.gmra.mxu0 %v8367
        %v8696 = vpop.f32.mrf.mxu0
        %v8697 = vadd.f32 %v8468, %v8696
        %v8698 = vpop.f32.mrf.mxu0
        %v8699 = vpop.f32.mrf.mxu0
        %v8700 = vadd.f32 %v8468, %v8699
        %v8701 = vpop.f32.mrf.mxu0
        %8702 = vmatprep.mubr.bf16.mxu0 %v8372
        %8703 = vmatmul.mubr.bf16.gmra.mxu0 %v8371
        %v8704 = vpop.f32.mrf.mxu0
        %v8705 = vadd.f32 %v8468, %v8704
        %v8706 = vpop.f32.mrf.mxu0
        %v8707 = vpop.f32.mrf.mxu0
        %v8708 = vadd.f32 %v8468, %v8707
        %v8709 = vpop.f32.mrf.mxu0
        %8710 = vmatprep.mubr.bf16.mxu0 %v8376
        %8711 = vmatmul.mubr.bf16.gmra.mxu0 %v8375
        %v8712 = vpop.f32.mrf.mxu0
        %v8713 = vadd.f32 %v8468, %v8712
        %v8714 = vpop.f32.mrf.mxu0
        %v8715 = vpop.f32.mrf.mxu0
        %v8716 = vadd.f32 %v8468, %v8715
        %v8717 = vpop.f32.mrf.mxu0
        %8718 = vmatprep.mubr.bf16.mxu0 %v8380
        %8719 = vmatmul.mubr.bf16.gmra.mxu0 %v8379
        %v8720 = vpop.f32.mrf.mxu0
        %v8721 = vadd.f32 %v8468, %v8720
        %v8722 = vpop.f32.mrf.mxu0
        %v8723 = vpop.f32.mrf.mxu0
        %v8724 = vadd.f32 %v8468, %v8723
        %v8725 = vpop.f32.mrf.mxu0
        %8726 = vmatprep.mubr.bf16.mxu0 %v8384
        %8727 = vmatmul.mubr.bf16.gmra.mxu0 %v8383
        %v8728 = vpop.f32.mrf.mxu0
        %v8729 = vadd.f32 %v8468, %v8728
        %v8730 = vpop.f32.mrf.mxu0
        %v8731 = vpop.f32.mrf.mxu0
        %v8732 = vadd.f32 %v8468, %v8731
        %v8733 = vpop.f32.mrf.mxu0
        %8734 = vmatprep.mubr.bf16.mxu0 %v8388
        %8735 = vmatmul.mubr.bf16.gmra.mxu0 %v8387
        %v8736 = vpop.f32.mrf.mxu0
        %v8737 = vadd.f32 %v8468, %v8736
        %v8738 = vpop.f32.mrf.mxu0
        %v8739 = vpop.f32.mrf.mxu0
        %v8740 = vadd.f32 %v8468, %v8739
        %v8741 = vpop.f32.mrf.mxu0
        %8742 = vmatprep.mubr.bf16.mxu0 %v8392
        %8743 = vmatmul.mubr.bf16.gmra.mxu0 %v8391
        %v8744 = vpop.f32.mrf.mxu0
        %v8745 = vadd.f32 %v8468, %v8744
        %v8746 = vpop.f32.mrf.mxu0
        %v8747 = vpop.f32.mrf.mxu0
        %v8748 = vadd.f32 %v8468, %v8747
        %v8749 = vpop.f32.mrf.mxu0
        %8750 = vmatprep.mubr.bf16.mxu0 %v8396
        %8751 = vmatmul.mubr.bf16.gmra.mxu0 %v8395
        %v8752 = vpop.f32.mrf.mxu0
        %v8753 = vadd.f32 %v8468, %v8752
        %v8754 = vpop.f32.mrf.mxu0
        %v8755 = vpop.f32.mrf.mxu0
        %v8756 = vadd.f32 %v8468, %v8755
        %v8757 = vpop.f32.mrf.mxu0
        %8758 = vdwg.mxu0
        %8759 = vmatprep.subr.bf16.mxu0 0
        %8760 = vmatpush1.bf16.msra.mxu0 %v8621
        %8761 = vmatprep.subr.bf16.mxu0 0
        %8762 = vmatpush1.bf16.msra.mxu0 %v8620
        %8763 = vmatprep.subr.bf16.mxu0 0
        %8764 = vmatpush1.bf16.msra.mxu0 %v8619
        %8765 = vmatprep.subr.bf16.mxu0 0
        %8766 = vmatpush1.bf16.msra.mxu0 %v8618
        %8767 = vmatprep.subr.bf16.mxu0 0
        %8768 = vmatpush1.bf16.msra.mxu0 %v8617
        %8769 = vmatprep.subr.bf16.mxu0 0
        %8770 = vmatpush1.bf16.msra.mxu0 %v8616
        %8771 = vmatprep.subr.bf16.mxu0 0
        %8772 = vmatpush1.bf16.msra.mxu0 %v8615
        %8773 = vmatprep.subr.bf16.mxu0 0
        %8774 = vmatpush1.bf16.msra.mxu0 %v8614
        %8775 = vmatprep.subr.bf16.mxu0 0
        %8776 = vmatpush2.bf16.msra.mxu0 %v8629
        %8777 = vmatprep.subr.bf16.mxu0 0
        %8778 = vmatpush2.bf16.msra.mxu0 %v8628
        %8779 = vmatprep.subr.bf16.mxu0 0
        %8780 = vmatpush2.bf16.msra.mxu0 %v8627
        %8781 = vmatprep.subr.bf16.mxu0 0
        %8782 = vmatpush2.bf16.msra.mxu0 %v8626
        %8783 = vmatprep.subr.bf16.mxu0 0
        %8784 = vmatpush2.bf16.msra.mxu0 %v8625
        %8785 = vmatprep.subr.bf16.mxu0 0
        %8786 = vmatpush2.bf16.msra.mxu0 %v8624
        %8787 = vmatprep.subr.bf16.mxu0 0
        %8788 = vmatpush2.bf16.msra.mxu0 %v8623
        %8789 = vmatprep.subr.bf16.mxu0 0
        %8790 = vmatpush2.bf16.msra.mxu0 %v8622
        %8791 = vmatprep.mubr.bf16.mxu0 %v8370
        %8792 = vmatmul.mubr.bf16.gmra.mxu0 %v8369
        %v8793 = vpop.f32.mrf.mxu0
        %v8794 = vadd.f32 %v8697, %v8793
        %v8795 = vpop.f32.mrf.mxu0
        %v8796 = vpop.f32.mrf.mxu0
        %v8797 = vadd.f32 %v8700, %v8796
        %v8798 = vpop.f32.mrf.mxu0
        %8799 = vmatprep.mubr.bf16.mxu0 %v8374
        %8800 = vmatmul.mubr.bf16.gmra.mxu0 %v8373
        %v8801 = vpop.f32.mrf.mxu0
        %v8802 = vadd.f32 %v8705, %v8801
        %v8803 = vpop.f32.mrf.mxu0
        %v8804 = vpop.f32.mrf.mxu0
        %v8805 = vadd.f32 %v8708, %v8804
        %v8806 = vpop.f32.mrf.mxu0
        %8807 = vmatprep.mubr.bf16.mxu0 %v8378
        %8808 = vmatmul.mubr.bf16.gmra.mxu0 %v8377
        %v8809 = vpop.f32.mrf.mxu0
        %v8810 = vadd.f32 %v8713, %v8809
        %v8811 = vpop.f32.mrf.mxu0
        %v8812 = vpop.f32.mrf.mxu0
        %v8813 = vadd.f32 %v8716, %v8812
        %v8814 = vpop.f32.mrf.mxu0
        %8815 = vmatprep.mubr.bf16.mxu0 %v8382
        %8816 = vmatmul.mubr.bf16.gmra.mxu0 %v8381
        %v8817 = vpop.f32.mrf.mxu0
        %v8818 = vadd.f32 %v8721, %v8817
        %v8819 = vpop.f32.mrf.mxu0
        %v8820 = vpop.f32.mrf.mxu0
        %v8821 = vadd.f32 %v8724, %v8820
        %v8822 = vpop.f32.mrf.mxu0
        %8823 = vmatprep.mubr.bf16.mxu0 %v8386
        %8824 = vmatmul.mubr.bf16.gmra.mxu0 %v8385
        %v8825 = vpop.f32.mrf.mxu0
        %v8826 = vadd.f32 %v8729, %v8825
        %v8827 = vpop.f32.mrf.mxu0
        %v8828 = vpop.f32.mrf.mxu0
        %v8829 = vadd.f32 %v8732, %v8828
        %v8830 = vpop.f32.mrf.mxu0
        %8831 = vmatprep.mubr.bf16.mxu0 %v8390
        %8832 = vmatmul.mubr.bf16.gmra.mxu0 %v8389
        %v8833 = vpop.f32.mrf.mxu0
        %v8834 = vadd.f32 %v8737, %v8833
        %v8835 = vpop.f32.mrf.mxu0
        %v8836 = vpop.f32.mrf.mxu0
        %v8837 = vadd.f32 %v8740, %v8836
        %v8838 = vpop.f32.mrf.mxu0
        %8839 = vmatprep.mubr.bf16.mxu0 %v8394
        %8840 = vmatmul.mubr.bf16.gmra.mxu0 %v8393
        %v8841 = vpop.f32.mrf.mxu0
        %v8842 = vadd.f32 %v8745, %v8841
        %v8843 = vpop.f32.mrf.mxu0
        %v8844 = vpop.f32.mrf.mxu0
        %v8845 = vadd.f32 %v8748, %v8844
        %v8846 = vpop.f32.mrf.mxu0
        %8847 = vmatprep.mubr.bf16.mxu0 %v8398
        %8848 = vmatmul.mubr.bf16.gmra.mxu0 %v8397
        %v8849 = vpop.f32.mrf.mxu0
        %v8850 = vadd.f32 %v8753, %v8849
        %v8851 = vpop.f32.mrf.mxu0
        %v8852 = vpop.f32.mrf.mxu0
        %v8853 = vadd.f32 %v8756, %v8852
        %v8854 = vpop.f32.mrf.mxu0
        %8855 = vdwg.mxu0
        %v8856 = vmax.f32 %v8794, 0.0
        %v8857 = vmax.f32 %v8797, 0.0
        %v8858 = vmax.f32 %v8802, 0.0
        %v8859 = vmax.f32 %v8805, 0.0
        %v8860 = vmax.f32 %v8810, 0.0
        %v8861 = vmax.f32 %v8813, 0.0
        %v8862 = vmax.f32 %v8818, 0.0
        %v8863 = vmax.f32 %v8821, 0.0
        %v8864 = vmax.f32 %v8826, 0.0
        %v8865 = vmax.f32 %v8829, 0.0
        %v8866 = vmax.f32 %v8834, 0.0
        %v8867 = vmax.f32 %v8837, 0.0
        %v8868 = vmax.f32 %v8842, 0.0
        %v8869 = vmax.f32 %v8845, 0.0
        %v8870 = vmax.f32 %v8850, 0.0
        %v8871 = vmax.f32 %v8853, 0.0
        %v8872 = vpack.c.bf16 %v8857, %v8856
        %v8873 = vpack.c.bf16 %v8859, %v8858
        %v8874 = vpack.c.bf16 %v8861, %v8860
        %v8875 = vpack.c.bf16 %v8863, %v8862
        %v8876 = vpack.c.bf16 %v8865, %v8864
        %v8877 = vpack.c.bf16 %v8867, %v8866
        %v8878 = vpack.c.bf16 %v8869, %v8868
        %v8879 = vpack.c.bf16 %v8871, %v8870
        %v8880 = vld [vmem:[%s10] sm:$0xf]
        %v8881 = vld [vmem:[%s10 + $0x4] sm:$0xf]
        %v8882 = vld [vmem:[%s10 + $0x8] sm:$0xf]
        %v8883 = vld [vmem:[%s10 + $0xc] sm:$0xf]
        %v8884 = vld [vmem:[%s10 + $0x10] sm:$0xf]
        %v8885 = vld [vmem:[%s10 + $0x14] sm:$0xf]
        %v8886 = vld [vmem:[%s10 + $0x18] sm:$0xf]
        %v8887 = vld [vmem:[%s10 + $0x1c] sm:$0xf]
        %v8888 = vld [vmem:[%s10 + $0x20] sm:$0xf]
        %v8889 = vld [vmem:[%s10 + $0x24] sm:$0xf]
        %v8890 = vld [vmem:[%s10 + $0x28] sm:$0xf]
        %v8891 = vld [vmem:[%s10 + $0x2c] sm:$0xf]
        %v8892 = vld [vmem:[%s10 + $0x30] sm:$0xf]
        %v8893 = vld [vmem:[%s10 + $0x34] sm:$0xf]
        %v8894 = vld [vmem:[%s10 + $0x38] sm:$0xf]
        %v8895 = vld [vmem:[%s10 + $0x3c] sm:$0xf]
        %v8896 = vld [vmem:[%s11] sm:$0x1]
        %v8898 = vlaneseq
        %v8899 = vshrl.u32 %v8898, 7
        %v8900 = vsub.s32 0, %v8899
        %v8901 = vrot.slane %v8896, %v8900
        %v8919 = vunpack.c.l.b16 %v8880
        %v8920 = vunpack.c.l.b16 %v8881
        %v8921 = vunpack.c.l.b16 %v8882
        %v8922 = vunpack.c.l.b16 %v8883
        %v8923 = vunpack.c.l.b16 %v8884
        %v8924 = vunpack.c.l.b16 %v8885
        %v8925 = vunpack.c.l.b16 %v8886
        %v8926 = vunpack.c.l.b16 %v8887
        %v8927 = vunpack.c.l.b16 %v8888
        %v8928 = vunpack.c.l.b16 %v8889
        %v8929 = vunpack.c.l.b16 %v8890
        %v8930 = vunpack.c.l.b16 %v8891
        %v8931 = vunpack.c.l.b16 %v8892
        %v8932 = vunpack.c.l.b16 %v8893
        %v8933 = vunpack.c.l.b16 %v8894
        %v8934 = vunpack.c.l.b16 %v8895
        %v8935 = vpack.c.b16 %v8920, %v8919
        %v8936 = vpack.c.b16 %v8922, %v8921
        %v8937 = vpack.c.b16 %v8924, %v8923
        %v8938 = vpack.c.b16 %v8926, %v8925
        %v8939 = vpack.c.b16 %v8928, %v8927
        %v8940 = vpack.c.b16 %v8930, %v8929
        %v8941 = vpack.c.b16 %v8932, %v8931
        %v8942 = vpack.c.b16 %v8934, %v8933
        %8951 = vmatprep.subr.bf16.mxu0 0
        %8952 = vmatpush1.bf16.msra.mxu0 %v8942
        %8953 = vmatprep.subr.bf16.mxu0 0
        %8954 = vmatpush1.bf16.msra.mxu0 %v8941
        %8955 = vmatprep.subr.bf16.mxu0 0
        %8956 = vmatpush1.bf16.msra.mxu0 %v8940
        %8957 = vmatprep.subr.bf16.mxu0 0
        %8958 = vmatpush1.bf16.msra.mxu0 %v8939
        %8959 = vmatprep.subr.bf16.mxu0 0
        %8960 = vmatpush1.bf16.msra.mxu0 %v8938
        %8961 = vmatprep.subr.bf16.mxu0 0
        %8962 = vmatpush1.bf16.msra.mxu0 %v8937
        %8963 = vmatprep.subr.bf16.mxu0 0
        %8964 = vmatpush1.bf16.msra.mxu0 %v8936
        %8965 = vmatprep.subr.bf16.mxu0 0
        %8966 = vmatpush1.bf16.msra.mxu0 %v8935
        %8967 = vmatprep.subr.bf16.mxu0 0
        %8968 = vmatpush2.bf16.msra.mxu0 0
        %8969 = vmatprep.subr.bf16.mxu0 0
        %8970 = vmatpush2.bf16.msra.mxu0 0
        %8971 = vmatprep.subr.bf16.mxu0 0
        %8972 = vmatpush2.bf16.msra.mxu0 0
        %8973 = vmatprep.subr.bf16.mxu0 0
        %8974 = vmatpush2.bf16.msra.mxu0 0
        %8975 = vmatprep.subr.bf16.mxu0 0
        %8976 = vmatpush2.bf16.msra.mxu0 0
        %8977 = vmatprep.subr.bf16.mxu0 0
        %8978 = vmatpush2.bf16.msra.mxu0 0
        %8979 = vmatprep.subr.bf16.mxu0 0
        %8980 = vmatpush2.bf16.msra.mxu0 0
        %8981 = vmatprep.subr.bf16.mxu0 0
        %8982 = vmatpush2.bf16.msra.mxu0 0
        %8983 = vmatprep.mubr.bf16.mxu0 0
        %8984 = vmatmul.mubr.bf16.gmra.mxu0 %v8872
        %v8985 = vpop.f32.mrf.mxu0
        %v8986 = vadd.f32 %v8901, %v8985
        %v8987 = vpop.f32.mrf.mxu0
        %v8988 = vpop.f32.mrf.mxu0
        %v8989 = vadd.f32 %v8901, %v8988
        %v8990 = vpop.f32.mrf.mxu0
        %8991 = vmatprep.mubr.bf16.mxu0 0
        %8992 = vmatmul.mubr.bf16.gmra.mxu0 %v8873
        %v8993 = vpop.f32.mrf.mxu0
        %v8994 = vadd.f32 %v8901, %v8993
        %v8995 = vpop.f32.mrf.mxu0
        %v8996 = vpop.f32.mrf.mxu0
        %v8997 = vadd.f32 %v8901, %v8996
        %v8998 = vpop.f32.mrf.mxu0
        %8999 = vmatprep.mubr.bf16.mxu0 0
        %9000 = vmatmul.mubr.bf16.gmra.mxu0 %v8874
        %v9001 = vpop.f32.mrf.mxu0
        %v9002 = vadd.f32 %v8901, %v9001
        %v9003 = vpop.f32.mrf.mxu0
        %v9004 = vpop.f32.mrf.mxu0
        %v9005 = vadd.f32 %v8901, %v9004
        %v9006 = vpop.f32.mrf.mxu0
        %9007 = vmatprep.mubr.bf16.mxu0 0
        %9008 = vmatmul.mubr.bf16.gmra.mxu0 %v8875
        %v9009 = vpop.f32.mrf.mxu0
        %v9010 = vadd.f32 %v8901, %v9009
        %v9011 = vpop.f32.mrf.mxu0
        %v9012 = vpop.f32.mrf.mxu0
        %v9013 = vadd.f32 %v8901, %v9012
        %v9014 = vpop.f32.mrf.mxu0
        %9015 = vmatprep.mubr.bf16.mxu0 0
        %9016 = vmatmul.mubr.bf16.gmra.mxu0 %v8876
        %v9017 = vpop.f32.mrf.mxu0
        %v9018 = vadd.f32 %v8901, %v9017
        %v9019 = vpop.f32.mrf.mxu0
        %v9020 = vpop.f32.mrf.mxu0
        %v9021 = vadd.f32 %v8901, %v9020
        %v9022 = vpop.f32.mrf.mxu0
        %9023 = vmatprep.mubr.bf16.mxu0 0
        %9024 = vmatmul.mubr.bf16.gmra.mxu0 %v8877
        %v9025 = vpop.f32.mrf.mxu0
        %v9026 = vadd.f32 %v8901, %v9025
        %v9027 = vpop.f32.mrf.mxu0
        %v9028 = vpop.f32.mrf.mxu0
        %v9029 = vadd.f32 %v8901, %v9028
        %v9030 = vpop.f32.mrf.mxu0
        %9031 = vmatprep.mubr.bf16.mxu0 0
        %9032 = vmatmul.mubr.bf16.gmra.mxu0 %v8878
        %v9033 = vpop.f32.mrf.mxu0
        %v9034 = vadd.f32 %v8901, %v9033
        %v9035 = vpop.f32.mrf.mxu0
        %v9036 = vpop.f32.mrf.mxu0
        %v9037 = vadd.f32 %v8901, %v9036
        %v9038 = vpop.f32.mrf.mxu0
        %9039 = vmatprep.mubr.bf16.mxu0 0
        %9040 = vmatmul.mubr.bf16.gmra.mxu0 %v8879
        %v9041 = vpop.f32.mrf.mxu0
        %v9042 = vadd.f32 %v8901, %v9041
        %v9043 = vpop.f32.mrf.mxu0
        %v9044 = vpop.f32.mrf.mxu0
        %v9045 = vadd.f32 %v8901, %v9044
        %v9046 = vpop.f32.mrf.mxu0
        %9047 = vdwg.mxu0
        %9048 = vst [vmem:[%s488] sm:$0xff] %v8986
        %9049 = vst [vmem:[%s488 + $0x8] sm:$0xff] %v8989
        %9050 = vst [vmem:[%s488 + $0x10] sm:$0xff] %v8994
        %9051 = vst [vmem:[%s488 + $0x18] sm:$0xff] %v8997
        %9052 = vst [vmem:[%s488 + $0x20] sm:$0xff] %v9002
        %9053 = vst [vmem:[%s488 + $0x28] sm:$0xff] %v9005
        %9054 = vst [vmem:[%s488 + $0x30] sm:$0xff] %v9010
        %9055 = vst [vmem:[%s488 + $0x38] sm:$0xff] %v9013
        %9056 = vst [vmem:[%s488 + $0x40] sm:$0xff] %v9018
        %9057 = vst [vmem:[%s488 + $0x48] sm:$0xff] %v9021
        %9058 = vst [vmem:[%s488 + $0x50] sm:$0xff] %v9026
        %9059 = vst [vmem:[%s488 + $0x58] sm:$0xff] %v9029
        %9060 = vst [vmem:[%s488 + $0x60] sm:$0xff] %v9034
        %9061 = vst [vmem:[%s488 + $0x68] sm:$0xff] %v9037
        %9062 = vst [vmem:[%s488 + $0x70] sm:$0xff] %v9042
        %9063 = vst [vmem:[%s488 + $0x78] sm:$0xff] %v9045
        %s9064 = smul.u32 16, %s25
        %p9065 = scmp.lt.s32.totalorder %s9064, 31
        %s9066 = scalar_select %p9065, %s9064, 31
        %s9067 = smul.addr %s9066, 8
        %s9068 = scalar_lea.vmem %s12, %s9067
        // Predicated region
        $region77: #{encoder_forward.1} parent=67 // pred_check
          %p9069 = pneg %p310
        $region78: #{encoder_forward.1} parent=67 // pred_check_branch
          %9071 = sbr.rel (%p9069) target = $region80
        $region79: #{encoder_forward.1} parent=67 // pred_region
          %s9072 = smul.u32 16, %s25
        $region80: #{encoder_forward.1} parent=67 // pred_fallthru
          _
      $region68: #{encoder_forward.1} parent=5 // pred_fallthru
        _
      %p9073 = scmp.le.s32.totalorder 2, %s20
      // Predicated region
      $region81: #{encoder_forward.1} parent=5 // pred_check
        %p9074 = pneg %p9073
      $region82: #{encoder_forward.1} parent=5 // pred_check_branch
        %9076 = sbr.rel (%p9074) target = $region84
      $region83: #{encoder_forward.1} parent=5 // pred_region
        %s9077 = ssub.s32 %s20, 2
        // Predicated region
        $region85: #{encoder_forward.1} parent=83 // pred_check
          %p9078 = pneg %p316
        $region86: #{encoder_forward.1} parent=83 // pred_check_branch
          %9080 = sbr.rel (%p9078) target = $region88
        $region87: #{encoder_forward.1} parent=83 // pred_region
          %s9081 = smul.u32 16, %s26
          %p9082 = scmp.lt.s32.totalorder %s9081, 31
          %s9083 = scalar_select %p9082, %s9081, 31
          %s9084 = smul.addr %s9083, 8
          %s9085 = scalar_lea.vmem %s12, %s9084
        $region88: #{encoder_forward.1} parent=83 // pred_fallthru
          _
      $region84: #{encoder_forward.1} parent=5 // pred_fallthru
        _
    $region6: #{encoder_forward.1} parent=1 // loop_footer
      %s24 = sadd.s32 1, %s20
    $region7: #{encoder_forward.1} parent=1 // loop_footer_branch
      %19 = sbr.rel target = $region3
    $region8: #{encoder_forward.1} parent=1 // loop_exit
      _
    %9086 = vsyncpa [#allocation3], 1
    %s9087 = scalar_lea.sflag [#allocation3], 1
    %9088 = vsyncpa %s9087, 1
    %9089 = vsyncpa [#allocation5], 1

</llo_original>
